<compile_context>
chip_gen: v7x
topology: tpu7x:2x2x1
jax: 0.10.0
libtpu: 0.0.40
codegen_flags: <defaults>
</compile_context>

<pallas_src>
import jax
import jax.numpy as jnp
from jax.experimental import pallas as pl
from jax.experimental.pallas import tpu as pltpu


# ----------------------------------------------------------------------------
# Generic lane-tiled matmul + bias:  y = x @ w + b   (f32 accumulation/output).
# Used for: BiLSTM input projection (both directions fused along N), second
# LSTM input projection, and the final fc layer (tiled over vocab).
# ----------------------------------------------------------------------------
def _matmul_bias_kernel(x_ref, w_ref, b_ref, o_ref):
    o_ref[...] = (
        jnp.dot(x_ref[...].astype(w_ref.dtype), w_ref[...],
                preferred_element_type=jnp.float32)
        + b_ref[...]
    )


def matmul_bias(x, w, b):
    M, K = x.shape
    N = w.shape[1]
    tn = N                                   # fall back to a single full block
    for cand in (1024, 512, 256, 128):       # lane-dense tiles (multiples of 128)
        if N % cand == 0:
            tn = cand
            break
    return pl.pallas_call(
        _matmul_bias_kernel,
        out_shape=jax.ShapeDtypeStruct((M, N), jnp.float32),
        grid=(N // tn,),
        in_specs=[
            pl.BlockSpec((M, K), lambda j: (0, 0)),
            pl.BlockSpec((K, tn), lambda j: (0, j)),
            pl.BlockSpec((1, tn), lambda j: (0, j)),
        ],
        out_specs=pl.BlockSpec((M, tn), lambda j: (0, j)),
        compiler_params=pltpu.CompilerParams(dimension_semantics=("parallel",)),
    )(x, w, b)


# ----------------------------------------------------------------------------
# LSTM cell math on 128-aligned gate slices (PyTorch gate order i, f, g, o).
# ----------------------------------------------------------------------------
def _lstm_cell(g, c, hp):
    i = jax.nn.sigmoid(g[:, 0 * hp:1 * hp])
    f = jax.nn.sigmoid(g[:, 1 * hp:2 * hp])
    u = jnp.tanh(g[:, 2 * hp:3 * hp])
    o = jax.nn.sigmoid(g[:, 3 * hp:4 * hp])
    c_new = f * c + i * u
    return o * jnp.tanh(c_new), c_new


# ----------------------------------------------------------------------------
# Fused bidirectional recurrence.  gx holds the precomputed input-projection
# gates for BOTH directions: lanes [0:4Hp] fwd, [4Hp:8Hp] bwd.  Single kernel
# invocation; time loop inside; h/c carried in registers.
# ----------------------------------------------------------------------------
def _bilstm_recur_kernel(gx_ref, whh_f_ref, whh_b_ref, outf_ref, outb_ref):
    T, B, _ = gx_ref.shape
    Hp = whh_f_ref.shape[0]
    G = 4 * Hp
    wdt = whh_f_ref.dtype

    def step(t, carry):
        h_f, c_f, h_b, c_b = carry
        tb = T - 1 - t
        # Per-step critical path: only the small h @ W_hh matmuls.
        gf = gx_ref[t][:, 0:G] + jnp.dot(
            h_f.astype(wdt), whh_f_ref[...], preferred_element_type=jnp.float32)
        gb = gx_ref[tb][:, G:2 * G] + jnp.dot(
            h_b.astype(wdt), whh_b_ref[...], preferred_element_type=jnp.float32)
        h_f, c_f = _lstm_cell(gf, c_f, Hp)
        h_b, c_b = _lstm_cell(gb, c_b, Hp)
        outf_ref[pl.ds(t, 1)] = h_f[None].astype(outf_ref.dtype)
        outb_ref[pl.ds(tb, 1)] = h_b[None].astype(outb_ref.dtype)
        return h_f, c_f, h_b, c_b

    z = jnp.zeros((B, Hp), jnp.float32)
    jax.lax.fori_loop(0, T, step, (z, z, z, z), unroll=(T <= 16))


def bilstm_recurrence(gx, whh_f, whh_b):
    T, B, _ = gx.shape
    Hp = whh_f.shape[0]
    out_sds = jax.ShapeDtypeStruct((T, B, Hp), jnp.bfloat16)
    return pl.pallas_call(
        _bilstm_recur_kernel,
        out_shape=(out_sds, out_sds),
    )(gx, whh_f, whh_b)


# ----------------------------------------------------------------------------
# Unidirectional recurrence for the second LSTM (batch axis = 1 column).
# ----------------------------------------------------------------------------
def _lstm_recur_kernel(gx_ref, whh_ref, out_ref):
    T, N, _ = gx_ref.shape
    Hp = whh_ref.shape[0]
    wdt = whh_ref.dtype

    def step(t, carry):
        h, c = carry
        g = gx_ref[t] + jnp.dot(h.astype(wdt), whh_ref[...],
                                preferred_element_type=jnp.float32)
        h, c = _lstm_cell(g, c, Hp)
        out_ref[pl.ds(t, 1)] = h[None].astype(out_ref.dtype)
        return h, c

    z = jnp.zeros((N, Hp), jnp.float32)
    jax.lax.fori_loop(0, T, step, (z, z), unroll=(T <= 16))


def lstm_recurrence(gx, whh):
    T, N, _ = gx.shape
    Hp = whh.shape[0]
    return pl.pallas_call(
        _lstm_recur_kernel,
        out_shape=jax.ShapeDtypeStruct((T, N, Hp), jnp.float32),
    )(gx, whh)


# ----------------------------------------------------------------------------
# Forward pass matching LSTMModel.forward.
# ----------------------------------------------------------------------------
def lstm_model_forward(prep, token_ids):
    B, S = token_ids.shape
    V, _ = prep["embedding"].shape
    Hp1 = prep["bl_whh_f"].shape[0]
    Hp2 = prep["l2_whh"].shape[0]

    # Embedding lookup (gather) — plain-JAX glue; padding_idx=0 row is zero.
    emb = prep["embedding"][token_ids]                       # (B, S, E) bf16

    # --- bilstm: nn.LSTM(E, H1, batch_first=True, bidirectional=True) ---
    # Hoisted, time-parallel input projection for both directions (one matmul).
    x_flat = jnp.transpose(emb, (1, 0, 2)).reshape(S * B, -1)     # time-major rows
    gx = matmul_bias(x_flat, prep["bl_wih"], prep["bl_b"])        # (S*B, 8*Hp1)
    gx = gx.reshape(S, B, 8 * Hp1)
    out_f, out_b = bilstm_recurrence(gx, prep["bl_whh_f"], prep["bl_whh_b"])
    # out_f[s, b] / out_b[s, b]: fwd / bwd hidden at time s (padded lanes == 0).

    # --- lstm: nn.LSTM(2*H1, 100), batch_first=False ---
    # It reads the (B, S, 2H1) bilstm output as (time=B, batch=S, feat).  Only
    # batch column S-1 reaches last_hidden = x[:, -1, :], and LSTM batch
    # columns are independent, so only that column is computed (bit-identical).
    x2 = jnp.concatenate([out_f[S - 1], out_b[S - 1]], axis=-1)   # (B, 2*Hp1)
    gx2 = matmul_bias(x2, prep["l2_wih"], prep["l2_b"])           # (B, 4*Hp2)
    gx2 = gx2.reshape(B, 1, 4 * Hp2)
    h2 = lstm_recurrence(gx2, prep["l2_whh"])                     # (B, 1, Hp2)
    last_hidden = h2.reshape(B, Hp2)                              # padded lanes == 0

    # self.dropout(last_hidden) is unused by the reference forward (fc consumes
    # last_hidden directly); dropout is identity at inference anyway.
    logits_p = matmul_bias(last_hidden, prep["fc_w"], prep["fc_b"])  # (B, Vp)
    return logits_p[:, :V]


# ----------------------------------------------------------------------------
# Parameter construction (natural shapes) + lane-padded/fused preparation.
# ----------------------------------------------------------------------------
def init_params(key, vocab, emb_dim, lstm_dim, h2=100):
    ks = jax.random.split(key, 12)

    def u(k, shape, scale):
        return jax.random.uniform(k, shape, jnp.float32, -scale, scale)

    emb = jax.random.normal(ks[0], (vocab, emb_dim), jnp.float32)
    emb = emb.at[0].set(0.0)                                   # padding_idx=0

    k1 = 1.0 / (lstm_dim ** 0.5)
    k2 = 1.0 / (h2 ** 0.5)
    return {
        "embedding": emb,
        # bilstm — forward direction (weights stored transposed, bias = b_ih+b_hh)
        "bl_f_wih": u(ks[1], (emb_dim, 4 * lstm_dim), k1),
        "bl_f_whh": u(ks[2], (lstm_dim, 4 * lstm_dim), k1),
        "bl_f_b":   u(ks[3], (1, 4 * lstm_dim), k1),
        # bilstm — backward direction
        "bl_b_wih": u(ks[4], (emb_dim, 4 * lstm_dim), k1),
        "bl_b_whh": u(ks[5], (lstm_dim, 4 * lstm_dim), k1),
        "bl_b_b":   u(ks[6], (1, 4 * lstm_dim), k1),
        # second LSTM (input 2*lstm_dim, hidden 100)
        "l2_wih": u(ks[7], (2 * lstm_dim, 4 * h2), k2),
        "l2_whh": u(ks[8], (h2, 4 * h2), k2),
        "l2_b":   u(ks[9], (1, 4 * h2), k2),
        # fc: Linear(100, vocab) — stored transposed (100, V)
        "fc_w": u(ks[10], (h2, vocab), k2),
        "fc_b": u(ks[11], (1, vocab), k2),
    }


def _round_up(n, m):
    return ((n + m - 1) // m) * m


def _pad_gate_cols(w, h, hp):
    """(I, 4h) -> (I, 4hp): zero-pad each of the 4 gate blocks to hp lanes."""
    i_dim = w.shape[0]
    w4 = w.reshape(i_dim, 4, h)
    out = jnp.zeros((i_dim, 4, hp), w.dtype).at[:, :, :h].set(w4)
    return out.reshape(i_dim, 4 * hp)


def _pad_rows(w, rows):
    return jnp.zeros((rows, w.shape[1]), w.dtype).at[: w.shape[0]].set(w)


def prepare_params(p):
    """Pad hidden/gate/vocab lane dims to multiples of 128, fuse both BiLSTM
    input projections along the output dim, fold biases once, cast matmul
    weights to bf16.  Zero padding keeps padded hidden units identically 0."""
    V, _ = p["embedding"].shape
    H1 = p["bl_f_whh"].shape[0]
    H2 = p["l2_whh"].shape[0]
    Hp1 = _round_up(H1, 128)
    Hp2 = _round_up(H2, 128)
    Vp = _round_up(V, 128)
    bf16 = jnp.bfloat16

    bl_wih = jnp.concatenate(
        [_pad_gate_cols(p["bl_f_wih"], H1, Hp1),
         _pad_gate_cols(p["bl_b_wih"], H1, Hp1)], axis=1).astype(bf16)   # (E, 8Hp1)
    bl_b = jnp.concatenate(
        [_pad_gate_cols(p["bl_f_b"], H1, Hp1),
         _pad_gate_cols(p["bl_b_b"], H1, Hp1)], axis=1)                  # (1, 8Hp1)
    bl_whh_f = _pad_rows(_pad_gate_cols(p["bl_f_whh"], H1, Hp1), Hp1).astype(bf16)
    bl_whh_b = _pad_rows(_pad_gate_cols(p["bl_b_whh"], H1, Hp1), Hp1).astype(bf16)

    # Second LSTM: W_ih rows laid out to match the padded [fwd | bwd] lanes.
    w2 = _pad_gate_cols(p["l2_wih"], H2, Hp2)                            # (2H1, 4Hp2)
    l2_wih = jnp.zeros((2 * Hp1, 4 * Hp2), jnp.float32)
    l2_wih = l2_wih.at[:H1].set(w2[:H1]).at[Hp1:Hp1 + H1].set(w2[H1:]).astype(bf16)
    l2_whh = _pad_rows(_pad_gate_cols(p["l2_whh"], H2, Hp2), Hp2).astype(bf16)
    l2_b = _pad_gate_cols(p["l2_b"], H2, Hp2)                            # (1, 4Hp2)

    fc_w = jnp.zeros((Hp2, Vp), jnp.float32).at[:H2, :V].set(p["fc_w"]).astype(bf16)
    fc_b = jnp.zeros((1, Vp), jnp.float32).at[:, :V].set(p["fc_b"])

    return {
        "embedding": p["embedding"].astype(bf16),
        "bl_wih": bl_wih, "bl_b": bl_b,
        "bl_whh_f": bl_whh_f, "bl_whh_b": bl_whh_b,
        "l2_wih": l2_wih, "l2_b": l2_b, "l2_whh": l2_whh,
        "fc_w": fc_w, "fc_b": fc_b,
    }


if __name__ == "__main__":
    VOCAB, EMB_DIM, LSTM_DIM = 50, 16, 32
    B, S = 2, 8

    key = jax.random.PRNGKey(0)
    params = init_params(key, VOCAB, EMB_DIM, LSTM_DIM)
    prep = prepare_params(params)
    token_ids = jax.random.randint(jax.random.fold_in(key, 999),
                                   (B, S), 0, VOCAB, dtype=jnp.int32)

    logits = jax.jit(lstm_model_forward)(prep, token_ids)
    logits = jax.block_until_ready(logits)
    assert logits.shape == (B, VOCAB) and logits.dtype == jnp.float32
    print("KERNEL_OK")
</pallas_src>

<mosaic_0001>
module attributes {stable_mosaic.version = 11 : i64} {
  func.func @_matmul_bias_kernel(%arg0: i32, %arg1: memref<16x16xbf16, #tpu.memory_space<vmem>>, %arg2: memref<16x1024xbf16, #tpu.memory_space<vmem>>, %arg3: memref<1x1024xf32, #tpu.memory_space<vmem>>, %arg4: memref<16x1024xf32, #tpu.memory_space<vmem>>) attributes {dimension_semantics = [#tpu.dimension_semantics<parallel>], iteration_bounds = array<i64: 1>, scalar_prefetch = 0 : i64, scratch_operands = 0 : i64, tpu.core_type = #tpu.core_type<tc>, window_params = [{pipeline_mode = #tpu.pipeline_mode<synchronous>, transform_indices = @transform_0, window_bounds = array<i64: 16, 16>}, {transform_indices = @transform_1, window_bounds = array<i64: 16, 1024>}, {transform_indices = @transform_2, window_bounds = array<i64: 1, 1024>}, {transform_indices = @transform_3, window_bounds = array<i64: 16, 1024>}]} {
    %c0 = arith.constant 0 : index
    %c0_0 = arith.constant 0 : index
    %0 = vector.load %arg1[%c0, %c0_0] : memref<16x16xbf16, #tpu.memory_space<vmem>>, vector<16x16xbf16>
    %c0_1 = arith.constant 0 : index
    %c0_2 = arith.constant 0 : index
    %1 = vector.load %arg2[%c0_1, %c0_2] : memref<16x1024xbf16, #tpu.memory_space<vmem>>, vector<16x1024xbf16>
    %cst = arith.constant dense<0.000000e+00> : vector<16x1024xf32>
    %2 = tpu.matmul %0, %1, %cst {dimension_numbers = #tpu.dot_dimension_numbers<[1], [0], [0], [1], [0, 0, 1, 1], [], []>} : vector<16x16xbf16>, vector<16x1024xbf16>, vector<16x1024xf32> -> vector<16x1024xf32>
    %c0_3 = arith.constant 0 : index
    %c0_4 = arith.constant 0 : index
    %3 = vector.load %arg3[%c0_3, %c0_4] : memref<1x1024xf32, #tpu.memory_space<vmem>>, vector<1x1024xf32>
    %4 = vector.broadcast %3 : vector<1x1024xf32> to vector<16x1024xf32>
    %5 = arith.addf %2, %4 : vector<16x1024xf32>
    %c0_5 = arith.constant 0 : index
    %c0_6 = arith.constant 0 : index
    %6 = vector.load %arg4[%c0_5, %c0_6] : memref<16x1024xf32, #tpu.memory_space<vmem>>, vector<16x1024xf32>
    tpu.vector_store %arg4[%c0_5, %c0_6], %5 {strides = array<i32>} : memref<16x1024xf32, #tpu.memory_space<vmem>>, vector<16x1024xf32>,
    return
  }
  func.func @transform_0(%arg0: i32) -> (i32, i32) {
    %c0_i32 = arith.constant 0 : i32
    %c0_i32_0 = arith.constant 0 : i32
    %c0_i32_1 = arith.constant 0 : i32
    return %c0_i32, %c0_i32_0 : i32, i32
  }
  func.func @transform_1(%arg0: i32) -> (i32, i32) {
    %c0_i32 = arith.constant 0 : i32
    %c0_i32_0 = arith.constant 0 : i32
    return %c0_i32, %arg0 : i32, i32
  }
  func.func @transform_2(%arg0: i32) -> (i32, i32) {
    %c0_i32 = arith.constant 0 : i32
    %c0_i32_0 = arith.constant 0 : i32
    return %c0_i32, %arg0 : i32, i32
  }
  func.func @transform_3(%arg0: i32) -> (i32, i32) {
    %c0_i32 = arith.constant 0 : i32
    %c0_i32_0 = arith.constant 0 : i32
    return %c0_i32, %arg0 : i32, i32
  }
}

module attributes {stable_mosaic.version = 11 : i64} {
  func.func @_bilstm_recur_kernel(%arg0: memref<8x2x1024xf32, #tpu.memory_space<vmem>>, %arg1: memref<128x512xbf16, #tpu.memory_space<vmem>>, %arg2: memref<128x512xbf16, #tpu.memory_space<vmem>>, %arg3: memref<8x2x128xbf16, #tpu.memory_space<vmem>>, %arg4: memref<8x2x128xbf16, #tpu.memory_space<vmem>>) attributes {dimension_semantics = [], scalar_prefetch = 0 : i64, scratch_operands = 0 : i64, tpu.core_type = #tpu.core_type<tc>} {
    %cst = arith.constant 0.000000e+00 : f32
    %0 = vector.broadcast %cst : f32 to vector<2x128xf32>
    %c0_i32 = arith.constant 0 : i32
    %c7_i32 = arith.constant 7 : i32
    %1 = arith.subi %c7_i32, %c0_i32 : i32
    %2 = arith.index_cast %c0_i32 : i32 to index
    %c0 = arith.constant 0 : index
    %c0_0 = arith.constant 0 : index
    %3 = vector.load %arg0[%2, %c0, %c0_0] : memref<8x2x1024xf32, #tpu.memory_space<vmem>>, vector<1x2x1024xf32>
    %4 = vector.shape_cast %3 : vector<1x2x1024xf32> to vector<2x1024xf32>
    %5 = vector.extract_strided_slice %4 {offsets = [0, 0], sizes = [2, 512], strides = [1, 1]} : vector<2x1024xf32> to vector<2x512xf32>
    %6 = arith.truncf %0 : vector<2x128xf32> to vector<2x128xbf16>
    %c0_1 = arith.constant 0 : index
    %c0_2 = arith.constant 0 : index
    %7 = vector.load %arg1[%c0_1, %c0_2] : memref<128x512xbf16, #tpu.memory_space<vmem>>, vector<128x512xbf16>
    %cst_3 = arith.constant dense<0.000000e+00> : vector<2x512xf32>
    %8 = tpu.matmul %6, %7, %cst_3 {dimension_numbers = #tpu.dot_dimension_numbers<[1], [0], [0], [1], [0, 0, 1, 1], [], []>} : vector<2x128xbf16>, vector<128x512xbf16>, vector<2x512xf32> -> vector<2x512xf32>
    %9 = arith.addf %5, %8 : vector<2x512xf32>
    %10 = arith.index_cast %1 : i32 to index
    %c0_4 = arith.constant 0 : index
    %c0_5 = arith.constant 0 : index
    %11 = vector.load %arg0[%10, %c0_4, %c0_5] : memref<8x2x1024xf32, #tpu.memory_space<vmem>>, vector<1x2x1024xf32>
    %12 = vector.shape_cast %11 : vector<1x2x1024xf32> to vector<2x1024xf32>
    %13 = vector.extract_strided_slice %12 {offsets = [0, 512], sizes = [2, 512], strides = [1, 1]} : vector<2x1024xf32> to vector<2x512xf32>
    %14 = arith.truncf %0 : vector<2x128xf32> to vector<2x128xbf16>
    %c0_6 = arith.constant 0 : index
    %c0_7 = arith.constant 0 : index
    %15 = vector.load %arg2[%c0_6, %c0_7] : memref<128x512xbf16, #tpu.memory_space<vmem>>, vector<128x512xbf16>
    %cst_8 = arith.constant dense<0.000000e+00> : vector<2x512xf32>
    %16 = tpu.matmul %14, %15, %cst_8 {dimension_numbers = #tpu.dot_dimension_numbers<[1], [0], [0], [1], [0, 0, 1, 1], [], []>} : vector<2x128xbf16>, vector<128x512xbf16>, vector<2x512xf32> -> vector<2x512xf32>
    %17 = arith.addf %13, %16 : vector<2x512xf32>
    %18 = vector.extract_strided_slice %9 {offsets = [0, 0], sizes = [2, 128], strides = [1, 1]} : vector<2x512xf32> to vector<2x128xf32>
    %19 = arith.negf %18 : vector<2x128xf32>
    %20 = math.exp %19 : vector<2x128xf32>
    %cst_9 = arith.constant 1.000000e+00 : f32
    %21 = vector.broadcast %cst_9 : f32 to vector<2x128xf32>
    %22 = arith.addf %21, %20 : vector<2x128xf32>
    %23 = arith.divf %21, %22 : vector<2x128xf32>
    %24 = vector.extract_strided_slice %9 {offsets = [0, 128], sizes = [2, 128], strides = [1, 1]} : vector<2x512xf32> to vector<2x128xf32>
    %25 = arith.negf %24 : vector<2x128xf32>
    %26 = math.exp %25 : vector<2x128xf32>
    %cst_10 = arith.constant 1.000000e+00 : f32
    %27 = vector.broadcast %cst_10 : f32 to vector<2x128xf32>
    %28 = arith.addf %27, %26 : vector<2x128xf32>
    %29 = arith.divf %27, %28 : vector<2x128xf32>
    %30 = vector.extract_strided_slice %9 {offsets = [0, 256], sizes = [2, 128], strides = [1, 1]} : vector<2x512xf32> to vector<2x128xf32>
    %31 = math.tanh %30 : vector<2x128xf32>
    %32 = vector.extract_strided_slice %9 {offsets = [0, 384], sizes = [2, 128], strides = [1, 1]} : vector<2x512xf32> to vector<2x128xf32>
    %33 = arith.negf %32 : vector<2x128xf32>
    %34 = math.exp %33 : vector<2x128xf32>
    %cst_11 = arith.constant 1.000000e+00 : f32
    %35 = vector.broadcast %cst_11 : f32 to vector<2x128xf32>
    %36 = arith.addf %35, %34 : vector<2x128xf32>
    %37 = arith.divf %35, %36 : vector<2x128xf32>
    %38 = arith.mulf %29, %0 : vector<2x128xf32>
    %39 = arith.mulf %23, %31 : vector<2x128xf32>
    %40 = arith.addf %38, %39 : vector<2x128xf32>
    %41 = math.tanh %40 : vector<2x128xf32>
    %42 = arith.mulf %37, %41 : vector<2x128xf32>
    %43 = vector.extract_strided_slice %17 {offsets = [0, 0], sizes = [2, 128], strides = [1, 1]} : vector<2x512xf32> to vector<2x128xf32>
    %44 = arith.negf %43 : vector<2x128xf32>
    %45 = math.exp %44 : vector<2x128xf32>
    %cst_12 = arith.constant 1.000000e+00 : f32
    %46 = vector.broadcast %cst_12 : f32 to vector<2x128xf32>
    %47 = arith.addf %46, %45 : vector<2x128xf32>
    %48 = arith.divf %46, %47 : vector<2x128xf32>
    %49 = vector.extract_strided_slice %17 {offsets = [0, 128], sizes = [2, 128], strides = [1, 1]} : vector<2x512xf32> to vector<2x128xf32>
    %50 = arith.negf %49 : vector<2x128xf32>
    %51 = math.exp %50 : vector<2x128xf32>
    %cst_13 = arith.constant 1.000000e+00 : f32
    %52 = vector.broadcast %cst_13 : f32 to vector<2x128xf32>
    %53 = arith.addf %52, %51 : vector<2x128xf32>
    %54 = arith.divf %52, %53 : vector<2x128xf32>
    %55 = vector.extract_strided_slice %17 {offsets = [0, 256], sizes = [2, 128], strides = [1, 1]} : vector<2x512xf32> to vector<2x128xf32>
    %56 = math.tanh %55 : vector<2x128xf32>
    %57 = vector.extract_strided_slice %17 {offsets = [0, 384], sizes = [2, 128], strides = [1, 1]} : vector<2x512xf32> to vector<2x128xf32>
    %58 = arith.negf %57 : vector<2x128xf32>
    %59 = math.exp %58 : vector<2x128xf32>
    %cst_14 = arith.constant 1.000000e+00 : f32
    %60 = vector.broadcast %cst_14 : f32 to vector<2x128xf32>
    %61 = arith.addf %60, %59 : vector<2x128xf32>
    %62 = arith.divf %60, %61 : vector<2x128xf32>
    %63 = arith.mulf %54, %0 : vector<2x128xf32>
    %64 = arith.mulf %48, %56 : vector<2x128xf32>
    %65 = arith.addf %63, %64 : vector<2x128xf32>
    %66 = math.tanh %65 : vector<2x128xf32>
    %67 = arith.mulf %62, %66 : vector<2x128xf32>
    %68 = vector.shape_cast %42 : vector<2x128xf32> to vector<1x2x128xf32>
    %69 = arith.truncf %68 : vector<1x2x128xf32> to vector<1x2x128xbf16>
    %70 = arith.index_cast %c0_i32 : i32 to index
    %c0_15 = arith.constant 0 : index
    %c0_16 = arith.constant 0 : index
    %71 = vector.load %arg3[%70, %c0_15, %c0_16] : memref<8x2x128xbf16, #tpu.memory_space<vmem>>, vector<1x2x128xbf16>
    tpu.vector_store %arg3[%70, %c0_15, %c0_16], %69 {strides = array<i32>} : memref<8x2x128xbf16, #tpu.memory_space<vmem>>, vector<1x2x128xbf16>,
    %72 = vector.shape_cast %67 : vector<2x128xf32> to vector<1x2x128xf32>
    %73 = arith.truncf %72 : vector<1x2x128xf32> to vector<1x2x128xbf16>
    %74 = arith.index_cast %1 : i32 to index
    %c0_17 = arith.constant 0 : index
    %c0_18 = arith.constant 0 : index
    %75 = vector.load %arg4[%74, %c0_17, %c0_18] : memref<8x2x128xbf16, #tpu.memory_space<vmem>>, vector<1x2x128xbf16>
    tpu.vector_store %arg4[%74, %c0_17, %c0_18], %73 {strides = array<i32>} : memref<8x2x128xbf16, #tpu.memory_space<vmem>>, vector<1x2x128xbf16>,
    %c1_i32 = arith.constant 1 : i32
    %c7_i32_19 = arith.constant 7 : i32
    %76 = arith.subi %c7_i32_19, %c1_i32 : i32
    %77 = arith.index_cast %c1_i32 : i32 to index
    %c0_20 = arith.constant 0 : index
    %c0_21 = arith.constant 0 : index
    %78 = vector.load %arg0[%77, %c0_20, %c0_21] : memref<8x2x1024xf32, #tpu.memory_space<vmem>>, vector<1x2x1024xf32>
    %79 = vector.shape_cast %78 : vector<1x2x1024xf32> to vector<2x1024xf32>
    %80 = vector.extract_strided_slice %79 {offsets = [0, 0], sizes = [2, 512], strides = [1, 1]} : vector<2x1024xf32> to vector<2x512xf32>
    %81 = arith.truncf %42 : vector<2x128xf32> to vector<2x128xbf16>
    %c0_22 = arith.constant 0 : index
    %c0_23 = arith.constant 0 : index
    %82 = vector.load %arg1[%c0_22, %c0_23] : memref<128x512xbf16, #tpu.memory_space<vmem>>, vector<128x512xbf16>
    %cst_24 = arith.constant dense<0.000000e+00> : vector<2x512xf32>
    %83 = tpu.matmul %81, %82, %cst_24 {dimension_numbers = #tpu.dot_dimension_numbers<[1], [0], [0], [1], [0, 0, 1, 1], [], []>} : vector<2x128xbf16>, vector<128x512xbf16>, vector<2x512xf32> -> vector<2x512xf32>
    %84 = arith.addf %80, %83 : vector<2x512xf32>
    %85 = arith.index_cast %76 : i32 to index
    %c0_25 = arith.constant 0 : index
    %c0_26 = arith.constant 0 : index
    %86 = vector.load %arg0[%85, %c0_25, %c0_26] : memref<8x2x1024xf32, #tpu.memory_space<vmem>>, vector<1x2x1024xf32>
    %87 = vector.shape_cast %86 : vector<1x2x1024xf32> to vector<2x1024xf32>
    %88 = vector.extract_strided_slice %87 {offsets = [0, 512], sizes = [2, 512], strides = [1, 1]} : vector<2x1024xf32> to vector<2x512xf32>
    %89 = arith.truncf %67 : vector<2x128xf32> to vector<2x128xbf16>
    %c0_27 = arith.constant 0 : index
    %c0_28 = arith.constant 0 : index
    %90 = vector.load %arg2[%c0_27, %c0_28] : memref<128x512xbf16, #tpu.memory_space<vmem>>, vector<128x512xbf16>
    %cst_29 = arith.constant dense<0.000000e+00> : vector<2x512xf32>
    %91 = tpu.matmul %89, %90, %cst_29 {dimension_numbers = #tpu.dot_dimension_numbers<[1], [0], [0], [1], [0, 0, 1, 1], [], []>} : vector<2x128xbf16>, vector<128x512xbf16>, vector<2x512xf32> -> vector<2x512xf32>
    %92 = arith.addf %88, %91 : vector<2x512xf32>
    %93 = vector.extract_strided_slice %84 {offsets = [0, 0], sizes = [2, 128], strides = [1, 1]} : vector<2x512xf32> to vector<2x128xf32>
    %94 = arith.negf %93 : vector<2x128xf32>
    %95 = math.exp %94 : vector<2x128xf32>
    %cst_30 = arith.constant 1.000000e+00 : f32
    %96 = vector.broadcast %cst_30 : f32 to vector<2x128xf32>
    %97 = arith.addf %96, %95 : vector<2x128xf32>
    %98 = arith.divf %96, %97 : vector<2x128xf32>
    %99 = vector.extract_strided_slice %84 {offsets = [0, 128], sizes = [2, 128], strides = [1, 1]} : vector<2x512xf32> to vector<2x128xf32>
    %100 = arith.negf %99 : vector<2x128xf32>
    %101 = math.exp %100 : vector<2x128xf32>
    %cst_31 = arith.constant 1.000000e+00 : f32
    %102 = vector.broadcast %cst_31 : f32 to vector<2x128xf32>
    %103 = arith.addf %102, %101 : vector<2x128xf32>
    %104 = arith.divf %102, %103 : vector<2x128xf32>
    %105 = vector.extract_strided_slice %84 {offsets = [0, 256], sizes = [2, 128], strides = [1, 1]} : vector<2x512xf32> to vector<2x128xf32>
    %106 = math.tanh %105 : vector<2x128xf32>
    %107 = vector.extract_strided_slice %84 {offsets = [0, 384], sizes = [2, 128], strides = [1, 1]} : vector<2x512xf32> to vector<2x128xf32>
    %108 = arith.negf %107 : vector<2x128xf32>
    %109 = math.exp %108 : vector<2x128xf32>
    %cst_32 = arith.constant 1.000000e+00 : f32
    %110 = vector.broadcast %cst_32 : f32 to vector<2x128xf32>
    %111 = arith.addf %110, %109 : vector<2x128xf32>
    %112 = arith.divf %110, %111 : vector<2x128xf32>
    %113 = arith.mulf %104, %40 : vector<2x128xf32>
    %114 = arith.mulf %98, %106 : vector<2x128xf32>
    %115 = arith.addf %113, %114 : vector<2x128xf32>
    %116 = math.tanh %115 : vector<2x128xf32>
    %117 = arith.mulf %112, %116 : vector<2x128xf32>
    %118 = vector.extract_strided_slice %92 {offsets = [0, 0], sizes = [2, 128], strides = [1, 1]} : vector<2x512xf32> to vector<2x128xf32>
    %119 = arith.negf %118 : vector<2x128xf32>
    %120 = math.exp %119 : vector<2x128xf32>
    %cst_33 = arith.constant 1.000000e+00 : f32
    %121 = vector.broadcast %cst_33 : f32 to vector<2x128xf32>
    %122 = arith.addf %121, %120 : vector<2x128xf32>
    %123 = arith.divf %121, %122 : vector<2x128xf32>
    %124 = vector.extract_strided_slice %92 {offsets = [0, 128], sizes = [2, 128], strides = [1, 1]} : vector<2x512xf32> to vector<2x128xf32>
    %125 = arith.negf %124 : vector<2x128xf32>
    %126 = math.exp %125 : vector<2x128xf32>
    %cst_34 = arith.constant 1.000000e+00 : f32
    %127 = vector.broadcast %cst_34 : f32 to vector<2x128xf32>
    %128 = arith.addf %127, %126 : vector<2x128xf32>
    %129 = arith.divf %127, %128 : vector<2x128xf32>
    %130 = vector.extract_strided_slice %92 {offsets = [0, 256], sizes = [2, 128], strides = [1, 1]} : vector<2x512xf32> to vector<2x128xf32>
    %131 = math.tanh %130 : vector<2x128xf32>
    %132 = vector.extract_strided_slice %92 {offsets = [0, 384], sizes = [2, 128], strides = [1, 1]} : vector<2x512xf32> to vector<2x128xf32>
    %133 = arith.negf %132 : vector<2x128xf32>
    %134 = math.exp %133 : vector<2x128xf32>
    %cst_35 = arith.constant 1.000000e+00 : f32
    %135 = vector.broadcast %cst_35 : f32 to vector<2x128xf32>
    %136 = arith.addf %135, %134 : vector<2x128xf32>
    %137 = arith.divf %135, %136 : vector<2x128xf32>
    %138 = arith.mulf %129, %65 : vector<2x128xf32>
    %139 = arith.mulf %123, %131 : vector<2x128xf32>
    %140 = arith.addf %138, %139 : vector<2x128xf32>
    %141 = math.tanh %140 : vector<2x128xf32>
    %142 = arith.mulf %137, %141 : vector<2x128xf32>
    %143 = vector.shape_cast %117 : vector<2x128xf32> to vector<1x2x128xf32>
    %144 = arith.truncf %143 : vector<1x2x128xf32> to vector<1x2x128xbf16>
    %145 = arith.index_cast %c1_i32 : i32 to index
    %c0_36 = arith.constant 0 : index
    %c0_37 = arith.constant 0 : index
    %146 = vector.load %arg3[%145, %c0_36, %c0_37] : memref<8x2x128xbf16, #tpu.memory_space<vmem>>, vector<1x2x128xbf16>
    tpu.vector_store %arg3[%145, %c0_36, %c0_37], %144 {strides = array<i32>} : memref<8x2x128xbf16, #tpu.memory_space<vmem>>, vector<1x2x128xbf16>,
    %147 = vector.shape_cast %142 : vector<2x128xf32> to vector<1x2x128xf32>
    %148 = arith.truncf %147 : vector<1x2x128xf32> to vector<1x2x128xbf16>
    %149 = arith.index_cast %76 : i32 to index
    %c0_38 = arith.constant 0 : index
    %c0_39 = arith.constant 0 : index
    %150 = vector.load %arg4[%149, %c0_38, %c0_39] : memref<8x2x128xbf16, #tpu.memory_space<vmem>>, vector<1x2x128xbf16>
    tpu.vector_store %arg4[%149, %c0_38, %c0_39], %148 {strides = array<i32>} : memref<8x2x128xbf16, #tpu.memory_space<vmem>>, vector<1x2x128xbf16>,
    %c2_i32 = arith.constant 2 : i32
    %c7_i32_40 = arith.constant 7 : i32
    %151 = arith.subi %c7_i32_40, %c2_i32 : i32
    %152 = arith.index_cast %c2_i32 : i32 to index
    %c0_41 = arith.constant 0 : index
    %c0_42 = arith.constant 0 : index
    %153 = vector.load %arg0[%152, %c0_41, %c0_42] : memref<8x2x1024xf32, #tpu.memory_space<vmem>>, vector<1x2x1024xf32>
    %154 = vector.shape_cast %153 : vector<1x2x1024xf32> to vector<2x1024xf32>
    %155 = vector.extract_strided_slice %154 {offsets = [0, 0], sizes = [2, 512], strides = [1, 1]} : vector<2x1024xf32> to vector<2x512xf32>
    %156 = arith.truncf %117 : vector<2x128xf32> to vector<2x128xbf16>
    %c0_43 = arith.constant 0 : index
    %c0_44 = arith.constant 0 : index
    %157 = vector.load %arg1[%c0_43, %c0_44] : memref<128x512xbf16, #tpu.memory_space<vmem>>, vector<128x512xbf16>
    %cst_45 = arith.constant dense<0.000000e+00> : vector<2x512xf32>
    %158 = tpu.matmul %156, %157, %cst_45 {dimension_numbers = #tpu.dot_dimension_numbers<[1], [0], [0], [1], [0, 0, 1, 1], [], []>} : vector<2x128xbf16>, vector<128x512xbf16>, vector<2x512xf32> -> vector<2x512xf32>
    %159 = arith.addf %155, %158 : vector<2x512xf32>
    %160 = arith.index_cast %151 : i32 to index
    %c0_46 = arith.constant 0 : index
    %c0_47 = arith.constant 0 : index
    %161 = vector.load %arg0[%160, %c0_46, %c0_47] : memref<8x2x1024xf32, #tpu.memory_space<vmem>>, vector<1x2x1024xf32>
    %162 = vector.shape_cast %161 : vector<1x2x1024xf32> to vector<2x1024xf32>
    %163 = vector.extract_strided_slice %162 {offsets = [0, 512], sizes = [2, 512], strides = [1, 1]} : vector<2x1024xf32> to vector<2x512xf32>
    %164 = arith.truncf %142 : vector<2x128xf32> to vector<2x128xbf16>
    %c0_48 = arith.constant 0 : index
    %c0_49 = arith.constant 0 : index
    %165 = vector.load %arg2[%c0_48, %c0_49] : memref<128x512xbf16, #tpu.memory_space<vmem>>, vector<128x512xbf16>
    %cst_50 = arith.constant dense<0.000000e+00> : vector<2x512xf32>
    %166 = tpu.matmul %164, %165, %cst_50 {dimension_numbers = #tpu.dot_dimension_numbers<[1], [0], [0], [1], [0, 0, 1, 1], [], []>} : vector<2x128xbf16>, vector<128x512xbf16>, vector<2x512xf32> -> vector<2x512xf32>
    %167 = arith.addf %163, %166 : vector<2x512xf32>
    %168 = vector.extract_strided_slice %159 {offsets = [0, 0], sizes = [2, 128], strides = [1, 1]} : vector<2x512xf32> to vector<2x128xf32>
    %169 = arith.negf %168 : vector<2x128xf32>
    %170 = math.exp %169 : vector<2x128xf32>
    %cst_51 = arith.constant 1.000000e+00 : f32
    %171 = vector.broadcast %cst_51 : f32 to vector<2x128xf32>
    %172 = arith.addf %171, %170 : vector<2x128xf32>
    %173 = arith.divf %171, %172 : vector<2x128xf32>
    %174 = vector.extract_strided_slice %159 {offsets = [0, 128], sizes = [2, 128], strides = [1, 1]} : vector<2x512xf32> to vector<2x128xf32>
    %175 = arith.negf %174 : vector<2x128xf32>
    %176 = math.exp %175 : vector<2x128xf32>
    %cst_52 = arith.constant 1.000000e+00 : f32
    %177 = vector.broadcast %cst_52 : f32 to vector<2x128xf32>
    %178 = arith.addf %177, %176 : vector<2x128xf32>
    %179 = arith.divf %177, %178 : vector<2x128xf32>
    %180 = vector.extract_strided_slice %159 {offsets = [0, 256], sizes = [2, 128], strides = [1, 1]} : vector<2x512xf32> to vector<2x128xf32>
    %181 = math.tanh %180 : vector<2x128xf32>
    %182 = vector.extract_strided_slice %159 {offsets = [0, 384], sizes = [2, 128], strides = [1, 1]} : vector<2x512xf32> to vector<2x128xf32>
    %183 = arith.negf %182 : vector<2x128xf32>
    %184 = math.exp %183 : vector<2x128xf32>
    %cst_53 = arith.constant 1.000000e+00 : f32
    %185 = vector.broadcast %cst_53 : f32 to vector<2x128xf32>
    %186 = arith.addf %185, %184 : vector<2x128xf32>
    %187 = arith.divf %185, %186 : vector<2x128xf32>
    %188 = arith.mulf %179, %115 : vector<2x128xf32>
    %189 = arith.mulf %173, %181 : vector<2x128xf32>
    %190 = arith.addf %188, %189 : vector<2x128xf32>
    %191 = math.tanh %190 : vector<2x128xf32>
    %192 = arith.mulf %187, %191 : vector<2x128xf32>
    %193 = vector.extract_strided_slice %167 {offsets = [0, 0], sizes = [2, 128], strides = [1, 1]} : vector<2x512xf32> to vector<2x128xf32>
    %194 = arith.negf %193 : vector<2x128xf32>
    %195 = math.exp %194 : vector<2x128xf32>
    %cst_54 = arith.constant 1.000000e+00 : f32
    %196 = vector.broadcast %cst_54 : f32 to vector<2x128xf32>
    %197 = arith.addf %196, %195 : vector<2x128xf32>
    %198 = arith.divf %196, %197 : vector<2x128xf32>
    %199 = vector.extract_strided_slice %167 {offsets = [0, 128], sizes = [2, 128], strides = [1, 1]} : vector<2x512xf32> to vector<2x128xf32>
    %200 = arith.negf %199 : vector<2x128xf32>
    %201 = math.exp %200 : vector<2x128xf32>
    %cst_55 = arith.constant 1.000000e+00 : f32
    %202 = vector.broadcast %cst_55 : f32 to vector<2x128xf32>
    %203 = arith.addf %202, %201 : vector<2x128xf32>
    %204 = arith.divf %202, %203 : vector<2x128xf32>
    %205 = vector.extract_strided_slice %167 {offsets = [0, 256], sizes = [2, 128], strides = [1, 1]} : vector<2x512xf32> to vector<2x128xf32>
    %206 = math.tanh %205 : vector<2x128xf32>
    %207 = vector.extract_strided_slice %167 {offsets = [0, 384], sizes = [2, 128], strides = [1, 1]} : vector<2x512xf32> to vector<2x128xf32>
    %208 = arith.negf %207 : vector<2x128xf32>
    %209 = math.exp %208 : vector<2x128xf32>
    %cst_56 = arith.constant 1.000000e+00 : f32
    %210 = vector.broadcast %cst_56 : f32 to vector<2x128xf32>
    %211 = arith.addf %210, %209 : vector<2x128xf32>
    %212 = arith.divf %210, %211 : vector<2x128xf32>
    %213 = arith.mulf %204, %140 : vector<2x128xf32>
    %214 = arith.mulf %198, %206 : vector<2x128xf32>
    %215 = arith.addf %213, %214 : vector<2x128xf32>
    %216 = math.tanh %215 : vector<2x128xf32>
    %217 = arith.mulf %212, %216 : vector<2x128xf32>
    %218 = vector.shape_cast %192 : vector<2x128xf32> to vector<1x2x128xf32>
    %219 = arith.truncf %218 : vector<1x2x128xf32> to vector<1x2x128xbf16>
    %220 = arith.index_cast %c2_i32 : i32 to index
    %c0_57 = arith.constant 0 : index
    %c0_58 = arith.constant 0 : index
    %221 = vector.load %arg3[%220, %c0_57, %c0_58] : memref<8x2x128xbf16, #tpu.memory_space<vmem>>, vector<1x2x128xbf16>
    tpu.vector_store %arg3[%220, %c0_57, %c0_58], %219 {strides = array<i32>} : memref<8x2x128xbf16, #tpu.memory_space<vmem>>, vector<1x2x128xbf16>,
    %222 = vector.shape_cast %217 : vector<2x128xf32> to vector<1x2x128xf32>
    %223 = arith.truncf %222 : vector<1x2x128xf32> to vector<1x2x128xbf16>
    %224 = arith.index_cast %151 : i32 to index
    %c0_59 = arith.constant 0 : index
    %c0_60 = arith.constant 0 : index
    %225 = vector.load %arg4[%224, %c0_59, %c0_60] : memref<8x2x128xbf16, #tpu.memory_space<vmem>>, vector<1x2x128xbf16>
    tpu.vector_store %arg4[%224, %c0_59, %c0_60], %223 {strides = array<i32>} : memref<8x2x128xbf16, #tpu.memory_space<vmem>>, vector<1x2x128xbf16>,
    %c3_i32 = arith.constant 3 : i32
    %c7_i32_61 = arith.constant 7 : i32
    %226 = arith.subi %c7_i32_61, %c3_i32 : i32
    %227 = arith.index_cast %c3_i32 : i32 to index
    %c0_62 = arith.constant 0 : index
    %c0_63 = arith.constant 0 : index
    %228 = vector.load %arg0[%227, %c0_62, %c0_63] : memref<8x2x1024xf32, #tpu.memory_space<vmem>>, vector<1x2x1024xf32>
    %229 = vector.shape_cast %228 : vector<1x2x1024xf32> to vector<2x1024xf32>
    %230 = vector.extract_strided_slice %229 {offsets = [0, 0], sizes = [2, 512], strides = [1, 1]} : vector<2x1024xf32> to vector<2x512xf32>
    %231 = arith.truncf %192 : vector<2x128xf32> to vector<2x128xbf16>
    %c0_64 = arith.constant 0 : index
    %c0_65 = arith.constant 0 : index
    %232 = vector.load %arg1[%c0_64, %c0_65] : memref<128x512xbf16, #tpu.memory_space<vmem>>, vector<128x512xbf16>
    %cst_66 = arith.constant dense<0.000000e+00> : vector<2x512xf32>
    %233 = tpu.matmul %231, %232, %cst_66 {dimension_numbers = #tpu.dot_dimension_numbers<[1], [0], [0], [1], [0, 0, 1, 1], [], []>} : vector<2x128xbf16>, vector<128x512xbf16>, vector<2x512xf32> -> vector<2x512xf32>
    %234 = arith.addf %230, %233 : vector<2x512xf32>
    %235 = arith.index_cast %226 : i32 to index
    %c0_67 = arith.constant 0 : index
    %c0_68 = arith.constant 0 : index
    %236 = vector.load %arg0[%235, %c0_67, %c0_68] : memref<8x2x1024xf32, #tpu.memory_space<vmem>>, vector<1x2x1024xf32>
    %237 = vector.shape_cast %236 : vector<1x2x1024xf32> to vector<2x1024xf32>
    %238 = vector.extract_strided_slice %237 {offsets = [0, 512], sizes = [2, 512], strides = [1, 1]} : vector<2x1024xf32> to vector<2x512xf32>
    %239 = arith.truncf %217 : vector<2x128xf32> to vector<2x128xbf16>
    %c0_69 = arith.constant 0 : index
    %c0_70 = arith.constant 0 : index
    %240 = vector.load %arg2[%c0_69, %c0_70] : memref<128x512xbf16, #tpu.memory_space<vmem>>, vector<128x512xbf16>
    %cst_71 = arith.constant dense<0.000000e+00> : vector<2x512xf32>
    %241 = tpu.matmul %239, %240, %cst_71 {dimension_numbers = #tpu.dot_dimension_numbers<[1], [0], [0], [1], [0, 0, 1, 1], [], []>} : vector<2x128xbf16>, vector<128x512xbf16>, vector<2x512xf32> -> vector<2x512xf32>
    %242 = arith.addf %238, %241 : vector<2x512xf32>
    %243 = vector.extract_strided_slice %234 {offsets = [0, 0], sizes = [2, 128], strides = [1, 1]} : vector<2x512xf32> to vector<2x128xf32>
    %244 = arith.negf %243 : vector<2x128xf32>
    %245 = math.exp %244 : vector<2x128xf32>
    %cst_72 = arith.constant 1.000000e+00 : f32
    %246 = vector.broadcast %cst_72 : f32 to vector<2x128xf32>
    %247 = arith.addf %246, %245 : vector<2x128xf32>
    %248 = arith.divf %246, %247 : vector<2x128xf32>
    %249 = vector.extract_strided_slice %234 {offsets = [0, 128], sizes = [2, 128], strides = [1, 1]} : vector<2x512xf32> to vector<2x128xf32>
    %250 = arith.negf %249 : vector<2x128xf32>
    %251 = math.exp %250 : vector<2x128xf32>
    %cst_73 = arith.constant 1.000000e+00 : f32
    %252 = vector.broadcast %cst_73 : f32 to vector<2x128xf32>
    %253 = arith.addf %252, %251 : vector<2x128xf32>
    %254 = arith.divf %252, %253 : vector<2x128xf32>
    %255 = vector.extract_strided_slice %234 {offsets = [0, 256], sizes = [2, 128], strides = [1, 1]} : vector<2x512xf32> to vector<2x128xf32>
    %256 = math.tanh %255 : vector<2x128xf32>
    %257 = vector.extract_strided_slice %234 {offsets = [0, 384], sizes = [2, 128], strides = [1, 1]} : vector<2x512xf32> to vector<2x128xf32>
    %258 = arith.negf %257 : vector<2x128xf32>
    %259 = math.exp %258 : vector<2x128xf32>
    %cst_74 = arith.constant 1.000000e+00 : f32
    %260 = vector.broadcast %cst_74 : f32 to vector<2x128xf32>
    %261 = arith.addf %260, %259 : vector<2x128xf32>
    %262 = arith.divf %260, %261 : vector<2x128xf32>
    %263 = arith.mulf %254, %190 : vector<2x128xf32>
    %264 = arith.mulf %248, %256 : vector<2x128xf32>
    %265 = arith.addf %263, %264 : vector<2x128xf32>
    %266 = math.tanh %265 : vector<2x128xf32>
    %267 = arith.mulf %262, %266 : vector<2x128xf32>
    %268 = vector.extract_strided_slice %242 {offsets = [0, 0], sizes = [2, 128], strides = [1, 1]} : vector<2x512xf32> to vector<2x128xf32>
    %269 = arith.negf %268 : vector<2x128xf32>
    %270 = math.exp %269 : vector<2x128xf32>
    %cst_75 = arith.constant 1.000000e+00 : f32
    %271 = vector.broadcast %cst_75 : f32 to vector<2x128xf32>
    %272 = arith.addf %271, %270 : vector<2x128xf32>
    %273 = arith.divf %271, %272 : vector<2x128xf32>
    %274 = vector.extract_strided_slice %242 {offsets = [0, 128], sizes = [2, 128], strides = [1, 1]} : vector<2x512xf32> to vector<2x128xf32>
    %275 = arith.negf %274 : vector<2x128xf32>
    %276 = math.exp %275 : vector<2x128xf32>
    %cst_76 = arith.constant 1.000000e+00 : f32
    %277 = vector.broadcast %cst_76 : f32 to vector<2x128xf32>
    %278 = arith.addf %277, %276 : vector<2x128xf32>
    %279 = arith.divf %277, %278 : vector<2x128xf32>
    %280 = vector.extract_strided_slice %242 {offsets = [0, 256], sizes = [2, 128], strides = [1, 1]} : vector<2x512xf32> to vector<2x128xf32>
    %281 = math.tanh %280 : vector<2x128xf32>
    %282 = vector.extract_strided_slice %242 {offsets = [0, 384], sizes = [2, 128], strides = [1, 1]} : vector<2x512xf32> to vector<2x128xf32>
    %283 = arith.negf %282 : vector<2x128xf32>
    %284 = math.exp %283 : vector<2x128xf32>
    %cst_77 = arith.constant 1.000000e+00 : f32
    %285 = vector.broadcast %cst_77 : f32 to vector<2x128xf32>
    %286 = arith.addf %285, %284 : vector<2x128xf32>
    %287 = arith.divf %285, %286 : vector<2x128xf32>
    %288 = arith.mulf %279, %215 : vector<2x128xf32>
    %289 = arith.mulf %273, %281 : vector<2x128xf32>
    %290 = arith.addf %288, %289 : vector<2x128xf32>
    %291 = math.tanh %290 : vector<2x128xf32>
    %292 = arith.mulf %287, %291 : vector<2x128xf32>
    %293 = vector.shape_cast %267 : vector<2x128xf32> to vector<1x2x128xf32>
    %294 = arith.truncf %293 : vector<1x2x128xf32> to vector<1x2x128xbf16>
    %295 = arith.index_cast %c3_i32 : i32 to index
    %c0_78 = arith.constant 0 : index
    %c0_79 = arith.constant 0 : index
    %296 = vector.load %arg3[%295, %c0_78, %c0_79] : memref<8x2x128xbf16, #tpu.memory_space<vmem>>, vector<1x2x128xbf16>
    tpu.vector_store %arg3[%295, %c0_78, %c0_79], %294 {strides = array<i32>} : memref<8x2x128xbf16, #tpu.memory_space<vmem>>, vector<1x2x128xbf16>,
    %297 = vector.shape_cast %292 : vector<2x128xf32> to vector<1x2x128xf32>
    %298 = arith.truncf %297 : vector<1x2x128xf32> to vector<1x2x128xbf16>
    %299 = arith.index_cast %226 : i32 to index
    %c0_80 = arith.constant 0 : index
    %c0_81 = arith.constant 0 : index
    %300 = vector.load %arg4[%299, %c0_80, %c0_81] : memref<8x2x128xbf16, #tpu.memory_space<vmem>>, vector<1x2x128xbf16>
    tpu.vector_store %arg4[%299, %c0_80, %c0_81], %298 {strides = array<i32>} : memref<8x2x128xbf16, #tpu.memory_space<vmem>>, vector<1x2x128xbf16>,
    %c4_i32 = arith.constant 4 : i32
    %c7_i32_82 = arith.constant 7 : i32
    %301 = arith.subi %c7_i32_82, %c4_i32 : i32
    %302 = arith.index_cast %c4_i32 : i32 to index
    %c0_83 = arith.constant 0 : index
    %c0_84 = arith.constant 0 : index
    %303 = vector.load %arg0[%302, %c0_83, %c0_84] : memref<8x2x1024xf32, #tpu.memory_space<vmem>>, vector<1x2x1024xf32>
    %304 = vector.shape_cast %303 : vector<1x2x1024xf32> to vector<2x1024xf32>
    %305 = vector.extract_strided_slice %304 {offsets = [0, 0], sizes = [2, 512], strides = [1, 1]} : vector<2x1024xf32> to vector<2x512xf32>
    %306 = arith.truncf %267 : vector<2x128xf32> to vector<2x128xbf16>
    %c0_85 = arith.constant 0 : index
    %c0_86 = arith.constant 0 : index
    %307 = vector.load %arg1[%c0_85, %c0_86] : memref<128x512xbf16, #tpu.memory_space<vmem>>, vector<128x512xbf16>
    %cst_87 = arith.constant dense<0.000000e+00> : vector<2x512xf32>
    %308 = tpu.matmul %306, %307, %cst_87 {dimension_numbers = #tpu.dot_dimension_numbers<[1], [0], [0], [1], [0, 0, 1, 1], [], []>} : vector<2x128xbf16>, vector<128x512xbf16>, vector<2x512xf32> -> vector<2x512xf32>
    %309 = arith.addf %305, %308 : vector<2x512xf32>
    %310 = arith.index_cast %301 : i32 to index
    %c0_88 = arith.constant 0 : index
    %c0_89 = arith.constant 0 : index
    %311 = vector.load %arg0[%310, %c0_88, %c0_89] : memref<8x2x1024xf32, #tpu.memory_space<vmem>>, vector<1x2x1024xf32>
    %312 = vector.shape_cast %311 : vector<1x2x1024xf32> to vector<2x1024xf32>
    %313 = vector.extract_strided_slice %312 {offsets = [0, 512], sizes = [2, 512], strides = [1, 1]} : vector<2x1024xf32> to vector<2x512xf32>
    %314 = arith.truncf %292 : vector<2x128xf32> to vector<2x128xbf16>
    %c0_90 = arith.constant 0 : index
    %c0_91 = arith.constant 0 : index
    %315 = vector.load %arg2[%c0_90, %c0_91] : memref<128x512xbf16, #tpu.memory_space<vmem>>, vector<128x512xbf16>
    %cst_92 = arith.constant dense<0.000000e+00> : vector<2x512xf32>
    %316 = tpu.matmul %314, %315, %cst_92 {dimension_numbers = #tpu.dot_dimension_numbers<[1], [0], [0], [1], [0, 0, 1, 1], [], []>} : vector<2x128xbf16>, vector<128x512xbf16>, vector<2x512xf32> -> vector<2x512xf32>
    %317 = arith.addf %313, %316 : vector<2x512xf32>
    %318 = vector.extract_strided_slice %309 {offsets = [0, 0], sizes = [2, 128], strides = [1, 1]} : vector<2x512xf32> to vector<2x128xf32>
    %319 = arith.negf %318 : vector<2x128xf32>
    %320 = math.exp %319 : vector<2x128xf32>
    %cst_93 = arith.constant 1.000000e+00 : f32
    %321 = vector.broadcast %cst_93 : f32 to vector<2x128xf32>
    %322 = arith.addf %321, %320 : vector<2x128xf32>
    %323 = arith.divf %321, %322 : vector<2x128xf32>
    %324 = vector.extract_strided_slice %309 {offsets = [0, 128], sizes = [2, 128], strides = [1, 1]} : vector<2x512xf32> to vector<2x128xf32>
    %325 = arith.negf %324 : vector<2x128xf32>
    %326 = math.exp %325 : vector<2x128xf32>
    %cst_94 = arith.constant 1.000000e+00 : f32
    %327 = vector.broadcast %cst_94 : f32 to vector<2x128xf32>
    %328 = arith.addf %327, %326 : vector<2x128xf32>
    %329 = arith.divf %327, %328 : vector<2x128xf32>
    %330 = vector.extract_strided_slice %309 {offsets = [0, 256], sizes = [2, 128], strides = [1, 1]} : vector<2x512xf32> to vector<2x128xf32>
    %331 = math.tanh %330 : vector<2x128xf32>
    %332 = vector.extract_strided_slice %309 {offsets = [0, 384], sizes = [2, 128], strides = [1, 1]} : vector<2x512xf32> to vector<2x128xf32>
    %333 = arith.negf %332 : vector<2x128xf32>
    %334 = math.exp %333 : vector<2x128xf32>
    %cst_95 = arith.constant 1.000000e+00 : f32
    %335 = vector.broadcast %cst_95 : f32 to vector<2x128xf32>
    %336 = arith.addf %335, %334 : vector<2x128xf32>
    %337 = arith.divf %335, %336 : vector<2x128xf32>
    %338 = arith.mulf %329, %265 : vector<2x128xf32>
    %339 = arith.mulf %323, %331 : vector<2x128xf32>
    %340 = arith.addf %338, %339 : vector<2x128xf32>
    %341 = math.tanh %340 : vector<2x128xf32>
    %342 = arith.mulf %337, %341 : vector<2x128xf32>
    %343 = vector.extract_strided_slice %317 {offsets = [0, 0], sizes = [2, 128], strides = [1, 1]} : vector<2x512xf32> to vector<2x128xf32>
    %344 = arith.negf %343 : vector<2x128xf32>
    %345 = math.exp %344 : vector<2x128xf32>
    %cst_96 = arith.constant 1.000000e+00 : f32
    %346 = vector.broadcast %cst_96 : f32 to vector<2x128xf32>
    %347 = arith.addf %346, %345 : vector<2x128xf32>
    %348 = arith.divf %346, %347 : vector<2x128xf32>
    %349 = vector.extract_strided_slice %317 {offsets = [0, 128], sizes = [2, 128], strides = [1, 1]} : vector<2x512xf32> to vector<2x128xf32>
    %350 = arith.negf %349 : vector<2x128xf32>
    %351 = math.exp %350 : vector<2x128xf32>
    %cst_97 = arith.constant 1.000000e+00 : f32
    %352 = vector.broadcast %cst_97 : f32 to vector<2x128xf32>
    %353 = arith.addf %352, %351 : vector<2x128xf32>
    %354 = arith.divf %352, %353 : vector<2x128xf32>
    %355 = vector.extract_strided_slice %317 {offsets = [0, 256], sizes = [2, 128], strides = [1, 1]} : vector<2x512xf32> to vector<2x128xf32>
    %356 = math.tanh %355 : vector<2x128xf32>
    %357 = vector.extract_strided_slice %317 {offsets = [0, 384], sizes = [2, 128], strides = [1, 1]} : vector<2x512xf32> to vector<2x128xf32>
    %358 = arith.negf %357 : vector<2x128xf32>
    %359 = math.exp %358 : vector<2x128xf32>
    %cst_98 = arith.constant 1.000000e+00 : f32
    %360 = vector.broadcast %cst_98 : f32 to vector<2x128xf32>
    %361 = arith.addf %360, %359 : vector<2x128xf32>
    %362 = arith.divf %360, %361 : vector<2x128xf32>
    %363 = arith.mulf %354, %290 : vector<2x128xf32>
    %364 = arith.mulf %348, %356 : vector<2x128xf32>
    %365 = arith.addf %363, %364 : vector<2x128xf32>
    %366 = math.tanh %365 : vector<2x128xf32>
    %367 = arith.mulf %362, %366 : vector<2x128xf32>
    %368 = vector.shape_cast %342 : vector<2x128xf32> to vector<1x2x128xf32>
    %369 = arith.truncf %368 : vector<1x2x128xf32> to vector<1x2x128xbf16>
    %370 = arith.index_cast %c4_i32 : i32 to index
    %c0_99 = arith.constant 0 : index
    %c0_100 = arith.constant 0 : index
    %371 = vector.load %arg3[%370, %c0_99, %c0_100] : memref<8x2x128xbf16, #tpu.memory_space<vmem>>, vector<1x2x128xbf16>
    tpu.vector_store %arg3[%370, %c0_99, %c0_100], %369 {strides = array<i32>} : memref<8x2x128xbf16, #tpu.memory_space<vmem>>, vector<1x2x128xbf16>,
    %372 = vector.shape_cast %367 : vector<2x128xf32> to vector<1x2x128xf32>
    %373 = arith.truncf %372 : vector<1x2x128xf32> to vector<1x2x128xbf16>
    %374 = arith.index_cast %301 : i32 to index
    %c0_101 = arith.constant 0 : index
    %c0_102 = arith.constant 0 : index
    %375 = vector.load %arg4[%374, %c0_101, %c0_102] : memref<8x2x128xbf16, #tpu.memory_space<vmem>>, vector<1x2x128xbf16>
    tpu.vector_store %arg4[%374, %c0_101, %c0_102], %373 {strides = array<i32>} : memref<8x2x128xbf16, #tpu.memory_space<vmem>>, vector<1x2x128xbf16>,
    %c5_i32 = arith.constant 5 : i32
    %c7_i32_103 = arith.constant 7 : i32
    %376 = arith.subi %c7_i32_103, %c5_i32 : i32
    %377 = arith.index_cast %c5_i32 : i32 to index
    %c0_104 = arith.constant 0 : index
    %c0_105 = arith.constant 0 : index
    %378 = vector.load %arg0[%377, %c0_104, %c0_105] : memref<8x2x1024xf32, #tpu.memory_space<vmem>>, vector<1x2x1024xf32>
    %379 = vector.shape_cast %378 : vector<1x2x1024xf32> to vector<2x1024xf32>
    %380 = vector.extract_strided_slice %379 {offsets = [0, 0], sizes = [2, 512], strides = [1, 1]} : vector<2x1024xf32> to vector<2x512xf32>
    %381 = arith.truncf %342 : vector<2x128xf32> to vector<2x128xbf16>
    %c0_106 = arith.constant 0 : index
    %c0_107 = arith.constant 0 : index
    %382 = vector.load %arg1[%c0_106, %c0_107] : memref<128x512xbf16, #tpu.memory_space<vmem>>, vector<128x512xbf16>
    %cst_108 = arith.constant dense<0.000000e+00> : vector<2x512xf32>
    %383 = tpu.matmul %381, %382, %cst_108 {dimension_numbers = #tpu.dot_dimension_numbers<[1], [0], [0], [1], [0, 0, 1, 1], [], []>} : vector<2x128xbf16>, vector<128x512xbf16>, vector<2x512xf32> -> vector<2x512xf32>
    %384 = arith.addf %380, %383 : vector<2x512xf32>
    %385 = arith.index_cast %376 : i32 to index
    %c0_109 = arith.constant 0 : index
    %c0_110 = arith.constant 0 : index
    %386 = vector.load %arg0[%385, %c0_109, %c0_110] : memref<8x2x1024xf32, #tpu.memory_space<vmem>>, vector<1x2x1024xf32>
    %387 = vector.shape_cast %386 : vector<1x2x1024xf32> to vector<2x1024xf32>
    %388 = vector.extract_strided_slice %387 {offsets = [0, 512], sizes = [2, 512], strides = [1, 1]} : vector<2x1024xf32> to vector<2x512xf32>
    %389 = arith.truncf %367 : vector<2x128xf32> to vector<2x128xbf16>
    %c0_111 = arith.constant 0 : index
    %c0_112 = arith.constant 0 : index
    %390 = vector.load %arg2[%c0_111, %c0_112] : memref<128x512xbf16, #tpu.memory_space<vmem>>, vector<128x512xbf16>
    %cst_113 = arith.constant dense<0.000000e+00> : vector<2x512xf32>
    %391 = tpu.matmul %389, %390, %cst_113 {dimension_numbers = #tpu.dot_dimension_numbers<[1], [0], [0], [1], [0, 0, 1, 1], [], []>} : vector<2x128xbf16>, vector<128x512xbf16>, vector<2x512xf32> -> vector<2x512xf32>
    %392 = arith.addf %388, %391 : vector<2x512xf32>
    %393 = vector.extract_strided_slice %384 {offsets = [0, 0], sizes = [2, 128], strides = [1, 1]} : vector<2x512xf32> to vector<2x128xf32>
    %394 = arith.negf %393 : vector<2x128xf32>
    %395 = math.exp %394 : vector<2x128xf32>
    %cst_114 = arith.constant 1.000000e+00 : f32
    %396 = vector.broadcast %cst_114 : f32 to vector<2x128xf32>
    %397 = arith.addf %396, %395 : vector<2x128xf32>
    %398 = arith.divf %396, %397 : vector<2x128xf32>
    %399 = vector.extract_strided_slice %384 {offsets = [0, 128], sizes = [2, 128], strides = [1, 1]} : vector<2x512xf32> to vector<2x128xf32>
    %400 = arith.negf %399 : vector<2x128xf32>
    %401 = math.exp %400 : vector<2x128xf32>
    %cst_115 = arith.constant 1.000000e+00 : f32
    %402 = vector.broadcast %cst_115 : f32 to vector<2x128xf32>
    %403 = arith.addf %402, %401 : vector<2x128xf32>
    %404 = arith.divf %402, %403 : vector<2x128xf32>
    %405 = vector.extract_strided_slice %384 {offsets = [0, 256], sizes = [2, 128], strides = [1, 1]} : vector<2x512xf32> to vector<2x128xf32>
    %406 = math.tanh %405 : vector<2x128xf32>
    %407 = vector.extract_strided_slice %384 {offsets = [0, 384], sizes = [2, 128], strides = [1, 1]} : vector<2x512xf32> to vector<2x128xf32>
    %408 = arith.negf %407 : vector<2x128xf32>
    %409 = math.exp %408 : vector<2x128xf32>
    %cst_116 = arith.constant 1.000000e+00 : f32
    %410 = vector.broadcast %cst_116 : f32 to vector<2x128xf32>
    %411 = arith.addf %410, %409 : vector<2x128xf32>
    %412 = arith.divf %410, %411 : vector<2x128xf32>
    %413 = arith.mulf %404, %340 : vector<2x128xf32>
    %414 = arith.mulf %398, %406 : vector<2x128xf32>
    %415 = arith.addf %413, %414 : vector<2x128xf32>
    %416 = math.tanh %415 : vector<2x128xf32>
    %417 = arith.mulf %412, %416 : vector<2x128xf32>
    %418 = vector.extract_strided_slice %392 {offsets = [0, 0], sizes = [2, 128], strides = [1, 1]} : vector<2x512xf32> to vector<2x128xf32>
    %419 = arith.negf %418 : vector<2x128xf32>
    %420 = math.exp %419 : vector<2x128xf32>
    %cst_117 = arith.constant 1.000000e+00 : f32
    %421 = vector.broadcast %cst_117 : f32 to vector<2x128xf32>
    %422 = arith.addf %421, %420 : vector<2x128xf32>
    %423 = arith.divf %421, %422 : vector<2x128xf32>
    %424 = vector.extract_strided_slice %392 {offsets = [0, 128], sizes = [2, 128], strides = [1, 1]} : vector<2x512xf32> to vector<2x128xf32>
    %425 = arith.negf %424 : vector<2x128xf32>
    %426 = math.exp %425 : vector<2x128xf32>
    %cst_118 = arith.constant 1.000000e+00 : f32
    %427 = vector.broadcast %cst_118 : f32 to vector<2x128xf32>
    %428 = arith.addf %427, %426 : vector<2x128xf32>
    %429 = arith.divf %427, %428 : vector<2x128xf32>
    %430 = vector.extract_strided_slice %392 {offsets = [0, 256], sizes = [2, 128], strides = [1, 1]} : vector<2x512xf32> to vector<2x128xf32>
    %431 = math.tanh %430 : vector<2x128xf32>
    %432 = vector.extract_strided_slice %392 {offsets = [0, 384], sizes = [2, 128], strides = [1, 1]} : vector<2x512xf32> to vector<2x128xf32>
    %433 = arith.negf %432 : vector<2x128xf32>
    %434 = math.exp %433 : vector<2x128xf32>
    %cst_119 = arith.constant 1.000000e+00 : f32
    %435 = vector.broadcast %cst_119 : f32 to vector<2x128xf32>
    %436 = arith.addf %435, %434 : vector<2x128xf32>
    %437 = arith.divf %435, %436 : vector<2x128xf32>
    %438 = arith.mulf %429, %365 : vector<2x128xf32>
    %439 = arith.mulf %423, %431 : vector<2x128xf32>
    %440 = arith.addf %438, %439 : vector<2x128xf32>
    %441 = math.tanh %440 : vector<2x128xf32>
    %442 = arith.mulf %437, %441 : vector<2x128xf32>
    %443 = vector.shape_cast %417 : vector<2x128xf32> to vector<1x2x128xf32>
    %444 = arith.truncf %443 : vector<1x2x128xf32> to vector<1x2x128xbf16>
    %445 = arith.index_cast %c5_i32 : i32 to index
    %c0_120 = arith.constant 0 : index
    %c0_121 = arith.constant 0 : index
    %446 = vector.load %arg3[%445, %c0_120, %c0_121] : memref<8x2x128xbf16, #tpu.memory_space<vmem>>, vector<1x2x128xbf16>
    tpu.vector_store %arg3[%445, %c0_120, %c0_121], %444 {strides = array<i32>} : memref<8x2x128xbf16, #tpu.memory_space<vmem>>, vector<1x2x128xbf16>,
    %447 = vector.shape_cast %442 : vector<2x128xf32> to vector<1x2x128xf32>
    %448 = arith.truncf %447 : vector<1x2x128xf32> to vector<1x2x128xbf16>
    %449 = arith.index_cast %376 : i32 to index
    %c0_122 = arith.constant 0 : index
    %c0_123 = arith.constant 0 : index
    %450 = vector.load %arg4[%449, %c0_122, %c0_123] : memref<8x2x128xbf16, #tpu.memory_space<vmem>>, vector<1x2x128xbf16>
    tpu.vector_store %arg4[%449, %c0_122, %c0_123], %448 {strides = array<i32>} : memref<8x2x128xbf16, #tpu.memory_space<vmem>>, vector<1x2x128xbf16>,
    %c6_i32 = arith.constant 6 : i32
    %c7_i32_124 = arith.constant 7 : i32
    %451 = arith.subi %c7_i32_124, %c6_i32 : i32
    %452 = arith.index_cast %c6_i32 : i32 to index
    %c0_125 = arith.constant 0 : index
    %c0_126 = arith.constant 0 : index
    %453 = vector.load %arg0[%452, %c0_125, %c0_126] : memref<8x2x1024xf32, #tpu.memory_space<vmem>>, vector<1x2x1024xf32>
    %454 = vector.shape_cast %453 : vector<1x2x1024xf32> to vector<2x1024xf32>
    %455 = vector.extract_strided_slice %454 {offsets = [0, 0], sizes = [2, 512], strides = [1, 1]} : vector<2x1024xf32> to vector<2x512xf32>
    %456 = arith.truncf %417 : vector<2x128xf32> to vector<2x128xbf16>
    %c0_127 = arith.constant 0 : index
    %c0_128 = arith.constant 0 : index
    %457 = vector.load %arg1[%c0_127, %c0_128] : memref<128x512xbf16, #tpu.memory_space<vmem>>, vector<128x512xbf16>
    %cst_129 = arith.constant dense<0.000000e+00> : vector<2x512xf32>
    %458 = tpu.matmul %456, %457, %cst_129 {dimension_numbers = #tpu.dot_dimension_numbers<[1], [0], [0], [1], [0, 0, 1, 1], [], []>} : vector<2x128xbf16>, vector<128x512xbf16>, vector<2x512xf32> -> vector<2x512xf32>
    %459 = arith.addf %455, %458 : vector<2x512xf32>
    %460 = arith.index_cast %451 : i32 to index
    %c0_130 = arith.constant 0 : index
    %c0_131 = arith.constant 0 : index
    %461 = vector.load %arg0[%460, %c0_130, %c0_131] : memref<8x2x1024xf32, #tpu.memory_space<vmem>>, vector<1x2x1024xf32>
    %462 = vector.shape_cast %461 : vector<1x2x1024xf32> to vector<2x1024xf32>
    %463 = vector.extract_strided_slice %462 {offsets = [0, 512], sizes = [2, 512], strides = [1, 1]} : vector<2x1024xf32> to vector<2x512xf32>
    %464 = arith.truncf %442 : vector<2x128xf32> to vector<2x128xbf16>
    %c0_132 = arith.constant 0 : index
    %c0_133 = arith.constant 0 : index
    %465 = vector.load %arg2[%c0_132, %c0_133] : memref<128x512xbf16, #tpu.memory_space<vmem>>, vector<128x512xbf16>
    %cst_134 = arith.constant dense<0.000000e+00> : vector<2x512xf32>
    %466 = tpu.matmul %464, %465, %cst_134 {dimension_numbers = #tpu.dot_dimension_numbers<[1], [0], [0], [1], [0, 0, 1, 1], [], []>} : vector<2x128xbf16>, vector<128x512xbf16>, vector<2x512xf32> -> vector<2x512xf32>
    %467 = arith.addf %463, %466 : vector<2x512xf32>
    %468 = vector.extract_strided_slice %459 {offsets = [0, 0], sizes = [2, 128], strides = [1, 1]} : vector<2x512xf32> to vector<2x128xf32>
    %469 = arith.negf %468 : vector<2x128xf32>
    %470 = math.exp %469 : vector<2x128xf32>
    %cst_135 = arith.constant 1.000000e+00 : f32
    %471 = vector.broadcast %cst_135 : f32 to vector<2x128xf32>
    %472 = arith.addf %471, %470 : vector<2x128xf32>
    %473 = arith.divf %471, %472 : vector<2x128xf32>
    %474 = vector.extract_strided_slice %459 {offsets = [0, 128], sizes = [2, 128], strides = [1, 1]} : vector<2x512xf32> to vector<2x128xf32>
    %475 = arith.negf %474 : vector<2x128xf32>
    %476 = math.exp %475 : vector<2x128xf32>
    %cst_136 = arith.constant 1.000000e+00 : f32
    %477 = vector.broadcast %cst_136 : f32 to vector<2x128xf32>
    %478 = arith.addf %477, %476 : vector<2x128xf32>
    %479 = arith.divf %477, %478 : vector<2x128xf32>
    %480 = vector.extract_strided_slice %459 {offsets = [0, 256], sizes = [2, 128], strides = [1, 1]} : vector<2x512xf32> to vector<2x128xf32>
    %481 = math.tanh %480 : vector<2x128xf32>
    %482 = vector.extract_strided_slice %459 {offsets = [0, 384], sizes = [2, 128], strides = [1, 1]} : vector<2x512xf32> to vector<2x128xf32>
    %483 = arith.negf %482 : vector<2x128xf32>
    %484 = math.exp %483 : vector<2x128xf32>
    %cst_137 = arith.constant 1.000000e+00 : f32
    %485 = vector.broadcast %cst_137 : f32 to vector<2x128xf32>
    %486 = arith.addf %485, %484 : vector<2x128xf32>
    %487 = arith.divf %485, %486 : vector<2x128xf32>
    %488 = arith.mulf %479, %415 : vector<2x128xf32>
    %489 = arith.mulf %473, %481 : vector<2x128xf32>
    %490 = arith.addf %488, %489 : vector<2x128xf32>
    %491 = math.tanh %490 : vector<2x128xf32>
    %492 = arith.mulf %487, %491 : vector<2x128xf32>
    %493 = vector.extract_strided_slice %467 {offsets = [0, 0], sizes = [2, 128], strides = [1, 1]} : vector<2x512xf32> to vector<2x128xf32>
    %494 = arith.negf %493 : vector<2x128xf32>
    %495 = math.exp %494 : vector<2x128xf32>
    %cst_138 = arith.constant 1.000000e+00 : f32
    %496 = vector.broadcast %cst_138 : f32 to vector<2x128xf32>
    %497 = arith.addf %496, %495 : vector<2x128xf32>
    %498 = arith.divf %496, %497 : vector<2x128xf32>
    %499 = vector.extract_strided_slice %467 {offsets = [0, 128], sizes = [2, 128], strides = [1, 1]} : vector<2x512xf32> to vector<2x128xf32>
    %500 = arith.negf %499 : vector<2x128xf32>
    %501 = math.exp %500 : vector<2x128xf32>
    %cst_139 = arith.constant 1.000000e+00 : f32
    %502 = vector.broadcast %cst_139 : f32 to vector<2x128xf32>
    %503 = arith.addf %502, %501 : vector<2x128xf32>
    %504 = arith.divf %502, %503 : vector<2x128xf32>
    %505 = vector.extract_strided_slice %467 {offsets = [0, 256], sizes = [2, 128], strides = [1, 1]} : vector<2x512xf32> to vector<2x128xf32>
    %506 = math.tanh %505 : vector<2x128xf32>
    %507 = vector.extract_strided_slice %467 {offsets = [0, 384], sizes = [2, 128], strides = [1, 1]} : vector<2x512xf32> to vector<2x128xf32>
    %508 = arith.negf %507 : vector<2x128xf32>
    %509 = math.exp %508 : vector<2x128xf32>
    %cst_140 = arith.constant 1.000000e+00 : f32
    %510 = vector.broadcast %cst_140 : f32 to vector<2x128xf32>
    %511 = arith.addf %510, %509 : vector<2x128xf32>
    %512 = arith.divf %510, %511 : vector<2x128xf32>
    %513 = arith.mulf %504, %440 : vector<2x128xf32>
    %514 = arith.mulf %498, %506 : vector<2x128xf32>
    %515 = arith.addf %513, %514 : vector<2x128xf32>
    %516 = math.tanh %515 : vector<2x128xf32>
    %517 = arith.mulf %512, %516 : vector<2x128xf32>
    %518 = vector.shape_cast %492 : vector<2x128xf32> to vector<1x2x128xf32>
    %519 = arith.truncf %518 : vector<1x2x128xf32> to vector<1x2x128xbf16>
    %520 = arith.index_cast %c6_i32 : i32 to index
    %c0_141 = arith.constant 0 : index
    %c0_142 = arith.constant 0 : index
    %521 = vector.load %arg3[%520, %c0_141, %c0_142] : memref<8x2x128xbf16, #tpu.memory_space<vmem>>, vector<1x2x128xbf16>
    tpu.vector_store %arg3[%520, %c0_141, %c0_142], %519 {strides = array<i32>} : memref<8x2x128xbf16, #tpu.memory_space<vmem>>, vector<1x2x128xbf16>,
    %522 = vector.shape_cast %517 : vector<2x128xf32> to vector<1x2x128xf32>
    %523 = arith.truncf %522 : vector<1x2x128xf32> to vector<1x2x128xbf16>
    %524 = arith.index_cast %451 : i32 to index
    %c0_143 = arith.constant 0 : index
    %c0_144 = arith.constant 0 : index
    %525 = vector.load %arg4[%524, %c0_143, %c0_144] : memref<8x2x128xbf16, #tpu.memory_space<vmem>>, vector<1x2x128xbf16>
    tpu.vector_store %arg4[%524, %c0_143, %c0_144], %523 {strides = array<i32>} : memref<8x2x128xbf16, #tpu.memory_space<vmem>>, vector<1x2x128xbf16>,
    %c7_i32_145 = arith.constant 7 : i32
    %c7_i32_146 = arith.constant 7 : i32
    %526 = arith.subi %c7_i32_146, %c7_i32_145 : i32
    %527 = arith.index_cast %c7_i32_145 : i32 to index
    %c0_147 = arith.constant 0 : index
    %c0_148 = arith.constant 0 : index
    %528 = vector.load %arg0[%527, %c0_147, %c0_148] : memref<8x2x1024xf32, #tpu.memory_space<vmem>>, vector<1x2x1024xf32>
    %529 = vector.shape_cast %528 : vector<1x2x1024xf32> to vector<2x1024xf32>
    %530 = vector.extract_strided_slice %529 {offsets = [0, 0], sizes = [2, 512], strides = [1, 1]} : vector<2x1024xf32> to vector<2x512xf32>
    %531 = arith.truncf %492 : vector<2x128xf32> to vector<2x128xbf16>
    %c0_149 = arith.constant 0 : index
    %c0_150 = arith.constant 0 : index
    %532 = vector.load %arg1[%c0_149, %c0_150] : memref<128x512xbf16, #tpu.memory_space<vmem>>, vector<128x512xbf16>
    %cst_151 = arith.constant dense<0.000000e+00> : vector<2x512xf32>
    %533 = tpu.matmul %531, %532, %cst_151 {dimension_numbers = #tpu.dot_dimension_numbers<[1], [0], [0], [1], [0, 0, 1, 1], [], []>} : vector<2x128xbf16>, vector<128x512xbf16>, vector<2x512xf32> -> vector<2x512xf32>
    %534 = arith.addf %530, %533 : vector<2x512xf32>
    %535 = arith.index_cast %526 : i32 to index
    %c0_152 = arith.constant 0 : index
    %c0_153 = arith.constant 0 : index
    %536 = vector.load %arg0[%535, %c0_152, %c0_153] : memref<8x2x1024xf32, #tpu.memory_space<vmem>>, vector<1x2x1024xf32>
    %537 = vector.shape_cast %536 : vector<1x2x1024xf32> to vector<2x1024xf32>
    %538 = vector.extract_strided_slice %537 {offsets = [0, 512], sizes = [2, 512], strides = [1, 1]} : vector<2x1024xf32> to vector<2x512xf32>
    %539 = arith.truncf %517 : vector<2x128xf32> to vector<2x128xbf16>
    %c0_154 = arith.constant 0 : index
    %c0_155 = arith.constant 0 : index
    %540 = vector.load %arg2[%c0_154, %c0_155] : memref<128x512xbf16, #tpu.memory_space<vmem>>, vector<128x512xbf16>
    %cst_156 = arith.constant dense<0.000000e+00> : vector<2x512xf32>
    %541 = tpu.matmul %539, %540, %cst_156 {dimension_numbers = #tpu.dot_dimension_numbers<[1], [0], [0], [1], [0, 0, 1, 1], [], []>} : vector<2x128xbf16>, vector<128x512xbf16>, vector<2x512xf32> -> vector<2x512xf32>
    %542 = arith.addf %538, %541 : vector<2x512xf32>
    %543 = vector.extract_strided_slice %534 {offsets = [0, 0], sizes = [2, 128], strides = [1, 1]} : vector<2x512xf32> to vector<2x128xf32>
    %544 = arith.negf %543 : vector<2x128xf32>
    %545 = math.exp %544 : vector<2x128xf32>
    %cst_157 = arith.constant 1.000000e+00 : f32
    %546 = vector.broadcast %cst_157 : f32 to vector<2x128xf32>
    %547 = arith.addf %546, %545 : vector<2x128xf32>
    %548 = arith.divf %546, %547 : vector<2x128xf32>
    %549 = vector.extract_strided_slice %534 {offsets = [0, 128], sizes = [2, 128], strides = [1, 1]} : vector<2x512xf32> to vector<2x128xf32>
    %550 = arith.negf %549 : vector<2x128xf32>
    %551 = math.exp %550 : vector<2x128xf32>
    %cst_158 = arith.constant 1.000000e+00 : f32
    %552 = vector.broadcast %cst_158 : f32 to vector<2x128xf32>
    %553 = arith.addf %552, %551 : vector<2x128xf32>
    %554 = arith.divf %552, %553 : vector<2x128xf32>
    %555 = vector.extract_strided_slice %534 {offsets = [0, 256], sizes = [2, 128], strides = [1, 1]} : vector<2x512xf32> to vector<2x128xf32>
    %556 = math.tanh %555 : vector<2x128xf32>
    %557 = vector.extract_strided_slice %534 {offsets = [0, 384], sizes = [2, 128], strides = [1, 1]} : vector<2x512xf32> to vector<2x128xf32>
    %558 = arith.negf %557 : vector<2x128xf32>
    %559 = math.exp %558 : vector<2x128xf32>
    %cst_159 = arith.constant 1.000000e+00 : f32
    %560 = vector.broadcast %cst_159 : f32 to vector<2x128xf32>
    %561 = arith.addf %560, %559 : vector<2x128xf32>
    %562 = arith.divf %560, %561 : vector<2x128xf32>
    %563 = arith.mulf %554, %490 : vector<2x128xf32>
    %564 = arith.mulf %548, %556 : vector<2x128xf32>
    %565 = arith.addf %563, %564 : vector<2x128xf32>
    %566 = math.tanh %565 : vector<2x128xf32>
    %567 = arith.mulf %562, %566 : vector<2x128xf32>
    %568 = vector.extract_strided_slice %542 {offsets = [0, 0], sizes = [2, 128], strides = [1, 1]} : vector<2x512xf32> to vector<2x128xf32>
    %569 = arith.negf %568 : vector<2x128xf32>
    %570 = math.exp %569 : vector<2x128xf32>
    %cst_160 = arith.constant 1.000000e+00 : f32
    %571 = vector.broadcast %cst_160 : f32 to vector<2x128xf32>
    %572 = arith.addf %571, %570 : vector<2x128xf32>
    %573 = arith.divf %571, %572 : vector<2x128xf32>
    %574 = vector.extract_strided_slice %542 {offsets = [0, 128], sizes = [2, 128], strides = [1, 1]} : vector<2x512xf32> to vector<2x128xf32>
    %575 = arith.negf %574 : vector<2x128xf32>
    %576 = math.exp %575 : vector<2x128xf32>
    %cst_161 = arith.constant 1.000000e+00 : f32
    %577 = vector.broadcast %cst_161 : f32 to vector<2x128xf32>
    %578 = arith.addf %577, %576 : vector<2x128xf32>
    %579 = arith.divf %577, %578 : vector<2x128xf32>
    %580 = vector.extract_strided_slice %542 {offsets = [0, 256], sizes = [2, 128], strides = [1, 1]} : vector<2x512xf32> to vector<2x128xf32>
    %581 = math.tanh %580 : vector<2x128xf32>
    %582 = vector.extract_strided_slice %542 {offsets = [0, 384], sizes = [2, 128], strides = [1, 1]} : vector<2x512xf32> to vector<2x128xf32>
    %583 = arith.negf %582 : vector<2x128xf32>
    %584 = math.exp %583 : vector<2x128xf32>
    %cst_162 = arith.constant 1.000000e+00 : f32
    %585 = vector.broadcast %cst_162 : f32 to vector<2x128xf32>
    %586 = arith.addf %585, %584 : vector<2x128xf32>
    %587 = arith.divf %585, %586 : vector<2x128xf32>
    %588 = arith.mulf %579, %515 : vector<2x128xf32>
    %589 = arith.mulf %573, %581 : vector<2x128xf32>
    %590 = arith.addf %588, %589 : vector<2x128xf32>
    %591 = math.tanh %590 : vector<2x128xf32>
    %592 = arith.mulf %587, %591 : vector<2x128xf32>
    %593 = vector.shape_cast %567 : vector<2x128xf32> to vector<1x2x128xf32>
    %594 = arith.truncf %593 : vector<1x2x128xf32> to vector<1x2x128xbf16>
    %595 = arith.index_cast %c7_i32_145 : i32 to index
    %c0_163 = arith.constant 0 : index
    %c0_164 = arith.constant 0 : index
    %596 = vector.load %arg3[%595, %c0_163, %c0_164] : memref<8x2x128xbf16, #tpu.memory_space<vmem>>, vector<1x2x128xbf16>
    tpu.vector_store %arg3[%595, %c0_163, %c0_164], %594 {strides = array<i32>} : memref<8x2x128xbf16, #tpu.memory_space<vmem>>, vector<1x2x128xbf16>,
    %597 = vector.shape_cast %592 : vector<2x128xf32> to vector<1x2x128xf32>
    %598 = arith.truncf %597 : vector<1x2x128xf32> to vector<1x2x128xbf16>
    %599 = arith.index_cast %526 : i32 to index
    %c0_165 = arith.constant 0 : index
    %c0_166 = arith.constant 0 : index
    %600 = vector.load %arg4[%599, %c0_165, %c0_166] : memref<8x2x128xbf16, #tpu.memory_space<vmem>>, vector<1x2x128xbf16>
    tpu.vector_store %arg4[%599, %c0_165, %c0_166], %598 {strides = array<i32>} : memref<8x2x128xbf16, #tpu.memory_space<vmem>>, vector<1x2x128xbf16>,
    %c8_i32 = arith.constant 8 : i32
    return
  }
}

module attributes {stable_mosaic.version = 11 : i64} {
  func.func @_lstm_recur_kernel(%arg0: memref<2x1x512xf32, #tpu.memory_space<vmem>>, %arg1: memref<128x512xbf16, #tpu.memory_space<vmem>>, %arg2: memref<2x1x128xf32, #tpu.memory_space<vmem>>) attributes {dimension_semantics = [], scalar_prefetch = 0 : i64, scratch_operands = 0 : i64, tpu.core_type = #tpu.core_type<tc>} {
    %cst = arith.constant 0.000000e+00 : f32
    %0 = vector.broadcast %cst : f32 to vector<1x128xf32>
    %c0_i32 = arith.constant 0 : i32
    %1 = arith.index_cast %c0_i32 : i32 to index
    %c0 = arith.constant 0 : index
    %c0_0 = arith.constant 0 : index
    %2 = vector.load %arg0[%1, %c0, %c0_0] : memref<2x1x512xf32, #tpu.memory_space<vmem>>, vector<1x1x512xf32>
    %3 = vector.shape_cast %2 : vector<1x1x512xf32> to vector<1x512xf32>
    %4 = arith.truncf %0 : vector<1x128xf32> to vector<1x128xbf16>
    %c0_1 = arith.constant 0 : index
    %c0_2 = arith.constant 0 : index
    %5 = vector.load %arg1[%c0_1, %c0_2] : memref<128x512xbf16, #tpu.memory_space<vmem>>, vector<128x512xbf16>
    %cst_3 = arith.constant dense<0.000000e+00> : vector<1x512xf32>
    %6 = tpu.matmul %4, %5, %cst_3 {dimension_numbers = #tpu.dot_dimension_numbers<[1], [0], [0], [1], [0, 0, 1, 1], [], []>} : vector<1x128xbf16>, vector<128x512xbf16>, vector<1x512xf32> -> vector<1x512xf32>
    %7 = arith.addf %3, %6 : vector<1x512xf32>
    %8 = vector.extract_strided_slice %7 {offsets = [0, 0], sizes = [1, 128], strides = [1, 1]} : vector<1x512xf32> to vector<1x128xf32>
    %9 = arith.negf %8 : vector<1x128xf32>
    %10 = math.exp %9 : vector<1x128xf32>
    %cst_4 = arith.constant 1.000000e+00 : f32
    %11 = vector.broadcast %cst_4 : f32 to vector<1x128xf32>
    %12 = arith.addf %11, %10 : vector<1x128xf32>
    %13 = arith.divf %11, %12 : vector<1x128xf32>
    %14 = vector.extract_strided_slice %7 {offsets = [0, 128], sizes = [1, 128], strides = [1, 1]} : vector<1x512xf32> to vector<1x128xf32>
    %15 = arith.negf %14 : vector<1x128xf32>
    %16 = math.exp %15 : vector<1x128xf32>
    %cst_5 = arith.constant 1.000000e+00 : f32
    %17 = vector.broadcast %cst_5 : f32 to vector<1x128xf32>
    %18 = arith.addf %17, %16 : vector<1x128xf32>
    %19 = arith.divf %17, %18 : vector<1x128xf32>
    %20 = vector.extract_strided_slice %7 {offsets = [0, 256], sizes = [1, 128], strides = [1, 1]} : vector<1x512xf32> to vector<1x128xf32>
    %21 = math.tanh %20 : vector<1x128xf32>
    %22 = vector.extract_strided_slice %7 {offsets = [0, 384], sizes = [1, 128], strides = [1, 1]} : vector<1x512xf32> to vector<1x128xf32>
    %23 = arith.negf %22 : vector<1x128xf32>
    %24 = math.exp %23 : vector<1x128xf32>
    %cst_6 = arith.constant 1.000000e+00 : f32
    %25 = vector.broadcast %cst_6 : f32 to vector<1x128xf32>
    %26 = arith.addf %25, %24 : vector<1x128xf32>
    %27 = arith.divf %25, %26 : vector<1x128xf32>
    %28 = arith.mulf %19, %0 : vector<1x128xf32>
    %29 = arith.mulf %13, %21 : vector<1x128xf32>
    %30 = arith.addf %28, %29 : vector<1x128xf32>
    %31 = math.tanh %30 : vector<1x128xf32>
    %32 = arith.mulf %27, %31 : vector<1x128xf32>
    %33 = vector.shape_cast %32 : vector<1x128xf32> to vector<1x1x128xf32>
    %34 = arith.index_cast %c0_i32 : i32 to index
    %c0_7 = arith.constant 0 : index
    %c0_8 = arith.constant 0 : index
    %35 = vector.load %arg2[%34, %c0_7, %c0_8] : memref<2x1x128xf32, #tpu.memory_space<vmem>>, vector<1x1x128xf32>
    tpu.vector_store %arg2[%34, %c0_7, %c0_8], %33 {strides = array<i32>} : memref<2x1x128xf32, #tpu.memory_space<vmem>>, vector<1x1x128xf32>,
    %c1_i32 = arith.constant 1 : i32
    %36 = arith.index_cast %c1_i32 : i32 to index
    %c0_9 = arith.constant 0 : index
    %c0_10 = arith.constant 0 : index
    %37 = vector.load %arg0[%36, %c0_9, %c0_10] : memref<2x1x512xf32, #tpu.memory_space<vmem>>, vector<1x1x512xf32>
    %38 = vector.shape_cast %37 : vector<1x1x512xf32> to vector<1x512xf32>
    %39 = arith.truncf %32 : vector<1x128xf32> to vector<1x128xbf16>
    %c0_11 = arith.constant 0 : index
    %c0_12 = arith.constant 0 : index
    %40 = vector.load %arg1[%c0_11, %c0_12] : memref<128x512xbf16, #tpu.memory_space<vmem>>, vector<128x512xbf16>
    %cst_13 = arith.constant dense<0.000000e+00> : vector<1x512xf32>
    %41 = tpu.matmul %39, %40, %cst_13 {dimension_numbers = #tpu.dot_dimension_numbers<[1], [0], [0], [1], [0, 0, 1, 1], [], []>} : vector<1x128xbf16>, vector<128x512xbf16>, vector<1x512xf32> -> vector<1x512xf32>
    %42 = arith.addf %38, %41 : vector<1x512xf32>
    %43 = vector.extract_strided_slice %42 {offsets = [0, 0], sizes = [1, 128], strides = [1, 1]} : vector<1x512xf32> to vector<1x128xf32>
    %44 = arith.negf %43 : vector<1x128xf32>
    %45 = math.exp %44 : vector<1x128xf32>
    %cst_14 = arith.constant 1.000000e+00 : f32
    %46 = vector.broadcast %cst_14 : f32 to vector<1x128xf32>
    %47 = arith.addf %46, %45 : vector<1x128xf32>
    %48 = arith.divf %46, %47 : vector<1x128xf32>
    %49 = vector.extract_strided_slice %42 {offsets = [0, 128], sizes = [1, 128], strides = [1, 1]} : vector<1x512xf32> to vector<1x128xf32>
    %50 = arith.negf %49 : vector<1x128xf32>
    %51 = math.exp %50 : vector<1x128xf32>
    %cst_15 = arith.constant 1.000000e+00 : f32
    %52 = vector.broadcast %cst_15 : f32 to vector<1x128xf32>
    %53 = arith.addf %52, %51 : vector<1x128xf32>
    %54 = arith.divf %52, %53 : vector<1x128xf32>
    %55 = vector.extract_strided_slice %42 {offsets = [0, 256], sizes = [1, 128], strides = [1, 1]} : vector<1x512xf32> to vector<1x128xf32>
    %56 = math.tanh %55 : vector<1x128xf32>
    %57 = vector.extract_strided_slice %42 {offsets = [0, 384], sizes = [1, 128], strides = [1, 1]} : vector<1x512xf32> to vector<1x128xf32>
    %58 = arith.negf %57 : vector<1x128xf32>
    %59 = math.exp %58 : vector<1x128xf32>
    %cst_16 = arith.constant 1.000000e+00 : f32
    %60 = vector.broadcast %cst_16 : f32 to vector<1x128xf32>
    %61 = arith.addf %60, %59 : vector<1x128xf32>
    %62 = arith.divf %60, %61 : vector<1x128xf32>
    %63 = arith.mulf %54, %30 : vector<1x128xf32>
    %64 = arith.mulf %48, %56 : vector<1x128xf32>
    %65 = arith.addf %63, %64 : vector<1x128xf32>
    %66 = math.tanh %65 : vector<1x128xf32>
    %67 = arith.mulf %62, %66 : vector<1x128xf32>
    %68 = vector.shape_cast %67 : vector<1x128xf32> to vector<1x1x128xf32>
    %69 = arith.index_cast %c1_i32 : i32 to index
    %c0_17 = arith.constant 0 : index
    %c0_18 = arith.constant 0 : index
    %70 = vector.load %arg2[%69, %c0_17, %c0_18] : memref<2x1x128xf32, #tpu.memory_space<vmem>>, vector<1x1x128xf32>
    tpu.vector_store %arg2[%69, %c0_17, %c0_18], %68 {strides = array<i32>} : memref<2x1x128xf32, #tpu.memory_space<vmem>>, vector<1x1x128xf32>,
    %c2_i32 = arith.constant 2 : i32
    return
  }
}

module attributes {stable_mosaic.version = 11 : i64} {
  func.func @_matmul_bias_kernel(%arg0: i32, %arg1: memref<2x256xbf16, #tpu.memory_space<vmem>>, %arg2: memref<256x512xbf16, #tpu.memory_space<vmem>>, %arg3: memref<1x512xf32, #tpu.memory_space<vmem>>, %arg4: memref<2x512xf32, #tpu.memory_space<vmem>>) attributes {dimension_semantics = [#tpu.dimension_semantics<parallel>], iteration_bounds = array<i64: 1>, scalar_prefetch = 0 : i64, scratch_operands = 0 : i64, tpu.core_type = #tpu.core_type<tc>, window_params = [{pipeline_mode = #tpu.pipeline_mode<synchronous>, transform_indices = @transform_0, window_bounds = array<i64: 2, 256>}, {transform_indices = @transform_1, window_bounds = array<i64: 256, 512>}, {transform_indices = @transform_2, window_bounds = array<i64: 1, 512>}, {transform_indices = @transform_3, window_bounds = array<i64: 2, 512>}]} {
    %c0 = arith.constant 0 : index
    %c0_0 = arith.constant 0 : index
    %0 = vector.load %arg1[%c0, %c0_0] : memref<2x256xbf16, #tpu.memory_space<vmem>>, vector<2x256xbf16>
    %c0_1 = arith.constant 0 : index
    %c0_2 = arith.constant 0 : index
    %1 = vector.load %arg2[%c0_1, %c0_2] : memref<256x512xbf16, #tpu.memory_space<vmem>>, vector<256x512xbf16>
    %cst = arith.constant dense<0.000000e+00> : vector<2x512xf32>
    %2 = tpu.matmul %0, %1, %cst {dimension_numbers = #tpu.dot_dimension_numbers<[1], [0], [0], [1], [0, 0, 1, 1], [], []>} : vector<2x256xbf16>, vector<256x512xbf16>, vector<2x512xf32> -> vector<2x512xf32>
    %c0_3 = arith.constant 0 : index
    %c0_4 = arith.constant 0 : index
    %3 = vector.load %arg3[%c0_3, %c0_4] : memref<1x512xf32, #tpu.memory_space<vmem>>, vector<1x512xf32>
    %4 = vector.broadcast %3 : vector<1x512xf32> to vector<2x512xf32>
    %5 = arith.addf %2, %4 : vector<2x512xf32>
    %c0_5 = arith.constant 0 : index
    %c0_6 = arith.constant 0 : index
    %6 = vector.load %arg4[%c0_5, %c0_6] : memref<2x512xf32, #tpu.memory_space<vmem>>, vector<2x512xf32>
    tpu.vector_store %arg4[%c0_5, %c0_6], %5 {strides = array<i32>} : memref<2x512xf32, #tpu.memory_space<vmem>>, vector<2x512xf32>,
    return
  }
  func.func @transform_0(%arg0: i32) -> (i32, i32) {
    %c0_i32 = arith.constant 0 : i32
    %c0_i32_0 = arith.constant 0 : i32
    %c0_i32_1 = arith.constant 0 : i32
    return %c0_i32, %c0_i32_0 : i32, i32
  }
  func.func @transform_1(%arg0: i32) -> (i32, i32) {
    %c0_i32 = arith.constant 0 : i32
    %c0_i32_0 = arith.constant 0 : i32
    return %c0_i32, %arg0 : i32, i32
  }
  func.func @transform_2(%arg0: i32) -> (i32, i32) {
    %c0_i32 = arith.constant 0 : i32
    %c0_i32_0 = arith.constant 0 : i32
    return %c0_i32, %arg0 : i32, i32
  }
  func.func @transform_3(%arg0: i32) -> (i32, i32) {
    %c0_i32 = arith.constant 0 : i32
    %c0_i32_0 = arith.constant 0 : i32
    return %c0_i32, %arg0 : i32, i32
  }
}

module attributes {stable_mosaic.version = 11 : i64} {
  func.func @_matmul_bias_kernel(%arg0: i32, %arg1: memref<2x128xf32, #tpu.memory_space<vmem>>, %arg2: memref<128x128xbf16, #tpu.memory_space<vmem>>, %arg3: memref<1x128xf32, #tpu.memory_space<vmem>>, %arg4: memref<2x128xf32, #tpu.memory_space<vmem>>) attributes {dimension_semantics = [#tpu.dimension_semantics<parallel>], iteration_bounds = array<i64: 1>, scalar_prefetch = 0 : i64, scratch_operands = 0 : i64, tpu.core_type = #tpu.core_type<tc>, window_params = [{pipeline_mode = #tpu.pipeline_mode<synchronous>, transform_indices = @transform_0, window_bounds = array<i64: 2, 128>}, {transform_indices = @transform_1, window_bounds = array<i64: 128, 128>}, {transform_indices = @transform_2, window_bounds = array<i64: 1, 128>}, {transform_indices = @transform_3, window_bounds = array<i64: 2, 128>}]} {
    %c0 = arith.constant 0 : index
    %c0_0 = arith.constant 0 : index
    %0 = vector.load %arg1[%c0, %c0_0] : memref<2x128xf32, #tpu.memory_space<vmem>>, vector<2x128xf32>
    %1 = arith.truncf %0 : vector<2x128xf32> to vector<2x128xbf16>
    %c0_1 = arith.constant 0 : index
    %c0_2 = arith.constant 0 : index
    %2 = vector.load %arg2[%c0_1, %c0_2] : memref<128x128xbf16, #tpu.memory_space<vmem>>, vector<128x128xbf16>
    %cst = arith.constant dense<0.000000e+00> : vector<2x128xf32>
    %3 = tpu.matmul %1, %2, %cst {dimension_numbers = #tpu.dot_dimension_numbers<[1], [0], [0], [1], [0, 0, 1, 1], [], []>} : vector<2x128xbf16>, vector<128x128xbf16>, vector<2x128xf32> -> vector<2x128xf32>
    %c0_3 = arith.constant 0 : index
    %c0_4 = arith.constant 0 : index
    %4 = vector.load %arg3[%c0_3, %c0_4] : memref<1x128xf32, #tpu.memory_space<vmem>>, vector<1x128xf32>
    %5 = vector.broadcast %4 : vector<1x128xf32> to vector<2x128xf32>
    %6 = arith.addf %3, %5 : vector<2x128xf32>
    %c0_5 = arith.constant 0 : index
    %c0_6 = arith.constant 0 : index
    %7 = vector.load %arg4[%c0_5, %c0_6] : memref<2x128xf32, #tpu.memory_space<vmem>>, vector<2x128xf32>
    tpu.vector_store %arg4[%c0_5, %c0_6], %6 {strides = array<i32>} : memref<2x128xf32, #tpu.memory_space<vmem>>, vector<2x128xf32>,
    return
  }
  func.func @transform_0(%arg0: i32) -> (i32, i32) {
    %c0_i32 = arith.constant 0 : i32
    %c0_i32_0 = arith.constant 0 : i32
    %c0_i32_1 = arith.constant 0 : i32
    return %c0_i32, %c0_i32_0 : i32, i32
  }
  func.func @transform_1(%arg0: i32) -> (i32, i32) {
    %c0_i32 = arith.constant 0 : i32
    %c0_i32_0 = arith.constant 0 : i32
    return %c0_i32, %arg0 : i32, i32
  }
  func.func @transform_2(%arg0: i32) -> (i32, i32) {
    %c0_i32 = arith.constant 0 : i32
    %c0_i32_0 = arith.constant 0 : i32
    return %c0_i32, %arg0 : i32, i32
  }
  func.func @transform_3(%arg0: i32) -> (i32, i32) {
    %c0_i32 = arith.constant 0 : i32
    %c0_i32_0 = arith.constant 0 : i32
    return %c0_i32, %arg0 : i32, i32
  }
}

</mosaic_0001>

<llo_original>
// kernel: lstm_model_forward.5
$region0: #{lstm_model_forward.5}
  #allocation0 [shape = 'u32[]', space=smem, size = 0x4, offset = 0x4, fixed_abs, tag = 'smem constant byte address 0x4 - core index']
  #allocation1 [shape = 'u32[144,128]{1,0:T(1,128)}', space=vmem, size = 0x12000, scoped, tag = 'internal scratch']
  %s0 = inlined_call_operand.vmem [shape: bf16[16,16], index: 0, kind: input, shape index: {}]
  %s1 = inlined_call_operand.vmem [shape: bf16[16,1024], index: 1, kind: input, shape index: {}]
  %s2 = inlined_call_operand.vmem [shape: f32[1,1024], index: 2, kind: input, shape index: {}]
  %s3 = inlined_call_operand.vmem [shape: f32[16,1024], index: 3, kind: output, shape index: {}]
  %s4 = sld [smem:[#allocation0]]
  $region22: #{lstm_model_forward.5} parent=0
    _
  %s6 = ssub.s32 1, %s4
  %s7 = scalar_select 0, %s6, %s4
  // Predicated region
  $region2: #{lstm_model_forward.5} parent=0 // pred_check
    _
  $region3: #{lstm_model_forward.5} parent=0 // pred_check_branch
    %9 = sbr.rel (0) target = $region5
  $region4: #{lstm_model_forward.5} parent=0 // pred_region
    _
  $region5: #{lstm_model_forward.5} parent=0 // pred_fallthru
    _
  // Predicated region
  $region6: #{lstm_model_forward.5} parent=0 // pred_check
    _
  $region7: #{lstm_model_forward.5} parent=0 // pred_check_branch
    %11 = sbr.rel (0) target = $region9
  $region8: #{lstm_model_forward.5} parent=0 // pred_region
    _
  $region9: #{lstm_model_forward.5} parent=0 // pred_fallthru
    _
  // Predicated region
  $region10: #{lstm_model_forward.5} parent=0 // pred_check
    _
  $region11: #{lstm_model_forward.5} parent=0 // pred_check_branch
    %13 = sbr.rel (0) target = $region13
  $region12: #{lstm_model_forward.5} parent=0 // pred_region
    _
  $region13: #{lstm_model_forward.5} parent=0 // pred_fallthru
    _
  %v15 = vld [vmem:[%s0] sm:$0xf]
  %v16 = vld [vmem:[%s0 + $0x4] sm:$0xf]
  %v17 = vld [vmem:[%s1] sm:$0xff]
  %v18 = vld [vmem:[%s1 + $0x8] sm:$0xff]
  %v19 = vld [vmem:[%s1 + $0x10] sm:$0xff]
  %v20 = vld [vmem:[%s1 + $0x18] sm:$0xff]
  %v21 = vld [vmem:[%s1 + $0x20] sm:$0xff]
  %v22 = vld [vmem:[%s1 + $0x28] sm:$0xff]
  %v23 = vld [vmem:[%s1 + $0x30] sm:$0xff]
  %v24 = vld [vmem:[%s1 + $0x38] sm:$0xff]
  %v25 = vld [vmem:[%s2] sm:$0xff]
  %v27 = vlaneseq
  %v28 = vshrl.u32 %v27, 7
  %v29 = vsub.s32 0, %v28
  %v30 = vrot.slane %v25, %v29
  %v31 = vlaneseq
  %v32 = vshrl.u32 %v31, 7
  %v33 = vsub.s32 1, %v32
  %v34 = vrot.slane %v25, %v33
  %v35 = vlaneseq
  %v36 = vshrl.u32 %v35, 7
  %v37 = vsub.s32 2, %v36
  %v38 = vrot.slane %v25, %v37
  %v39 = vlaneseq
  %v40 = vshrl.u32 %v39, 7
  %v41 = vsub.s32 3, %v40
  %v42 = vrot.slane %v25, %v41
  %v43 = vlaneseq
  %v44 = vshrl.u32 %v43, 7
  %v45 = vsub.s32 4, %v44
  %v46 = vrot.slane %v25, %v45
  %v47 = vlaneseq
  %v48 = vshrl.u32 %v47, 7
  %v49 = vsub.s32 5, %v48
  %v50 = vrot.slane %v25, %v49
  %v51 = vlaneseq
  %v52 = vshrl.u32 %v51, 7
  %v53 = vsub.s32 6, %v52
  %v54 = vrot.slane %v25, %v53
  %v55 = vlaneseq
  %v56 = vshrl.u32 %v55, 7
  %v57 = vsub.s32 7, %v56
  %v58 = vrot.slane %v25, %v57
  %v69 = vunpack.c.l.b16 %v15
  %v70 = vunpack.c.l.b16 %v16
  %v71 = vpack.c.b16 %v70, %v69
  %v80 = vunpack.c.l.b16 %v17
  %v81 = vunpack.c.h.b16 %v17
  %v82 = vunpack.c.l.b16 %v18
  %v83 = vunpack.c.h.b16 %v18
  %v84 = vunpack.c.l.b16 %v19
  %v85 = vunpack.c.h.b16 %v19
  %v86 = vunpack.c.l.b16 %v20
  %v87 = vunpack.c.h.b16 %v20
  %v88 = vunpack.c.l.b16 %v21
  %v89 = vunpack.c.h.b16 %v21
  %v90 = vunpack.c.l.b16 %v22
  %v91 = vunpack.c.h.b16 %v22
  %v92 = vunpack.c.l.b16 %v23
  %v93 = vunpack.c.h.b16 %v23
  %v94 = vunpack.c.l.b16 %v24
  %v95 = vunpack.c.h.b16 %v24
  %v96 = vpack.c.b16 %v88, %v80
  %v97 = vpack.c.b16 %v89, %v81
  %v98 = vpack.c.b16 %v90, %v82
  %v99 = vpack.c.b16 %v91, %v83
  %v100 = vpack.c.b16 %v92, %v84
  %v101 = vpack.c.b16 %v93, %v85
  %v102 = vpack.c.b16 %v94, %v86
  %v103 = vpack.c.b16 %v95, %v87
  %vm112 = vcmask 130048
  %v114 = vsel %vm112, %v71, 0
  %116 = vmatprep.subr.bf16.mxu0 %v97
  %117 = vmatpush1.bf16.msra.mxu0 %v96
  %118 = vmatprep.subr.bf16.mxu0 0
  %119 = vmatpush1.bf16.msra.mxu0 0
  %120 = vmatprep.subr.bf16.mxu0 0
  %121 = vmatpush1.bf16.msra.mxu0 0
  %122 = vmatprep.subr.bf16.mxu0 0
  %123 = vmatpush1.bf16.msra.mxu0 0
  %124 = vmatprep.subr.bf16.mxu0 0
  %125 = vmatpush1.bf16.msra.mxu0 0
  %126 = vmatprep.subr.bf16.mxu0 0
  %127 = vmatpush1.bf16.msra.mxu0 0
  %128 = vmatprep.subr.bf16.mxu0 0
  %129 = vmatpush1.bf16.msra.mxu0 0
  %130 = vmatprep.subr.bf16.mxu0 0
  %131 = vmatpush1.bf16.msra.mxu0 0
  %132 = vmatprep.subr.bf16.mxu0 0
  %133 = vmatpush1.bf16.msra.mxu0 0
  %134 = vmatprep.subr.bf16.mxu0 0
  %135 = vmatpush1.bf16.msra.mxu0 0
  %136 = vmatprep.subr.bf16.mxu0 0
  %137 = vmatpush1.bf16.msra.mxu0 0
  %138 = vmatprep.subr.bf16.mxu0 0
  %139 = vmatpush1.bf16.msra.mxu0 0
  %140 = vmatprep.subr.bf16.mxu0 0
  %141 = vmatpush1.bf16.msra.mxu0 0
  %142 = vmatprep.subr.bf16.mxu0 0
  %143 = vmatpush1.bf16.msra.mxu0 0
  %144 = vmatprep.subr.bf16.mxu0 0
  %145 = vmatpush1.bf16.msra.mxu0 0
  %146 = vmatprep.subr.bf16.mxu0 0
  %147 = vmatpush1.bf16.msra.mxu0 0
  %148 = vmatprep.mubr.bf16.mxu0 0
  %149 = vmatmul.mubr.bf16.gmra.mrb[0].mxu0 %v114
  %v150 = vpop.f32.mrb[0].mxu0
  %v151 = vadd.f32 %v30, %v150
  %v152 = vpop.f32.mrb[0].mxu0
  %v153 = vadd.f32 %v34, %v152
  %v154 = vpop.f32.mrb[0].mxu0
  %v155 = vadd.f32 %v30, %v154
  %v156 = vpop.f32.mrb[0].mxu0
  %v157 = vadd.f32 %v34, %v156
  %158 = vdwg.mxu0
  %159 = vmatprep.subr.bf16.mxu0 %v99
  %160 = vmatpush1.bf16.msra.mxu0 %v98
  %161 = vmatprep.subr.bf16.mxu0 0
  %162 = vmatpush1.bf16.msra.mxu0 0
  %163 = vmatprep.subr.bf16.mxu0 0
  %164 = vmatpush1.bf16.msra.mxu0 0
  %165 = vmatprep.subr.bf16.mxu0 0
  %166 = vmatpush1.bf16.msra.mxu0 0
  %167 = vmatprep.subr.bf16.mxu0 0
  %168 = vmatpush1.bf16.msra.mxu0 0
  %169 = vmatprep.subr.bf16.mxu0 0
  %170 = vmatpush1.bf16.msra.mxu0 0
  %171 = vmatprep.subr.bf16.mxu0 0
  %172 = vmatpush1.bf16.msra.mxu0 0
  %173 = vmatprep.subr.bf16.mxu0 0
  %174 = vmatpush1.bf16.msra.mxu0 0
  %175 = vmatprep.subr.bf16.mxu0 0
  %176 = vmatpush1.bf16.msra.mxu0 0
  %177 = vmatprep.subr.bf16.mxu0 0
  %178 = vmatpush1.bf16.msra.mxu0 0
  %179 = vmatprep.subr.bf16.mxu0 0
  %180 = vmatpush1.bf16.msra.mxu0 0
  %181 = vmatprep.subr.bf16.mxu0 0
  %182 = vmatpush1.bf16.msra.mxu0 0
  %183 = vmatprep.subr.bf16.mxu0 0
  %184 = vmatpush1.bf16.msra.mxu0 0
  %185 = vmatprep.subr.bf16.mxu0 0
  %186 = vmatpush1.bf16.msra.mxu0 0
  %187 = vmatprep.subr.bf16.mxu0 0
  %188 = vmatpush1.bf16.msra.mxu0 0
  %189 = vmatprep.subr.bf16.mxu0 0
  %190 = vmatpush1.bf16.msra.mxu0 0
  %191 = vmatprep.mubr.bf16.mxu0 0
  %192 = vmatmul.mubr.bf16.gmra.mrb[0].mxu0 %v114
  %v193 = vpop.f32.mrb[0].mxu0
  %v194 = vadd.f32 %v38, %v193
  %v195 = vpop.f32.mrb[0].mxu0
  %v196 = vadd.f32 %v42, %v195
  %v197 = vpop.f32.mrb[0].mxu0
  %v198 = vadd.f32 %v38, %v197
  %v199 = vpop.f32.mrb[0].mxu0
  %v200 = vadd.f32 %v42, %v199
  %201 = vdwg.mxu0
  %202 = vmatprep.subr.bf16.mxu0 %v101
  %203 = vmatpush1.bf16.msra.mxu0 %v100
  %204 = vmatprep.subr.bf16.mxu0 0
  %205 = vmatpush1.bf16.msra.mxu0 0
  %206 = vmatprep.subr.bf16.mxu0 0
  %207 = vmatpush1.bf16.msra.mxu0 0
  %208 = vmatprep.subr.bf16.mxu0 0
  %209 = vmatpush1.bf16.msra.mxu0 0
  %210 = vmatprep.subr.bf16.mxu0 0
  %211 = vmatpush1.bf16.msra.mxu0 0
  %212 = vmatprep.subr.bf16.mxu0 0
  %213 = vmatpush1.bf16.msra.mxu0 0
  %214 = vmatprep.subr.bf16.mxu0 0
  %215 = vmatpush1.bf16.msra.mxu0 0
  %216 = vmatprep.subr.bf16.mxu0 0
  %217 = vmatpush1.bf16.msra.mxu0 0
  %218 = vmatprep.subr.bf16.mxu0 0
  %219 = vmatpush1.bf16.msra.mxu0 0
  %220 = vmatprep.subr.bf16.mxu0 0
  %221 = vmatpush1.bf16.msra.mxu0 0
  %222 = vmatprep.subr.bf16.mxu0 0
  %223 = vmatpush1.bf16.msra.mxu0 0
  %224 = vmatprep.subr.bf16.mxu0 0
  %225 = vmatpush1.bf16.msra.mxu0 0
  %226 = vmatprep.subr.bf16.mxu0 0
  %227 = vmatpush1.bf16.msra.mxu0 0
  %228 = vmatprep.subr.bf16.mxu0 0
  %229 = vmatpush1.bf16.msra.mxu0 0
  %230 = vmatprep.subr.bf16.mxu0 0
  %231 = vmatpush1.bf16.msra.mxu0 0
  %232 = vmatprep.subr.bf16.mxu0 0
  %233 = vmatpush1.bf16.msra.mxu0 0
  %234 = vmatprep.mubr.bf16.mxu0 0
  %235 = vmatmul.mubr.bf16.gmra.mrb[0].mxu0 %v114
  %v236 = vpop.f32.mrb[0].mxu0
  %v237 = vadd.f32 %v46, %v236
  %v238 = vpop.f32.mrb[0].mxu0
  %v239 = vadd.f32 %v50, %v238
  %v240 = vpop.f32.mrb[0].mxu0
  %v241 = vadd.f32 %v46, %v240
  %v242 = vpop.f32.mrb[0].mxu0
  %v243 = vadd.f32 %v50, %v242
  %244 = vdwg.mxu0
  %245 = vmatprep.subr.bf16.mxu0 %v103
  %246 = vmatpush1.bf16.msra.mxu0 %v102
  %247 = vmatprep.subr.bf16.mxu0 0
  %248 = vmatpush1.bf16.msra.mxu0 0
  %249 = vmatprep.subr.bf16.mxu0 0
  %250 = vmatpush1.bf16.msra.mxu0 0
  %251 = vmatprep.subr.bf16.mxu0 0
  %252 = vmatpush1.bf16.msra.mxu0 0
  %253 = vmatprep.subr.bf16.mxu0 0
  %254 = vmatpush1.bf16.msra.mxu0 0
  %255 = vmatprep.subr.bf16.mxu0 0
  %256 = vmatpush1.bf16.msra.mxu0 0
  %257 = vmatprep.subr.bf16.mxu0 0
  %258 = vmatpush1.bf16.msra.mxu0 0
  %259 = vmatprep.subr.bf16.mxu0 0
  %260 = vmatpush1.bf16.msra.mxu0 0
  %261 = vmatprep.subr.bf16.mxu0 0
  %262 = vmatpush1.bf16.msra.mxu0 0
  %263 = vmatprep.subr.bf16.mxu0 0
  %264 = vmatpush1.bf16.msra.mxu0 0
  %265 = vmatprep.subr.bf16.mxu0 0
  %266 = vmatpush1.bf16.msra.mxu0 0
  %267 = vmatprep.subr.bf16.mxu0 0
  %268 = vmatpush1.bf16.msra.mxu0 0
  %269 = vmatprep.subr.bf16.mxu0 0
  %270 = vmatpush1.bf16.msra.mxu0 0
  %271 = vmatprep.subr.bf16.mxu0 0
  %272 = vmatpush1.bf16.msra.mxu0 0
  %273 = vmatprep.subr.bf16.mxu0 0
  %274 = vmatpush1.bf16.msra.mxu0 0
  %275 = vmatprep.subr.bf16.mxu0 0
  %276 = vmatpush1.bf16.msra.mxu0 0
  %277 = vmatprep.mubr.bf16.mxu0 0
  %278 = vmatmul.mubr.bf16.gmra.mrb[0].mxu0 %v114
  %v279 = vpop.f32.mrb[0].mxu0
  %v280 = vadd.f32 %v54, %v279
  %v281 = vpop.f32.mrb[0].mxu0
  %v282 = vadd.f32 %v58, %v281
  %v283 = vpop.f32.mrb[0].mxu0
  %v284 = vadd.f32 %v54, %v283
  %v285 = vpop.f32.mrb[0].mxu0
  %v286 = vadd.f32 %v58, %v285
  %287 = vdwg.mxu0
  %288 = vst [vmem:[%s3] sm:$0xff] %v151
  %289 = vst [vmem:[%s3 + $0x8] sm:$0xff] %v153
  %290 = vst [vmem:[%s3 + $0x10] sm:$0xff] %v194
  %291 = vst [vmem:[%s3 + $0x18] sm:$0xff] %v196
  %292 = vst [vmem:[%s3 + $0x20] sm:$0xff] %v237
  %293 = vst [vmem:[%s3 + $0x28] sm:$0xff] %v239
  %294 = vst [vmem:[%s3 + $0x30] sm:$0xff] %v280
  %295 = vst [vmem:[%s3 + $0x38] sm:$0xff] %v282
  %296 = vst [vmem:[%s3 + $0x40] sm:$0xff] %v155
  %297 = vst [vmem:[%s3 + $0x48] sm:$0xff] %v157
  %298 = vst [vmem:[%s3 + $0x50] sm:$0xff] %v198
  %299 = vst [vmem:[%s3 + $0x58] sm:$0xff] %v200
  %300 = vst [vmem:[%s3 + $0x60] sm:$0xff] %v241
  %301 = vst [vmem:[%s3 + $0x68] sm:$0xff] %v243
  %302 = vst [vmem:[%s3 + $0x70] sm:$0xff] %v284
  %303 = vst [vmem:[%s3 + $0x78] sm:$0xff] %v286
  // Predicated region
  $region14: #{lstm_model_forward.5} parent=0 // pred_check
    _
  $region15: #{lstm_model_forward.5} parent=0 // pred_check_branch
    %305 = sbr.rel (0) target = $region17
  $region16: #{lstm_model_forward.5} parent=0 // pred_region
    _
  $region17: #{lstm_model_forward.5} parent=0 // pred_fallthru
    _
  // Predicated region
  $region18: #{lstm_model_forward.5} parent=0 // pred_check
    _
  $region19: #{lstm_model_forward.5} parent=0 // pred_check_branch
    %307 = sbr.rel (0) target = $region21
  $region20: #{lstm_model_forward.5} parent=0 // pred_region
    _
  $region21: #{lstm_model_forward.5} parent=0 // pred_fallthru
    _

// kernel: lstm_model_forward.8
$region0: #{lstm_model_forward.8}
  #allocation0 [shape = 'u32[]', space=smem, size = 0x4, offset = 0x4, fixed_abs, tag = 'smem constant byte address 0x4 - core index']
  #allocation1 [shape = 'u32[144,128]{1,0:T(1,128)}', space=vmem, size = 0x12000, scoped, tag = 'internal scratch']
  %s0 = inlined_call_operand.vmem [shape: f32[2,1,512], index: 0, kind: input, shape index: {}]
  %s1 = inlined_call_operand.vmem [shape: bf16[128,512], index: 1, kind: input, shape index: {}]
  %s2 = inlined_call_operand.vmem [shape: f32[2,1,128], index: 2, kind: output, shape index: {}]
  %s3 = sld [smem:[#allocation0]]
  $region18: #{lstm_model_forward.8} parent=0
    _
  %s5 = ssub.s32 1, %s3
  %s6 = scalar_select 0, %s5, %s3
  // Predicated region
  $region2: #{lstm_model_forward.8} parent=0 // pred_check
    _
  $region3: #{lstm_model_forward.8} parent=0 // pred_check_branch
    %8 = sbr.rel (0) target = $region5
  $region4: #{lstm_model_forward.8} parent=0 // pred_region
    _
  $region5: #{lstm_model_forward.8} parent=0 // pred_fallthru
    _
  // Predicated region
  $region6: #{lstm_model_forward.8} parent=0 // pred_check
    _
  $region7: #{lstm_model_forward.8} parent=0 // pred_check_branch
    %10 = sbr.rel (0) target = $region9
  $region8: #{lstm_model_forward.8} parent=0 // pred_region
    _
  $region9: #{lstm_model_forward.8} parent=0 // pred_fallthru
    _
  %v12 = vld [vmem:[%s0] sm:$0xf]
  %v13 = vld [vmem:[%s1] sm:$0xff]
  %v14 = vld [vmem:[%s1 + $0x8] sm:$0xff]
  %v15 = vld [vmem:[%s1 + $0x10] sm:$0xff]
  %v16 = vld [vmem:[%s1 + $0x18] sm:$0xff]
  %v17 = vld [vmem:[%s1 + $0x20] sm:$0xff]
  %v18 = vld [vmem:[%s1 + $0x28] sm:$0xff]
  %v19 = vld [vmem:[%s1 + $0x30] sm:$0xff]
  %v20 = vld [vmem:[%s1 + $0x38] sm:$0xff]
  %v21 = vld [vmem:[%s1 + $0x40] sm:$0xff]
  %v22 = vld [vmem:[%s1 + $0x48] sm:$0xff]
  %v23 = vld [vmem:[%s1 + $0x50] sm:$0xff]
  %v24 = vld [vmem:[%s1 + $0x58] sm:$0xff]
  %v25 = vld [vmem:[%s1 + $0x60] sm:$0xff]
  %v26 = vld [vmem:[%s1 + $0x68] sm:$0xff]
  %v27 = vld [vmem:[%s1 + $0x70] sm:$0xff]
  %v28 = vld [vmem:[%s1 + $0x78] sm:$0xff]
  %v29 = vld [vmem:[%s1 + $0x80] sm:$0xff]
  %v30 = vld [vmem:[%s1 + $0x88] sm:$0xff]
  %v31 = vld [vmem:[%s1 + $0x90] sm:$0xff]
  %v32 = vld [vmem:[%s1 + $0x98] sm:$0xff]
  %v33 = vld [vmem:[%s1 + $0xa0] sm:$0xff]
  %v34 = vld [vmem:[%s1 + $0xa8] sm:$0xff]
  %v35 = vld [vmem:[%s1 + $0xb0] sm:$0xff]
  %v36 = vld [vmem:[%s1 + $0xb8] sm:$0xff]
  %v37 = vld [vmem:[%s1 + $0xc0] sm:$0xff]
  %v38 = vld [vmem:[%s1 + $0xc8] sm:$0xff]
  %v39 = vld [vmem:[%s1 + $0xd0] sm:$0xff]
  %v40 = vld [vmem:[%s1 + $0xd8] sm:$0xff]
  %v41 = vld [vmem:[%s1 + $0xe0] sm:$0xff]
  %v42 = vld [vmem:[%s1 + $0xe8] sm:$0xff]
  %v43 = vld [vmem:[%s1 + $0xf0] sm:$0xff]
  %v44 = vld [vmem:[%s1 + $0xf8] sm:$0xff]
  %v77 = vunpack.c.l.b16 %v13
  %v78 = vunpack.c.h.b16 %v13
  %v79 = vunpack.c.l.b16 %v14
  %v80 = vunpack.c.h.b16 %v14
  %v81 = vunpack.c.l.b16 %v15
  %v82 = vunpack.c.h.b16 %v15
  %v83 = vunpack.c.l.b16 %v16
  %v84 = vunpack.c.h.b16 %v16
  %v85 = vunpack.c.l.b16 %v17
  %v86 = vunpack.c.h.b16 %v17
  %v87 = vunpack.c.l.b16 %v18
  %v88 = vunpack.c.h.b16 %v18
  %v89 = vunpack.c.l.b16 %v19
  %v90 = vunpack.c.h.b16 %v19
  %v91 = vunpack.c.l.b16 %v20
  %v92 = vunpack.c.h.b16 %v20
  %v93 = vunpack.c.l.b16 %v21
  %v94 = vunpack.c.h.b16 %v21
  %v95 = vunpack.c.l.b16 %v22
  %v96 = vunpack.c.h.b16 %v22
  %v97 = vunpack.c.l.b16 %v23
  %v98 = vunpack.c.h.b16 %v23
  %v99 = vunpack.c.l.b16 %v24
  %v100 = vunpack.c.h.b16 %v24
  %v101 = vunpack.c.l.b16 %v25
  %v102 = vunpack.c.h.b16 %v25
  %v103 = vunpack.c.l.b16 %v26
  %v104 = vunpack.c.h.b16 %v26
  %v105 = vunpack.c.l.b16 %v27
  %v106 = vunpack.c.h.b16 %v27
  %v107 = vunpack.c.l.b16 %v28
  %v108 = vunpack.c.h.b16 %v28
  %v109 = vunpack.c.l.b16 %v29
  %v110 = vunpack.c.h.b16 %v29
  %v111 = vunpack.c.l.b16 %v30
  %v112 = vunpack.c.h.b16 %v30
  %v113 = vunpack.c.l.b16 %v31
  %v114 = vunpack.c.h.b16 %v31
  %v115 = vunpack.c.l.b16 %v32
  %v116 = vunpack.c.h.b16 %v32
  %v117 = vunpack.c.l.b16 %v33
  %v118 = vunpack.c.h.b16 %v33
  %v119 = vunpack.c.l.b16 %v34
  %v120 = vunpack.c.h.b16 %v34
  %v121 = vunpack.c.l.b16 %v35
  %v122 = vunpack.c.h.b16 %v35
  %v123 = vunpack.c.l.b16 %v36
  %v124 = vunpack.c.h.b16 %v36
  %v125 = vunpack.c.l.b16 %v37
  %v126 = vunpack.c.h.b16 %v37
  %v127 = vunpack.c.l.b16 %v38
  %v128 = vunpack.c.h.b16 %v38
  %v129 = vunpack.c.l.b16 %v39
  %v130 = vunpack.c.h.b16 %v39
  %v131 = vunpack.c.l.b16 %v40
  %v132 = vunpack.c.h.b16 %v40
  %v133 = vunpack.c.l.b16 %v41
  %v134 = vunpack.c.h.b16 %v41
  %v135 = vunpack.c.l.b16 %v42
  %v136 = vunpack.c.h.b16 %v42
  %v137 = vunpack.c.l.b16 %v43
  %v138 = vunpack.c.h.b16 %v43
  %v139 = vunpack.c.l.b16 %v44
  %v140 = vunpack.c.h.b16 %v44
  %v141 = vpack.c.b16 %v81, %v77
  %v142 = vpack.c.b16 %v82, %v78
  %v143 = vpack.c.b16 %v83, %v79
  %v144 = vpack.c.b16 %v84, %v80
  %v145 = vpack.c.b16 %v89, %v85
  %v146 = vpack.c.b16 %v90, %v86
  %v147 = vpack.c.b16 %v91, %v87
  %v148 = vpack.c.b16 %v92, %v88
  %v149 = vpack.c.b16 %v97, %v93
  %v150 = vpack.c.b16 %v98, %v94
  %v151 = vpack.c.b16 %v99, %v95
  %v152 = vpack.c.b16 %v100, %v96
  %v153 = vpack.c.b16 %v105, %v101
  %v154 = vpack.c.b16 %v106, %v102
  %v155 = vpack.c.b16 %v107, %v103
  %v156 = vpack.c.b16 %v108, %v104
  %v157 = vpack.c.b16 %v113, %v109
  %v158 = vpack.c.b16 %v114, %v110
  %v159 = vpack.c.b16 %v115, %v111
  %v160 = vpack.c.b16 %v116, %v112
  %v161 = vpack.c.b16 %v121, %v117
  %v162 = vpack.c.b16 %v122, %v118
  %v163 = vpack.c.b16 %v123, %v119
  %v164 = vpack.c.b16 %v124, %v120
  %v165 = vpack.c.b16 %v129, %v125
  %v166 = vpack.c.b16 %v130, %v126
  %v167 = vpack.c.b16 %v131, %v127
  %v168 = vpack.c.b16 %v132, %v128
  %v169 = vpack.c.b16 %v137, %v133
  %v170 = vpack.c.b16 %v138, %v134
  %v171 = vpack.c.b16 %v139, %v135
  %v172 = vpack.c.b16 %v140, %v136
  %205 = vmatprep.subr.bf16.mxu0 %v142
  %206 = vmatpush1.bf16.msra.mxu0 %v141
  %207 = vmatprep.subr.bf16.mxu0 %v146
  %208 = vmatpush1.bf16.msra.mxu0 %v145
  %209 = vmatprep.subr.bf16.mxu0 %v150
  %210 = vmatpush1.bf16.msra.mxu0 %v149
  %211 = vmatprep.subr.bf16.mxu0 %v154
  %212 = vmatpush1.bf16.msra.mxu0 %v153
  %213 = vmatprep.subr.bf16.mxu0 %v158
  %214 = vmatpush1.bf16.msra.mxu0 %v157
  %215 = vmatprep.subr.bf16.mxu0 %v162
  %216 = vmatpush1.bf16.msra.mxu0 %v161
  %217 = vmatprep.subr.bf16.mxu0 %v166
  %218 = vmatpush1.bf16.msra.mxu0 %v165
  %219 = vmatprep.subr.bf16.mxu0 %v170
  %220 = vmatpush1.bf16.msra.mxu0 %v169
  %221 = vmatprep.subr.bf16.mxu0 0
  %222 = vmatpush1.bf16.msra.mxu0 0
  %223 = vmatprep.subr.bf16.mxu0 0
  %224 = vmatpush1.bf16.msra.mxu0 0
  %225 = vmatprep.subr.bf16.mxu0 0
  %226 = vmatpush1.bf16.msra.mxu0 0
  %227 = vmatprep.subr.bf16.mxu0 0
  %228 = vmatpush1.bf16.msra.mxu0 0
  %229 = vmatprep.subr.bf16.mxu0 0
  %230 = vmatpush1.bf16.msra.mxu0 0
  %231 = vmatprep.subr.bf16.mxu0 0
  %232 = vmatpush1.bf16.msra.mxu0 0
  %233 = vmatprep.subr.bf16.mxu0 0
  %234 = vmatpush1.bf16.msra.mxu0 0
  %235 = vmatprep.subr.bf16.mxu0 0
  %236 = vmatpush1.bf16.msra.mxu0 0
  %237 = vmatprep.mubr.bf16.mxu0 0
  %238 = vmatmul.mubr.bf16.gmra.mrb[0].mxu0 0
  %v239 = vpop.f32.mrb[0].mxu0
  %v240 = vadd.f32 0.0, %v239
  %v241 = vpop.f32.mrb[0].mxu0
  %v242 = vadd.f32 0.0, %v241
  %v243 = vpop.f32.mrb[0].mxu0
  %v244 = vpop.f32.mrb[0].mxu0
  %245 = vdwg.mxu0
  %246 = vmatprep.subr.bf16.mxu0 %v144
  %247 = vmatpush1.bf16.msra.mxu0 %v143
  %248 = vmatprep.subr.bf16.mxu0 %v148
  %249 = vmatpush1.bf16.msra.mxu0 %v147
  %250 = vmatprep.subr.bf16.mxu0 %v152
  %251 = vmatpush1.bf16.msra.mxu0 %v151
  %252 = vmatprep.subr.bf16.mxu0 %v156
  %253 = vmatpush1.bf16.msra.mxu0 %v155
  %254 = vmatprep.subr.bf16.mxu0 %v160
  %255 = vmatpush1.bf16.msra.mxu0 %v159
  %256 = vmatprep.subr.bf16.mxu0 %v164
  %257 = vmatpush1.bf16.msra.mxu0 %v163
  %258 = vmatprep.subr.bf16.mxu0 %v168
  %259 = vmatpush1.bf16.msra.mxu0 %v167
  %260 = vmatprep.subr.bf16.mxu0 %v172
  %261 = vmatpush1.bf16.msra.mxu0 %v171
  %262 = vmatprep.subr.bf16.mxu0 0
  %263 = vmatpush1.bf16.msra.mxu0 0
  %264 = vmatprep.subr.bf16.mxu0 0
  %265 = vmatpush1.bf16.msra.mxu0 0
  %266 = vmatprep.subr.bf16.mxu0 0
  %267 = vmatpush1.bf16.msra.mxu0 0
  %268 = vmatprep.subr.bf16.mxu0 0
  %269 = vmatpush1.bf16.msra.mxu0 0
  %270 = vmatprep.subr.bf16.mxu0 0
  %271 = vmatpush1.bf16.msra.mxu0 0
  %272 = vmatprep.subr.bf16.mxu0 0
  %273 = vmatpush1.bf16.msra.mxu0 0
  %274 = vmatprep.subr.bf16.mxu0 0
  %275 = vmatpush1.bf16.msra.mxu0 0
  %276 = vmatprep.subr.bf16.mxu0 0
  %277 = vmatpush1.bf16.msra.mxu0 0
  %278 = vmatprep.mubr.bf16.mxu0 0
  %279 = vmatmul.mubr.bf16.gmra.mrb[0].mxu0 0
  %v280 = vpop.f32.mrb[0].mxu0
  %v281 = vadd.f32 0.0, %v280
  %v282 = vpop.f32.mrb[0].mxu0
  %v283 = vadd.f32 0.0, %v282
  %v284 = vpop.f32.mrb[0].mxu0
  %v285 = vpop.f32.mrb[0].mxu0
  %286 = vdwg.mxu0
  %v291 = vcombine.low %v240, %v242
  %v292 = vcombine.low %v281, %v283
  %v294 = vunpack.c.l.s4 1966171168
  %v295 = vunpack.c.0.s8 %v294
  %v296 = vlaneseq
  %v297 = vshrl.u32 %v296, 7
  %v298 = vsub.s32 %v295, %v297
  %v299 = vrot.slane %v291, %v298
  %v301 = vunpack.c.l.s4 1966171168
  %v302 = vunpack.c.0.s8 %v301
  %v303 = vlaneseq
  %v304 = vshrl.u32 %v303, 7
  %v305 = vsub.s32 %v302, %v304
  %v306 = vrot.slane %v292, %v305
  %v307 = vcombine.low %v299, %v306
  %v309 = vunpack.c.l.s4 1966171168
  %v310 = vunpack.c.0.s8 %v309
  %v311 = vlaneseq
  %v312 = vshrl.u32 %v311, 7
  %v313 = vsub.s32 %v310, %v312
  %v314 = vrot.slane %v307, %v313
  %v316 = vadd.f32 %v12, %v314
  %v317 = vxor.u32 %v316, 2147483648
  %v318 = vmul.f32 %v317, 1.442695
  %v319 = vpow.pop %v318
  %v320 = vadd.f32 %v319, 1.0
  %v321 = vrcp.pop %v320
  %v322 = vmul.f32 1.0, %v321
  %v324 = vrot.slane %v316, 1
  %v326 = vxor.u32 %v324, 2147483648
  %v327 = vmul.f32 %v326, 1.442695
  %v328 = vpow.pop %v327
  %v329 = vadd.f32 %v328, 1.0
  %v330 = vrcp.pop %v329
  %v331 = vmul.f32 1.0, %v330
  %v332 = vrot.slane %v316, 2
  %v334 = vtanh.pop %v332
  %v335 = vrot.slane %v316, 3
  %v337 = vxor.u32 %v335, 2147483648
  %v338 = vmul.f32 %v337, 1.442695
  %v339 = vpow.pop %v338
  %v340 = vadd.f32 %v339, 1.0
  %v341 = vrcp.pop %v340
  %v342 = vmul.f32 1.0, %v341
  %v343 = vmul.f32 %v331, 0.0
  %v344 = vmul.f32 %v322, %v334
  %v345 = vadd.f32 %v343, %v344
  %v346 = vtanh.pop %v345
  %v347 = vmul.f32 %v342, %v346
  %348 = vst [vmem:[%s2] sm:$0x1] %v347
  %s349 = scalar_lea.vmem %s0, 4
  %v350 = vld [vmem:[%s349] sm:$0xf]
  %v351 = vpack.c.bf16 %v347, %v347
  %v352 = vld [vmem:[%s1] sm:$0xff]
  %v353 = vld [vmem:[%s1 + $0x8] sm:$0xff]
  %v354 = vld [vmem:[%s1 + $0x10] sm:$0xff]
  %v355 = vld [vmem:[%s1 + $0x18] sm:$0xff]
  %v356 = vld [vmem:[%s1 + $0x20] sm:$0xff]
  %v357 = vld [vmem:[%s1 + $0x28] sm:$0xff]
  %v358 = vld [vmem:[%s1 + $0x30] sm:$0xff]
  %v359 = vld [vmem:[%s1 + $0x38] sm:$0xff]
  %v360 = vld [vmem:[%s1 + $0x40] sm:$0xff]
  %v361 = vld [vmem:[%s1 + $0x48] sm:$0xff]
  %v362 = vld [vmem:[%s1 + $0x50] sm:$0xff]
  %v363 = vld [vmem:[%s1 + $0x58] sm:$0xff]
  %v364 = vld [vmem:[%s1 + $0x60] sm:$0xff]
  %v365 = vld [vmem:[%s1 + $0x68] sm:$0xff]
  %v366 = vld [vmem:[%s1 + $0x70] sm:$0xff]
  %v367 = vld [vmem:[%s1 + $0x78] sm:$0xff]
  %v368 = vld [vmem:[%s1 + $0x80] sm:$0xff]
  %v369 = vld [vmem:[%s1 + $0x88] sm:$0xff]
  %v370 = vld [vmem:[%s1 + $0x90] sm:$0xff]
  %v371 = vld [vmem:[%s1 + $0x98] sm:$0xff]
  %v372 = vld [vmem:[%s1 + $0xa0] sm:$0xff]
  %v373 = vld [vmem:[%s1 + $0xa8] sm:$0xff]
  %v374 = vld [vmem:[%s1 + $0xb0] sm:$0xff]
  %v375 = vld [vmem:[%s1 + $0xb8] sm:$0xff]
  %v376 = vld [vmem:[%s1 + $0xc0] sm:$0xff]
  %v377 = vld [vmem:[%s1 + $0xc8] sm:$0xff]
  %v378 = vld [vmem:[%s1 + $0xd0] sm:$0xff]
  %v379 = vld [vmem:[%s1 + $0xd8] sm:$0xff]
  %v380 = vld [vmem:[%s1 + $0xe0] sm:$0xff]
  %v381 = vld [vmem:[%s1 + $0xe8] sm:$0xff]
  %v382 = vld [vmem:[%s1 + $0xf0] sm:$0xff]
  %v383 = vld [vmem:[%s1 + $0xf8] sm:$0xff]
  %v416 = vunpack.c.l.b16 %v352
  %v417 = vunpack.c.h.b16 %v352
  %v418 = vunpack.c.l.b16 %v353
  %v419 = vunpack.c.h.b16 %v353
  %v420 = vunpack.c.l.b16 %v354
  %v421 = vunpack.c.h.b16 %v354
  %v422 = vunpack.c.l.b16 %v355
  %v423 = vunpack.c.h.b16 %v355
  %v424 = vunpack.c.l.b16 %v356
  %v425 = vunpack.c.h.b16 %v356
  %v426 = vunpack.c.l.b16 %v357
  %v427 = vunpack.c.h.b16 %v357
  %v428 = vunpack.c.l.b16 %v358
  %v429 = vunpack.c.h.b16 %v358
  %v430 = vunpack.c.l.b16 %v359
  %v431 = vunpack.c.h.b16 %v359
  %v432 = vunpack.c.l.b16 %v360
  %v433 = vunpack.c.h.b16 %v360
  %v434 = vunpack.c.l.b16 %v361
  %v435 = vunpack.c.h.b16 %v361
  %v436 = vunpack.c.l.b16 %v362
  %v437 = vunpack.c.h.b16 %v362
  %v438 = vunpack.c.l.b16 %v363
  %v439 = vunpack.c.h.b16 %v363
  %v440 = vunpack.c.l.b16 %v364
  %v441 = vunpack.c.h.b16 %v364
  %v442 = vunpack.c.l.b16 %v365
  %v443 = vunpack.c.h.b16 %v365
  %v444 = vunpack.c.l.b16 %v366
  %v445 = vunpack.c.h.b16 %v366
  %v446 = vunpack.c.l.b16 %v367
  %v447 = vunpack.c.h.b16 %v367
  %v448 = vunpack.c.l.b16 %v368
  %v449 = vunpack.c.h.b16 %v368
  %v450 = vunpack.c.l.b16 %v369
  %v451 = vunpack.c.h.b16 %v369
  %v452 = vunpack.c.l.b16 %v370
  %v453 = vunpack.c.h.b16 %v370
  %v454 = vunpack.c.l.b16 %v371
  %v455 = vunpack.c.h.b16 %v371
  %v456 = vunpack.c.l.b16 %v372
  %v457 = vunpack.c.h.b16 %v372
  %v458 = vunpack.c.l.b16 %v373
  %v459 = vunpack.c.h.b16 %v373
  %v460 = vunpack.c.l.b16 %v374
  %v461 = vunpack.c.h.b16 %v374
  %v462 = vunpack.c.l.b16 %v375
  %v463 = vunpack.c.h.b16 %v375
  %v464 = vunpack.c.l.b16 %v376
  %v465 = vunpack.c.h.b16 %v376
  %v466 = vunpack.c.l.b16 %v377
  %v467 = vunpack.c.h.b16 %v377
  %v468 = vunpack.c.l.b16 %v378
  %v469 = vunpack.c.h.b16 %v378
  %v470 = vunpack.c.l.b16 %v379
  %v471 = vunpack.c.h.b16 %v379
  %v472 = vunpack.c.l.b16 %v380
  %v473 = vunpack.c.h.b16 %v380
  %v474 = vunpack.c.l.b16 %v381
  %v475 = vunpack.c.h.b16 %v381
  %v476 = vunpack.c.l.b16 %v382
  %v477 = vunpack.c.h.b16 %v382
  %v478 = vunpack.c.l.b16 %v383
  %v479 = vunpack.c.h.b16 %v383
  %v480 = vpack.c.b16 %v420, %v416
  %v481 = vpack.c.b16 %v421, %v417
  %v482 = vpack.c.b16 %v422, %v418
  %v483 = vpack.c.b16 %v423, %v419
  %v484 = vpack.c.b16 %v428, %v424
  %v485 = vpack.c.b16 %v429, %v425
  %v486 = vpack.c.b16 %v430, %v426
  %v487 = vpack.c.b16 %v431, %v427
  %v488 = vpack.c.b16 %v436, %v432
  %v489 = vpack.c.b16 %v437, %v433
  %v490 = vpack.c.b16 %v438, %v434
  %v491 = vpack.c.b16 %v439, %v435
  %v492 = vpack.c.b16 %v444, %v440
  %v493 = vpack.c.b16 %v445, %v441
  %v494 = vpack.c.b16 %v446, %v442
  %v495 = vpack.c.b16 %v447, %v443
  %v496 = vpack.c.b16 %v452, %v448
  %v497 = vpack.c.b16 %v453, %v449
  %v498 = vpack.c.b16 %v454, %v450
  %v499 = vpack.c.b16 %v455, %v451
  %v500 = vpack.c.b16 %v460, %v456
  %v501 = vpack.c.b16 %v461, %v457
  %v502 = vpack.c.b16 %v462, %v458
  %v503 = vpack.c.b16 %v463, %v459
  %v504 = vpack.c.b16 %v468, %v464
  %v505 = vpack.c.b16 %v469, %v465
  %v506 = vpack.c.b16 %v470, %v466
  %v507 = vpack.c.b16 %v471, %v467
  %v508 = vpack.c.b16 %v476, %v472
  %v509 = vpack.c.b16 %v477, %v473
  %v510 = vpack.c.b16 %v478, %v474
  %v511 = vpack.c.b16 %v479, %v475
  %544 = vmatprep.subr.bf16.mxu0 %v481
  %545 = vmatpush1.bf16.msra.mxu0 %v480
  %546 = vmatprep.subr.bf16.mxu0 %v485
  %547 = vmatpush1.bf16.msra.mxu0 %v484
  %548 = vmatprep.subr.bf16.mxu0 %v489
  %549 = vmatpush1.bf16.msra.mxu0 %v488
  %550 = vmatprep.subr.bf16.mxu0 %v493
  %551 = vmatpush1.bf16.msra.mxu0 %v492
  %552 = vmatprep.subr.bf16.mxu0 %v497
  %553 = vmatpush1.bf16.msra.mxu0 %v496
  %554 = vmatprep.subr.bf16.mxu0 %v501
  %555 = vmatpush1.bf16.msra.mxu0 %v500
  %556 = vmatprep.subr.bf16.mxu0 %v505
  %557 = vmatpush1.bf16.msra.mxu0 %v504
  %558 = vmatprep.subr.bf16.mxu0 %v509
  %559 = vmatpush1.bf16.msra.mxu0 %v508
  %560 = vmatprep.subr.bf16.mxu0 0
  %561 = vmatpush1.bf16.msra.mxu0 0
  %562 = vmatprep.subr.bf16.mxu0 0
  %563 = vmatpush1.bf16.msra.mxu0 0
  %564 = vmatprep.subr.bf16.mxu0 0
  %565 = vmatpush1.bf16.msra.mxu0 0
  %566 = vmatprep.subr.bf16.mxu0 0
  %567 = vmatpush1.bf16.msra.mxu0 0
  %568 = vmatprep.subr.bf16.mxu0 0
  %569 = vmatpush1.bf16.msra.mxu0 0
  %570 = vmatprep.subr.bf16.mxu0 0
  %571 = vmatpush1.bf16.msra.mxu0 0
  %572 = vmatprep.subr.bf16.mxu0 0
  %573 = vmatpush1.bf16.msra.mxu0 0
  %574 = vmatprep.subr.bf16.mxu0 0
  %575 = vmatpush1.bf16.msra.mxu0 0
  %576 = vmatprep.mubr.bf16.mxu0 0
  %577 = vmatmul.mubr.bf16.gmra.mrb[0].mxu0 %v351
  %v578 = vpop.f32.mrb[0].mxu0
  %v579 = vadd.f32 0.0, %v578
  %v580 = vpop.f32.mrb[0].mxu0
  %v581 = vadd.f32 0.0, %v580
  %v582 = vpop.f32.mrb[0].mxu0
  %v583 = vpop.f32.mrb[0].mxu0
  %584 = vdwg.mxu0
  %585 = vmatprep.subr.bf16.mxu0 %v483
  %586 = vmatpush1.bf16.msra.mxu0 %v482
  %587 = vmatprep.subr.bf16.mxu0 %v487
  %588 = vmatpush1.bf16.msra.mxu0 %v486
  %589 = vmatprep.subr.bf16.mxu0 %v491
  %590 = vmatpush1.bf16.msra.mxu0 %v490
  %591 = vmatprep.subr.bf16.mxu0 %v495
  %592 = vmatpush1.bf16.msra.mxu0 %v494
  %593 = vmatprep.subr.bf16.mxu0 %v499
  %594 = vmatpush1.bf16.msra.mxu0 %v498
  %595 = vmatprep.subr.bf16.mxu0 %v503
  %596 = vmatpush1.bf16.msra.mxu0 %v502
  %597 = vmatprep.subr.bf16.mxu0 %v507
  %598 = vmatpush1.bf16.msra.mxu0 %v506
  %599 = vmatprep.subr.bf16.mxu0 %v511
  %600 = vmatpush1.bf16.msra.mxu0 %v510
  %601 = vmatprep.subr.bf16.mxu0 0
  %602 = vmatpush1.bf16.msra.mxu0 0
  %603 = vmatprep.subr.bf16.mxu0 0
  %604 = vmatpush1.bf16.msra.mxu0 0
  %605 = vmatprep.subr.bf16.mxu0 0
  %606 = vmatpush1.bf16.msra.mxu0 0
  %607 = vmatprep.subr.bf16.mxu0 0
  %608 = vmatpush1.bf16.msra.mxu0 0
  %609 = vmatprep.subr.bf16.mxu0 0
  %610 = vmatpush1.bf16.msra.mxu0 0
  %611 = vmatprep.subr.bf16.mxu0 0
  %612 = vmatpush1.bf16.msra.mxu0 0
  %613 = vmatprep.subr.bf16.mxu0 0
  %614 = vmatpush1.bf16.msra.mxu0 0
  %615 = vmatprep.subr.bf16.mxu0 0
  %616 = vmatpush1.bf16.msra.mxu0 0
  %617 = vmatprep.mubr.bf16.mxu0 0
  %618 = vmatmul.mubr.bf16.gmra.mrb[0].mxu0 %v351
  %v619 = vpop.f32.mrb[0].mxu0
  %v620 = vadd.f32 0.0, %v619
  %v621 = vpop.f32.mrb[0].mxu0
  %v622 = vadd.f32 0.0, %v621
  %v623 = vpop.f32.mrb[0].mxu0
  %v624 = vpop.f32.mrb[0].mxu0
  %625 = vdwg.mxu0
  %v630 = vcombine.low %v579, %v581
  %v631 = vcombine.low %v620, %v622
  %v633 = vunpack.c.l.s4 1966171168
  %v634 = vunpack.c.0.s8 %v633
  %v635 = vlaneseq
  %v636 = vshrl.u32 %v635, 7
  %v637 = vsub.s32 %v634, %v636
  %v638 = vrot.slane %v630, %v637
  %v640 = vunpack.c.l.s4 1966171168
  %v641 = vunpack.c.0.s8 %v640
  %v642 = vlaneseq
  %v643 = vshrl.u32 %v642, 7
  %v644 = vsub.s32 %v641, %v643
  %v645 = vrot.slane %v631, %v644
  %v646 = vcombine.low %v638, %v645
  %v648 = vunpack.c.l.s4 1966171168
  %v649 = vunpack.c.0.s8 %v648
  %v650 = vlaneseq
  %v651 = vshrl.u32 %v650, 7
  %v652 = vsub.s32 %v649, %v651
  %v653 = vrot.slane %v646, %v652
  %v655 = vadd.f32 %v350, %v653
  %v656 = vxor.u32 %v655, 2147483648
  %v657 = vmul.f32 %v656, 1.442695
  %v658 = vpow.pop %v657
  %v659 = vadd.f32 %v658, 1.0
  %v660 = vrcp.pop %v659
  %v661 = vmul.f32 1.0, %v660
  %v663 = vrot.slane %v655, 1
  %v665 = vxor.u32 %v663, 2147483648
  %v666 = vmul.f32 %v665, 1.442695
  %v667 = vpow.pop %v666
  %v668 = vadd.f32 %v667, 1.0
  %v669 = vrcp.pop %v668
  %v670 = vmul.f32 1.0, %v669
  %v671 = vrot.slane %v655, 2
  %v673 = vtanh.pop %v671
  %v674 = vrot.slane %v655, 3
  %v676 = vxor.u32 %v674, 2147483648
  %v677 = vmul.f32 %v676, 1.442695
  %v678 = vpow.pop %v677
  %v679 = vadd.f32 %v678, 1.0
  %v680 = vrcp.pop %v679
  %v681 = vmul.f32 1.0, %v680
  %v682 = vmul.f32 %v670, %v345
  %v683 = vmul.f32 %v661, %v673
  %v684 = vadd.f32 %v682, %v683
  %v685 = vtanh.pop %v684
  %v686 = vmul.f32 %v681, %v685
  %s687 = scalar_lea.vmem %s2, 1
  %688 = vst [vmem:[%s687] sm:$0x1] %v686
  // Predicated region
  $region10: #{lstm_model_forward.8} parent=0 // pred_check
    _
  $region11: #{lstm_model_forward.8} parent=0 // pred_check_branch
    %690 = sbr.rel (0) target = $region13
  $region12: #{lstm_model_forward.8} parent=0 // pred_region
    _
  $region13: #{lstm_model_forward.8} parent=0 // pred_fallthru
    _
  // Predicated region
  $region14: #{lstm_model_forward.8} parent=0 // pred_check
    _
  $region15: #{lstm_model_forward.8} parent=0 // pred_check_branch
    %692 = sbr.rel (0) target = $region17
  $region16: #{lstm_model_forward.8} parent=0 // pred_region
    _
  $region17: #{lstm_model_forward.8} parent=0 // pred_fallthru
    _

// kernel: lstm_model_forward.7
$region0: #{lstm_model_forward.7}
  #allocation0 [shape = 'u32[]', space=smem, size = 0x4, offset = 0x4, fixed_abs, tag = 'smem constant byte address 0x4 - core index']
  #allocation1 [shape = 'u32[144,128]{1,0:T(1,128)}', space=vmem, size = 0x12000, scoped, tag = 'internal scratch']
  %s0 = inlined_call_operand.vmem [shape: bf16[2,256], index: 0, kind: input, shape index: {}]
  %s1 = inlined_call_operand.vmem [shape: bf16[256,512], index: 1, kind: input, shape index: {}]
  %s2 = inlined_call_operand.vmem [shape: f32[1,512], index: 2, kind: input, shape index: {}]
  %s3 = inlined_call_operand.vmem [shape: f32[2,512], index: 3, kind: output, shape index: {}]
  %s4 = sld [smem:[#allocation0]]
  $region22: #{lstm_model_forward.7} parent=0
    _
  %s6 = ssub.s32 1, %s4
  %s7 = scalar_select 0, %s6, %s4
  // Predicated region
  $region2: #{lstm_model_forward.7} parent=0 // pred_check
    _
  $region3: #{lstm_model_forward.7} parent=0 // pred_check_branch
    %9 = sbr.rel (0) target = $region5
  $region4: #{lstm_model_forward.7} parent=0 // pred_region
    _
  $region5: #{lstm_model_forward.7} parent=0 // pred_fallthru
    _
  // Predicated region
  $region6: #{lstm_model_forward.7} parent=0 // pred_check
    _
  $region7: #{lstm_model_forward.7} parent=0 // pred_check_branch
    %11 = sbr.rel (0) target = $region9
  $region8: #{lstm_model_forward.7} parent=0 // pred_region
    _
  $region9: #{lstm_model_forward.7} parent=0 // pred_fallthru
    _
  // Predicated region
  $region10: #{lstm_model_forward.7} parent=0 // pred_check
    _
  $region11: #{lstm_model_forward.7} parent=0 // pred_check_branch
    %13 = sbr.rel (0) target = $region13
  $region12: #{lstm_model_forward.7} parent=0 // pred_region
    _
  $region13: #{lstm_model_forward.7} parent=0 // pred_fallthru
    _
  %v14 = vld [vmem:[%s0] sm:$0x3]
  %v15 = vld [vmem:[%s1] sm:$0xff]
  %v16 = vld [vmem:[%s1 + $0x8] sm:$0xff]
  %v17 = vld [vmem:[%s1 + $0x10] sm:$0xff]
  %v18 = vld [vmem:[%s1 + $0x18] sm:$0xff]
  %v19 = vld [vmem:[%s1 + $0x20] sm:$0xff]
  %v20 = vld [vmem:[%s1 + $0x28] sm:$0xff]
  %v21 = vld [vmem:[%s1 + $0x30] sm:$0xff]
  %v22 = vld [vmem:[%s1 + $0x38] sm:$0xff]
  %v23 = vld [vmem:[%s1 + $0x40] sm:$0xff]
  %v24 = vld [vmem:[%s1 + $0x48] sm:$0xff]
  %v25 = vld [vmem:[%s1 + $0x50] sm:$0xff]
  %v26 = vld [vmem:[%s1 + $0x58] sm:$0xff]
  %v27 = vld [vmem:[%s1 + $0x60] sm:$0xff]
  %v28 = vld [vmem:[%s1 + $0x68] sm:$0xff]
  %v29 = vld [vmem:[%s1 + $0x70] sm:$0xff]
  %v30 = vld [vmem:[%s1 + $0x78] sm:$0xff]
  %v31 = vld [vmem:[%s1 + $0x80] sm:$0xff]
  %v32 = vld [vmem:[%s1 + $0x88] sm:$0xff]
  %v33 = vld [vmem:[%s1 + $0x90] sm:$0xff]
  %v34 = vld [vmem:[%s1 + $0x98] sm:$0xff]
  %v35 = vld [vmem:[%s1 + $0xa0] sm:$0xff]
  %v36 = vld [vmem:[%s1 + $0xa8] sm:$0xff]
  %v37 = vld [vmem:[%s1 + $0xb0] sm:$0xff]
  %v38 = vld [vmem:[%s1 + $0xb8] sm:$0xff]
  %v39 = vld [vmem:[%s1 + $0xc0] sm:$0xff]
  %v40 = vld [vmem:[%s1 + $0xc8] sm:$0xff]
  %v41 = vld [vmem:[%s1 + $0xd0] sm:$0xff]
  %v42 = vld [vmem:[%s1 + $0xd8] sm:$0xff]
  %v43 = vld [vmem:[%s1 + $0xe0] sm:$0xff]
  %v44 = vld [vmem:[%s1 + $0xe8] sm:$0xff]
  %v45 = vld [vmem:[%s1 + $0xf0] sm:$0xff]
  %v46 = vld [vmem:[%s1 + $0xf8] sm:$0xff]
  %v47 = vld [vmem:[%s1 + $0x100] sm:$0xff]
  %v48 = vld [vmem:[%s1 + $0x108] sm:$0xff]
  %v49 = vld [vmem:[%s1 + $0x110] sm:$0xff]
  %v50 = vld [vmem:[%s1 + $0x118] sm:$0xff]
  %v51 = vld [vmem:[%s1 + $0x120] sm:$0xff]
  %v52 = vld [vmem:[%s1 + $0x128] sm:$0xff]
  %v53 = vld [vmem:[%s1 + $0x130] sm:$0xff]
  %v54 = vld [vmem:[%s1 + $0x138] sm:$0xff]
  %v55 = vld [vmem:[%s1 + $0x140] sm:$0xff]
  %v56 = vld [vmem:[%s1 + $0x148] sm:$0xff]
  %v57 = vld [vmem:[%s1 + $0x150] sm:$0xff]
  %v58 = vld [vmem:[%s1 + $0x158] sm:$0xff]
  %v59 = vld [vmem:[%s1 + $0x160] sm:$0xff]
  %v60 = vld [vmem:[%s1 + $0x168] sm:$0xff]
  %v61 = vld [vmem:[%s1 + $0x170] sm:$0xff]
  %v62 = vld [vmem:[%s1 + $0x178] sm:$0xff]
  %v63 = vld [vmem:[%s1 + $0x180] sm:$0xff]
  %v64 = vld [vmem:[%s1 + $0x188] sm:$0xff]
  %v65 = vld [vmem:[%s1 + $0x190] sm:$0xff]
  %v66 = vld [vmem:[%s1 + $0x198] sm:$0xff]
  %v67 = vld [vmem:[%s1 + $0x1a0] sm:$0xff]
  %v68 = vld [vmem:[%s1 + $0x1a8] sm:$0xff]
  %v69 = vld [vmem:[%s1 + $0x1b0] sm:$0xff]
  %v70 = vld [vmem:[%s1 + $0x1b8] sm:$0xff]
  %v71 = vld [vmem:[%s1 + $0x1c0] sm:$0xff]
  %v72 = vld [vmem:[%s1 + $0x1c8] sm:$0xff]
  %v73 = vld [vmem:[%s1 + $0x1d0] sm:$0xff]
  %v74 = vld [vmem:[%s1 + $0x1d8] sm:$0xff]
  %v75 = vld [vmem:[%s1 + $0x1e0] sm:$0xff]
  %v76 = vld [vmem:[%s1 + $0x1e8] sm:$0xff]
  %v77 = vld [vmem:[%s1 + $0x1f0] sm:$0xff]
  %v78 = vld [vmem:[%s1 + $0x1f8] sm:$0xff]
  %v79 = vld [vmem:[%s2] sm:$0xf]
  %v81 = vlaneseq
  %v82 = vshrl.u32 %v81, 7
  %v83 = vsub.s32 0, %v82
  %v84 = vrot.slane %v79, %v83
  %v85 = vlaneseq
  %v86 = vshrl.u32 %v85, 7
  %v87 = vsub.s32 1, %v86
  %v88 = vrot.slane %v79, %v87
  %v89 = vlaneseq
  %v90 = vshrl.u32 %v89, 7
  %v91 = vsub.s32 2, %v90
  %v92 = vrot.slane %v79, %v91
  %v93 = vlaneseq
  %v94 = vshrl.u32 %v93, 7
  %v95 = vsub.s32 3, %v94
  %v96 = vrot.slane %v79, %v95
  %v103 = vunpack.c.l.s4 1966171168
  %v104 = vunpack.c.0.s8 %v103
  %v105 = vlaneseq
  %v106 = vshrl.u32 %v105, 7
  %v107 = vsub.s32 %v104, %v106
  %v108 = vrot.slane %v14, %v107
  %v109 = vcombine.high %v108, %v108
  %v111 = vunpack.c.l.s4 1966171168
  %v112 = vunpack.c.0.s8 %v111
  %v113 = vlaneseq
  %v114 = vshrl.u32 %v113, 7
  %v115 = vsub.s32 %v112, %v114
  %v116 = vrot.slane %v108, %v115
  %v118 = vunpack.c.l.s4 1966171168
  %v119 = vunpack.c.0.s8 %v118
  %v120 = vlaneseq
  %v121 = vshrl.u32 %v120, 7
  %v122 = vsub.s32 %v119, %v121
  %v123 = vrot.slane %v109, %v122
  %v190 = vunpack.c.l.b16 %v15
  %v191 = vunpack.c.h.b16 %v15
  %v192 = vunpack.c.l.b16 %v16
  %v193 = vunpack.c.h.b16 %v16
  %v194 = vunpack.c.l.b16 %v17
  %v195 = vunpack.c.h.b16 %v17
  %v196 = vunpack.c.l.b16 %v18
  %v197 = vunpack.c.h.b16 %v18
  %v198 = vunpack.c.l.b16 %v19
  %v199 = vunpack.c.h.b16 %v19
  %v200 = vunpack.c.l.b16 %v20
  %v201 = vunpack.c.h.b16 %v20
  %v202 = vunpack.c.l.b16 %v21
  %v203 = vunpack.c.h.b16 %v21
  %v204 = vunpack.c.l.b16 %v22
  %v205 = vunpack.c.h.b16 %v22
  %v206 = vunpack.c.l.b16 %v23
  %v207 = vunpack.c.h.b16 %v23
  %v208 = vunpack.c.l.b16 %v24
  %v209 = vunpack.c.h.b16 %v24
  %v210 = vunpack.c.l.b16 %v25
  %v211 = vunpack.c.h.b16 %v25
  %v212 = vunpack.c.l.b16 %v26
  %v213 = vunpack.c.h.b16 %v26
  %v214 = vunpack.c.l.b16 %v27
  %v215 = vunpack.c.h.b16 %v27
  %v216 = vunpack.c.l.b16 %v28
  %v217 = vunpack.c.h.b16 %v28
  %v218 = vunpack.c.l.b16 %v29
  %v219 = vunpack.c.h.b16 %v29
  %v220 = vunpack.c.l.b16 %v30
  %v221 = vunpack.c.h.b16 %v30
  %v222 = vunpack.c.l.b16 %v31
  %v223 = vunpack.c.h.b16 %v31
  %v224 = vunpack.c.l.b16 %v32
  %v225 = vunpack.c.h.b16 %v32
  %v226 = vunpack.c.l.b16 %v33
  %v227 = vunpack.c.h.b16 %v33
  %v228 = vunpack.c.l.b16 %v34
  %v229 = vunpack.c.h.b16 %v34
  %v230 = vunpack.c.l.b16 %v35
  %v231 = vunpack.c.h.b16 %v35
  %v232 = vunpack.c.l.b16 %v36
  %v233 = vunpack.c.h.b16 %v36
  %v234 = vunpack.c.l.b16 %v37
  %v235 = vunpack.c.h.b16 %v37
  %v236 = vunpack.c.l.b16 %v38
  %v237 = vunpack.c.h.b16 %v38
  %v238 = vunpack.c.l.b16 %v39
  %v239 = vunpack.c.h.b16 %v39
  %v240 = vunpack.c.l.b16 %v40
  %v241 = vunpack.c.h.b16 %v40
  %v242 = vunpack.c.l.b16 %v41
  %v243 = vunpack.c.h.b16 %v41
  %v244 = vunpack.c.l.b16 %v42
  %v245 = vunpack.c.h.b16 %v42
  %v246 = vunpack.c.l.b16 %v43
  %v247 = vunpack.c.h.b16 %v43
  %v248 = vunpack.c.l.b16 %v44
  %v249 = vunpack.c.h.b16 %v44
  %v250 = vunpack.c.l.b16 %v45
  %v251 = vunpack.c.h.b16 %v45
  %v252 = vunpack.c.l.b16 %v46
  %v253 = vunpack.c.h.b16 %v46
  %v254 = vunpack.c.l.b16 %v47
  %v255 = vunpack.c.h.b16 %v47
  %v256 = vunpack.c.l.b16 %v48
  %v257 = vunpack.c.h.b16 %v48
  %v258 = vunpack.c.l.b16 %v49
  %v259 = vunpack.c.h.b16 %v49
  %v260 = vunpack.c.l.b16 %v50
  %v261 = vunpack.c.h.b16 %v50
  %v262 = vunpack.c.l.b16 %v51
  %v263 = vunpack.c.h.b16 %v51
  %v264 = vunpack.c.l.b16 %v52
  %v265 = vunpack.c.h.b16 %v52
  %v266 = vunpack.c.l.b16 %v53
  %v267 = vunpack.c.h.b16 %v53
  %v268 = vunpack.c.l.b16 %v54
  %v269 = vunpack.c.h.b16 %v54
  %v270 = vunpack.c.l.b16 %v55
  %v271 = vunpack.c.h.b16 %v55
  %v272 = vunpack.c.l.b16 %v56
  %v273 = vunpack.c.h.b16 %v56
  %v274 = vunpack.c.l.b16 %v57
  %v275 = vunpack.c.h.b16 %v57
  %v276 = vunpack.c.l.b16 %v58
  %v277 = vunpack.c.h.b16 %v58
  %v278 = vunpack.c.l.b16 %v59
  %v279 = vunpack.c.h.b16 %v59
  %v280 = vunpack.c.l.b16 %v60
  %v281 = vunpack.c.h.b16 %v60
  %v282 = vunpack.c.l.b16 %v61
  %v283 = vunpack.c.h.b16 %v61
  %v284 = vunpack.c.l.b16 %v62
  %v285 = vunpack.c.h.b16 %v62
  %v286 = vunpack.c.l.b16 %v63
  %v287 = vunpack.c.h.b16 %v63
  %v288 = vunpack.c.l.b16 %v64
  %v289 = vunpack.c.h.b16 %v64
  %v290 = vunpack.c.l.b16 %v65
  %v291 = vunpack.c.h.b16 %v65
  %v292 = vunpack.c.l.b16 %v66
  %v293 = vunpack.c.h.b16 %v66
  %v294 = vunpack.c.l.b16 %v67
  %v295 = vunpack.c.h.b16 %v67
  %v296 = vunpack.c.l.b16 %v68
  %v297 = vunpack.c.h.b16 %v68
  %v298 = vunpack.c.l.b16 %v69
  %v299 = vunpack.c.h.b16 %v69
  %v300 = vunpack.c.l.b16 %v70
  %v301 = vunpack.c.h.b16 %v70
  %v302 = vunpack.c.l.b16 %v71
  %v303 = vunpack.c.h.b16 %v71
  %v304 = vunpack.c.l.b16 %v72
  %v305 = vunpack.c.h.b16 %v72
  %v306 = vunpack.c.l.b16 %v73
  %v307 = vunpack.c.h.b16 %v73
  %v308 = vunpack.c.l.b16 %v74
  %v309 = vunpack.c.h.b16 %v74
  %v310 = vunpack.c.l.b16 %v75
  %v311 = vunpack.c.h.b16 %v75
  %v312 = vunpack.c.l.b16 %v76
  %v313 = vunpack.c.h.b16 %v76
  %v314 = vunpack.c.l.b16 %v77
  %v315 = vunpack.c.h.b16 %v77
  %v316 = vunpack.c.l.b16 %v78
  %v317 = vunpack.c.h.b16 %v78
  %v318 = vpack.c.b16 %v194, %v190
  %v319 = vpack.c.b16 %v195, %v191
  %v320 = vpack.c.b16 %v196, %v192
  %v321 = vpack.c.b16 %v197, %v193
  %v322 = vpack.c.b16 %v202, %v198
  %v323 = vpack.c.b16 %v203, %v199
  %v324 = vpack.c.b16 %v204, %v200
  %v325 = vpack.c.b16 %v205, %v201
  %v326 = vpack.c.b16 %v210, %v206
  %v327 = vpack.c.b16 %v211, %v207
  %v328 = vpack.c.b16 %v212, %v208
  %v329 = vpack.c.b16 %v213, %v209
  %v330 = vpack.c.b16 %v218, %v214
  %v331 = vpack.c.b16 %v219, %v215
  %v332 = vpack.c.b16 %v220, %v216
  %v333 = vpack.c.b16 %v221, %v217
  %v334 = vpack.c.b16 %v226, %v222
  %v335 = vpack.c.b16 %v227, %v223
  %v336 = vpack.c.b16 %v228, %v224
  %v337 = vpack.c.b16 %v229, %v225
  %v338 = vpack.c.b16 %v234, %v230
  %v339 = vpack.c.b16 %v235, %v231
  %v340 = vpack.c.b16 %v236, %v232
  %v341 = vpack.c.b16 %v237, %v233
  %v342 = vpack.c.b16 %v242, %v238
  %v343 = vpack.c.b16 %v243, %v239
  %v344 = vpack.c.b16 %v244, %v240
  %v345 = vpack.c.b16 %v245, %v241
  %v346 = vpack.c.b16 %v250, %v246
  %v347 = vpack.c.b16 %v251, %v247
  %v348 = vpack.c.b16 %v252, %v248
  %v349 = vpack.c.b16 %v253, %v249
  %v350 = vpack.c.b16 %v258, %v254
  %v351 = vpack.c.b16 %v259, %v255
  %v352 = vpack.c.b16 %v260, %v256
  %v353 = vpack.c.b16 %v261, %v257
  %v354 = vpack.c.b16 %v266, %v262
  %v355 = vpack.c.b16 %v267, %v263
  %v356 = vpack.c.b16 %v268, %v264
  %v357 = vpack.c.b16 %v269, %v265
  %v358 = vpack.c.b16 %v274, %v270
  %v359 = vpack.c.b16 %v275, %v271
  %v360 = vpack.c.b16 %v276, %v272
  %v361 = vpack.c.b16 %v277, %v273
  %v362 = vpack.c.b16 %v282, %v278
  %v363 = vpack.c.b16 %v283, %v279
  %v364 = vpack.c.b16 %v284, %v280
  %v365 = vpack.c.b16 %v285, %v281
  %v366 = vpack.c.b16 %v290, %v286
  %v367 = vpack.c.b16 %v291, %v287
  %v368 = vpack.c.b16 %v292, %v288
  %v369 = vpack.c.b16 %v293, %v289
  %v370 = vpack.c.b16 %v298, %v294
  %v371 = vpack.c.b16 %v299, %v295
  %v372 = vpack.c.b16 %v300, %v296
  %v373 = vpack.c.b16 %v301, %v297
  %v374 = vpack.c.b16 %v306, %v302
  %v375 = vpack.c.b16 %v307, %v303
  %v376 = vpack.c.b16 %v308, %v304
  %v377 = vpack.c.b16 %v309, %v305
  %v378 = vpack.c.b16 %v314, %v310
  %v379 = vpack.c.b16 %v315, %v311
  %v380 = vpack.c.b16 %v316, %v312
  %v381 = vpack.c.b16 %v317, %v313
  %446 = vmatprep.subr.bf16.mxu0 %v319
  %447 = vmatpush1.bf16.msra.mxu0 %v318
  %448 = vmatprep.subr.bf16.mxu0 %v323
  %449 = vmatpush1.bf16.msra.mxu0 %v322
  %450 = vmatprep.subr.bf16.mxu0 %v327
  %451 = vmatpush1.bf16.msra.mxu0 %v326
  %452 = vmatprep.subr.bf16.mxu0 %v331
  %453 = vmatpush1.bf16.msra.mxu0 %v330
  %454 = vmatprep.subr.bf16.mxu0 %v335
  %455 = vmatpush1.bf16.msra.mxu0 %v334
  %456 = vmatprep.subr.bf16.mxu0 %v339
  %457 = vmatpush1.bf16.msra.mxu0 %v338
  %458 = vmatprep.subr.bf16.mxu0 %v343
  %459 = vmatpush1.bf16.msra.mxu0 %v342
  %460 = vmatprep.subr.bf16.mxu0 %v347
  %461 = vmatpush1.bf16.msra.mxu0 %v346
  %462 = vmatprep.subr.bf16.mxu0 %v351
  %463 = vmatpush1.bf16.msra.mxu0 %v350
  %464 = vmatprep.subr.bf16.mxu0 %v355
  %465 = vmatpush1.bf16.msra.mxu0 %v354
  %466 = vmatprep.subr.bf16.mxu0 %v359
  %467 = vmatpush1.bf16.msra.mxu0 %v358
  %468 = vmatprep.subr.bf16.mxu0 %v363
  %469 = vmatpush1.bf16.msra.mxu0 %v362
  %470 = vmatprep.subr.bf16.mxu0 %v367
  %471 = vmatpush1.bf16.msra.mxu0 %v366
  %472 = vmatprep.subr.bf16.mxu0 %v371
  %473 = vmatpush1.bf16.msra.mxu0 %v370
  %474 = vmatprep.subr.bf16.mxu0 %v375
  %475 = vmatpush1.bf16.msra.mxu0 %v374
  %476 = vmatprep.subr.bf16.mxu0 %v379
  %477 = vmatpush1.bf16.msra.mxu0 %v378
  %478 = vmatprep.mubr.bf16.mxu0 %v123
  %479 = vmatmul.mubr.bf16.gmra.mrb[0].mxu0 %v116
  %v480 = vpop.f32.mrb[0].mxu0
  %v481 = vadd.f32 %v84, %v480
  %v482 = vpop.f32.mrb[0].mxu0
  %v483 = vadd.f32 %v88, %v482
  %v484 = vpop.f32.mrb[0].mxu0
  %v485 = vpop.f32.mrb[0].mxu0
  %486 = vdwg.mxu0
  %487 = vmatprep.subr.bf16.mxu0 %v321
  %488 = vmatpush1.bf16.msra.mxu0 %v320
  %489 = vmatprep.subr.bf16.mxu0 %v325
  %490 = vmatpush1.bf16.msra.mxu0 %v324
  %491 = vmatprep.subr.bf16.mxu0 %v329
  %492 = vmatpush1.bf16.msra.mxu0 %v328
  %493 = vmatprep.subr.bf16.mxu0 %v333
  %494 = vmatpush1.bf16.msra.mxu0 %v332
  %495 = vmatprep.subr.bf16.mxu0 %v337
  %496 = vmatpush1.bf16.msra.mxu0 %v336
  %497 = vmatprep.subr.bf16.mxu0 %v341
  %498 = vmatpush1.bf16.msra.mxu0 %v340
  %499 = vmatprep.subr.bf16.mxu0 %v345
  %500 = vmatpush1.bf16.msra.mxu0 %v344
  %501 = vmatprep.subr.bf16.mxu0 %v349
  %502 = vmatpush1.bf16.msra.mxu0 %v348
  %503 = vmatprep.subr.bf16.mxu0 %v353
  %504 = vmatpush1.bf16.msra.mxu0 %v352
  %505 = vmatprep.subr.bf16.mxu0 %v357
  %506 = vmatpush1.bf16.msra.mxu0 %v356
  %507 = vmatprep.subr.bf16.mxu0 %v361
  %508 = vmatpush1.bf16.msra.mxu0 %v360
  %509 = vmatprep.subr.bf16.mxu0 %v365
  %510 = vmatpush1.bf16.msra.mxu0 %v364
  %511 = vmatprep.subr.bf16.mxu0 %v369
  %512 = vmatpush1.bf16.msra.mxu0 %v368
  %513 = vmatprep.subr.bf16.mxu0 %v373
  %514 = vmatpush1.bf16.msra.mxu0 %v372
  %515 = vmatprep.subr.bf16.mxu0 %v377
  %516 = vmatpush1.bf16.msra.mxu0 %v376
  %517 = vmatprep.subr.bf16.mxu0 %v381
  %518 = vmatpush1.bf16.msra.mxu0 %v380
  %519 = vmatprep.mubr.bf16.mxu0 %v123
  %520 = vmatmul.mubr.bf16.gmra.mrb[0].mxu0 %v116
  %v521 = vpop.f32.mrb[0].mxu0
  %v522 = vadd.f32 %v92, %v521
  %v523 = vpop.f32.mrb[0].mxu0
  %v524 = vadd.f32 %v96, %v523
  %v525 = vpop.f32.mrb[0].mxu0
  %v526 = vpop.f32.mrb[0].mxu0
  %527 = vdwg.mxu0
  %v532 = vcombine.low %v481, %v483
  %v533 = vcombine.low %v522, %v524
  %v535 = vunpack.c.l.s4 1983009808
  %v536 = vunpack.c.0.s8 %v535
  %v537 = vlaneseq
  %v538 = vshrl.u32 %v537, 7
  %v539 = vsub.s32 %v536, %v538
  %v540 = vrot.slane %v532, %v539
  %v542 = vunpack.c.l.s4 1983009808
  %v543 = vunpack.c.0.s8 %v542
  %v544 = vlaneseq
  %v545 = vshrl.u32 %v544, 7
  %v546 = vsub.s32 %v543, %v545
  %v547 = vrot.slane %v533, %v546
  %v548 = vcombine.low %v540, %v547
  %550 = vst [vmem:[%s3] sm:$0xff] %v548
  // Predicated region
  $region14: #{lstm_model_forward.7} parent=0 // pred_check
    _
  $region15: #{lstm_model_forward.7} parent=0 // pred_check_branch
    %552 = sbr.rel (0) target = $region17
  $region16: #{lstm_model_forward.7} parent=0 // pred_region
    _
  $region17: #{lstm_model_forward.7} parent=0 // pred_fallthru
    _
  // Predicated region
  $region18: #{lstm_model_forward.7} parent=0 // pred_check
    _
  $region19: #{lstm_model_forward.7} parent=0 // pred_check_branch
    %554 = sbr.rel (0) target = $region21
  $region20: #{lstm_model_forward.7} parent=0 // pred_region
    _
  $region21: #{lstm_model_forward.7} parent=0 // pred_fallthru
    _

// kernel: lstm_model_forward.9
$region0: #{lstm_model_forward.9}
  #allocation0 [shape = 'u32[]', space=smem, size = 0x4, offset = 0x4, fixed_abs, tag = 'smem constant byte address 0x4 - core index']
  #allocation1 [shape = 'u32[144,128]{1,0:T(1,128)}', space=vmem, size = 0x12000, scoped, tag = 'internal scratch']
  %s0 = inlined_call_operand.vmem [shape: f32[2,128], index: 0, kind: input, shape index: {}]
  %s1 = inlined_call_operand.vmem [shape: bf16[128,128], index: 1, kind: input, shape index: {}]
  %s2 = inlined_call_operand.vmem [shape: f32[1,128], index: 2, kind: input, shape index: {}]
  %s3 = inlined_call_operand.hbm [shape: f32[2,128], index: 3, kind: output, shape index: {}]
  %s4 = sld [smem:[#allocation0]]
  $region22: #{lstm_model_forward.9} parent=0
    _
  %s6 = ssub.s32 1, %s4
  %s7 = scalar_select 0, %s6, %s4
  $region1: #{lstm_model_forward.9} parent=0
    #allocation2 [shape = 'u8[1024]{0}', space=vmem, size = 0x400, scoped, tag = 'output window, operand 0, single buffered']
    #allocation3 [shape = 's32[1]{0}', space=sflag, size = 0x4, scoped, tag = 'scoped memory for lstm_model_forward.9']
    %8 = vsyncpa [#allocation3], 0
    // Predicated region
    $region2: #{lstm_model_forward.9} parent=1 // pred_check
      _
    $region3: #{lstm_model_forward.9} parent=1 // pred_check_branch
      %10 = sbr.rel (0) target = $region5
    $region4: #{lstm_model_forward.9} parent=1 // pred_region
      _
    $region5: #{lstm_model_forward.9} parent=1 // pred_fallthru
      _
    // Predicated region
    $region6: #{lstm_model_forward.9} parent=1 // pred_check
      _
    $region7: #{lstm_model_forward.9} parent=1 // pred_check_branch
      %12 = sbr.rel (0) target = $region9
    $region8: #{lstm_model_forward.9} parent=1 // pred_region
      _
    $region9: #{lstm_model_forward.9} parent=1 // pred_fallthru
      _
    // Predicated region
    $region10: #{lstm_model_forward.9} parent=1 // pred_check
      _
    $region11: #{lstm_model_forward.9} parent=1 // pred_check_branch
      %14 = sbr.rel (0) target = $region13
    $region12: #{lstm_model_forward.9} parent=1 // pred_region
      _
    $region13: #{lstm_model_forward.9} parent=1 // pred_fallthru
      _
    %v16 = vld [vmem:[%s0] sm:$0x3]
    %v17 = vpack.c.bf16 %v16, %v16
    %v18 = vld [vmem:[%s1] sm:$0xf]
    %v19 = vld [vmem:[%s1 + $0x4] sm:$0xf]
    %v20 = vld [vmem:[%s1 + $0x8] sm:$0xf]
    %v21 = vld [vmem:[%s1 + $0xc] sm:$0xf]
    %v22 = vld [vmem:[%s1 + $0x10] sm:$0xf]
    %v23 = vld [vmem:[%s1 + $0x14] sm:$0xf]
    %v24 = vld [vmem:[%s1 + $0x18] sm:$0xf]
    %v25 = vld [vmem:[%s1 + $0x1c] sm:$0xf]
    %v26 = vld [vmem:[%s1 + $0x20] sm:$0xf]
    %v27 = vld [vmem:[%s1 + $0x24] sm:$0xf]
    %v28 = vld [vmem:[%s1 + $0x28] sm:$0xf]
    %v29 = vld [vmem:[%s1 + $0x2c] sm:$0xf]
    %v30 = vld [vmem:[%s1 + $0x30] sm:$0xf]
    %v31 = vld [vmem:[%s1 + $0x34] sm:$0xf]
    %v32 = vld [vmem:[%s1 + $0x38] sm:$0xf]
    %v33 = vld [vmem:[%s1 + $0x3c] sm:$0xf]
    %v34 = vld [vmem:[%s2] sm:$0x1]
    %v36 = vlaneseq
    %v37 = vshrl.u32 %v36, 7
    %v38 = vsub.s32 0, %v37
    %v39 = vrot.slane %v34, %v38
    %v57 = vunpack.c.l.b16 %v18
    %v58 = vunpack.c.l.b16 %v19
    %v59 = vunpack.c.l.b16 %v20
    %v60 = vunpack.c.l.b16 %v21
    %v61 = vunpack.c.l.b16 %v22
    %v62 = vunpack.c.l.b16 %v23
    %v63 = vunpack.c.l.b16 %v24
    %v64 = vunpack.c.l.b16 %v25
    %v65 = vunpack.c.l.b16 %v26
    %v66 = vunpack.c.l.b16 %v27
    %v67 = vunpack.c.l.b16 %v28
    %v68 = vunpack.c.l.b16 %v29
    %v69 = vunpack.c.l.b16 %v30
    %v70 = vunpack.c.l.b16 %v31
    %v71 = vunpack.c.l.b16 %v32
    %v72 = vunpack.c.l.b16 %v33
    %v73 = vpack.c.b16 %v58, %v57
    %v74 = vpack.c.b16 %v60, %v59
    %v75 = vpack.c.b16 %v62, %v61
    %v76 = vpack.c.b16 %v64, %v63
    %v77 = vpack.c.b16 %v66, %v65
    %v78 = vpack.c.b16 %v68, %v67
    %v79 = vpack.c.b16 %v70, %v69
    %v80 = vpack.c.b16 %v72, %v71
    %89 = vmatprep.subr.bf16.mxu0 0
    %90 = vmatpush1.bf16.msra.mxu0 %v73
    %91 = vmatprep.subr.bf16.mxu0 0
    %92 = vmatpush1.bf16.msra.mxu0 %v74
    %93 = vmatprep.subr.bf16.mxu0 0
    %94 = vmatpush1.bf16.msra.mxu0 %v75
    %95 = vmatprep.subr.bf16.mxu0 0
    %96 = vmatpush1.bf16.msra.mxu0 %v76
    %97 = vmatprep.subr.bf16.mxu0 0
    %98 = vmatpush1.bf16.msra.mxu0 %v77
    %99 = vmatprep.subr.bf16.mxu0 0
    %100 = vmatpush1.bf16.msra.mxu0 %v78
    %101 = vmatprep.subr.bf16.mxu0 0
    %102 = vmatpush1.bf16.msra.mxu0 %v79
    %103 = vmatprep.subr.bf16.mxu0 0
    %104 = vmatpush1.bf16.msra.mxu0 %v80
    %105 = vmatprep.subr.bf16.mxu0 0
    %106 = vmatpush1.bf16.msra.mxu0 0
    %107 = vmatprep.subr.bf16.mxu0 0
    %108 = vmatpush1.bf16.msra.mxu0 0
    %109 = vmatprep.subr.bf16.mxu0 0
    %110 = vmatpush1.bf16.msra.mxu0 0
    %111 = vmatprep.subr.bf16.mxu0 0
    %112 = vmatpush1.bf16.msra.mxu0 0
    %113 = vmatprep.subr.bf16.mxu0 0
    %114 = vmatpush1.bf16.msra.mxu0 0
    %115 = vmatprep.subr.bf16.mxu0 0
    %116 = vmatpush1.bf16.msra.mxu0 0
    %117 = vmatprep.subr.bf16.mxu0 0
    %118 = vmatpush1.bf16.msra.mxu0 0
    %119 = vmatprep.subr.bf16.mxu0 0
    %120 = vmatpush1.bf16.msra.mxu0 0
    %121 = vmatprep.mubr.bf16.mxu0 0
    %122 = vmatmul.mubr.bf16.gmra.mrb[0].mxu0 %v17
    %v123 = vpop.f32.mrb[0].mxu0
    %v124 = vadd.f32 %v39, %v123
    %v125 = vpop.f32.mrb[0].mxu0
    %v126 = vpop.f32.mrb[0].mxu0
    %v127 = vpop.f32.mrb[0].mxu0
    %128 = vdwg.mxu0
    %129 = vst [vmem:[#allocation2] sm:$0x3] %v124
    // Predicated region
    $region14: #{lstm_model_forward.9} parent=1 // pred_check
      _
    $region15: #{lstm_model_forward.9} parent=1 // pred_check_branch
      %131 = sbr.rel (0) target = $region17
    $region16: #{lstm_model_forward.9} parent=1 // pred_region
      %s133 = ssub.s32 32, 32
      %134 = vsyncadd [#allocation3], %s133
      %s136 = sshll.u32 [#allocation2], 4
      %s137 = int_to_ptr.vmem [resolvable:$true] %s136
      %139 = dma.vmem_to_hbm [thread:$0]  %s137, 32, %s3, [#allocation3]
    $region17: #{lstm_model_forward.9} parent=1 // pred_fallthru
      _
    // Predicated region
    $region18: #{lstm_model_forward.9} parent=1 // pred_check
      _
    $region19: #{lstm_model_forward.9} parent=1 // pred_check_branch
      %141 = sbr.rel (0) target = $region21
    $region20: #{lstm_model_forward.9} parent=1 // pred_region
      %142 = dma.done [#allocation3], 32
    $region21: #{lstm_model_forward.9} parent=1 // pred_fallthru
      _
    %143 = vsyncpa [#allocation3], 1

// kernel: lstm_model_forward.6
$region0: #{lstm_model_forward.6}
  #allocation0 [shape = 'u32[]', space=smem, size = 0x4, offset = 0x4, fixed_abs, tag = 'smem constant byte address 0x4 - core index']
  #allocation1 [shape = 'u32[144,128]{1,0:T(1,128)}', space=vmem, size = 0x12000, scoped, tag = 'internal scratch']
  %s0 = inlined_call_operand.vmem [shape: f32[8,2,1024], index: 0, kind: input, shape index: {}]
  %s1 = inlined_call_operand.vmem [shape: bf16[128,512], index: 1, kind: input, shape index: {}]
  %s2 = inlined_call_operand.vmem [shape: bf16[128,512], index: 2, kind: input, shape index: {}]
  %s3 = inlined_call_operand.vmem [shape: bf16[8,2,128], index: 3, kind: output, shape index: {0}]
  %s4 = inlined_call_operand.vmem [shape: bf16[8,2,128], index: 4, kind: output, shape index: {1}]
  %5 = xla_tuple %s3, %s4
  %s6 = sld [smem:[#allocation0]]
  $region30: #{lstm_model_forward.6} parent=0
    _
  %s8 = ssub.s32 1, %s6
  %s9 = scalar_select 0, %s8, %s6
  // Predicated region
  $region2: #{lstm_model_forward.6} parent=0 // pred_check
    _
  $region3: #{lstm_model_forward.6} parent=0 // pred_check_branch
    %11 = sbr.rel (0) target = $region5
  $region4: #{lstm_model_forward.6} parent=0 // pred_region
    _
  $region5: #{lstm_model_forward.6} parent=0 // pred_fallthru
    _
  // Predicated region
  $region6: #{lstm_model_forward.6} parent=0 // pred_check
    _
  $region7: #{lstm_model_forward.6} parent=0 // pred_check_branch
    %13 = sbr.rel (0) target = $region9
  $region8: #{lstm_model_forward.6} parent=0 // pred_region
    _
  $region9: #{lstm_model_forward.6} parent=0 // pred_fallthru
    _
  // Predicated region
  $region10: #{lstm_model_forward.6} parent=0 // pred_check
    _
  $region11: #{lstm_model_forward.6} parent=0 // pred_check_branch
    %15 = sbr.rel (0) target = $region13
  $region12: #{lstm_model_forward.6} parent=0 // pred_region
    _
  $region13: #{lstm_model_forward.6} parent=0 // pred_fallthru
    _
  %v17 = vld [vmem:[%s0] sm:$0xff]
  %v18 = vld [vmem:[%s1] sm:$0xff]
  %v19 = vld [vmem:[%s1 + $0x8] sm:$0xff]
  %v20 = vld [vmem:[%s1 + $0x10] sm:$0xff]
  %v21 = vld [vmem:[%s1 + $0x18] sm:$0xff]
  %v22 = vld [vmem:[%s1 + $0x20] sm:$0xff]
  %v23 = vld [vmem:[%s1 + $0x28] sm:$0xff]
  %v24 = vld [vmem:[%s1 + $0x30] sm:$0xff]
  %v25 = vld [vmem:[%s1 + $0x38] sm:$0xff]
  %v26 = vld [vmem:[%s1 + $0x40] sm:$0xff]
  %v27 = vld [vmem:[%s1 + $0x48] sm:$0xff]
  %v28 = vld [vmem:[%s1 + $0x50] sm:$0xff]
  %v29 = vld [vmem:[%s1 + $0x58] sm:$0xff]
  %v30 = vld [vmem:[%s1 + $0x60] sm:$0xff]
  %v31 = vld [vmem:[%s1 + $0x68] sm:$0xff]
  %v32 = vld [vmem:[%s1 + $0x70] sm:$0xff]
  %v33 = vld [vmem:[%s1 + $0x78] sm:$0xff]
  %v34 = vld [vmem:[%s1 + $0x80] sm:$0xff]
  %v35 = vld [vmem:[%s1 + $0x88] sm:$0xff]
  %v36 = vld [vmem:[%s1 + $0x90] sm:$0xff]
  %v37 = vld [vmem:[%s1 + $0x98] sm:$0xff]
  %v38 = vld [vmem:[%s1 + $0xa0] sm:$0xff]
  %v39 = vld [vmem:[%s1 + $0xa8] sm:$0xff]
  %v40 = vld [vmem:[%s1 + $0xb0] sm:$0xff]
  %v41 = vld [vmem:[%s1 + $0xb8] sm:$0xff]
  %v42 = vld [vmem:[%s1 + $0xc0] sm:$0xff]
  %v43 = vld [vmem:[%s1 + $0xc8] sm:$0xff]
  %v44 = vld [vmem:[%s1 + $0xd0] sm:$0xff]
  %v45 = vld [vmem:[%s1 + $0xd8] sm:$0xff]
  %v46 = vld [vmem:[%s1 + $0xe0] sm:$0xff]
  %v47 = vld [vmem:[%s1 + $0xe8] sm:$0xff]
  %v48 = vld [vmem:[%s1 + $0xf0] sm:$0xff]
  %v49 = vld [vmem:[%s1 + $0xf8] sm:$0xff]
  %v82 = vunpack.c.l.b16 %v18
  %v83 = vunpack.c.h.b16 %v18
  %v84 = vunpack.c.l.b16 %v19
  %v85 = vunpack.c.h.b16 %v19
  %v86 = vunpack.c.l.b16 %v20
  %v87 = vunpack.c.h.b16 %v20
  %v88 = vunpack.c.l.b16 %v21
  %v89 = vunpack.c.h.b16 %v21
  %v90 = vunpack.c.l.b16 %v22
  %v91 = vunpack.c.h.b16 %v22
  %v92 = vunpack.c.l.b16 %v23
  %v93 = vunpack.c.h.b16 %v23
  %v94 = vunpack.c.l.b16 %v24
  %v95 = vunpack.c.h.b16 %v24
  %v96 = vunpack.c.l.b16 %v25
  %v97 = vunpack.c.h.b16 %v25
  %v98 = vunpack.c.l.b16 %v26
  %v99 = vunpack.c.h.b16 %v26
  %v100 = vunpack.c.l.b16 %v27
  %v101 = vunpack.c.h.b16 %v27
  %v102 = vunpack.c.l.b16 %v28
  %v103 = vunpack.c.h.b16 %v28
  %v104 = vunpack.c.l.b16 %v29
  %v105 = vunpack.c.h.b16 %v29
  %v106 = vunpack.c.l.b16 %v30
  %v107 = vunpack.c.h.b16 %v30
  %v108 = vunpack.c.l.b16 %v31
  %v109 = vunpack.c.h.b16 %v31
  %v110 = vunpack.c.l.b16 %v32
  %v111 = vunpack.c.h.b16 %v32
  %v112 = vunpack.c.l.b16 %v33
  %v113 = vunpack.c.h.b16 %v33
  %v114 = vunpack.c.l.b16 %v34
  %v115 = vunpack.c.h.b16 %v34
  %v116 = vunpack.c.l.b16 %v35
  %v117 = vunpack.c.h.b16 %v35
  %v118 = vunpack.c.l.b16 %v36
  %v119 = vunpack.c.h.b16 %v36
  %v120 = vunpack.c.l.b16 %v37
  %v121 = vunpack.c.h.b16 %v37
  %v122 = vunpack.c.l.b16 %v38
  %v123 = vunpack.c.h.b16 %v38
  %v124 = vunpack.c.l.b16 %v39
  %v125 = vunpack.c.h.b16 %v39
  %v126 = vunpack.c.l.b16 %v40
  %v127 = vunpack.c.h.b16 %v40
  %v128 = vunpack.c.l.b16 %v41
  %v129 = vunpack.c.h.b16 %v41
  %v130 = vunpack.c.l.b16 %v42
  %v131 = vunpack.c.h.b16 %v42
  %v132 = vunpack.c.l.b16 %v43
  %v133 = vunpack.c.h.b16 %v43
  %v134 = vunpack.c.l.b16 %v44
  %v135 = vunpack.c.h.b16 %v44
  %v136 = vunpack.c.l.b16 %v45
  %v137 = vunpack.c.h.b16 %v45
  %v138 = vunpack.c.l.b16 %v46
  %v139 = vunpack.c.h.b16 %v46
  %v140 = vunpack.c.l.b16 %v47
  %v141 = vunpack.c.h.b16 %v47
  %v142 = vunpack.c.l.b16 %v48
  %v143 = vunpack.c.h.b16 %v48
  %v144 = vunpack.c.l.b16 %v49
  %v145 = vunpack.c.h.b16 %v49
  %v146 = vpack.c.b16 %v86, %v82
  %v147 = vpack.c.b16 %v87, %v83
  %v148 = vpack.c.b16 %v88, %v84
  %v149 = vpack.c.b16 %v89, %v85
  %v150 = vpack.c.b16 %v94, %v90
  %v151 = vpack.c.b16 %v95, %v91
  %v152 = vpack.c.b16 %v96, %v92
  %v153 = vpack.c.b16 %v97, %v93
  %v154 = vpack.c.b16 %v102, %v98
  %v155 = vpack.c.b16 %v103, %v99
  %v156 = vpack.c.b16 %v104, %v100
  %v157 = vpack.c.b16 %v105, %v101
  %v158 = vpack.c.b16 %v110, %v106
  %v159 = vpack.c.b16 %v111, %v107
  %v160 = vpack.c.b16 %v112, %v108
  %v161 = vpack.c.b16 %v113, %v109
  %v162 = vpack.c.b16 %v118, %v114
  %v163 = vpack.c.b16 %v119, %v115
  %v164 = vpack.c.b16 %v120, %v116
  %v165 = vpack.c.b16 %v121, %v117
  %v166 = vpack.c.b16 %v126, %v122
  %v167 = vpack.c.b16 %v127, %v123
  %v168 = vpack.c.b16 %v128, %v124
  %v169 = vpack.c.b16 %v129, %v125
  %v170 = vpack.c.b16 %v134, %v130
  %v171 = vpack.c.b16 %v135, %v131
  %v172 = vpack.c.b16 %v136, %v132
  %v173 = vpack.c.b16 %v137, %v133
  %v174 = vpack.c.b16 %v142, %v138
  %v175 = vpack.c.b16 %v143, %v139
  %v176 = vpack.c.b16 %v144, %v140
  %v177 = vpack.c.b16 %v145, %v141
  %210 = vmatprep.subr.bf16.mxu0 %v147
  %211 = vmatpush1.bf16.msra.mxu0 %v146
  %212 = vmatprep.subr.bf16.mxu0 %v151
  %213 = vmatpush1.bf16.msra.mxu0 %v150
  %214 = vmatprep.subr.bf16.mxu0 %v155
  %215 = vmatpush1.bf16.msra.mxu0 %v154
  %216 = vmatprep.subr.bf16.mxu0 %v159
  %217 = vmatpush1.bf16.msra.mxu0 %v158
  %218 = vmatprep.subr.bf16.mxu0 %v163
  %219 = vmatpush1.bf16.msra.mxu0 %v162
  %220 = vmatprep.subr.bf16.mxu0 %v167
  %221 = vmatpush1.bf16.msra.mxu0 %v166
  %222 = vmatprep.subr.bf16.mxu0 %v171
  %223 = vmatpush1.bf16.msra.mxu0 %v170
  %224 = vmatprep.subr.bf16.mxu0 %v175
  %225 = vmatpush1.bf16.msra.mxu0 %v174
  %226 = vmatprep.subr.bf16.mxu0 0
  %227 = vmatpush1.bf16.msra.mxu0 0
  %228 = vmatprep.subr.bf16.mxu0 0
  %229 = vmatpush1.bf16.msra.mxu0 0
  %230 = vmatprep.subr.bf16.mxu0 0
  %231 = vmatpush1.bf16.msra.mxu0 0
  %232 = vmatprep.subr.bf16.mxu0 0
  %233 = vmatpush1.bf16.msra.mxu0 0
  %234 = vmatprep.subr.bf16.mxu0 0
  %235 = vmatpush1.bf16.msra.mxu0 0
  %236 = vmatprep.subr.bf16.mxu0 0
  %237 = vmatpush1.bf16.msra.mxu0 0
  %238 = vmatprep.subr.bf16.mxu0 0
  %239 = vmatpush1.bf16.msra.mxu0 0
  %240 = vmatprep.subr.bf16.mxu0 0
  %241 = vmatpush1.bf16.msra.mxu0 0
  %242 = vmatprep.mubr.bf16.mxu0 0
  %243 = vmatmul.mubr.bf16.gmra.mrb[0].mxu0 0
  %v244 = vpop.f32.mrb[0].mxu0
  %v245 = vadd.f32 0.0, %v244
  %v246 = vpop.f32.mrb[0].mxu0
  %v247 = vadd.f32 0.0, %v246
  %v248 = vpop.f32.mrb[0].mxu0
  %v249 = vpop.f32.mrb[0].mxu0
  %250 = vdwg.mxu0
  %251 = vmatprep.subr.bf16.mxu0 %v149
  %252 = vmatpush1.bf16.msra.mxu0 %v148
  %253 = vmatprep.subr.bf16.mxu0 %v153
  %254 = vmatpush1.bf16.msra.mxu0 %v152
  %255 = vmatprep.subr.bf16.mxu0 %v157
  %256 = vmatpush1.bf16.msra.mxu0 %v156
  %257 = vmatprep.subr.bf16.mxu0 %v161
  %258 = vmatpush1.bf16.msra.mxu0 %v160
  %259 = vmatprep.subr.bf16.mxu0 %v165
  %260 = vmatpush1.bf16.msra.mxu0 %v164
  %261 = vmatprep.subr.bf16.mxu0 %v169
  %262 = vmatpush1.bf16.msra.mxu0 %v168
  %263 = vmatprep.subr.bf16.mxu0 %v173
  %264 = vmatpush1.bf16.msra.mxu0 %v172
  %265 = vmatprep.subr.bf16.mxu0 %v177
  %266 = vmatpush1.bf16.msra.mxu0 %v176
  %267 = vmatprep.subr.bf16.mxu0 0
  %268 = vmatpush1.bf16.msra.mxu0 0
  %269 = vmatprep.subr.bf16.mxu0 0
  %270 = vmatpush1.bf16.msra.mxu0 0
  %271 = vmatprep.subr.bf16.mxu0 0
  %272 = vmatpush1.bf16.msra.mxu0 0
  %273 = vmatprep.subr.bf16.mxu0 0
  %274 = vmatpush1.bf16.msra.mxu0 0
  %275 = vmatprep.subr.bf16.mxu0 0
  %276 = vmatpush1.bf16.msra.mxu0 0
  %277 = vmatprep.subr.bf16.mxu0 0
  %278 = vmatpush1.bf16.msra.mxu0 0
  %279 = vmatprep.subr.bf16.mxu0 0
  %280 = vmatpush1.bf16.msra.mxu0 0
  %281 = vmatprep.subr.bf16.mxu0 0
  %282 = vmatpush1.bf16.msra.mxu0 0
  %283 = vmatprep.mubr.bf16.mxu0 0
  %284 = vmatmul.mubr.bf16.gmra.mrb[0].mxu0 0
  %v285 = vpop.f32.mrb[0].mxu0
  %v286 = vadd.f32 0.0, %v285
  %v287 = vpop.f32.mrb[0].mxu0
  %v288 = vadd.f32 0.0, %v287
  %v289 = vpop.f32.mrb[0].mxu0
  %v290 = vpop.f32.mrb[0].mxu0
  %291 = vdwg.mxu0
  %v296 = vcombine.low %v245, %v247
  %v297 = vcombine.low %v286, %v288
  %v299 = vunpack.c.l.s4 1983009808
  %v300 = vunpack.c.0.s8 %v299
  %v301 = vlaneseq
  %v302 = vshrl.u32 %v301, 7
  %v303 = vsub.s32 %v300, %v302
  %v304 = vrot.slane %v296, %v303
  %v306 = vunpack.c.l.s4 1983009808
  %v307 = vunpack.c.0.s8 %v306
  %v308 = vlaneseq
  %v309 = vshrl.u32 %v308, 7
  %v310 = vsub.s32 %v307, %v309
  %v311 = vrot.slane %v297, %v310
  %v312 = vcombine.low %v304, %v311
  %v314 = vadd.f32 %v17, %v312
  %s315 = scalar_lea.vmem %s0, 112
  %v316 = vld [vmem:[%s315 + $0x8] sm:$0xff]
  %v317 = vld [vmem:[%s2] sm:$0xff]
  %v318 = vld [vmem:[%s2 + $0x8] sm:$0xff]
  %v319 = vld [vmem:[%s2 + $0x10] sm:$0xff]
  %v320 = vld [vmem:[%s2 + $0x18] sm:$0xff]
  %v321 = vld [vmem:[%s2 + $0x20] sm:$0xff]
  %v322 = vld [vmem:[%s2 + $0x28] sm:$0xff]
  %v323 = vld [vmem:[%s2 + $0x30] sm:$0xff]
  %v324 = vld [vmem:[%s2 + $0x38] sm:$0xff]
  %v325 = vld [vmem:[%s2 + $0x40] sm:$0xff]
  %v326 = vld [vmem:[%s2 + $0x48] sm:$0xff]
  %v327 = vld [vmem:[%s2 + $0x50] sm:$0xff]
  %v328 = vld [vmem:[%s2 + $0x58] sm:$0xff]
  %v329 = vld [vmem:[%s2 + $0x60] sm:$0xff]
  %v330 = vld [vmem:[%s2 + $0x68] sm:$0xff]
  %v331 = vld [vmem:[%s2 + $0x70] sm:$0xff]
  %v332 = vld [vmem:[%s2 + $0x78] sm:$0xff]
  %v333 = vld [vmem:[%s2 + $0x80] sm:$0xff]
  %v334 = vld [vmem:[%s2 + $0x88] sm:$0xff]
  %v335 = vld [vmem:[%s2 + $0x90] sm:$0xff]
  %v336 = vld [vmem:[%s2 + $0x98] sm:$0xff]
  %v337 = vld [vmem:[%s2 + $0xa0] sm:$0xff]
  %v338 = vld [vmem:[%s2 + $0xa8] sm:$0xff]
  %v339 = vld [vmem:[%s2 + $0xb0] sm:$0xff]
  %v340 = vld [vmem:[%s2 + $0xb8] sm:$0xff]
  %v341 = vld [vmem:[%s2 + $0xc0] sm:$0xff]
  %v342 = vld [vmem:[%s2 + $0xc8] sm:$0xff]
  %v343 = vld [vmem:[%s2 + $0xd0] sm:$0xff]
  %v344 = vld [vmem:[%s2 + $0xd8] sm:$0xff]
  %v345 = vld [vmem:[%s2 + $0xe0] sm:$0xff]
  %v346 = vld [vmem:[%s2 + $0xe8] sm:$0xff]
  %v347 = vld [vmem:[%s2 + $0xf0] sm:$0xff]
  %v348 = vld [vmem:[%s2 + $0xf8] sm:$0xff]
  %v381 = vunpack.c.l.b16 %v317
  %v382 = vunpack.c.h.b16 %v317
  %v383 = vunpack.c.l.b16 %v318
  %v384 = vunpack.c.h.b16 %v318
  %v385 = vunpack.c.l.b16 %v319
  %v386 = vunpack.c.h.b16 %v319
  %v387 = vunpack.c.l.b16 %v320
  %v388 = vunpack.c.h.b16 %v320
  %v389 = vunpack.c.l.b16 %v321
  %v390 = vunpack.c.h.b16 %v321
  %v391 = vunpack.c.l.b16 %v322
  %v392 = vunpack.c.h.b16 %v322
  %v393 = vunpack.c.l.b16 %v323
  %v394 = vunpack.c.h.b16 %v323
  %v395 = vunpack.c.l.b16 %v324
  %v396 = vunpack.c.h.b16 %v324
  %v397 = vunpack.c.l.b16 %v325
  %v398 = vunpack.c.h.b16 %v325
  %v399 = vunpack.c.l.b16 %v326
  %v400 = vunpack.c.h.b16 %v326
  %v401 = vunpack.c.l.b16 %v327
  %v402 = vunpack.c.h.b16 %v327
  %v403 = vunpack.c.l.b16 %v328
  %v404 = vunpack.c.h.b16 %v328
  %v405 = vunpack.c.l.b16 %v329
  %v406 = vunpack.c.h.b16 %v329
  %v407 = vunpack.c.l.b16 %v330
  %v408 = vunpack.c.h.b16 %v330
  %v409 = vunpack.c.l.b16 %v331
  %v410 = vunpack.c.h.b16 %v331
  %v411 = vunpack.c.l.b16 %v332
  %v412 = vunpack.c.h.b16 %v332
  %v413 = vunpack.c.l.b16 %v333
  %v414 = vunpack.c.h.b16 %v333
  %v415 = vunpack.c.l.b16 %v334
  %v416 = vunpack.c.h.b16 %v334
  %v417 = vunpack.c.l.b16 %v335
  %v418 = vunpack.c.h.b16 %v335
  %v419 = vunpack.c.l.b16 %v336
  %v420 = vunpack.c.h.b16 %v336
  %v421 = vunpack.c.l.b16 %v337
  %v422 = vunpack.c.h.b16 %v337
  %v423 = vunpack.c.l.b16 %v338
  %v424 = vunpack.c.h.b16 %v338
  %v425 = vunpack.c.l.b16 %v339
  %v426 = vunpack.c.h.b16 %v339
  %v427 = vunpack.c.l.b16 %v340
  %v428 = vunpack.c.h.b16 %v340
  %v429 = vunpack.c.l.b16 %v341
  %v430 = vunpack.c.h.b16 %v341
  %v431 = vunpack.c.l.b16 %v342
  %v432 = vunpack.c.h.b16 %v342
  %v433 = vunpack.c.l.b16 %v343
  %v434 = vunpack.c.h.b16 %v343
  %v435 = vunpack.c.l.b16 %v344
  %v436 = vunpack.c.h.b16 %v344
  %v437 = vunpack.c.l.b16 %v345
  %v438 = vunpack.c.h.b16 %v345
  %v439 = vunpack.c.l.b16 %v346
  %v440 = vunpack.c.h.b16 %v346
  %v441 = vunpack.c.l.b16 %v347
  %v442 = vunpack.c.h.b16 %v347
  %v443 = vunpack.c.l.b16 %v348
  %v444 = vunpack.c.h.b16 %v348
  %v445 = vpack.c.b16 %v385, %v381
  %v446 = vpack.c.b16 %v386, %v382
  %v447 = vpack.c.b16 %v387, %v383
  %v448 = vpack.c.b16 %v388, %v384
  %v449 = vpack.c.b16 %v393, %v389
  %v450 = vpack.c.b16 %v394, %v390
  %v451 = vpack.c.b16 %v395, %v391
  %v452 = vpack.c.b16 %v396, %v392
  %v453 = vpack.c.b16 %v401, %v397
  %v454 = vpack.c.b16 %v402, %v398
  %v455 = vpack.c.b16 %v403, %v399
  %v456 = vpack.c.b16 %v404, %v400
  %v457 = vpack.c.b16 %v409, %v405
  %v458 = vpack.c.b16 %v410, %v406
  %v459 = vpack.c.b16 %v411, %v407
  %v460 = vpack.c.b16 %v412, %v408
  %v461 = vpack.c.b16 %v417, %v413
  %v462 = vpack.c.b16 %v418, %v414
  %v463 = vpack.c.b16 %v419, %v415
  %v464 = vpack.c.b16 %v420, %v416
  %v465 = vpack.c.b16 %v425, %v421
  %v466 = vpack.c.b16 %v426, %v422
  %v467 = vpack.c.b16 %v427, %v423
  %v468 = vpack.c.b16 %v428, %v424
  %v469 = vpack.c.b16 %v433, %v429
  %v470 = vpack.c.b16 %v434, %v430
  %v471 = vpack.c.b16 %v435, %v431
  %v472 = vpack.c.b16 %v436, %v432
  %v473 = vpack.c.b16 %v441, %v437
  %v474 = vpack.c.b16 %v442, %v438
  %v475 = vpack.c.b16 %v443, %v439
  %v476 = vpack.c.b16 %v444, %v440
  %509 = vmatprep.subr.bf16.mxu0 %v446
  %510 = vmatpush1.bf16.msra.mxu0 %v445
  %511 = vmatprep.subr.bf16.mxu0 %v450
  %512 = vmatpush1.bf16.msra.mxu0 %v449
  %513 = vmatprep.subr.bf16.mxu0 %v454
  %514 = vmatpush1.bf16.msra.mxu0 %v453
  %515 = vmatprep.subr.bf16.mxu0 %v458
  %516 = vmatpush1.bf16.msra.mxu0 %v457
  %517 = vmatprep.subr.bf16.mxu0 %v462
  %518 = vmatpush1.bf16.msra.mxu0 %v461
  %519 = vmatprep.subr.bf16.mxu0 %v466
  %520 = vmatpush1.bf16.msra.mxu0 %v465
  %521 = vmatprep.subr.bf16.mxu0 %v470
  %522 = vmatpush1.bf16.msra.mxu0 %v469
  %523 = vmatprep.subr.bf16.mxu0 %v474
  %524 = vmatpush1.bf16.msra.mxu0 %v473
  %525 = vmatprep.subr.bf16.mxu0 0
  %526 = vmatpush1.bf16.msra.mxu0 0
  %527 = vmatprep.subr.bf16.mxu0 0
  %528 = vmatpush1.bf16.msra.mxu0 0
  %529 = vmatprep.subr.bf16.mxu0 0
  %530 = vmatpush1.bf16.msra.mxu0 0
  %531 = vmatprep.subr.bf16.mxu0 0
  %532 = vmatpush1.bf16.msra.mxu0 0
  %533 = vmatprep.subr.bf16.mxu0 0
  %534 = vmatpush1.bf16.msra.mxu0 0
  %535 = vmatprep.subr.bf16.mxu0 0
  %536 = vmatpush1.bf16.msra.mxu0 0
  %537 = vmatprep.subr.bf16.mxu0 0
  %538 = vmatpush1.bf16.msra.mxu0 0
  %539 = vmatprep.subr.bf16.mxu0 0
  %540 = vmatpush1.bf16.msra.mxu0 0
  %541 = vmatprep.mubr.bf16.mxu0 0
  %542 = vmatmul.mubr.bf16.gmra.mrb[0].mxu0 0
  %v543 = vpop.f32.mrb[0].mxu0
  %v544 = vadd.f32 0.0, %v543
  %v545 = vpop.f32.mrb[0].mxu0
  %v546 = vadd.f32 0.0, %v545
  %v547 = vpop.f32.mrb[0].mxu0
  %v548 = vpop.f32.mrb[0].mxu0
  %549 = vdwg.mxu0
  %550 = vmatprep.subr.bf16.mxu0 %v448
  %551 = vmatpush1.bf16.msra.mxu0 %v447
  %552 = vmatprep.subr.bf16.mxu0 %v452
  %553 = vmatpush1.bf16.msra.mxu0 %v451
  %554 = vmatprep.subr.bf16.mxu0 %v456
  %555 = vmatpush1.bf16.msra.mxu0 %v455
  %556 = vmatprep.subr.bf16.mxu0 %v460
  %557 = vmatpush1.bf16.msra.mxu0 %v459
  %558 = vmatprep.subr.bf16.mxu0 %v464
  %559 = vmatpush1.bf16.msra.mxu0 %v463
  %560 = vmatprep.subr.bf16.mxu0 %v468
  %561 = vmatpush1.bf16.msra.mxu0 %v467
  %562 = vmatprep.subr.bf16.mxu0 %v472
  %563 = vmatpush1.bf16.msra.mxu0 %v471
  %564 = vmatprep.subr.bf16.mxu0 %v476
  %565 = vmatpush1.bf16.msra.mxu0 %v475
  %566 = vmatprep.subr.bf16.mxu0 0
  %567 = vmatpush1.bf16.msra.mxu0 0
  %568 = vmatprep.subr.bf16.mxu0 0
  %569 = vmatpush1.bf16.msra.mxu0 0
  %570 = vmatprep.subr.bf16.mxu0 0
  %571 = vmatpush1.bf16.msra.mxu0 0
  %572 = vmatprep.subr.bf16.mxu0 0
  %573 = vmatpush1.bf16.msra.mxu0 0
  %574 = vmatprep.subr.bf16.mxu0 0
  %575 = vmatpush1.bf16.msra.mxu0 0
  %576 = vmatprep.subr.bf16.mxu0 0
  %577 = vmatpush1.bf16.msra.mxu0 0
  %578 = vmatprep.subr.bf16.mxu0 0
  %579 = vmatpush1.bf16.msra.mxu0 0
  %580 = vmatprep.subr.bf16.mxu0 0
  %581 = vmatpush1.bf16.msra.mxu0 0
  %582 = vmatprep.mubr.bf16.mxu0 0
  %583 = vmatmul.mubr.bf16.gmra.mrb[0].mxu0 0
  %v584 = vpop.f32.mrb[0].mxu0
  %v585 = vadd.f32 0.0, %v584
  %v586 = vpop.f32.mrb[0].mxu0
  %v587 = vadd.f32 0.0, %v586
  %v588 = vpop.f32.mrb[0].mxu0
  %v589 = vpop.f32.mrb[0].mxu0
  %590 = vdwg.mxu0
  %v595 = vcombine.low %v544, %v546
  %v596 = vcombine.low %v585, %v587
  %v598 = vunpack.c.l.s4 1983009808
  %v599 = vunpack.c.0.s8 %v598
  %v600 = vlaneseq
  %v601 = vshrl.u32 %v600, 7
  %v602 = vsub.s32 %v599, %v601
  %v603 = vrot.slane %v595, %v602
  %v605 = vunpack.c.l.s4 1983009808
  %v606 = vunpack.c.0.s8 %v605
  %v607 = vlaneseq
  %v608 = vshrl.u32 %v607, 7
  %v609 = vsub.s32 %v606, %v608
  %v610 = vrot.slane %v596, %v609
  %v611 = vcombine.low %v603, %v610
  %v613 = vadd.f32 %v316, %v611
  %v614 = vxor.u32 %v314, 2147483648
  %v615 = vmul.f32 %v614, 1.442695
  %v616 = vpow.pop %v615
  %v617 = vadd.f32 %v616, 1.0
  %v618 = vrcp.pop %v617
  %v619 = vmul.f32 1.0, %v618
  %v621 = vrot.slane %v314, 2
  %v623 = vxor.u32 %v621, 2147483648
  %v624 = vmul.f32 %v623, 1.442695
  %v625 = vpow.pop %v624
  %v626 = vadd.f32 %v625, 1.0
  %v627 = vrcp.pop %v626
  %v628 = vmul.f32 1.0, %v627
  %v629 = vrot.slane %v314, 4
  %v631 = vtanh.pop %v629
  %v632 = vrot.slane %v314, 6
  %v634 = vxor.u32 %v632, 2147483648
  %v635 = vmul.f32 %v634, 1.442695
  %v636 = vpow.pop %v635
  %v637 = vadd.f32 %v636, 1.0
  %v638 = vrcp.pop %v637
  %v639 = vmul.f32 1.0, %v638
  %v640 = vmul.f32 %v628, 0.0
  %v641 = vmul.f32 %v619, %v631
  %v642 = vadd.f32 %v640, %v641
  %v643 = vtanh.pop %v642
  %v644 = vmul.f32 %v639, %v643
  %v645 = vxor.u32 %v613, 2147483648
  %v646 = vmul.f32 %v645, 1.442695
  %v647 = vpow.pop %v646
  %v648 = vadd.f32 %v647, 1.0
  %v649 = vrcp.pop %v648
  %v650 = vmul.f32 1.0, %v649
  %v652 = vrot.slane %v613, 2
  %v654 = vxor.u32 %v652, 2147483648
  %v655 = vmul.f32 %v654, 1.442695
  %v656 = vpow.pop %v655
  %v657 = vadd.f32 %v656, 1.0
  %v658 = vrcp.pop %v657
  %v659 = vmul.f32 1.0, %v658
  %v660 = vrot.slane %v613, 4
  %v662 = vtanh.pop %v660
  %v663 = vrot.slane %v613, 6
  %v665 = vxor.u32 %v663, 2147483648
  %v666 = vmul.f32 %v665, 1.442695
  %v667 = vpow.pop %v666
  %v668 = vadd.f32 %v667, 1.0
  %v669 = vrcp.pop %v668
  %v670 = vmul.f32 1.0, %v669
  %v671 = vmul.f32 %v659, 0.0
  %v672 = vmul.f32 %v650, %v662
  %v673 = vadd.f32 %v671, %v672
  %v674 = vtanh.pop %v673
  %v675 = vmul.f32 %v670, %v674
  %v676 = vpack.c.bf16 %v644, %v644
  %677 = vst [vmem:[%s3] sm:$0x1] %v676
  %v678 = vpack.c.bf16 %v675, %v675
  %s679 = scalar_lea.vmem %s4, 7
  %680 = vst [vmem:[%s679] sm:$0x1] %v678
  %s681 = scalar_lea.vmem %s0, 16
  %v682 = vld [vmem:[%s681] sm:$0xff]
  %v683 = vld [vmem:[%s1] sm:$0xff]
  %v684 = vld [vmem:[%s1 + $0x8] sm:$0xff]
  %v685 = vld [vmem:[%s1 + $0x10] sm:$0xff]
  %v686 = vld [vmem:[%s1 + $0x18] sm:$0xff]
  %v687 = vld [vmem:[%s1 + $0x20] sm:$0xff]
  %v688 = vld [vmem:[%s1 + $0x28] sm:$0xff]
  %v689 = vld [vmem:[%s1 + $0x30] sm:$0xff]
  %v690 = vld [vmem:[%s1 + $0x38] sm:$0xff]
  %v691 = vld [vmem:[%s1 + $0x40] sm:$0xff]
  %v692 = vld [vmem:[%s1 + $0x48] sm:$0xff]
  %v693 = vld [vmem:[%s1 + $0x50] sm:$0xff]
  %v694 = vld [vmem:[%s1 + $0x58] sm:$0xff]
  %v695 = vld [vmem:[%s1 + $0x60] sm:$0xff]
  %v696 = vld [vmem:[%s1 + $0x68] sm:$0xff]
  %v697 = vld [vmem:[%s1 + $0x70] sm:$0xff]
  %v698 = vld [vmem:[%s1 + $0x78] sm:$0xff]
  %v699 = vld [vmem:[%s1 + $0x80] sm:$0xff]
  %v700 = vld [vmem:[%s1 + $0x88] sm:$0xff]
  %v701 = vld [vmem:[%s1 + $0x90] sm:$0xff]
  %v702 = vld [vmem:[%s1 + $0x98] sm:$0xff]
  %v703 = vld [vmem:[%s1 + $0xa0] sm:$0xff]
  %v704 = vld [vmem:[%s1 + $0xa8] sm:$0xff]
  %v705 = vld [vmem:[%s1 + $0xb0] sm:$0xff]
  %v706 = vld [vmem:[%s1 + $0xb8] sm:$0xff]
  %v707 = vld [vmem:[%s1 + $0xc0] sm:$0xff]
  %v708 = vld [vmem:[%s1 + $0xc8] sm:$0xff]
  %v709 = vld [vmem:[%s1 + $0xd0] sm:$0xff]
  %v710 = vld [vmem:[%s1 + $0xd8] sm:$0xff]
  %v711 = vld [vmem:[%s1 + $0xe0] sm:$0xff]
  %v712 = vld [vmem:[%s1 + $0xe8] sm:$0xff]
  %v713 = vld [vmem:[%s1 + $0xf0] sm:$0xff]
  %v714 = vld [vmem:[%s1 + $0xf8] sm:$0xff]
  %v747 = vunpack.c.l.b16 %v683
  %v748 = vunpack.c.h.b16 %v683
  %v749 = vunpack.c.l.b16 %v684
  %v750 = vunpack.c.h.b16 %v684
  %v751 = vunpack.c.l.b16 %v685
  %v752 = vunpack.c.h.b16 %v685
  %v753 = vunpack.c.l.b16 %v686
  %v754 = vunpack.c.h.b16 %v686
  %v755 = vunpack.c.l.b16 %v687
  %v756 = vunpack.c.h.b16 %v687
  %v757 = vunpack.c.l.b16 %v688
  %v758 = vunpack.c.h.b16 %v688
  %v759 = vunpack.c.l.b16 %v689
  %v760 = vunpack.c.h.b16 %v689
  %v761 = vunpack.c.l.b16 %v690
  %v762 = vunpack.c.h.b16 %v690
  %v763 = vunpack.c.l.b16 %v691
  %v764 = vunpack.c.h.b16 %v691
  %v765 = vunpack.c.l.b16 %v692
  %v766 = vunpack.c.h.b16 %v692
  %v767 = vunpack.c.l.b16 %v693
  %v768 = vunpack.c.h.b16 %v693
  %v769 = vunpack.c.l.b16 %v694
  %v770 = vunpack.c.h.b16 %v694
  %v771 = vunpack.c.l.b16 %v695
  %v772 = vunpack.c.h.b16 %v695
  %v773 = vunpack.c.l.b16 %v696
  %v774 = vunpack.c.h.b16 %v696
  %v775 = vunpack.c.l.b16 %v697
  %v776 = vunpack.c.h.b16 %v697
  %v777 = vunpack.c.l.b16 %v698
  %v778 = vunpack.c.h.b16 %v698
  %v779 = vunpack.c.l.b16 %v699
  %v780 = vunpack.c.h.b16 %v699
  %v781 = vunpack.c.l.b16 %v700
  %v782 = vunpack.c.h.b16 %v700
  %v783 = vunpack.c.l.b16 %v701
  %v784 = vunpack.c.h.b16 %v701
  %v785 = vunpack.c.l.b16 %v702
  %v786 = vunpack.c.h.b16 %v702
  %v787 = vunpack.c.l.b16 %v703
  %v788 = vunpack.c.h.b16 %v703
  %v789 = vunpack.c.l.b16 %v704
  %v790 = vunpack.c.h.b16 %v704
  %v791 = vunpack.c.l.b16 %v705
  %v792 = vunpack.c.h.b16 %v705
  %v793 = vunpack.c.l.b16 %v706
  %v794 = vunpack.c.h.b16 %v706
  %v795 = vunpack.c.l.b16 %v707
  %v796 = vunpack.c.h.b16 %v707
  %v797 = vunpack.c.l.b16 %v708
  %v798 = vunpack.c.h.b16 %v708
  %v799 = vunpack.c.l.b16 %v709
  %v800 = vunpack.c.h.b16 %v709
  %v801 = vunpack.c.l.b16 %v710
  %v802 = vunpack.c.h.b16 %v710
  %v803 = vunpack.c.l.b16 %v711
  %v804 = vunpack.c.h.b16 %v711
  %v805 = vunpack.c.l.b16 %v712
  %v806 = vunpack.c.h.b16 %v712
  %v807 = vunpack.c.l.b16 %v713
  %v808 = vunpack.c.h.b16 %v713
  %v809 = vunpack.c.l.b16 %v714
  %v810 = vunpack.c.h.b16 %v714
  %v811 = vpack.c.b16 %v751, %v747
  %v812 = vpack.c.b16 %v752, %v748
  %v813 = vpack.c.b16 %v753, %v749
  %v814 = vpack.c.b16 %v754, %v750
  %v815 = vpack.c.b16 %v759, %v755
  %v816 = vpack.c.b16 %v760, %v756
  %v817 = vpack.c.b16 %v761, %v757
  %v818 = vpack.c.b16 %v762, %v758
  %v819 = vpack.c.b16 %v767, %v763
  %v820 = vpack.c.b16 %v768, %v764
  %v821 = vpack.c.b16 %v769, %v765
  %v822 = vpack.c.b16 %v770, %v766
  %v823 = vpack.c.b16 %v775, %v771
  %v824 = vpack.c.b16 %v776, %v772
  %v825 = vpack.c.b16 %v777, %v773
  %v826 = vpack.c.b16 %v778, %v774
  %v827 = vpack.c.b16 %v783, %v779
  %v828 = vpack.c.b16 %v784, %v780
  %v829 = vpack.c.b16 %v785, %v781
  %v830 = vpack.c.b16 %v786, %v782
  %v831 = vpack.c.b16 %v791, %v787
  %v832 = vpack.c.b16 %v792, %v788
  %v833 = vpack.c.b16 %v793, %v789
  %v834 = vpack.c.b16 %v794, %v790
  %v835 = vpack.c.b16 %v799, %v795
  %v836 = vpack.c.b16 %v800, %v796
  %v837 = vpack.c.b16 %v801, %v797
  %v838 = vpack.c.b16 %v802, %v798
  %v839 = vpack.c.b16 %v807, %v803
  %v840 = vpack.c.b16 %v808, %v804
  %v841 = vpack.c.b16 %v809, %v805
  %v842 = vpack.c.b16 %v810, %v806
  %875 = vmatprep.subr.bf16.mxu0 %v812
  %876 = vmatpush1.bf16.msra.mxu0 %v811
  %877 = vmatprep.subr.bf16.mxu0 %v816
  %878 = vmatpush1.bf16.msra.mxu0 %v815
  %879 = vmatprep.subr.bf16.mxu0 %v820
  %880 = vmatpush1.bf16.msra.mxu0 %v819
  %881 = vmatprep.subr.bf16.mxu0 %v824
  %882 = vmatpush1.bf16.msra.mxu0 %v823
  %883 = vmatprep.subr.bf16.mxu0 %v828
  %884 = vmatpush1.bf16.msra.mxu0 %v827
  %885 = vmatprep.subr.bf16.mxu0 %v832
  %886 = vmatpush1.bf16.msra.mxu0 %v831
  %887 = vmatprep.subr.bf16.mxu0 %v836
  %888 = vmatpush1.bf16.msra.mxu0 %v835
  %889 = vmatprep.subr.bf16.mxu0 %v840
  %890 = vmatpush1.bf16.msra.mxu0 %v839
  %891 = vmatprep.subr.bf16.mxu0 0
  %892 = vmatpush1.bf16.msra.mxu0 0
  %893 = vmatprep.subr.bf16.mxu0 0
  %894 = vmatpush1.bf16.msra.mxu0 0
  %895 = vmatprep.subr.bf16.mxu0 0
  %896 = vmatpush1.bf16.msra.mxu0 0
  %897 = vmatprep.subr.bf16.mxu0 0
  %898 = vmatpush1.bf16.msra.mxu0 0
  %899 = vmatprep.subr.bf16.mxu0 0
  %900 = vmatpush1.bf16.msra.mxu0 0
  %901 = vmatprep.subr.bf16.mxu0 0
  %902 = vmatpush1.bf16.msra.mxu0 0
  %903 = vmatprep.subr.bf16.mxu0 0
  %904 = vmatpush1.bf16.msra.mxu0 0
  %905 = vmatprep.subr.bf16.mxu0 0
  %906 = vmatpush1.bf16.msra.mxu0 0
  %907 = vmatprep.mubr.bf16.mxu0 0
  %908 = vmatmul.mubr.bf16.gmra.mrb[0].mxu0 %v676
  %v909 = vpop.f32.mrb[0].mxu0
  %v910 = vadd.f32 0.0, %v909
  %v911 = vpop.f32.mrb[0].mxu0
  %v912 = vadd.f32 0.0, %v911
  %v913 = vpop.f32.mrb[0].mxu0
  %v914 = vpop.f32.mrb[0].mxu0
  %915 = vdwg.mxu0
  %916 = vmatprep.subr.bf16.mxu0 %v814
  %917 = vmatpush1.bf16.msra.mxu0 %v813
  %918 = vmatprep.subr.bf16.mxu0 %v818
  %919 = vmatpush1.bf16.msra.mxu0 %v817
  %920 = vmatprep.subr.bf16.mxu0 %v822
  %921 = vmatpush1.bf16.msra.mxu0 %v821
  %922 = vmatprep.subr.bf16.mxu0 %v826
  %923 = vmatpush1.bf16.msra.mxu0 %v825
  %924 = vmatprep.subr.bf16.mxu0 %v830
  %925 = vmatpush1.bf16.msra.mxu0 %v829
  %926 = vmatprep.subr.bf16.mxu0 %v834
  %927 = vmatpush1.bf16.msra.mxu0 %v833
  %928 = vmatprep.subr.bf16.mxu0 %v838
  %929 = vmatpush1.bf16.msra.mxu0 %v837
  %930 = vmatprep.subr.bf16.mxu0 %v842
  %931 = vmatpush1.bf16.msra.mxu0 %v841
  %932 = vmatprep.subr.bf16.mxu0 0
  %933 = vmatpush1.bf16.msra.mxu0 0
  %934 = vmatprep.subr.bf16.mxu0 0
  %935 = vmatpush1.bf16.msra.mxu0 0
  %936 = vmatprep.subr.bf16.mxu0 0
  %937 = vmatpush1.bf16.msra.mxu0 0
  %938 = vmatprep.subr.bf16.mxu0 0
  %939 = vmatpush1.bf16.msra.mxu0 0
  %940 = vmatprep.subr.bf16.mxu0 0
  %941 = vmatpush1.bf16.msra.mxu0 0
  %942 = vmatprep.subr.bf16.mxu0 0
  %943 = vmatpush1.bf16.msra.mxu0 0
  %944 = vmatprep.subr.bf16.mxu0 0
  %945 = vmatpush1.bf16.msra.mxu0 0
  %946 = vmatprep.subr.bf16.mxu0 0
  %947 = vmatpush1.bf16.msra.mxu0 0
  %948 = vmatprep.mubr.bf16.mxu0 0
  %949 = vmatmul.mubr.bf16.gmra.mrb[0].mxu0 %v676
  %v950 = vpop.f32.mrb[0].mxu0
  %v951 = vadd.f32 0.0, %v950
  %v952 = vpop.f32.mrb[0].mxu0
  %v953 = vadd.f32 0.0, %v952
  %v954 = vpop.f32.mrb[0].mxu0
  %v955 = vpop.f32.mrb[0].mxu0
  %956 = vdwg.mxu0
  %v961 = vcombine.low %v910, %v912
  %v962 = vcombine.low %v951, %v953
  %v964 = vunpack.c.l.s4 1983009808
  %v965 = vunpack.c.0.s8 %v964
  %v966 = vlaneseq
  %v967 = vshrl.u32 %v966, 7
  %v968 = vsub.s32 %v965, %v967
  %v969 = vrot.slane %v961, %v968
  %v971 = vunpack.c.l.s4 1983009808
  %v972 = vunpack.c.0.s8 %v971
  %v973 = vlaneseq
  %v974 = vshrl.u32 %v973, 7
  %v975 = vsub.s32 %v972, %v974
  %v976 = vrot.slane %v962, %v975
  %v977 = vcombine.low %v969, %v976
  %v979 = vadd.f32 %v682, %v977
  %s980 = scalar_lea.vmem %s0, 96
  %v981 = vld [vmem:[%s980 + $0x8] sm:$0xff]
  %v982 = vld [vmem:[%s2] sm:$0xff]
  %v983 = vld [vmem:[%s2 + $0x8] sm:$0xff]
  %v984 = vld [vmem:[%s2 + $0x10] sm:$0xff]
  %v985 = vld [vmem:[%s2 + $0x18] sm:$0xff]
  %v986 = vld [vmem:[%s2 + $0x20] sm:$0xff]
  %v987 = vld [vmem:[%s2 + $0x28] sm:$0xff]
  %v988 = vld [vmem:[%s2 + $0x30] sm:$0xff]
  %v989 = vld [vmem:[%s2 + $0x38] sm:$0xff]
  %v990 = vld [vmem:[%s2 + $0x40] sm:$0xff]
  %v991 = vld [vmem:[%s2 + $0x48] sm:$0xff]
  %v992 = vld [vmem:[%s2 + $0x50] sm:$0xff]
  %v993 = vld [vmem:[%s2 + $0x58] sm:$0xff]
  %v994 = vld [vmem:[%s2 + $0x60] sm:$0xff]
  %v995 = vld [vmem:[%s2 + $0x68] sm:$0xff]
  %v996 = vld [vmem:[%s2 + $0x70] sm:$0xff]
  %v997 = vld [vmem:[%s2 + $0x78] sm:$0xff]
  %v998 = vld [vmem:[%s2 + $0x80] sm:$0xff]
  %v999 = vld [vmem:[%s2 + $0x88] sm:$0xff]
  %v1000 = vld [vmem:[%s2 + $0x90] sm:$0xff]
  %v1001 = vld [vmem:[%s2 + $0x98] sm:$0xff]
  %v1002 = vld [vmem:[%s2 + $0xa0] sm:$0xff]
  %v1003 = vld [vmem:[%s2 + $0xa8] sm:$0xff]
  %v1004 = vld [vmem:[%s2 + $0xb0] sm:$0xff]
  %v1005 = vld [vmem:[%s2 + $0xb8] sm:$0xff]
  %v1006 = vld [vmem:[%s2 + $0xc0] sm:$0xff]
  %v1007 = vld [vmem:[%s2 + $0xc8] sm:$0xff]
  %v1008 = vld [vmem:[%s2 + $0xd0] sm:$0xff]
  %v1009 = vld [vmem:[%s2 + $0xd8] sm:$0xff]
  %v1010 = vld [vmem:[%s2 + $0xe0] sm:$0xff]
  %v1011 = vld [vmem:[%s2 + $0xe8] sm:$0xff]
  %v1012 = vld [vmem:[%s2 + $0xf0] sm:$0xff]
  %v1013 = vld [vmem:[%s2 + $0xf8] sm:$0xff]
  %v1046 = vunpack.c.l.b16 %v982
  %v1047 = vunpack.c.h.b16 %v982
  %v1048 = vunpack.c.l.b16 %v983
  %v1049 = vunpack.c.h.b16 %v983
  %v1050 = vunpack.c.l.b16 %v984
  %v1051 = vunpack.c.h.b16 %v984
  %v1052 = vunpack.c.l.b16 %v985
  %v1053 = vunpack.c.h.b16 %v985
  %v1054 = vunpack.c.l.b16 %v986
  %v1055 = vunpack.c.h.b16 %v986
  %v1056 = vunpack.c.l.b16 %v987
  %v1057 = vunpack.c.h.b16 %v987
  %v1058 = vunpack.c.l.b16 %v988
  %v1059 = vunpack.c.h.b16 %v988
  %v1060 = vunpack.c.l.b16 %v989
  %v1061 = vunpack.c.h.b16 %v989
  %v1062 = vunpack.c.l.b16 %v990
  %v1063 = vunpack.c.h.b16 %v990
  %v1064 = vunpack.c.l.b16 %v991
  %v1065 = vunpack.c.h.b16 %v991
  %v1066 = vunpack.c.l.b16 %v992
  %v1067 = vunpack.c.h.b16 %v992
  %v1068 = vunpack.c.l.b16 %v993
  %v1069 = vunpack.c.h.b16 %v993
  %v1070 = vunpack.c.l.b16 %v994
  %v1071 = vunpack.c.h.b16 %v994
  %v1072 = vunpack.c.l.b16 %v995
  %v1073 = vunpack.c.h.b16 %v995
  %v1074 = vunpack.c.l.b16 %v996
  %v1075 = vunpack.c.h.b16 %v996
  %v1076 = vunpack.c.l.b16 %v997
  %v1077 = vunpack.c.h.b16 %v997
  %v1078 = vunpack.c.l.b16 %v998
  %v1079 = vunpack.c.h.b16 %v998
  %v1080 = vunpack.c.l.b16 %v999
  %v1081 = vunpack.c.h.b16 %v999
  %v1082 = vunpack.c.l.b16 %v1000
  %v1083 = vunpack.c.h.b16 %v1000
  %v1084 = vunpack.c.l.b16 %v1001
  %v1085 = vunpack.c.h.b16 %v1001
  %v1086 = vunpack.c.l.b16 %v1002
  %v1087 = vunpack.c.h.b16 %v1002
  %v1088 = vunpack.c.l.b16 %v1003
  %v1089 = vunpack.c.h.b16 %v1003
  %v1090 = vunpack.c.l.b16 %v1004
  %v1091 = vunpack.c.h.b16 %v1004
  %v1092 = vunpack.c.l.b16 %v1005
  %v1093 = vunpack.c.h.b16 %v1005
  %v1094 = vunpack.c.l.b16 %v1006
  %v1095 = vunpack.c.h.b16 %v1006
  %v1096 = vunpack.c.l.b16 %v1007
  %v1097 = vunpack.c.h.b16 %v1007
  %v1098 = vunpack.c.l.b16 %v1008
  %v1099 = vunpack.c.h.b16 %v1008
  %v1100 = vunpack.c.l.b16 %v1009
  %v1101 = vunpack.c.h.b16 %v1009
  %v1102 = vunpack.c.l.b16 %v1010
  %v1103 = vunpack.c.h.b16 %v1010
  %v1104 = vunpack.c.l.b16 %v1011
  %v1105 = vunpack.c.h.b16 %v1011
  %v1106 = vunpack.c.l.b16 %v1012
  %v1107 = vunpack.c.h.b16 %v1012
  %v1108 = vunpack.c.l.b16 %v1013
  %v1109 = vunpack.c.h.b16 %v1013
  %v1110 = vpack.c.b16 %v1050, %v1046
  %v1111 = vpack.c.b16 %v1051, %v1047
  %v1112 = vpack.c.b16 %v1052, %v1048
  %v1113 = vpack.c.b16 %v1053, %v1049
  %v1114 = vpack.c.b16 %v1058, %v1054
  %v1115 = vpack.c.b16 %v1059, %v1055
  %v1116 = vpack.c.b16 %v1060, %v1056
  %v1117 = vpack.c.b16 %v1061, %v1057
  %v1118 = vpack.c.b16 %v1066, %v1062
  %v1119 = vpack.c.b16 %v1067, %v1063
  %v1120 = vpack.c.b16 %v1068, %v1064
  %v1121 = vpack.c.b16 %v1069, %v1065
  %v1122 = vpack.c.b16 %v1074, %v1070
  %v1123 = vpack.c.b16 %v1075, %v1071
  %v1124 = vpack.c.b16 %v1076, %v1072
  %v1125 = vpack.c.b16 %v1077, %v1073
  %v1126 = vpack.c.b16 %v1082, %v1078
  %v1127 = vpack.c.b16 %v1083, %v1079
  %v1128 = vpack.c.b16 %v1084, %v1080
  %v1129 = vpack.c.b16 %v1085, %v1081
  %v1130 = vpack.c.b16 %v1090, %v1086
  %v1131 = vpack.c.b16 %v1091, %v1087
  %v1132 = vpack.c.b16 %v1092, %v1088
  %v1133 = vpack.c.b16 %v1093, %v1089
  %v1134 = vpack.c.b16 %v1098, %v1094
  %v1135 = vpack.c.b16 %v1099, %v1095
  %v1136 = vpack.c.b16 %v1100, %v1096
  %v1137 = vpack.c.b16 %v1101, %v1097
  %v1138 = vpack.c.b16 %v1106, %v1102
  %v1139 = vpack.c.b16 %v1107, %v1103
  %v1140 = vpack.c.b16 %v1108, %v1104
  %v1141 = vpack.c.b16 %v1109, %v1105
  %1174 = vmatprep.subr.bf16.mxu0 %v1111
  %1175 = vmatpush1.bf16.msra.mxu0 %v1110
  %1176 = vmatprep.subr.bf16.mxu0 %v1115
  %1177 = vmatpush1.bf16.msra.mxu0 %v1114
  %1178 = vmatprep.subr.bf16.mxu0 %v1119
  %1179 = vmatpush1.bf16.msra.mxu0 %v1118
  %1180 = vmatprep.subr.bf16.mxu0 %v1123
  %1181 = vmatpush1.bf16.msra.mxu0 %v1122
  %1182 = vmatprep.subr.bf16.mxu0 %v1127
  %1183 = vmatpush1.bf16.msra.mxu0 %v1126
  %1184 = vmatprep.subr.bf16.mxu0 %v1131
  %1185 = vmatpush1.bf16.msra.mxu0 %v1130
  %1186 = vmatprep.subr.bf16.mxu0 %v1135
  %1187 = vmatpush1.bf16.msra.mxu0 %v1134
  %1188 = vmatprep.subr.bf16.mxu0 %v1139
  %1189 = vmatpush1.bf16.msra.mxu0 %v1138
  %1190 = vmatprep.subr.bf16.mxu0 0
  %1191 = vmatpush1.bf16.msra.mxu0 0
  %1192 = vmatprep.subr.bf16.mxu0 0
  %1193 = vmatpush1.bf16.msra.mxu0 0
  %1194 = vmatprep.subr.bf16.mxu0 0
  %1195 = vmatpush1.bf16.msra.mxu0 0
  %1196 = vmatprep.subr.bf16.mxu0 0
  %1197 = vmatpush1.bf16.msra.mxu0 0
  %1198 = vmatprep.subr.bf16.mxu0 0
  %1199 = vmatpush1.bf16.msra.mxu0 0
  %1200 = vmatprep.subr.bf16.mxu0 0
  %1201 = vmatpush1.bf16.msra.mxu0 0
  %1202 = vmatprep.subr.bf16.mxu0 0
  %1203 = vmatpush1.bf16.msra.mxu0 0
  %1204 = vmatprep.subr.bf16.mxu0 0
  %1205 = vmatpush1.bf16.msra.mxu0 0
  %1206 = vmatprep.mubr.bf16.mxu0 0
  %1207 = vmatmul.mubr.bf16.gmra.mrb[0].mxu0 %v678
  %v1208 = vpop.f32.mrb[0].mxu0
  %v1209 = vadd.f32 0.0, %v1208
  %v1210 = vpop.f32.mrb[0].mxu0
  %v1211 = vadd.f32 0.0, %v1210
  %v1212 = vpop.f32.mrb[0].mxu0
  %v1213 = vpop.f32.mrb[0].mxu0
  %1214 = vdwg.mxu0
  %1215 = vmatprep.subr.bf16.mxu0 %v1113
  %1216 = vmatpush1.bf16.msra.mxu0 %v1112
  %1217 = vmatprep.subr.bf16.mxu0 %v1117
  %1218 = vmatpush1.bf16.msra.mxu0 %v1116
  %1219 = vmatprep.subr.bf16.mxu0 %v1121
  %1220 = vmatpush1.bf16.msra.mxu0 %v1120
  %1221 = vmatprep.subr.bf16.mxu0 %v1125
  %1222 = vmatpush1.bf16.msra.mxu0 %v1124
  %1223 = vmatprep.subr.bf16.mxu0 %v1129
  %1224 = vmatpush1.bf16.msra.mxu0 %v1128
  %1225 = vmatprep.subr.bf16.mxu0 %v1133
  %1226 = vmatpush1.bf16.msra.mxu0 %v1132
  %1227 = vmatprep.subr.bf16.mxu0 %v1137
  %1228 = vmatpush1.bf16.msra.mxu0 %v1136
  %1229 = vmatprep.subr.bf16.mxu0 %v1141
  %1230 = vmatpush1.bf16.msra.mxu0 %v1140
  %1231 = vmatprep.subr.bf16.mxu0 0
  %1232 = vmatpush1.bf16.msra.mxu0 0
  %1233 = vmatprep.subr.bf16.mxu0 0
  %1234 = vmatpush1.bf16.msra.mxu0 0
  %1235 = vmatprep.subr.bf16.mxu0 0
  %1236 = vmatpush1.bf16.msra.mxu0 0
  %1237 = vmatprep.subr.bf16.mxu0 0
  %1238 = vmatpush1.bf16.msra.mxu0 0
  %1239 = vmatprep.subr.bf16.mxu0 0
  %1240 = vmatpush1.bf16.msra.mxu0 0
  %1241 = vmatprep.subr.bf16.mxu0 0
  %1242 = vmatpush1.bf16.msra.mxu0 0
  %1243 = vmatprep.subr.bf16.mxu0 0
  %1244 = vmatpush1.bf16.msra.mxu0 0
  %1245 = vmatprep.subr.bf16.mxu0 0
  %1246 = vmatpush1.bf16.msra.mxu0 0
  %1247 = vmatprep.mubr.bf16.mxu0 0
  %1248 = vmatmul.mubr.bf16.gmra.mrb[0].mxu0 %v678
  %v1249 = vpop.f32.mrb[0].mxu0
  %v1250 = vadd.f32 0.0, %v1249
  %v1251 = vpop.f32.mrb[0].mxu0
  %v1252 = vadd.f32 0.0, %v1251
  %v1253 = vpop.f32.mrb[0].mxu0
  %v1254 = vpop.f32.mrb[0].mxu0
  %1255 = vdwg.mxu0
  %v1260 = vcombine.low %v1209, %v1211
  %v1261 = vcombine.low %v1250, %v1252
  %v1263 = vunpack.c.l.s4 1983009808
  %v1264 = vunpack.c.0.s8 %v1263
  %v1265 = vlaneseq
  %v1266 = vshrl.u32 %v1265, 7
  %v1267 = vsub.s32 %v1264, %v1266
  %v1268 = vrot.slane %v1260, %v1267
  %v1270 = vunpack.c.l.s4 1983009808
  %v1271 = vunpack.c.0.s8 %v1270
  %v1272 = vlaneseq
  %v1273 = vshrl.u32 %v1272, 7
  %v1274 = vsub.s32 %v1271, %v1273
  %v1275 = vrot.slane %v1261, %v1274
  %v1276 = vcombine.low %v1268, %v1275
  %v1278 = vadd.f32 %v981, %v1276
  %v1279 = vxor.u32 %v979, 2147483648
  %v1280 = vmul.f32 %v1279, 1.442695
  %v1281 = vpow.pop %v1280
  %v1282 = vadd.f32 %v1281, 1.0
  %v1283 = vrcp.pop %v1282
  %v1284 = vmul.f32 1.0, %v1283
  %v1286 = vrot.slane %v979, 2
  %v1288 = vxor.u32 %v1286, 2147483648
  %v1289 = vmul.f32 %v1288, 1.442695
  %v1290 = vpow.pop %v1289
  %v1291 = vadd.f32 %v1290, 1.0
  %v1292 = vrcp.pop %v1291
  %v1293 = vmul.f32 1.0, %v1292
  %v1294 = vrot.slane %v979, 4
  %v1296 = vtanh.pop %v1294
  %v1297 = vrot.slane %v979, 6
  %v1299 = vxor.u32 %v1297, 2147483648
  %v1300 = vmul.f32 %v1299, 1.442695
  %v1301 = vpow.pop %v1300
  %v1302 = vadd.f32 %v1301, 1.0
  %v1303 = vrcp.pop %v1302
  %v1304 = vmul.f32 1.0, %v1303
  %v1305 = vmul.f32 %v1293, %v642
  %v1306 = vmul.f32 %v1284, %v1296
  %v1307 = vadd.f32 %v1305, %v1306
  %v1308 = vtanh.pop %v1307
  %v1309 = vmul.f32 %v1304, %v1308
  %v1310 = vxor.u32 %v1278, 2147483648
  %v1311 = vmul.f32 %v1310, 1.442695
  %v1312 = vpow.pop %v1311
  %v1313 = vadd.f32 %v1312, 1.0
  %v1314 = vrcp.pop %v1313
  %v1315 = vmul.f32 1.0, %v1314
  %v1317 = vrot.slane %v1278, 2
  %v1319 = vxor.u32 %v1317, 2147483648
  %v1320 = vmul.f32 %v1319, 1.442695
  %v1321 = vpow.pop %v1320
  %v1322 = vadd.f32 %v1321, 1.0
  %v1323 = vrcp.pop %v1322
  %v1324 = vmul.f32 1.0, %v1323
  %v1325 = vrot.slane %v1278, 4
  %v1327 = vtanh.pop %v1325
  %v1328 = vrot.slane %v1278, 6
  %v1330 = vxor.u32 %v1328, 2147483648
  %v1331 = vmul.f32 %v1330, 1.442695
  %v1332 = vpow.pop %v1331
  %v1333 = vadd.f32 %v1332, 1.0
  %v1334 = vrcp.pop %v1333
  %v1335 = vmul.f32 1.0, %v1334
  %v1336 = vmul.f32 %v1324, %v673
  %v1337 = vmul.f32 %v1315, %v1327
  %v1338 = vadd.f32 %v1336, %v1337
  %v1339 = vtanh.pop %v1338
  %v1340 = vmul.f32 %v1335, %v1339
  %v1341 = vpack.c.bf16 %v1309, %v1309
  %s1342 = scalar_lea.vmem %s3, 1
  %1343 = vst [vmem:[%s1342] sm:$0x1] %v1341
  %v1344 = vpack.c.bf16 %v1340, %v1340
  %s1345 = scalar_lea.vmem %s4, 6
  %1346 = vst [vmem:[%s1345] sm:$0x1] %v1344
  %s1347 = scalar_lea.vmem %s0, 32
  %v1348 = vld [vmem:[%s1347] sm:$0xff]
  %v1349 = vld [vmem:[%s1] sm:$0xff]
  %v1350 = vld [vmem:[%s1 + $0x8] sm:$0xff]
  %v1351 = vld [vmem:[%s1 + $0x10] sm:$0xff]
  %v1352 = vld [vmem:[%s1 + $0x18] sm:$0xff]
  %v1353 = vld [vmem:[%s1 + $0x20] sm:$0xff]
  %v1354 = vld [vmem:[%s1 + $0x28] sm:$0xff]
  %v1355 = vld [vmem:[%s1 + $0x30] sm:$0xff]
  %v1356 = vld [vmem:[%s1 + $0x38] sm:$0xff]
  %v1357 = vld [vmem:[%s1 + $0x40] sm:$0xff]
  %v1358 = vld [vmem:[%s1 + $0x48] sm:$0xff]
  %v1359 = vld [vmem:[%s1 + $0x50] sm:$0xff]
  %v1360 = vld [vmem:[%s1 + $0x58] sm:$0xff]
  %v1361 = vld [vmem:[%s1 + $0x60] sm:$0xff]
  %v1362 = vld [vmem:[%s1 + $0x68] sm:$0xff]
  %v1363 = vld [vmem:[%s1 + $0x70] sm:$0xff]
  %v1364 = vld [vmem:[%s1 + $0x78] sm:$0xff]
  %v1365 = vld [vmem:[%s1 + $0x80] sm:$0xff]
  %v1366 = vld [vmem:[%s1 + $0x88] sm:$0xff]
  %v1367 = vld [vmem:[%s1 + $0x90] sm:$0xff]
  %v1368 = vld [vmem:[%s1 + $0x98] sm:$0xff]
  %v1369 = vld [vmem:[%s1 + $0xa0] sm:$0xff]
  %v1370 = vld [vmem:[%s1 + $0xa8] sm:$0xff]
  %v1371 = vld [vmem:[%s1 + $0xb0] sm:$0xff]
  %v1372 = vld [vmem:[%s1 + $0xb8] sm:$0xff]
  %v1373 = vld [vmem:[%s1 + $0xc0] sm:$0xff]
  %v1374 = vld [vmem:[%s1 + $0xc8] sm:$0xff]
  %v1375 = vld [vmem:[%s1 + $0xd0] sm:$0xff]
  %v1376 = vld [vmem:[%s1 + $0xd8] sm:$0xff]
  %v1377 = vld [vmem:[%s1 + $0xe0] sm:$0xff]
  %v1378 = vld [vmem:[%s1 + $0xe8] sm:$0xff]
  %v1379 = vld [vmem:[%s1 + $0xf0] sm:$0xff]
  %v1380 = vld [vmem:[%s1 + $0xf8] sm:$0xff]
  %v1413 = vunpack.c.l.b16 %v1349
  %v1414 = vunpack.c.h.b16 %v1349
  %v1415 = vunpack.c.l.b16 %v1350
  %v1416 = vunpack.c.h.b16 %v1350
  %v1417 = vunpack.c.l.b16 %v1351
  %v1418 = vunpack.c.h.b16 %v1351
  %v1419 = vunpack.c.l.b16 %v1352
  %v1420 = vunpack.c.h.b16 %v1352
  %v1421 = vunpack.c.l.b16 %v1353
  %v1422 = vunpack.c.h.b16 %v1353
  %v1423 = vunpack.c.l.b16 %v1354
  %v1424 = vunpack.c.h.b16 %v1354
  %v1425 = vunpack.c.l.b16 %v1355
  %v1426 = vunpack.c.h.b16 %v1355
  %v1427 = vunpack.c.l.b16 %v1356
  %v1428 = vunpack.c.h.b16 %v1356
  %v1429 = vunpack.c.l.b16 %v1357
  %v1430 = vunpack.c.h.b16 %v1357
  %v1431 = vunpack.c.l.b16 %v1358
  %v1432 = vunpack.c.h.b16 %v1358
  %v1433 = vunpack.c.l.b16 %v1359
  %v1434 = vunpack.c.h.b16 %v1359
  %v1435 = vunpack.c.l.b16 %v1360
  %v1436 = vunpack.c.h.b16 %v1360
  %v1437 = vunpack.c.l.b16 %v1361
  %v1438 = vunpack.c.h.b16 %v1361
  %v1439 = vunpack.c.l.b16 %v1362
  %v1440 = vunpack.c.h.b16 %v1362
  %v1441 = vunpack.c.l.b16 %v1363
  %v1442 = vunpack.c.h.b16 %v1363
  %v1443 = vunpack.c.l.b16 %v1364
  %v1444 = vunpack.c.h.b16 %v1364
  %v1445 = vunpack.c.l.b16 %v1365
  %v1446 = vunpack.c.h.b16 %v1365
  %v1447 = vunpack.c.l.b16 %v1366
  %v1448 = vunpack.c.h.b16 %v1366
  %v1449 = vunpack.c.l.b16 %v1367
  %v1450 = vunpack.c.h.b16 %v1367
  %v1451 = vunpack.c.l.b16 %v1368
  %v1452 = vunpack.c.h.b16 %v1368
  %v1453 = vunpack.c.l.b16 %v1369
  %v1454 = vunpack.c.h.b16 %v1369
  %v1455 = vunpack.c.l.b16 %v1370
  %v1456 = vunpack.c.h.b16 %v1370
  %v1457 = vunpack.c.l.b16 %v1371
  %v1458 = vunpack.c.h.b16 %v1371
  %v1459 = vunpack.c.l.b16 %v1372
  %v1460 = vunpack.c.h.b16 %v1372
  %v1461 = vunpack.c.l.b16 %v1373
  %v1462 = vunpack.c.h.b16 %v1373
  %v1463 = vunpack.c.l.b16 %v1374
  %v1464 = vunpack.c.h.b16 %v1374
  %v1465 = vunpack.c.l.b16 %v1375
  %v1466 = vunpack.c.h.b16 %v1375
  %v1467 = vunpack.c.l.b16 %v1376
  %v1468 = vunpack.c.h.b16 %v1376
  %v1469 = vunpack.c.l.b16 %v1377
  %v1470 = vunpack.c.h.b16 %v1377
  %v1471 = vunpack.c.l.b16 %v1378
  %v1472 = vunpack.c.h.b16 %v1378
  %v1473 = vunpack.c.l.b16 %v1379
  %v1474 = vunpack.c.h.b16 %v1379
  %v1475 = vunpack.c.l.b16 %v1380
  %v1476 = vunpack.c.h.b16 %v1380
  %v1477 = vpack.c.b16 %v1417, %v1413
  %v1478 = vpack.c.b16 %v1418, %v1414
  %v1479 = vpack.c.b16 %v1419, %v1415
  %v1480 = vpack.c.b16 %v1420, %v1416
  %v1481 = vpack.c.b16 %v1425, %v1421
  %v1482 = vpack.c.b16 %v1426, %v1422
  %v1483 = vpack.c.b16 %v1427, %v1423
  %v1484 = vpack.c.b16 %v1428, %v1424
  %v1485 = vpack.c.b16 %v1433, %v1429
  %v1486 = vpack.c.b16 %v1434, %v1430
  %v1487 = vpack.c.b16 %v1435, %v1431
  %v1488 = vpack.c.b16 %v1436, %v1432
  %v1489 = vpack.c.b16 %v1441, %v1437
  %v1490 = vpack.c.b16 %v1442, %v1438
  %v1491 = vpack.c.b16 %v1443, %v1439
  %v1492 = vpack.c.b16 %v1444, %v1440
  %v1493 = vpack.c.b16 %v1449, %v1445
  %v1494 = vpack.c.b16 %v1450, %v1446
  %v1495 = vpack.c.b16 %v1451, %v1447
  %v1496 = vpack.c.b16 %v1452, %v1448
  %v1497 = vpack.c.b16 %v1457, %v1453
  %v1498 = vpack.c.b16 %v1458, %v1454
  %v1499 = vpack.c.b16 %v1459, %v1455
  %v1500 = vpack.c.b16 %v1460, %v1456
  %v1501 = vpack.c.b16 %v1465, %v1461
  %v1502 = vpack.c.b16 %v1466, %v1462
  %v1503 = vpack.c.b16 %v1467, %v1463
  %v1504 = vpack.c.b16 %v1468, %v1464
  %v1505 = vpack.c.b16 %v1473, %v1469
  %v1506 = vpack.c.b16 %v1474, %v1470
  %v1507 = vpack.c.b16 %v1475, %v1471
  %v1508 = vpack.c.b16 %v1476, %v1472
  %1541 = vmatprep.subr.bf16.mxu0 %v1478
  %1542 = vmatpush1.bf16.msra.mxu0 %v1477
  %1543 = vmatprep.subr.bf16.mxu0 %v1482
  %1544 = vmatpush1.bf16.msra.mxu0 %v1481
  %1545 = vmatprep.subr.bf16.mxu0 %v1486
  %1546 = vmatpush1.bf16.msra.mxu0 %v1485
  %1547 = vmatprep.subr.bf16.mxu0 %v1490
  %1548 = vmatpush1.bf16.msra.mxu0 %v1489
  %1549 = vmatprep.subr.bf16.mxu0 %v1494
  %1550 = vmatpush1.bf16.msra.mxu0 %v1493
  %1551 = vmatprep.subr.bf16.mxu0 %v1498
  %1552 = vmatpush1.bf16.msra.mxu0 %v1497
  %1553 = vmatprep.subr.bf16.mxu0 %v1502
  %1554 = vmatpush1.bf16.msra.mxu0 %v1501
  %1555 = vmatprep.subr.bf16.mxu0 %v1506
  %1556 = vmatpush1.bf16.msra.mxu0 %v1505
  %1557 = vmatprep.subr.bf16.mxu0 0
  %1558 = vmatpush1.bf16.msra.mxu0 0
  %1559 = vmatprep.subr.bf16.mxu0 0
  %1560 = vmatpush1.bf16.msra.mxu0 0
  %1561 = vmatprep.subr.bf16.mxu0 0
  %1562 = vmatpush1.bf16.msra.mxu0 0
  %1563 = vmatprep.subr.bf16.mxu0 0
  %1564 = vmatpush1.bf16.msra.mxu0 0
  %1565 = vmatprep.subr.bf16.mxu0 0
  %1566 = vmatpush1.bf16.msra.mxu0 0
  %1567 = vmatprep.subr.bf16.mxu0 0
  %1568 = vmatpush1.bf16.msra.mxu0 0
  %1569 = vmatprep.subr.bf16.mxu0 0
  %1570 = vmatpush1.bf16.msra.mxu0 0
  %1571 = vmatprep.subr.bf16.mxu0 0
  %1572 = vmatpush1.bf16.msra.mxu0 0
  %1573 = vmatprep.mubr.bf16.mxu0 0
  %1574 = vmatmul.mubr.bf16.gmra.mrb[0].mxu0 %v1341
  %v1575 = vpop.f32.mrb[0].mxu0
  %v1576 = vadd.f32 0.0, %v1575
  %v1577 = vpop.f32.mrb[0].mxu0
  %v1578 = vadd.f32 0.0, %v1577
  %v1579 = vpop.f32.mrb[0].mxu0
  %v1580 = vpop.f32.mrb[0].mxu0
  %1581 = vdwg.mxu0
  %1582 = vmatprep.subr.bf16.mxu0 %v1480
  %1583 = vmatpush1.bf16.msra.mxu0 %v1479
  %1584 = vmatprep.subr.bf16.mxu0 %v1484
  %1585 = vmatpush1.bf16.msra.mxu0 %v1483
  %1586 = vmatprep.subr.bf16.mxu0 %v1488
  %1587 = vmatpush1.bf16.msra.mxu0 %v1487
  %1588 = vmatprep.subr.bf16.mxu0 %v1492
  %1589 = vmatpush1.bf16.msra.mxu0 %v1491
  %1590 = vmatprep.subr.bf16.mxu0 %v1496
  %1591 = vmatpush1.bf16.msra.mxu0 %v1495
  %1592 = vmatprep.subr.bf16.mxu0 %v1500
  %1593 = vmatpush1.bf16.msra.mxu0 %v1499
  %1594 = vmatprep.subr.bf16.mxu0 %v1504
  %1595 = vmatpush1.bf16.msra.mxu0 %v1503
  %1596 = vmatprep.subr.bf16.mxu0 %v1508
  %1597 = vmatpush1.bf16.msra.mxu0 %v1507
  %1598 = vmatprep.subr.bf16.mxu0 0
  %1599 = vmatpush1.bf16.msra.mxu0 0
  %1600 = vmatprep.subr.bf16.mxu0 0
  %1601 = vmatpush1.bf16.msra.mxu0 0
  %1602 = vmatprep.subr.bf16.mxu0 0
  %1603 = vmatpush1.bf16.msra.mxu0 0
  %1604 = vmatprep.subr.bf16.mxu0 0
  %1605 = vmatpush1.bf16.msra.mxu0 0
  %1606 = vmatprep.subr.bf16.mxu0 0
  %1607 = vmatpush1.bf16.msra.mxu0 0
  %1608 = vmatprep.subr.bf16.mxu0 0
  %1609 = vmatpush1.bf16.msra.mxu0 0
  %1610 = vmatprep.subr.bf16.mxu0 0
  %1611 = vmatpush1.bf16.msra.mxu0 0
  %1612 = vmatprep.subr.bf16.mxu0 0
  %1613 = vmatpush1.bf16.msra.mxu0 0
  %1614 = vmatprep.mubr.bf16.mxu0 0
  %1615 = vmatmul.mubr.bf16.gmra.mrb[0].mxu0 %v1341
  %v1616 = vpop.f32.mrb[0].mxu0
  %v1617 = vadd.f32 0.0, %v1616
  %v1618 = vpop.f32.mrb[0].mxu0
  %v1619 = vadd.f32 0.0, %v1618
  %v1620 = vpop.f32.mrb[0].mxu0
  %v1621 = vpop.f32.mrb[0].mxu0
  %1622 = vdwg.mxu0
  %v1627 = vcombine.low %v1576, %v1578
  %v1628 = vcombine.low %v1617, %v1619
  %v1630 = vunpack.c.l.s4 1983009808
  %v1631 = vunpack.c.0.s8 %v1630
  %v1632 = vlaneseq
  %v1633 = vshrl.u32 %v1632, 7
  %v1634 = vsub.s32 %v1631, %v1633
  %v1635 = vrot.slane %v1627, %v1634
  %v1637 = vunpack.c.l.s4 1983009808
  %v1638 = vunpack.c.0.s8 %v1637
  %v1639 = vlaneseq
  %v1640 = vshrl.u32 %v1639, 7
  %v1641 = vsub.s32 %v1638, %v1640
  %v1642 = vrot.slane %v1628, %v1641
  %v1643 = vcombine.low %v1635, %v1642
  %v1645 = vadd.f32 %v1348, %v1643
  %s1646 = scalar_lea.vmem %s0, 80
  %v1647 = vld [vmem:[%s1646 + $0x8] sm:$0xff]
  %v1648 = vld [vmem:[%s2] sm:$0xff]
  %v1649 = vld [vmem:[%s2 + $0x8] sm:$0xff]
  %v1650 = vld [vmem:[%s2 + $0x10] sm:$0xff]
  %v1651 = vld [vmem:[%s2 + $0x18] sm:$0xff]
  %v1652 = vld [vmem:[%s2 + $0x20] sm:$0xff]
  %v1653 = vld [vmem:[%s2 + $0x28] sm:$0xff]
  %v1654 = vld [vmem:[%s2 + $0x30] sm:$0xff]
  %v1655 = vld [vmem:[%s2 + $0x38] sm:$0xff]
  %v1656 = vld [vmem:[%s2 + $0x40] sm:$0xff]
  %v1657 = vld [vmem:[%s2 + $0x48] sm:$0xff]
  %v1658 = vld [vmem:[%s2 + $0x50] sm:$0xff]
  %v1659 = vld [vmem:[%s2 + $0x58] sm:$0xff]
  %v1660 = vld [vmem:[%s2 + $0x60] sm:$0xff]
  %v1661 = vld [vmem:[%s2 + $0x68] sm:$0xff]
  %v1662 = vld [vmem:[%s2 + $0x70] sm:$0xff]
  %v1663 = vld [vmem:[%s2 + $0x78] sm:$0xff]
  %v1664 = vld [vmem:[%s2 + $0x80] sm:$0xff]
  %v1665 = vld [vmem:[%s2 + $0x88] sm:$0xff]
  %v1666 = vld [vmem:[%s2 + $0x90] sm:$0xff]
  %v1667 = vld [vmem:[%s2 + $0x98] sm:$0xff]
  %v1668 = vld [vmem:[%s2 + $0xa0] sm:$0xff]
  %v1669 = vld [vmem:[%s2 + $0xa8] sm:$0xff]
  %v1670 = vld [vmem:[%s2 + $0xb0] sm:$0xff]
  %v1671 = vld [vmem:[%s2 + $0xb8] sm:$0xff]
  %v1672 = vld [vmem:[%s2 + $0xc0] sm:$0xff]
  %v1673 = vld [vmem:[%s2 + $0xc8] sm:$0xff]
  %v1674 = vld [vmem:[%s2 + $0xd0] sm:$0xff]
  %v1675 = vld [vmem:[%s2 + $0xd8] sm:$0xff]
  %v1676 = vld [vmem:[%s2 + $0xe0] sm:$0xff]
  %v1677 = vld [vmem:[%s2 + $0xe8] sm:$0xff]
  %v1678 = vld [vmem:[%s2 + $0xf0] sm:$0xff]
  %v1679 = vld [vmem:[%s2 + $0xf8] sm:$0xff]
  %v1712 = vunpack.c.l.b16 %v1648
  %v1713 = vunpack.c.h.b16 %v1648
  %v1714 = vunpack.c.l.b16 %v1649
  %v1715 = vunpack.c.h.b16 %v1649
  %v1716 = vunpack.c.l.b16 %v1650
  %v1717 = vunpack.c.h.b16 %v1650
  %v1718 = vunpack.c.l.b16 %v1651
  %v1719 = vunpack.c.h.b16 %v1651
  %v1720 = vunpack.c.l.b16 %v1652
  %v1721 = vunpack.c.h.b16 %v1652
  %v1722 = vunpack.c.l.b16 %v1653
  %v1723 = vunpack.c.h.b16 %v1653
  %v1724 = vunpack.c.l.b16 %v1654
  %v1725 = vunpack.c.h.b16 %v1654
  %v1726 = vunpack.c.l.b16 %v1655
  %v1727 = vunpack.c.h.b16 %v1655
  %v1728 = vunpack.c.l.b16 %v1656
  %v1729 = vunpack.c.h.b16 %v1656
  %v1730 = vunpack.c.l.b16 %v1657
  %v1731 = vunpack.c.h.b16 %v1657
  %v1732 = vunpack.c.l.b16 %v1658
  %v1733 = vunpack.c.h.b16 %v1658
  %v1734 = vunpack.c.l.b16 %v1659
  %v1735 = vunpack.c.h.b16 %v1659
  %v1736 = vunpack.c.l.b16 %v1660
  %v1737 = vunpack.c.h.b16 %v1660
  %v1738 = vunpack.c.l.b16 %v1661
  %v1739 = vunpack.c.h.b16 %v1661
  %v1740 = vunpack.c.l.b16 %v1662
  %v1741 = vunpack.c.h.b16 %v1662
  %v1742 = vunpack.c.l.b16 %v1663
  %v1743 = vunpack.c.h.b16 %v1663
  %v1744 = vunpack.c.l.b16 %v1664
  %v1745 = vunpack.c.h.b16 %v1664
  %v1746 = vunpack.c.l.b16 %v1665
  %v1747 = vunpack.c.h.b16 %v1665
  %v1748 = vunpack.c.l.b16 %v1666
  %v1749 = vunpack.c.h.b16 %v1666
  %v1750 = vunpack.c.l.b16 %v1667
  %v1751 = vunpack.c.h.b16 %v1667
  %v1752 = vunpack.c.l.b16 %v1668
  %v1753 = vunpack.c.h.b16 %v1668
  %v1754 = vunpack.c.l.b16 %v1669
  %v1755 = vunpack.c.h.b16 %v1669
  %v1756 = vunpack.c.l.b16 %v1670
  %v1757 = vunpack.c.h.b16 %v1670
  %v1758 = vunpack.c.l.b16 %v1671
  %v1759 = vunpack.c.h.b16 %v1671
  %v1760 = vunpack.c.l.b16 %v1672
  %v1761 = vunpack.c.h.b16 %v1672
  %v1762 = vunpack.c.l.b16 %v1673
  %v1763 = vunpack.c.h.b16 %v1673
  %v1764 = vunpack.c.l.b16 %v1674
  %v1765 = vunpack.c.h.b16 %v1674
  %v1766 = vunpack.c.l.b16 %v1675
  %v1767 = vunpack.c.h.b16 %v1675
  %v1768 = vunpack.c.l.b16 %v1676
  %v1769 = vunpack.c.h.b16 %v1676
  %v1770 = vunpack.c.l.b16 %v1677
  %v1771 = vunpack.c.h.b16 %v1677
  %v1772 = vunpack.c.l.b16 %v1678
  %v1773 = vunpack.c.h.b16 %v1678
  %v1774 = vunpack.c.l.b16 %v1679
  %v1775 = vunpack.c.h.b16 %v1679
  %v1776 = vpack.c.b16 %v1716, %v1712
  %v1777 = vpack.c.b16 %v1717, %v1713
  %v1778 = vpack.c.b16 %v1718, %v1714
  %v1779 = vpack.c.b16 %v1719, %v1715
  %v1780 = vpack.c.b16 %v1724, %v1720
  %v1781 = vpack.c.b16 %v1725, %v1721
  %v1782 = vpack.c.b16 %v1726, %v1722
  %v1783 = vpack.c.b16 %v1727, %v1723
  %v1784 = vpack.c.b16 %v1732, %v1728
  %v1785 = vpack.c.b16 %v1733, %v1729
  %v1786 = vpack.c.b16 %v1734, %v1730
  %v1787 = vpack.c.b16 %v1735, %v1731
  %v1788 = vpack.c.b16 %v1740, %v1736
  %v1789 = vpack.c.b16 %v1741, %v1737
  %v1790 = vpack.c.b16 %v1742, %v1738
  %v1791 = vpack.c.b16 %v1743, %v1739
  %v1792 = vpack.c.b16 %v1748, %v1744
  %v1793 = vpack.c.b16 %v1749, %v1745
  %v1794 = vpack.c.b16 %v1750, %v1746
  %v1795 = vpack.c.b16 %v1751, %v1747
  %v1796 = vpack.c.b16 %v1756, %v1752
  %v1797 = vpack.c.b16 %v1757, %v1753
  %v1798 = vpack.c.b16 %v1758, %v1754
  %v1799 = vpack.c.b16 %v1759, %v1755
  %v1800 = vpack.c.b16 %v1764, %v1760
  %v1801 = vpack.c.b16 %v1765, %v1761
  %v1802 = vpack.c.b16 %v1766, %v1762
  %v1803 = vpack.c.b16 %v1767, %v1763
  %v1804 = vpack.c.b16 %v1772, %v1768
  %v1805 = vpack.c.b16 %v1773, %v1769
  %v1806 = vpack.c.b16 %v1774, %v1770
  %v1807 = vpack.c.b16 %v1775, %v1771
  %1840 = vmatprep.subr.bf16.mxu0 %v1777
  %1841 = vmatpush1.bf16.msra.mxu0 %v1776
  %1842 = vmatprep.subr.bf16.mxu0 %v1781
  %1843 = vmatpush1.bf16.msra.mxu0 %v1780
  %1844 = vmatprep.subr.bf16.mxu0 %v1785
  %1845 = vmatpush1.bf16.msra.mxu0 %v1784
  %1846 = vmatprep.subr.bf16.mxu0 %v1789
  %1847 = vmatpush1.bf16.msra.mxu0 %v1788
  %1848 = vmatprep.subr.bf16.mxu0 %v1793
  %1849 = vmatpush1.bf16.msra.mxu0 %v1792
  %1850 = vmatprep.subr.bf16.mxu0 %v1797
  %1851 = vmatpush1.bf16.msra.mxu0 %v1796
  %1852 = vmatprep.subr.bf16.mxu0 %v1801
  %1853 = vmatpush1.bf16.msra.mxu0 %v1800
  %1854 = vmatprep.subr.bf16.mxu0 %v1805
  %1855 = vmatpush1.bf16.msra.mxu0 %v1804
  %1856 = vmatprep.subr.bf16.mxu0 0
  %1857 = vmatpush1.bf16.msra.mxu0 0
  %1858 = vmatprep.subr.bf16.mxu0 0
  %1859 = vmatpush1.bf16.msra.mxu0 0
  %1860 = vmatprep.subr.bf16.mxu0 0
  %1861 = vmatpush1.bf16.msra.mxu0 0
  %1862 = vmatprep.subr.bf16.mxu0 0
  %1863 = vmatpush1.bf16.msra.mxu0 0
  %1864 = vmatprep.subr.bf16.mxu0 0
  %1865 = vmatpush1.bf16.msra.mxu0 0
  %1866 = vmatprep.subr.bf16.mxu0 0
  %1867 = vmatpush1.bf16.msra.mxu0 0
  %1868 = vmatprep.subr.bf16.mxu0 0
  %1869 = vmatpush1.bf16.msra.mxu0 0
  %1870 = vmatprep.subr.bf16.mxu0 0
  %1871 = vmatpush1.bf16.msra.mxu0 0
  %1872 = vmatprep.mubr.bf16.mxu0 0
  %1873 = vmatmul.mubr.bf16.gmra.mrb[0].mxu0 %v1344
  %v1874 = vpop.f32.mrb[0].mxu0
  %v1875 = vadd.f32 0.0, %v1874
  %v1876 = vpop.f32.mrb[0].mxu0
  %v1877 = vadd.f32 0.0, %v1876
  %v1878 = vpop.f32.mrb[0].mxu0
  %v1879 = vpop.f32.mrb[0].mxu0
  %1880 = vdwg.mxu0
  %1881 = vmatprep.subr.bf16.mxu0 %v1779
  %1882 = vmatpush1.bf16.msra.mxu0 %v1778
  %1883 = vmatprep.subr.bf16.mxu0 %v1783
  %1884 = vmatpush1.bf16.msra.mxu0 %v1782
  %1885 = vmatprep.subr.bf16.mxu0 %v1787
  %1886 = vmatpush1.bf16.msra.mxu0 %v1786
  %1887 = vmatprep.subr.bf16.mxu0 %v1791
  %1888 = vmatpush1.bf16.msra.mxu0 %v1790
  %1889 = vmatprep.subr.bf16.mxu0 %v1795
  %1890 = vmatpush1.bf16.msra.mxu0 %v1794
  %1891 = vmatprep.subr.bf16.mxu0 %v1799
  %1892 = vmatpush1.bf16.msra.mxu0 %v1798
  %1893 = vmatprep.subr.bf16.mxu0 %v1803
  %1894 = vmatpush1.bf16.msra.mxu0 %v1802
  %1895 = vmatprep.subr.bf16.mxu0 %v1807
  %1896 = vmatpush1.bf16.msra.mxu0 %v1806
  %1897 = vmatprep.subr.bf16.mxu0 0
  %1898 = vmatpush1.bf16.msra.mxu0 0
  %1899 = vmatprep.subr.bf16.mxu0 0
  %1900 = vmatpush1.bf16.msra.mxu0 0
  %1901 = vmatprep.subr.bf16.mxu0 0
  %1902 = vmatpush1.bf16.msra.mxu0 0
  %1903 = vmatprep.subr.bf16.mxu0 0
  %1904 = vmatpush1.bf16.msra.mxu0 0
  %1905 = vmatprep.subr.bf16.mxu0 0
  %1906 = vmatpush1.bf16.msra.mxu0 0
  %1907 = vmatprep.subr.bf16.mxu0 0
  %1908 = vmatpush1.bf16.msra.mxu0 0
  %1909 = vmatprep.subr.bf16.mxu0 0
  %1910 = vmatpush1.bf16.msra.mxu0 0
  %1911 = vmatprep.subr.bf16.mxu0 0
  %1912 = vmatpush1.bf16.msra.mxu0 0
  %1913 = vmatprep.mubr.bf16.mxu0 0
  %1914 = vmatmul.mubr.bf16.gmra.mrb[0].mxu0 %v1344
  %v1915 = vpop.f32.mrb[0].mxu0
  %v1916 = vadd.f32 0.0, %v1915
  %v1917 = vpop.f32.mrb[0].mxu0
  %v1918 = vadd.f32 0.0, %v1917
  %v1919 = vpop.f32.mrb[0].mxu0
  %v1920 = vpop.f32.mrb[0].mxu0
  %1921 = vdwg.mxu0
  %v1926 = vcombine.low %v1875, %v1877
  %v1927 = vcombine.low %v1916, %v1918
  %v1929 = vunpack.c.l.s4 1983009808
  %v1930 = vunpack.c.0.s8 %v1929
  %v1931 = vlaneseq
  %v1932 = vshrl.u32 %v1931, 7
  %v1933 = vsub.s32 %v1930, %v1932
  %v1934 = vrot.slane %v1926, %v1933
  %v1936 = vunpack.c.l.s4 1983009808
  %v1937 = vunpack.c.0.s8 %v1936
  %v1938 = vlaneseq
  %v1939 = vshrl.u32 %v1938, 7
  %v1940 = vsub.s32 %v1937, %v1939
  %v1941 = vrot.slane %v1927, %v1940
  %v1942 = vcombine.low %v1934, %v1941
  %v1944 = vadd.f32 %v1647, %v1942
  %v1945 = vxor.u32 %v1645, 2147483648
  %v1946 = vmul.f32 %v1945, 1.442695
  %v1947 = vpow.pop %v1946
  %v1948 = vadd.f32 %v1947, 1.0
  %v1949 = vrcp.pop %v1948
  %v1950 = vmul.f32 1.0, %v1949
  %v1952 = vrot.slane %v1645, 2
  %v1954 = vxor.u32 %v1952, 2147483648
  %v1955 = vmul.f32 %v1954, 1.442695
  %v1956 = vpow.pop %v1955
  %v1957 = vadd.f32 %v1956, 1.0
  %v1958 = vrcp.pop %v1957
  %v1959 = vmul.f32 1.0, %v1958
  %v1960 = vrot.slane %v1645, 4
  %v1962 = vtanh.pop %v1960
  %v1963 = vrot.slane %v1645, 6
  %v1965 = vxor.u32 %v1963, 2147483648
  %v1966 = vmul.f32 %v1965, 1.442695
  %v1967 = vpow.pop %v1966
  %v1968 = vadd.f32 %v1967, 1.0
  %v1969 = vrcp.pop %v1968
  %v1970 = vmul.f32 1.0, %v1969
  %v1971 = vmul.f32 %v1959, %v1307
  %v1972 = vmul.f32 %v1950, %v1962
  %v1973 = vadd.f32 %v1971, %v1972
  %v1974 = vtanh.pop %v1973
  %v1975 = vmul.f32 %v1970, %v1974
  %v1976 = vxor.u32 %v1944, 2147483648
  %v1977 = vmul.f32 %v1976, 1.442695
  %v1978 = vpow.pop %v1977
  %v1979 = vadd.f32 %v1978, 1.0
  %v1980 = vrcp.pop %v1979
  %v1981 = vmul.f32 1.0, %v1980
  %v1983 = vrot.slane %v1944, 2
  %v1985 = vxor.u32 %v1983, 2147483648
  %v1986 = vmul.f32 %v1985, 1.442695
  %v1987 = vpow.pop %v1986
  %v1988 = vadd.f32 %v1987, 1.0
  %v1989 = vrcp.pop %v1988
  %v1990 = vmul.f32 1.0, %v1989
  %v1991 = vrot.slane %v1944, 4
  %v1993 = vtanh.pop %v1991
  %v1994 = vrot.slane %v1944, 6
  %v1996 = vxor.u32 %v1994, 2147483648
  %v1997 = vmul.f32 %v1996, 1.442695
  %v1998 = vpow.pop %v1997
  %v1999 = vadd.f32 %v1998, 1.0
  %v2000 = vrcp.pop %v1999
  %v2001 = vmul.f32 1.0, %v2000
  %v2002 = vmul.f32 %v1990, %v1338
  %v2003 = vmul.f32 %v1981, %v1993
  %v2004 = vadd.f32 %v2002, %v2003
  %v2005 = vtanh.pop %v2004
  %v2006 = vmul.f32 %v2001, %v2005
  %v2007 = vpack.c.bf16 %v1975, %v1975
  %s2008 = scalar_lea.vmem %s3, 2
  %2009 = vst [vmem:[%s2008] sm:$0x1] %v2007
  %v2010 = vpack.c.bf16 %v2006, %v2006
  %s2011 = scalar_lea.vmem %s4, 5
  %2012 = vst [vmem:[%s2011] sm:$0x1] %v2010
  %s2013 = scalar_lea.vmem %s0, 48
  %v2014 = vld [vmem:[%s2013] sm:$0xff]
  %v2015 = vld [vmem:[%s1] sm:$0xff]
  %v2016 = vld [vmem:[%s1 + $0x8] sm:$0xff]
  %v2017 = vld [vmem:[%s1 + $0x10] sm:$0xff]
  %v2018 = vld [vmem:[%s1 + $0x18] sm:$0xff]
  %v2019 = vld [vmem:[%s1 + $0x20] sm:$0xff]
  %v2020 = vld [vmem:[%s1 + $0x28] sm:$0xff]
  %v2021 = vld [vmem:[%s1 + $0x30] sm:$0xff]
  %v2022 = vld [vmem:[%s1 + $0x38] sm:$0xff]
  %v2023 = vld [vmem:[%s1 + $0x40] sm:$0xff]
  %v2024 = vld [vmem:[%s1 + $0x48] sm:$0xff]
  %v2025 = vld [vmem:[%s1 + $0x50] sm:$0xff]
  %v2026 = vld [vmem:[%s1 + $0x58] sm:$0xff]
  %v2027 = vld [vmem:[%s1 + $0x60] sm:$0xff]
  %v2028 = vld [vmem:[%s1 + $0x68] sm:$0xff]
  %v2029 = vld [vmem:[%s1 + $0x70] sm:$0xff]
  %v2030 = vld [vmem:[%s1 + $0x78] sm:$0xff]
  %v2031 = vld [vmem:[%s1 + $0x80] sm:$0xff]
  %v2032 = vld [vmem:[%s1 + $0x88] sm:$0xff]
  %v2033 = vld [vmem:[%s1 + $0x90] sm:$0xff]
  %v2034 = vld [vmem:[%s1 + $0x98] sm:$0xff]
  %v2035 = vld [vmem:[%s1 + $0xa0] sm:$0xff]
  %v2036 = vld [vmem:[%s1 + $0xa8] sm:$0xff]
  %v2037 = vld [vmem:[%s1 + $0xb0] sm:$0xff]
  %v2038 = vld [vmem:[%s1 + $0xb8] sm:$0xff]
  %v2039 = vld [vmem:[%s1 + $0xc0] sm:$0xff]
  %v2040 = vld [vmem:[%s1 + $0xc8] sm:$0xff]
  %v2041 = vld [vmem:[%s1 + $0xd0] sm:$0xff]
  %v2042 = vld [vmem:[%s1 + $0xd8] sm:$0xff]
  %v2043 = vld [vmem:[%s1 + $0xe0] sm:$0xff]
  %v2044 = vld [vmem:[%s1 + $0xe8] sm:$0xff]
  %v2045 = vld [vmem:[%s1 + $0xf0] sm:$0xff]
  %v2046 = vld [vmem:[%s1 + $0xf8] sm:$0xff]
  %v2079 = vunpack.c.l.b16 %v2015
  %v2080 = vunpack.c.h.b16 %v2015
  %v2081 = vunpack.c.l.b16 %v2016
  %v2082 = vunpack.c.h.b16 %v2016
  %v2083 = vunpack.c.l.b16 %v2017
  %v2084 = vunpack.c.h.b16 %v2017
  %v2085 = vunpack.c.l.b16 %v2018
  %v2086 = vunpack.c.h.b16 %v2018
  %v2087 = vunpack.c.l.b16 %v2019
  %v2088 = vunpack.c.h.b16 %v2019
  %v2089 = vunpack.c.l.b16 %v2020
  %v2090 = vunpack.c.h.b16 %v2020
  %v2091 = vunpack.c.l.b16 %v2021
  %v2092 = vunpack.c.h.b16 %v2021
  %v2093 = vunpack.c.l.b16 %v2022
  %v2094 = vunpack.c.h.b16 %v2022
  %v2095 = vunpack.c.l.b16 %v2023
  %v2096 = vunpack.c.h.b16 %v2023
  %v2097 = vunpack.c.l.b16 %v2024
  %v2098 = vunpack.c.h.b16 %v2024
  %v2099 = vunpack.c.l.b16 %v2025
  %v2100 = vunpack.c.h.b16 %v2025
  %v2101 = vunpack.c.l.b16 %v2026
  %v2102 = vunpack.c.h.b16 %v2026
  %v2103 = vunpack.c.l.b16 %v2027
  %v2104 = vunpack.c.h.b16 %v2027
  %v2105 = vunpack.c.l.b16 %v2028
  %v2106 = vunpack.c.h.b16 %v2028
  %v2107 = vunpack.c.l.b16 %v2029
  %v2108 = vunpack.c.h.b16 %v2029
  %v2109 = vunpack.c.l.b16 %v2030
  %v2110 = vunpack.c.h.b16 %v2030
  %v2111 = vunpack.c.l.b16 %v2031
  %v2112 = vunpack.c.h.b16 %v2031
  %v2113 = vunpack.c.l.b16 %v2032
  %v2114 = vunpack.c.h.b16 %v2032
  %v2115 = vunpack.c.l.b16 %v2033
  %v2116 = vunpack.c.h.b16 %v2033
  %v2117 = vunpack.c.l.b16 %v2034
  %v2118 = vunpack.c.h.b16 %v2034
  %v2119 = vunpack.c.l.b16 %v2035
  %v2120 = vunpack.c.h.b16 %v2035
  %v2121 = vunpack.c.l.b16 %v2036
  %v2122 = vunpack.c.h.b16 %v2036
  %v2123 = vunpack.c.l.b16 %v2037
  %v2124 = vunpack.c.h.b16 %v2037
  %v2125 = vunpack.c.l.b16 %v2038
  %v2126 = vunpack.c.h.b16 %v2038
  %v2127 = vunpack.c.l.b16 %v2039
  %v2128 = vunpack.c.h.b16 %v2039
  %v2129 = vunpack.c.l.b16 %v2040
  %v2130 = vunpack.c.h.b16 %v2040
  %v2131 = vunpack.c.l.b16 %v2041
  %v2132 = vunpack.c.h.b16 %v2041
  %v2133 = vunpack.c.l.b16 %v2042
  %v2134 = vunpack.c.h.b16 %v2042
  %v2135 = vunpack.c.l.b16 %v2043
  %v2136 = vunpack.c.h.b16 %v2043
  %v2137 = vunpack.c.l.b16 %v2044
  %v2138 = vunpack.c.h.b16 %v2044
  %v2139 = vunpack.c.l.b16 %v2045
  %v2140 = vunpack.c.h.b16 %v2045
  %v2141 = vunpack.c.l.b16 %v2046
  %v2142 = vunpack.c.h.b16 %v2046
  %v2143 = vpack.c.b16 %v2083, %v2079
  %v2144 = vpack.c.b16 %v2084, %v2080
  %v2145 = vpack.c.b16 %v2085, %v2081
  %v2146 = vpack.c.b16 %v2086, %v2082
  %v2147 = vpack.c.b16 %v2091, %v2087
  %v2148 = vpack.c.b16 %v2092, %v2088
  %v2149 = vpack.c.b16 %v2093, %v2089
  %v2150 = vpack.c.b16 %v2094, %v2090
  %v2151 = vpack.c.b16 %v2099, %v2095
  %v2152 = vpack.c.b16 %v2100, %v2096
  %v2153 = vpack.c.b16 %v2101, %v2097
  %v2154 = vpack.c.b16 %v2102, %v2098
  %v2155 = vpack.c.b16 %v2107, %v2103
  %v2156 = vpack.c.b16 %v2108, %v2104
  %v2157 = vpack.c.b16 %v2109, %v2105
  %v2158 = vpack.c.b16 %v2110, %v2106
  %v2159 = vpack.c.b16 %v2115, %v2111
  %v2160 = vpack.c.b16 %v2116, %v2112
  %v2161 = vpack.c.b16 %v2117, %v2113
  %v2162 = vpack.c.b16 %v2118, %v2114
  %v2163 = vpack.c.b16 %v2123, %v2119
  %v2164 = vpack.c.b16 %v2124, %v2120
  %v2165 = vpack.c.b16 %v2125, %v2121
  %v2166 = vpack.c.b16 %v2126, %v2122
  %v2167 = vpack.c.b16 %v2131, %v2127
  %v2168 = vpack.c.b16 %v2132, %v2128
  %v2169 = vpack.c.b16 %v2133, %v2129
  %v2170 = vpack.c.b16 %v2134, %v2130
  %v2171 = vpack.c.b16 %v2139, %v2135
  %v2172 = vpack.c.b16 %v2140, %v2136
  %v2173 = vpack.c.b16 %v2141, %v2137
  %v2174 = vpack.c.b16 %v2142, %v2138
  %2207 = vmatprep.subr.bf16.mxu0 %v2144
  %2208 = vmatpush1.bf16.msra.mxu0 %v2143
  %2209 = vmatprep.subr.bf16.mxu0 %v2148
  %2210 = vmatpush1.bf16.msra.mxu0 %v2147
  %2211 = vmatprep.subr.bf16.mxu0 %v2152
  %2212 = vmatpush1.bf16.msra.mxu0 %v2151
  %2213 = vmatprep.subr.bf16.mxu0 %v2156
  %2214 = vmatpush1.bf16.msra.mxu0 %v2155
  %2215 = vmatprep.subr.bf16.mxu0 %v2160
  %2216 = vmatpush1.bf16.msra.mxu0 %v2159
  %2217 = vmatprep.subr.bf16.mxu0 %v2164
  %2218 = vmatpush1.bf16.msra.mxu0 %v2163
  %2219 = vmatprep.subr.bf16.mxu0 %v2168
  %2220 = vmatpush1.bf16.msra.mxu0 %v2167
  %2221 = vmatprep.subr.bf16.mxu0 %v2172
  %2222 = vmatpush1.bf16.msra.mxu0 %v2171
  %2223 = vmatprep.subr.bf16.mxu0 0
  %2224 = vmatpush1.bf16.msra.mxu0 0
  %2225 = vmatprep.subr.bf16.mxu0 0
  %2226 = vmatpush1.bf16.msra.mxu0 0
  %2227 = vmatprep.subr.bf16.mxu0 0
  %2228 = vmatpush1.bf16.msra.mxu0 0
  %2229 = vmatprep.subr.bf16.mxu0 0
  %2230 = vmatpush1.bf16.msra.mxu0 0
  %2231 = vmatprep.subr.bf16.mxu0 0
  %2232 = vmatpush1.bf16.msra.mxu0 0
  %2233 = vmatprep.subr.bf16.mxu0 0
  %2234 = vmatpush1.bf16.msra.mxu0 0
  %2235 = vmatprep.subr.bf16.mxu0 0
  %2236 = vmatpush1.bf16.msra.mxu0 0
  %2237 = vmatprep.subr.bf16.mxu0 0
  %2238 = vmatpush1.bf16.msra.mxu0 0
  %2239 = vmatprep.mubr.bf16.mxu0 0
  %2240 = vmatmul.mubr.bf16.gmra.mrb[0].mxu0 %v2007
  %v2241 = vpop.f32.mrb[0].mxu0
  %v2242 = vadd.f32 0.0, %v2241
  %v2243 = vpop.f32.mrb[0].mxu0
  %v2244 = vadd.f32 0.0, %v2243
  %v2245 = vpop.f32.mrb[0].mxu0
  %v2246 = vpop.f32.mrb[0].mxu0
  %2247 = vdwg.mxu0
  %2248 = vmatprep.subr.bf16.mxu0 %v2146
  %2249 = vmatpush1.bf16.msra.mxu0 %v2145
  %2250 = vmatprep.subr.bf16.mxu0 %v2150
  %2251 = vmatpush1.bf16.msra.mxu0 %v2149
  %2252 = vmatprep.subr.bf16.mxu0 %v2154
  %2253 = vmatpush1.bf16.msra.mxu0 %v2153
  %2254 = vmatprep.subr.bf16.mxu0 %v2158
  %2255 = vmatpush1.bf16.msra.mxu0 %v2157
  %2256 = vmatprep.subr.bf16.mxu0 %v2162
  %2257 = vmatpush1.bf16.msra.mxu0 %v2161
  %2258 = vmatprep.subr.bf16.mxu0 %v2166
  %2259 = vmatpush1.bf16.msra.mxu0 %v2165
  %2260 = vmatprep.subr.bf16.mxu0 %v2170
  %2261 = vmatpush1.bf16.msra.mxu0 %v2169
  %2262 = vmatprep.subr.bf16.mxu0 %v2174
  %2263 = vmatpush1.bf16.msra.mxu0 %v2173
  %2264 = vmatprep.subr.bf16.mxu0 0
  %2265 = vmatpush1.bf16.msra.mxu0 0
  %2266 = vmatprep.subr.bf16.mxu0 0
  %2267 = vmatpush1.bf16.msra.mxu0 0
  %2268 = vmatprep.subr.bf16.mxu0 0
  %2269 = vmatpush1.bf16.msra.mxu0 0
  %2270 = vmatprep.subr.bf16.mxu0 0
  %2271 = vmatpush1.bf16.msra.mxu0 0
  %2272 = vmatprep.subr.bf16.mxu0 0
  %2273 = vmatpush1.bf16.msra.mxu0 0
  %2274 = vmatprep.subr.bf16.mxu0 0
  %2275 = vmatpush1.bf16.msra.mxu0 0
  %2276 = vmatprep.subr.bf16.mxu0 0
  %2277 = vmatpush1.bf16.msra.mxu0 0
  %2278 = vmatprep.subr.bf16.mxu0 0
  %2279 = vmatpush1.bf16.msra.mxu0 0
  %2280 = vmatprep.mubr.bf16.mxu0 0
  %2281 = vmatmul.mubr.bf16.gmra.mrb[0].mxu0 %v2007
  %v2282 = vpop.f32.mrb[0].mxu0
  %v2283 = vadd.f32 0.0, %v2282
  %v2284 = vpop.f32.mrb[0].mxu0
  %v2285 = vadd.f32 0.0, %v2284
  %v2286 = vpop.f32.mrb[0].mxu0
  %v2287 = vpop.f32.mrb[0].mxu0
  %2288 = vdwg.mxu0
  %v2293 = vcombine.low %v2242, %v2244
  %v2294 = vcombine.low %v2283, %v2285
  %v2296 = vunpack.c.l.s4 1983009808
  %v2297 = vunpack.c.0.s8 %v2296
  %v2298 = vlaneseq
  %v2299 = vshrl.u32 %v2298, 7
  %v2300 = vsub.s32 %v2297, %v2299
  %v2301 = vrot.slane %v2293, %v2300
  %v2303 = vunpack.c.l.s4 1983009808
  %v2304 = vunpack.c.0.s8 %v2303
  %v2305 = vlaneseq
  %v2306 = vshrl.u32 %v2305, 7
  %v2307 = vsub.s32 %v2304, %v2306
  %v2308 = vrot.slane %v2294, %v2307
  %v2309 = vcombine.low %v2301, %v2308
  %v2311 = vadd.f32 %v2014, %v2309
  %s2312 = scalar_lea.vmem %s0, 64
  %v2313 = vld [vmem:[%s2312 + $0x8] sm:$0xff]
  %v2314 = vld [vmem:[%s2] sm:$0xff]
  %v2315 = vld [vmem:[%s2 + $0x8] sm:$0xff]
  %v2316 = vld [vmem:[%s2 + $0x10] sm:$0xff]
  %v2317 = vld [vmem:[%s2 + $0x18] sm:$0xff]
  %v2318 = vld [vmem:[%s2 + $0x20] sm:$0xff]
  %v2319 = vld [vmem:[%s2 + $0x28] sm:$0xff]
  %v2320 = vld [vmem:[%s2 + $0x30] sm:$0xff]
  %v2321 = vld [vmem:[%s2 + $0x38] sm:$0xff]
  %v2322 = vld [vmem:[%s2 + $0x40] sm:$0xff]
  %v2323 = vld [vmem:[%s2 + $0x48] sm:$0xff]
  %v2324 = vld [vmem:[%s2 + $0x50] sm:$0xff]
  %v2325 = vld [vmem:[%s2 + $0x58] sm:$0xff]
  %v2326 = vld [vmem:[%s2 + $0x60] sm:$0xff]
  %v2327 = vld [vmem:[%s2 + $0x68] sm:$0xff]
  %v2328 = vld [vmem:[%s2 + $0x70] sm:$0xff]
  %v2329 = vld [vmem:[%s2 + $0x78] sm:$0xff]
  %v2330 = vld [vmem:[%s2 + $0x80] sm:$0xff]
  %v2331 = vld [vmem:[%s2 + $0x88] sm:$0xff]
  %v2332 = vld [vmem:[%s2 + $0x90] sm:$0xff]
  %v2333 = vld [vmem:[%s2 + $0x98] sm:$0xff]
  %v2334 = vld [vmem:[%s2 + $0xa0] sm:$0xff]
  %v2335 = vld [vmem:[%s2 + $0xa8] sm:$0xff]
  %v2336 = vld [vmem:[%s2 + $0xb0] sm:$0xff]
  %v2337 = vld [vmem:[%s2 + $0xb8] sm:$0xff]
  %v2338 = vld [vmem:[%s2 + $0xc0] sm:$0xff]
  %v2339 = vld [vmem:[%s2 + $0xc8] sm:$0xff]
  %v2340 = vld [vmem:[%s2 + $0xd0] sm:$0xff]
  %v2341 = vld [vmem:[%s2 + $0xd8] sm:$0xff]
  %v2342 = vld [vmem:[%s2 + $0xe0] sm:$0xff]
  %v2343 = vld [vmem:[%s2 + $0xe8] sm:$0xff]
  %v2344 = vld [vmem:[%s2 + $0xf0] sm:$0xff]
  %v2345 = vld [vmem:[%s2 + $0xf8] sm:$0xff]
  %v2378 = vunpack.c.l.b16 %v2314
  %v2379 = vunpack.c.h.b16 %v2314
  %v2380 = vunpack.c.l.b16 %v2315
  %v2381 = vunpack.c.h.b16 %v2315
  %v2382 = vunpack.c.l.b16 %v2316
  %v2383 = vunpack.c.h.b16 %v2316
  %v2384 = vunpack.c.l.b16 %v2317
  %v2385 = vunpack.c.h.b16 %v2317
  %v2386 = vunpack.c.l.b16 %v2318
  %v2387 = vunpack.c.h.b16 %v2318
  %v2388 = vunpack.c.l.b16 %v2319
  %v2389 = vunpack.c.h.b16 %v2319
  %v2390 = vunpack.c.l.b16 %v2320
  %v2391 = vunpack.c.h.b16 %v2320
  %v2392 = vunpack.c.l.b16 %v2321
  %v2393 = vunpack.c.h.b16 %v2321
  %v2394 = vunpack.c.l.b16 %v2322
  %v2395 = vunpack.c.h.b16 %v2322
  %v2396 = vunpack.c.l.b16 %v2323
  %v2397 = vunpack.c.h.b16 %v2323
  %v2398 = vunpack.c.l.b16 %v2324
  %v2399 = vunpack.c.h.b16 %v2324
  %v2400 = vunpack.c.l.b16 %v2325
  %v2401 = vunpack.c.h.b16 %v2325
  %v2402 = vunpack.c.l.b16 %v2326
  %v2403 = vunpack.c.h.b16 %v2326
  %v2404 = vunpack.c.l.b16 %v2327
  %v2405 = vunpack.c.h.b16 %v2327
  %v2406 = vunpack.c.l.b16 %v2328
  %v2407 = vunpack.c.h.b16 %v2328
  %v2408 = vunpack.c.l.b16 %v2329
  %v2409 = vunpack.c.h.b16 %v2329
  %v2410 = vunpack.c.l.b16 %v2330
  %v2411 = vunpack.c.h.b16 %v2330
  %v2412 = vunpack.c.l.b16 %v2331
  %v2413 = vunpack.c.h.b16 %v2331
  %v2414 = vunpack.c.l.b16 %v2332
  %v2415 = vunpack.c.h.b16 %v2332
  %v2416 = vunpack.c.l.b16 %v2333
  %v2417 = vunpack.c.h.b16 %v2333
  %v2418 = vunpack.c.l.b16 %v2334
  %v2419 = vunpack.c.h.b16 %v2334
  %v2420 = vunpack.c.l.b16 %v2335
  %v2421 = vunpack.c.h.b16 %v2335
  %v2422 = vunpack.c.l.b16 %v2336
  %v2423 = vunpack.c.h.b16 %v2336
  %v2424 = vunpack.c.l.b16 %v2337
  %v2425 = vunpack.c.h.b16 %v2337
  %v2426 = vunpack.c.l.b16 %v2338
  %v2427 = vunpack.c.h.b16 %v2338
  %v2428 = vunpack.c.l.b16 %v2339
  %v2429 = vunpack.c.h.b16 %v2339
  %v2430 = vunpack.c.l.b16 %v2340
  %v2431 = vunpack.c.h.b16 %v2340
  %v2432 = vunpack.c.l.b16 %v2341
  %v2433 = vunpack.c.h.b16 %v2341
  %v2434 = vunpack.c.l.b16 %v2342
  %v2435 = vunpack.c.h.b16 %v2342
  %v2436 = vunpack.c.l.b16 %v2343
  %v2437 = vunpack.c.h.b16 %v2343
  %v2438 = vunpack.c.l.b16 %v2344
  %v2439 = vunpack.c.h.b16 %v2344
  %v2440 = vunpack.c.l.b16 %v2345
  %v2441 = vunpack.c.h.b16 %v2345
  %v2442 = vpack.c.b16 %v2382, %v2378
  %v2443 = vpack.c.b16 %v2383, %v2379
  %v2444 = vpack.c.b16 %v2384, %v2380
  %v2445 = vpack.c.b16 %v2385, %v2381
  %v2446 = vpack.c.b16 %v2390, %v2386
  %v2447 = vpack.c.b16 %v2391, %v2387
  %v2448 = vpack.c.b16 %v2392, %v2388
  %v2449 = vpack.c.b16 %v2393, %v2389
  %v2450 = vpack.c.b16 %v2398, %v2394
  %v2451 = vpack.c.b16 %v2399, %v2395
  %v2452 = vpack.c.b16 %v2400, %v2396
  %v2453 = vpack.c.b16 %v2401, %v2397
  %v2454 = vpack.c.b16 %v2406, %v2402
  %v2455 = vpack.c.b16 %v2407, %v2403
  %v2456 = vpack.c.b16 %v2408, %v2404
  %v2457 = vpack.c.b16 %v2409, %v2405
  %v2458 = vpack.c.b16 %v2414, %v2410
  %v2459 = vpack.c.b16 %v2415, %v2411
  %v2460 = vpack.c.b16 %v2416, %v2412
  %v2461 = vpack.c.b16 %v2417, %v2413
  %v2462 = vpack.c.b16 %v2422, %v2418
  %v2463 = vpack.c.b16 %v2423, %v2419
  %v2464 = vpack.c.b16 %v2424, %v2420
  %v2465 = vpack.c.b16 %v2425, %v2421
  %v2466 = vpack.c.b16 %v2430, %v2426
  %v2467 = vpack.c.b16 %v2431, %v2427
  %v2468 = vpack.c.b16 %v2432, %v2428
  %v2469 = vpack.c.b16 %v2433, %v2429
  %v2470 = vpack.c.b16 %v2438, %v2434
  %v2471 = vpack.c.b16 %v2439, %v2435
  %v2472 = vpack.c.b16 %v2440, %v2436
  %v2473 = vpack.c.b16 %v2441, %v2437
  %2506 = vmatprep.subr.bf16.mxu0 %v2443
  %2507 = vmatpush1.bf16.msra.mxu0 %v2442
  %2508 = vmatprep.subr.bf16.mxu0 %v2447
  %2509 = vmatpush1.bf16.msra.mxu0 %v2446
  %2510 = vmatprep.subr.bf16.mxu0 %v2451
  %2511 = vmatpush1.bf16.msra.mxu0 %v2450
  %2512 = vmatprep.subr.bf16.mxu0 %v2455
  %2513 = vmatpush1.bf16.msra.mxu0 %v2454
  %2514 = vmatprep.subr.bf16.mxu0 %v2459
  %2515 = vmatpush1.bf16.msra.mxu0 %v2458
  %2516 = vmatprep.subr.bf16.mxu0 %v2463
  %2517 = vmatpush1.bf16.msra.mxu0 %v2462
  %2518 = vmatprep.subr.bf16.mxu0 %v2467
  %2519 = vmatpush1.bf16.msra.mxu0 %v2466
  %2520 = vmatprep.subr.bf16.mxu0 %v2471
  %2521 = vmatpush1.bf16.msra.mxu0 %v2470
  %2522 = vmatprep.subr.bf16.mxu0 0
  %2523 = vmatpush1.bf16.msra.mxu0 0
  %2524 = vmatprep.subr.bf16.mxu0 0
  %2525 = vmatpush1.bf16.msra.mxu0 0
  %2526 = vmatprep.subr.bf16.mxu0 0
  %2527 = vmatpush1.bf16.msra.mxu0 0
  %2528 = vmatprep.subr.bf16.mxu0 0
  %2529 = vmatpush1.bf16.msra.mxu0 0
  %2530 = vmatprep.subr.bf16.mxu0 0
  %2531 = vmatpush1.bf16.msra.mxu0 0
  %2532 = vmatprep.subr.bf16.mxu0 0
  %2533 = vmatpush1.bf16.msra.mxu0 0
  %2534 = vmatprep.subr.bf16.mxu0 0
  %2535 = vmatpush1.bf16.msra.mxu0 0
  %2536 = vmatprep.subr.bf16.mxu0 0
  %2537 = vmatpush1.bf16.msra.mxu0 0
  %2538 = vmatprep.mubr.bf16.mxu0 0
  %2539 = vmatmul.mubr.bf16.gmra.mrb[0].mxu0 %v2010
  %v2540 = vpop.f32.mrb[0].mxu0
  %v2541 = vadd.f32 0.0, %v2540
  %v2542 = vpop.f32.mrb[0].mxu0
  %v2543 = vadd.f32 0.0, %v2542
  %v2544 = vpop.f32.mrb[0].mxu0
  %v2545 = vpop.f32.mrb[0].mxu0
  %2546 = vdwg.mxu0
  %2547 = vmatprep.subr.bf16.mxu0 %v2445
  %2548 = vmatpush1.bf16.msra.mxu0 %v2444
  %2549 = vmatprep.subr.bf16.mxu0 %v2449
  %2550 = vmatpush1.bf16.msra.mxu0 %v2448
  %2551 = vmatprep.subr.bf16.mxu0 %v2453
  %2552 = vmatpush1.bf16.msra.mxu0 %v2452
  %2553 = vmatprep.subr.bf16.mxu0 %v2457
  %2554 = vmatpush1.bf16.msra.mxu0 %v2456
  %2555 = vmatprep.subr.bf16.mxu0 %v2461
  %2556 = vmatpush1.bf16.msra.mxu0 %v2460
  %2557 = vmatprep.subr.bf16.mxu0 %v2465
  %2558 = vmatpush1.bf16.msra.mxu0 %v2464
  %2559 = vmatprep.subr.bf16.mxu0 %v2469
  %2560 = vmatpush1.bf16.msra.mxu0 %v2468
  %2561 = vmatprep.subr.bf16.mxu0 %v2473
  %2562 = vmatpush1.bf16.msra.mxu0 %v2472
  %2563 = vmatprep.subr.bf16.mxu0 0
  %2564 = vmatpush1.bf16.msra.mxu0 0
  %2565 = vmatprep.subr.bf16.mxu0 0
  %2566 = vmatpush1.bf16.msra.mxu0 0
  %2567 = vmatprep.subr.bf16.mxu0 0
  %2568 = vmatpush1.bf16.msra.mxu0 0
  %2569 = vmatprep.subr.bf16.mxu0 0
  %2570 = vmatpush1.bf16.msra.mxu0 0
  %2571 = vmatprep.subr.bf16.mxu0 0
  %2572 = vmatpush1.bf16.msra.mxu0 0
  %2573 = vmatprep.subr.bf16.mxu0 0
  %2574 = vmatpush1.bf16.msra.mxu0 0
  %2575 = vmatprep.subr.bf16.mxu0 0
  %2576 = vmatpush1.bf16.msra.mxu0 0
  %2577 = vmatprep.subr.bf16.mxu0 0
  %2578 = vmatpush1.bf16.msra.mxu0 0
  %2579 = vmatprep.mubr.bf16.mxu0 0
  %2580 = vmatmul.mubr.bf16.gmra.mrb[0].mxu0 %v2010
  %v2581 = vpop.f32.mrb[0].mxu0
  %v2582 = vadd.f32 0.0, %v2581
  %v2583 = vpop.f32.mrb[0].mxu0
  %v2584 = vadd.f32 0.0, %v2583
  %v2585 = vpop.f32.mrb[0].mxu0
  %v2586 = vpop.f32.mrb[0].mxu0
  %2587 = vdwg.mxu0
  %v2592 = vcombine.low %v2541, %v2543
  %v2593 = vcombine.low %v2582, %v2584
  %v2595 = vunpack.c.l.s4 1983009808
  %v2596 = vunpack.c.0.s8 %v2595
  %v2597 = vlaneseq
  %v2598 = vshrl.u32 %v2597, 7
  %v2599 = vsub.s32 %v2596, %v2598
  %v2600 = vrot.slane %v2592, %v2599
  %v2602 = vunpack.c.l.s4 1983009808
  %v2603 = vunpack.c.0.s8 %v2602
  %v2604 = vlaneseq
  %v2605 = vshrl.u32 %v2604, 7
  %v2606 = vsub.s32 %v2603, %v2605
  %v2607 = vrot.slane %v2593, %v2606
  %v2608 = vcombine.low %v2600, %v2607
  %v2610 = vadd.f32 %v2313, %v2608
  %v2611 = vxor.u32 %v2311, 2147483648
  %v2612 = vmul.f32 %v2611, 1.442695
  %v2613 = vpow.pop %v2612
  %v2614 = vadd.f32 %v2613, 1.0
  %v2615 = vrcp.pop %v2614
  %v2616 = vmul.f32 1.0, %v2615
  %v2618 = vrot.slane %v2311, 2
  %v2620 = vxor.u32 %v2618, 2147483648
  %v2621 = vmul.f32 %v2620, 1.442695
  %v2622 = vpow.pop %v2621
  %v2623 = vadd.f32 %v2622, 1.0
  %v2624 = vrcp.pop %v2623
  %v2625 = vmul.f32 1.0, %v2624
  %v2626 = vrot.slane %v2311, 4
  %v2628 = vtanh.pop %v2626
  %v2629 = vrot.slane %v2311, 6
  %v2631 = vxor.u32 %v2629, 2147483648
  %v2632 = vmul.f32 %v2631, 1.442695
  %v2633 = vpow.pop %v2632
  %v2634 = vadd.f32 %v2633, 1.0
  %v2635 = vrcp.pop %v2634
  %v2636 = vmul.f32 1.0, %v2635
  %v2637 = vmul.f32 %v2625, %v1973
  %v2638 = vmul.f32 %v2616, %v2628
  %v2639 = vadd.f32 %v2637, %v2638
  %v2640 = vtanh.pop %v2639
  %v2641 = vmul.f32 %v2636, %v2640
  %v2642 = vxor.u32 %v2610, 2147483648
  %v2643 = vmul.f32 %v2642, 1.442695
  %v2644 = vpow.pop %v2643
  %v2645 = vadd.f32 %v2644, 1.0
  %v2646 = vrcp.pop %v2645
  %v2647 = vmul.f32 1.0, %v2646
  %v2649 = vrot.slane %v2610, 2
  %v2651 = vxor.u32 %v2649, 2147483648
  %v2652 = vmul.f32 %v2651, 1.442695
  %v2653 = vpow.pop %v2652
  %v2654 = vadd.f32 %v2653, 1.0
  %v2655 = vrcp.pop %v2654
  %v2656 = vmul.f32 1.0, %v2655
  %v2657 = vrot.slane %v2610, 4
  %v2659 = vtanh.pop %v2657
  %v2660 = vrot.slane %v2610, 6
  %v2662 = vxor.u32 %v2660, 2147483648
  %v2663 = vmul.f32 %v2662, 1.442695
  %v2664 = vpow.pop %v2663
  %v2665 = vadd.f32 %v2664, 1.0
  %v2666 = vrcp.pop %v2665
  %v2667 = vmul.f32 1.0, %v2666
  %v2668 = vmul.f32 %v2656, %v2004
  %v2669 = vmul.f32 %v2647, %v2659
  %v2670 = vadd.f32 %v2668, %v2669
  %v2671 = vtanh.pop %v2670
  %v2672 = vmul.f32 %v2667, %v2671
  %v2673 = vpack.c.bf16 %v2641, %v2641
  %s2674 = scalar_lea.vmem %s3, 3
  %2675 = vst [vmem:[%s2674] sm:$0x1] %v2673
  %v2676 = vpack.c.bf16 %v2672, %v2672
  %s2677 = scalar_lea.vmem %s4, 4
  %2678 = vst [vmem:[%s2677] sm:$0x1] %v2676
  %v2679 = vld [vmem:[%s2312] sm:$0xff]
  %v2680 = vld [vmem:[%s1] sm:$0xff]
  %v2681 = vld [vmem:[%s1 + $0x8] sm:$0xff]
  %v2682 = vld [vmem:[%s1 + $0x10] sm:$0xff]
  %v2683 = vld [vmem:[%s1 + $0x18] sm:$0xff]
  %v2684 = vld [vmem:[%s1 + $0x20] sm:$0xff]
  %v2685 = vld [vmem:[%s1 + $0x28] sm:$0xff]
  %v2686 = vld [vmem:[%s1 + $0x30] sm:$0xff]
  %v2687 = vld [vmem:[%s1 + $0x38] sm:$0xff]
  %v2688 = vld [vmem:[%s1 + $0x40] sm:$0xff]
  %v2689 = vld [vmem:[%s1 + $0x48] sm:$0xff]
  %v2690 = vld [vmem:[%s1 + $0x50] sm:$0xff]
  %v2691 = vld [vmem:[%s1 + $0x58] sm:$0xff]
  %v2692 = vld [vmem:[%s1 + $0x60] sm:$0xff]
  %v2693 = vld [vmem:[%s1 + $0x68] sm:$0xff]
  %v2694 = vld [vmem:[%s1 + $0x70] sm:$0xff]
  %v2695 = vld [vmem:[%s1 + $0x78] sm:$0xff]
  %v2696 = vld [vmem:[%s1 + $0x80] sm:$0xff]
  %v2697 = vld [vmem:[%s1 + $0x88] sm:$0xff]
  %v2698 = vld [vmem:[%s1 + $0x90] sm:$0xff]
  %v2699 = vld [vmem:[%s1 + $0x98] sm:$0xff]
  %v2700 = vld [vmem:[%s1 + $0xa0] sm:$0xff]
  %v2701 = vld [vmem:[%s1 + $0xa8] sm:$0xff]
  %v2702 = vld [vmem:[%s1 + $0xb0] sm:$0xff]
  %v2703 = vld [vmem:[%s1 + $0xb8] sm:$0xff]
  %v2704 = vld [vmem:[%s1 + $0xc0] sm:$0xff]
  %v2705 = vld [vmem:[%s1 + $0xc8] sm:$0xff]
  %v2706 = vld [vmem:[%s1 + $0xd0] sm:$0xff]
  %v2707 = vld [vmem:[%s1 + $0xd8] sm:$0xff]
  %v2708 = vld [vmem:[%s1 + $0xe0] sm:$0xff]
  %v2709 = vld [vmem:[%s1 + $0xe8] sm:$0xff]
  %v2710 = vld [vmem:[%s1 + $0xf0] sm:$0xff]
  %v2711 = vld [vmem:[%s1 + $0xf8] sm:$0xff]
  %v2744 = vunpack.c.l.b16 %v2680
  %v2745 = vunpack.c.h.b16 %v2680
  %v2746 = vunpack.c.l.b16 %v2681
  %v2747 = vunpack.c.h.b16 %v2681
  %v2748 = vunpack.c.l.b16 %v2682
  %v2749 = vunpack.c.h.b16 %v2682
  %v2750 = vunpack.c.l.b16 %v2683
  %v2751 = vunpack.c.h.b16 %v2683
  %v2752 = vunpack.c.l.b16 %v2684
  %v2753 = vunpack.c.h.b16 %v2684
  %v2754 = vunpack.c.l.b16 %v2685
  %v2755 = vunpack.c.h.b16 %v2685
  %v2756 = vunpack.c.l.b16 %v2686
  %v2757 = vunpack.c.h.b16 %v2686
  %v2758 = vunpack.c.l.b16 %v2687
  %v2759 = vunpack.c.h.b16 %v2687
  %v2760 = vunpack.c.l.b16 %v2688
  %v2761 = vunpack.c.h.b16 %v2688
  %v2762 = vunpack.c.l.b16 %v2689
  %v2763 = vunpack.c.h.b16 %v2689
  %v2764 = vunpack.c.l.b16 %v2690
  %v2765 = vunpack.c.h.b16 %v2690
  %v2766 = vunpack.c.l.b16 %v2691
  %v2767 = vunpack.c.h.b16 %v2691
  %v2768 = vunpack.c.l.b16 %v2692
  %v2769 = vunpack.c.h.b16 %v2692
  %v2770 = vunpack.c.l.b16 %v2693
  %v2771 = vunpack.c.h.b16 %v2693
  %v2772 = vunpack.c.l.b16 %v2694
  %v2773 = vunpack.c.h.b16 %v2694
  %v2774 = vunpack.c.l.b16 %v2695
  %v2775 = vunpack.c.h.b16 %v2695
  %v2776 = vunpack.c.l.b16 %v2696
  %v2777 = vunpack.c.h.b16 %v2696
  %v2778 = vunpack.c.l.b16 %v2697
  %v2779 = vunpack.c.h.b16 %v2697
  %v2780 = vunpack.c.l.b16 %v2698
  %v2781 = vunpack.c.h.b16 %v2698
  %v2782 = vunpack.c.l.b16 %v2699
  %v2783 = vunpack.c.h.b16 %v2699
  %v2784 = vunpack.c.l.b16 %v2700
  %v2785 = vunpack.c.h.b16 %v2700
  %v2786 = vunpack.c.l.b16 %v2701
  %v2787 = vunpack.c.h.b16 %v2701
  %v2788 = vunpack.c.l.b16 %v2702
  %v2789 = vunpack.c.h.b16 %v2702
  %v2790 = vunpack.c.l.b16 %v2703
  %v2791 = vunpack.c.h.b16 %v2703
  %v2792 = vunpack.c.l.b16 %v2704
  %v2793 = vunpack.c.h.b16 %v2704
  %v2794 = vunpack.c.l.b16 %v2705
  %v2795 = vunpack.c.h.b16 %v2705
  %v2796 = vunpack.c.l.b16 %v2706
  %v2797 = vunpack.c.h.b16 %v2706
  %v2798 = vunpack.c.l.b16 %v2707
  %v2799 = vunpack.c.h.b16 %v2707
  %v2800 = vunpack.c.l.b16 %v2708
  %v2801 = vunpack.c.h.b16 %v2708
  %v2802 = vunpack.c.l.b16 %v2709
  %v2803 = vunpack.c.h.b16 %v2709
  %v2804 = vunpack.c.l.b16 %v2710
  %v2805 = vunpack.c.h.b16 %v2710
  %v2806 = vunpack.c.l.b16 %v2711
  %v2807 = vunpack.c.h.b16 %v2711
  %v2808 = vpack.c.b16 %v2748, %v2744
  %v2809 = vpack.c.b16 %v2749, %v2745
  %v2810 = vpack.c.b16 %v2750, %v2746
  %v2811 = vpack.c.b16 %v2751, %v2747
  %v2812 = vpack.c.b16 %v2756, %v2752
  %v2813 = vpack.c.b16 %v2757, %v2753
  %v2814 = vpack.c.b16 %v2758, %v2754
  %v2815 = vpack.c.b16 %v2759, %v2755
  %v2816 = vpack.c.b16 %v2764, %v2760
  %v2817 = vpack.c.b16 %v2765, %v2761
  %v2818 = vpack.c.b16 %v2766, %v2762
  %v2819 = vpack.c.b16 %v2767, %v2763
  %v2820 = vpack.c.b16 %v2772, %v2768
  %v2821 = vpack.c.b16 %v2773, %v2769
  %v2822 = vpack.c.b16 %v2774, %v2770
  %v2823 = vpack.c.b16 %v2775, %v2771
  %v2824 = vpack.c.b16 %v2780, %v2776
  %v2825 = vpack.c.b16 %v2781, %v2777
  %v2826 = vpack.c.b16 %v2782, %v2778
  %v2827 = vpack.c.b16 %v2783, %v2779
  %v2828 = vpack.c.b16 %v2788, %v2784
  %v2829 = vpack.c.b16 %v2789, %v2785
  %v2830 = vpack.c.b16 %v2790, %v2786
  %v2831 = vpack.c.b16 %v2791, %v2787
  %v2832 = vpack.c.b16 %v2796, %v2792
  %v2833 = vpack.c.b16 %v2797, %v2793
  %v2834 = vpack.c.b16 %v2798, %v2794
  %v2835 = vpack.c.b16 %v2799, %v2795
  %v2836 = vpack.c.b16 %v2804, %v2800
  %v2837 = vpack.c.b16 %v2805, %v2801
  %v2838 = vpack.c.b16 %v2806, %v2802
  %v2839 = vpack.c.b16 %v2807, %v2803
  %2872 = vmatprep.subr.bf16.mxu0 %v2809
  %2873 = vmatpush1.bf16.msra.mxu0 %v2808
  %2874 = vmatprep.subr.bf16.mxu0 %v2813
  %2875 = vmatpush1.bf16.msra.mxu0 %v2812
  %2876 = vmatprep.subr.bf16.mxu0 %v2817
  %2877 = vmatpush1.bf16.msra.mxu0 %v2816
  %2878 = vmatprep.subr.bf16.mxu0 %v2821
  %2879 = vmatpush1.bf16.msra.mxu0 %v2820
  %2880 = vmatprep.subr.bf16.mxu0 %v2825
  %2881 = vmatpush1.bf16.msra.mxu0 %v2824
  %2882 = vmatprep.subr.bf16.mxu0 %v2829
  %2883 = vmatpush1.bf16.msra.mxu0 %v2828
  %2884 = vmatprep.subr.bf16.mxu0 %v2833
  %2885 = vmatpush1.bf16.msra.mxu0 %v2832
  %2886 = vmatprep.subr.bf16.mxu0 %v2837
  %2887 = vmatpush1.bf16.msra.mxu0 %v2836
  %2888 = vmatprep.subr.bf16.mxu0 0
  %2889 = vmatpush1.bf16.msra.mxu0 0
  %2890 = vmatprep.subr.bf16.mxu0 0
  %2891 = vmatpush1.bf16.msra.mxu0 0
  %2892 = vmatprep.subr.bf16.mxu0 0
  %2893 = vmatpush1.bf16.msra.mxu0 0
  %2894 = vmatprep.subr.bf16.mxu0 0
  %2895 = vmatpush1.bf16.msra.mxu0 0
  %2896 = vmatprep.subr.bf16.mxu0 0
  %2897 = vmatpush1.bf16.msra.mxu0 0
  %2898 = vmatprep.subr.bf16.mxu0 0
  %2899 = vmatpush1.bf16.msra.mxu0 0
  %2900 = vmatprep.subr.bf16.mxu0 0
  %2901 = vmatpush1.bf16.msra.mxu0 0
  %2902 = vmatprep.subr.bf16.mxu0 0
  %2903 = vmatpush1.bf16.msra.mxu0 0
  %2904 = vmatprep.mubr.bf16.mxu0 0
  %2905 = vmatmul.mubr.bf16.gmra.mrb[0].mxu0 %v2673
  %v2906 = vpop.f32.mrb[0].mxu0
  %v2907 = vadd.f32 0.0, %v2906
  %v2908 = vpop.f32.mrb[0].mxu0
  %v2909 = vadd.f32 0.0, %v2908
  %v2910 = vpop.f32.mrb[0].mxu0
  %v2911 = vpop.f32.mrb[0].mxu0
  %2912 = vdwg.mxu0
  %2913 = vmatprep.subr.bf16.mxu0 %v2811
  %2914 = vmatpush1.bf16.msra.mxu0 %v2810
  %2915 = vmatprep.subr.bf16.mxu0 %v2815
  %2916 = vmatpush1.bf16.msra.mxu0 %v2814
  %2917 = vmatprep.subr.bf16.mxu0 %v2819
  %2918 = vmatpush1.bf16.msra.mxu0 %v2818
  %2919 = vmatprep.subr.bf16.mxu0 %v2823
  %2920 = vmatpush1.bf16.msra.mxu0 %v2822
  %2921 = vmatprep.subr.bf16.mxu0 %v2827
  %2922 = vmatpush1.bf16.msra.mxu0 %v2826
  %2923 = vmatprep.subr.bf16.mxu0 %v2831
  %2924 = vmatpush1.bf16.msra.mxu0 %v2830
  %2925 = vmatprep.subr.bf16.mxu0 %v2835
  %2926 = vmatpush1.bf16.msra.mxu0 %v2834
  %2927 = vmatprep.subr.bf16.mxu0 %v2839
  %2928 = vmatpush1.bf16.msra.mxu0 %v2838
  %2929 = vmatprep.subr.bf16.mxu0 0
  %2930 = vmatpush1.bf16.msra.mxu0 0
  %2931 = vmatprep.subr.bf16.mxu0 0
  %2932 = vmatpush1.bf16.msra.mxu0 0
  %2933 = vmatprep.subr.bf16.mxu0 0
  %2934 = vmatpush1.bf16.msra.mxu0 0
  %2935 = vmatprep.subr.bf16.mxu0 0
  %2936 = vmatpush1.bf16.msra.mxu0 0
  %2937 = vmatprep.subr.bf16.mxu0 0
  %2938 = vmatpush1.bf16.msra.mxu0 0
  %2939 = vmatprep.subr.bf16.mxu0 0
  %2940 = vmatpush1.bf16.msra.mxu0 0
  %2941 = vmatprep.subr.bf16.mxu0 0
  %2942 = vmatpush1.bf16.msra.mxu0 0
  %2943 = vmatprep.subr.bf16.mxu0 0
  %2944 = vmatpush1.bf16.msra.mxu0 0
  %2945 = vmatprep.mubr.bf16.mxu0 0
  %2946 = vmatmul.mubr.bf16.gmra.mrb[0].mxu0 %v2673
  %v2947 = vpop.f32.mrb[0].mxu0
  %v2948 = vadd.f32 0.0, %v2947
  %v2949 = vpop.f32.mrb[0].mxu0
  %v2950 = vadd.f32 0.0, %v2949
  %v2951 = vpop.f32.mrb[0].mxu0
  %v2952 = vpop.f32.mrb[0].mxu0
  %2953 = vdwg.mxu0
  %v2958 = vcombine.low %v2907, %v2909
  %v2959 = vcombine.low %v2948, %v2950
  %v2961 = vunpack.c.l.s4 1983009808
  %v2962 = vunpack.c.0.s8 %v2961
  %v2963 = vlaneseq
  %v2964 = vshrl.u32 %v2963, 7
  %v2965 = vsub.s32 %v2962, %v2964
  %v2966 = vrot.slane %v2958, %v2965
  %v2968 = vunpack.c.l.s4 1983009808
  %v2969 = vunpack.c.0.s8 %v2968
  %v2970 = vlaneseq
  %v2971 = vshrl.u32 %v2970, 7
  %v2972 = vsub.s32 %v2969, %v2971
  %v2973 = vrot.slane %v2959, %v2972
  %v2974 = vcombine.low %v2966, %v2973
  %v2976 = vadd.f32 %v2679, %v2974
  %v2977 = vld [vmem:[%s2013 + $0x8] sm:$0xff]
  %v2978 = vld [vmem:[%s2] sm:$0xff]
  %v2979 = vld [vmem:[%s2 + $0x8] sm:$0xff]
  %v2980 = vld [vmem:[%s2 + $0x10] sm:$0xff]
  %v2981 = vld [vmem:[%s2 + $0x18] sm:$0xff]
  %v2982 = vld [vmem:[%s2 + $0x20] sm:$0xff]
  %v2983 = vld [vmem:[%s2 + $0x28] sm:$0xff]
  %v2984 = vld [vmem:[%s2 + $0x30] sm:$0xff]
  %v2985 = vld [vmem:[%s2 + $0x38] sm:$0xff]
  %v2986 = vld [vmem:[%s2 + $0x40] sm:$0xff]
  %v2987 = vld [vmem:[%s2 + $0x48] sm:$0xff]
  %v2988 = vld [vmem:[%s2 + $0x50] sm:$0xff]
  %v2989 = vld [vmem:[%s2 + $0x58] sm:$0xff]
  %v2990 = vld [vmem:[%s2 + $0x60] sm:$0xff]
  %v2991 = vld [vmem:[%s2 + $0x68] sm:$0xff]
  %v2992 = vld [vmem:[%s2 + $0x70] sm:$0xff]
  %v2993 = vld [vmem:[%s2 + $0x78] sm:$0xff]
  %v2994 = vld [vmem:[%s2 + $0x80] sm:$0xff]
  %v2995 = vld [vmem:[%s2 + $0x88] sm:$0xff]
  %v2996 = vld [vmem:[%s2 + $0x90] sm:$0xff]
  %v2997 = vld [vmem:[%s2 + $0x98] sm:$0xff]
  %v2998 = vld [vmem:[%s2 + $0xa0] sm:$0xff]
  %v2999 = vld [vmem:[%s2 + $0xa8] sm:$0xff]
  %v3000 = vld [vmem:[%s2 + $0xb0] sm:$0xff]
  %v3001 = vld [vmem:[%s2 + $0xb8] sm:$0xff]
  %v3002 = vld [vmem:[%s2 + $0xc0] sm:$0xff]
  %v3003 = vld [vmem:[%s2 + $0xc8] sm:$0xff]
  %v3004 = vld [vmem:[%s2 + $0xd0] sm:$0xff]
  %v3005 = vld [vmem:[%s2 + $0xd8] sm:$0xff]
  %v3006 = vld [vmem:[%s2 + $0xe0] sm:$0xff]
  %v3007 = vld [vmem:[%s2 + $0xe8] sm:$0xff]
  %v3008 = vld [vmem:[%s2 + $0xf0] sm:$0xff]
  %v3009 = vld [vmem:[%s2 + $0xf8] sm:$0xff]
  %v3042 = vunpack.c.l.b16 %v2978
  %v3043 = vunpack.c.h.b16 %v2978
  %v3044 = vunpack.c.l.b16 %v2979
  %v3045 = vunpack.c.h.b16 %v2979
  %v3046 = vunpack.c.l.b16 %v2980
  %v3047 = vunpack.c.h.b16 %v2980
  %v3048 = vunpack.c.l.b16 %v2981
  %v3049 = vunpack.c.h.b16 %v2981
  %v3050 = vunpack.c.l.b16 %v2982
  %v3051 = vunpack.c.h.b16 %v2982
  %v3052 = vunpack.c.l.b16 %v2983
  %v3053 = vunpack.c.h.b16 %v2983
  %v3054 = vunpack.c.l.b16 %v2984
  %v3055 = vunpack.c.h.b16 %v2984
  %v3056 = vunpack.c.l.b16 %v2985
  %v3057 = vunpack.c.h.b16 %v2985
  %v3058 = vunpack.c.l.b16 %v2986
  %v3059 = vunpack.c.h.b16 %v2986
  %v3060 = vunpack.c.l.b16 %v2987
  %v3061 = vunpack.c.h.b16 %v2987
  %v3062 = vunpack.c.l.b16 %v2988
  %v3063 = vunpack.c.h.b16 %v2988
  %v3064 = vunpack.c.l.b16 %v2989
  %v3065 = vunpack.c.h.b16 %v2989
  %v3066 = vunpack.c.l.b16 %v2990
  %v3067 = vunpack.c.h.b16 %v2990
  %v3068 = vunpack.c.l.b16 %v2991
  %v3069 = vunpack.c.h.b16 %v2991
  %v3070 = vunpack.c.l.b16 %v2992
  %v3071 = vunpack.c.h.b16 %v2992
  %v3072 = vunpack.c.l.b16 %v2993
  %v3073 = vunpack.c.h.b16 %v2993
  %v3074 = vunpack.c.l.b16 %v2994
  %v3075 = vunpack.c.h.b16 %v2994
  %v3076 = vunpack.c.l.b16 %v2995
  %v3077 = vunpack.c.h.b16 %v2995
  %v3078 = vunpack.c.l.b16 %v2996
  %v3079 = vunpack.c.h.b16 %v2996
  %v3080 = vunpack.c.l.b16 %v2997
  %v3081 = vunpack.c.h.b16 %v2997
  %v3082 = vunpack.c.l.b16 %v2998
  %v3083 = vunpack.c.h.b16 %v2998
  %v3084 = vunpack.c.l.b16 %v2999
  %v3085 = vunpack.c.h.b16 %v2999
  %v3086 = vunpack.c.l.b16 %v3000
  %v3087 = vunpack.c.h.b16 %v3000
  %v3088 = vunpack.c.l.b16 %v3001
  %v3089 = vunpack.c.h.b16 %v3001
  %v3090 = vunpack.c.l.b16 %v3002
  %v3091 = vunpack.c.h.b16 %v3002
  %v3092 = vunpack.c.l.b16 %v3003
  %v3093 = vunpack.c.h.b16 %v3003
  %v3094 = vunpack.c.l.b16 %v3004
  %v3095 = vunpack.c.h.b16 %v3004
  %v3096 = vunpack.c.l.b16 %v3005
  %v3097 = vunpack.c.h.b16 %v3005
  %v3098 = vunpack.c.l.b16 %v3006
  %v3099 = vunpack.c.h.b16 %v3006
  %v3100 = vunpack.c.l.b16 %v3007
  %v3101 = vunpack.c.h.b16 %v3007
  %v3102 = vunpack.c.l.b16 %v3008
  %v3103 = vunpack.c.h.b16 %v3008
  %v3104 = vunpack.c.l.b16 %v3009
  %v3105 = vunpack.c.h.b16 %v3009
  %v3106 = vpack.c.b16 %v3046, %v3042
  %v3107 = vpack.c.b16 %v3047, %v3043
  %v3108 = vpack.c.b16 %v3048, %v3044
  %v3109 = vpack.c.b16 %v3049, %v3045
  %v3110 = vpack.c.b16 %v3054, %v3050
  %v3111 = vpack.c.b16 %v3055, %v3051
  %v3112 = vpack.c.b16 %v3056, %v3052
  %v3113 = vpack.c.b16 %v3057, %v3053
  %v3114 = vpack.c.b16 %v3062, %v3058
  %v3115 = vpack.c.b16 %v3063, %v3059
  %v3116 = vpack.c.b16 %v3064, %v3060
  %v3117 = vpack.c.b16 %v3065, %v3061
  %v3118 = vpack.c.b16 %v3070, %v3066
  %v3119 = vpack.c.b16 %v3071, %v3067
  %v3120 = vpack.c.b16 %v3072, %v3068
  %v3121 = vpack.c.b16 %v3073, %v3069
  %v3122 = vpack.c.b16 %v3078, %v3074
  %v3123 = vpack.c.b16 %v3079, %v3075
  %v3124 = vpack.c.b16 %v3080, %v3076
  %v3125 = vpack.c.b16 %v3081, %v3077
  %v3126 = vpack.c.b16 %v3086, %v3082
  %v3127 = vpack.c.b16 %v3087, %v3083
  %v3128 = vpack.c.b16 %v3088, %v3084
  %v3129 = vpack.c.b16 %v3089, %v3085
  %v3130 = vpack.c.b16 %v3094, %v3090
  %v3131 = vpack.c.b16 %v3095, %v3091
  %v3132 = vpack.c.b16 %v3096, %v3092
  %v3133 = vpack.c.b16 %v3097, %v3093
  %v3134 = vpack.c.b16 %v3102, %v3098
  %v3135 = vpack.c.b16 %v3103, %v3099
  %v3136 = vpack.c.b16 %v3104, %v3100
  %v3137 = vpack.c.b16 %v3105, %v3101
  %3170 = vmatprep.subr.bf16.mxu0 %v3107
  %3171 = vmatpush1.bf16.msra.mxu0 %v3106
  %3172 = vmatprep.subr.bf16.mxu0 %v3111
  %3173 = vmatpush1.bf16.msra.mxu0 %v3110
  %3174 = vmatprep.subr.bf16.mxu0 %v3115
  %3175 = vmatpush1.bf16.msra.mxu0 %v3114
  %3176 = vmatprep.subr.bf16.mxu0 %v3119
  %3177 = vmatpush1.bf16.msra.mxu0 %v3118
  %3178 = vmatprep.subr.bf16.mxu0 %v3123
  %3179 = vmatpush1.bf16.msra.mxu0 %v3122
  %3180 = vmatprep.subr.bf16.mxu0 %v3127
  %3181 = vmatpush1.bf16.msra.mxu0 %v3126
  %3182 = vmatprep.subr.bf16.mxu0 %v3131
  %3183 = vmatpush1.bf16.msra.mxu0 %v3130
  %3184 = vmatprep.subr.bf16.mxu0 %v3135
  %3185 = vmatpush1.bf16.msra.mxu0 %v3134
  %3186 = vmatprep.subr.bf16.mxu0 0
  %3187 = vmatpush1.bf16.msra.mxu0 0
  %3188 = vmatprep.subr.bf16.mxu0 0
  %3189 = vmatpush1.bf16.msra.mxu0 0
  %3190 = vmatprep.subr.bf16.mxu0 0
  %3191 = vmatpush1.bf16.msra.mxu0 0
  %3192 = vmatprep.subr.bf16.mxu0 0
  %3193 = vmatpush1.bf16.msra.mxu0 0
  %3194 = vmatprep.subr.bf16.mxu0 0
  %3195 = vmatpush1.bf16.msra.mxu0 0
  %3196 = vmatprep.subr.bf16.mxu0 0
  %3197 = vmatpush1.bf16.msra.mxu0 0
  %3198 = vmatprep.subr.bf16.mxu0 0
  %3199 = vmatpush1.bf16.msra.mxu0 0
  %3200 = vmatprep.subr.bf16.mxu0 0
  %3201 = vmatpush1.bf16.msra.mxu0 0
  %3202 = vmatprep.mubr.bf16.mxu0 0
  %3203 = vmatmul.mubr.bf16.gmra.mrb[0].mxu0 %v2676
  %v3204 = vpop.f32.mrb[0].mxu0
  %v3205 = vadd.f32 0.0, %v3204
  %v3206 = vpop.f32.mrb[0].mxu0
  %v3207 = vadd.f32 0.0, %v3206
  %v3208 = vpop.f32.mrb[0].mxu0
  %v3209 = vpop.f32.mrb[0].mxu0
  %3210 = vdwg.mxu0
  %3211 = vmatprep.subr.bf16.mxu0 %v3109
  %3212 = vmatpush1.bf16.msra.mxu0 %v3108
  %3213 = vmatprep.subr.bf16.mxu0 %v3113
  %3214 = vmatpush1.bf16.msra.mxu0 %v3112
  %3215 = vmatprep.subr.bf16.mxu0 %v3117
  %3216 = vmatpush1.bf16.msra.mxu0 %v3116
  %3217 = vmatprep.subr.bf16.mxu0 %v3121
  %3218 = vmatpush1.bf16.msra.mxu0 %v3120
  %3219 = vmatprep.subr.bf16.mxu0 %v3125
  %3220 = vmatpush1.bf16.msra.mxu0 %v3124
  %3221 = vmatprep.subr.bf16.mxu0 %v3129
  %3222 = vmatpush1.bf16.msra.mxu0 %v3128
  %3223 = vmatprep.subr.bf16.mxu0 %v3133
  %3224 = vmatpush1.bf16.msra.mxu0 %v3132
  %3225 = vmatprep.subr.bf16.mxu0 %v3137
  %3226 = vmatpush1.bf16.msra.mxu0 %v3136
  %3227 = vmatprep.subr.bf16.mxu0 0
  %3228 = vmatpush1.bf16.msra.mxu0 0
  %3229 = vmatprep.subr.bf16.mxu0 0
  %3230 = vmatpush1.bf16.msra.mxu0 0
  %3231 = vmatprep.subr.bf16.mxu0 0
  %3232 = vmatpush1.bf16.msra.mxu0 0
  %3233 = vmatprep.subr.bf16.mxu0 0
  %3234 = vmatpush1.bf16.msra.mxu0 0
  %3235 = vmatprep.subr.bf16.mxu0 0
  %3236 = vmatpush1.bf16.msra.mxu0 0
  %3237 = vmatprep.subr.bf16.mxu0 0
  %3238 = vmatpush1.bf16.msra.mxu0 0
  %3239 = vmatprep.subr.bf16.mxu0 0
  %3240 = vmatpush1.bf16.msra.mxu0 0
  %3241 = vmatprep.subr.bf16.mxu0 0
  %3242 = vmatpush1.bf16.msra.mxu0 0
  %3243 = vmatprep.mubr.bf16.mxu0 0
  %3244 = vmatmul.mubr.bf16.gmra.mrb[0].mxu0 %v2676
  %v3245 = vpop.f32.mrb[0].mxu0
  %v3246 = vadd.f32 0.0, %v3245
  %v3247 = vpop.f32.mrb[0].mxu0
  %v3248 = vadd.f32 0.0, %v3247
  %v3249 = vpop.f32.mrb[0].mxu0
  %v3250 = vpop.f32.mrb[0].mxu0
  %3251 = vdwg.mxu0
  %v3256 = vcombine.low %v3205, %v3207
  %v3257 = vcombine.low %v3246, %v3248
  %v3259 = vunpack.c.l.s4 1983009808
  %v3260 = vunpack.c.0.s8 %v3259
  %v3261 = vlaneseq
  %v3262 = vshrl.u32 %v3261, 7
  %v3263 = vsub.s32 %v3260, %v3262
  %v3264 = vrot.slane %v3256, %v3263
  %v3266 = vunpack.c.l.s4 1983009808
  %v3267 = vunpack.c.0.s8 %v3266
  %v3268 = vlaneseq
  %v3269 = vshrl.u32 %v3268, 7
  %v3270 = vsub.s32 %v3267, %v3269
  %v3271 = vrot.slane %v3257, %v3270
  %v3272 = vcombine.low %v3264, %v3271
  %v3274 = vadd.f32 %v2977, %v3272
  %v3275 = vxor.u32 %v2976, 2147483648
  %v3276 = vmul.f32 %v3275, 1.442695
  %v3277 = vpow.pop %v3276
  %v3278 = vadd.f32 %v3277, 1.0
  %v3279 = vrcp.pop %v3278
  %v3280 = vmul.f32 1.0, %v3279
  %v3282 = vrot.slane %v2976, 2
  %v3284 = vxor.u32 %v3282, 2147483648
  %v3285 = vmul.f32 %v3284, 1.442695
  %v3286 = vpow.pop %v3285
  %v3287 = vadd.f32 %v3286, 1.0
  %v3288 = vrcp.pop %v3287
  %v3289 = vmul.f32 1.0, %v3288
  %v3290 = vrot.slane %v2976, 4
  %v3292 = vtanh.pop %v3290
  %v3293 = vrot.slane %v2976, 6
  %v3295 = vxor.u32 %v3293, 2147483648
  %v3296 = vmul.f32 %v3295, 1.442695
  %v3297 = vpow.pop %v3296
  %v3298 = vadd.f32 %v3297, 1.0
  %v3299 = vrcp.pop %v3298
  %v3300 = vmul.f32 1.0, %v3299
  %v3301 = vmul.f32 %v3289, %v2639
  %v3302 = vmul.f32 %v3280, %v3292
  %v3303 = vadd.f32 %v3301, %v3302
  %v3304 = vtanh.pop %v3303
  %v3305 = vmul.f32 %v3300, %v3304
  %v3306 = vxor.u32 %v3274, 2147483648
  %v3307 = vmul.f32 %v3306, 1.442695
  %v3308 = vpow.pop %v3307
  %v3309 = vadd.f32 %v3308, 1.0
  %v3310 = vrcp.pop %v3309
  %v3311 = vmul.f32 1.0, %v3310
  %v3313 = vrot.slane %v3274, 2
  %v3315 = vxor.u32 %v3313, 2147483648
  %v3316 = vmul.f32 %v3315, 1.442695
  %v3317 = vpow.pop %v3316
  %v3318 = vadd.f32 %v3317, 1.0
  %v3319 = vrcp.pop %v3318
  %v3320 = vmul.f32 1.0, %v3319
  %v3321 = vrot.slane %v3274, 4
  %v3323 = vtanh.pop %v3321
  %v3324 = vrot.slane %v3274, 6
  %v3326 = vxor.u32 %v3324, 2147483648
  %v3327 = vmul.f32 %v3326, 1.442695
  %v3328 = vpow.pop %v3327
  %v3329 = vadd.f32 %v3328, 1.0
  %v3330 = vrcp.pop %v3329
  %v3331 = vmul.f32 1.0, %v3330
  %v3332 = vmul.f32 %v3320, %v2670
  %v3333 = vmul.f32 %v3311, %v3323
  %v3334 = vadd.f32 %v3332, %v3333
  %v3335 = vtanh.pop %v3334
  %v3336 = vmul.f32 %v3331, %v3335
  %v3337 = vpack.c.bf16 %v3305, %v3305
  %s3338 = scalar_lea.vmem %s3, 4
  %3339 = vst [vmem:[%s3338] sm:$0x1] %v3337
  %v3340 = vpack.c.bf16 %v3336, %v3336
  %s3341 = scalar_lea.vmem %s4, 3
  %3342 = vst [vmem:[%s3341] sm:$0x1] %v3340
  %v3343 = vld [vmem:[%s1646] sm:$0xff]
  %v3344 = vld [vmem:[%s1] sm:$0xff]
  %v3345 = vld [vmem:[%s1 + $0x8] sm:$0xff]
  %v3346 = vld [vmem:[%s1 + $0x10] sm:$0xff]
  %v3347 = vld [vmem:[%s1 + $0x18] sm:$0xff]
  %v3348 = vld [vmem:[%s1 + $0x20] sm:$0xff]
  %v3349 = vld [vmem:[%s1 + $0x28] sm:$0xff]
  %v3350 = vld [vmem:[%s1 + $0x30] sm:$0xff]
  %v3351 = vld [vmem:[%s1 + $0x38] sm:$0xff]
  %v3352 = vld [vmem:[%s1 + $0x40] sm:$0xff]
  %v3353 = vld [vmem:[%s1 + $0x48] sm:$0xff]
  %v3354 = vld [vmem:[%s1 + $0x50] sm:$0xff]
  %v3355 = vld [vmem:[%s1 + $0x58] sm:$0xff]
  %v3356 = vld [vmem:[%s1 + $0x60] sm:$0xff]
  %v3357 = vld [vmem:[%s1 + $0x68] sm:$0xff]
  %v3358 = vld [vmem:[%s1 + $0x70] sm:$0xff]
  %v3359 = vld [vmem:[%s1 + $0x78] sm:$0xff]
  %v3360 = vld [vmem:[%s1 + $0x80] sm:$0xff]
  %v3361 = vld [vmem:[%s1 + $0x88] sm:$0xff]
  %v3362 = vld [vmem:[%s1 + $0x90] sm:$0xff]
  %v3363 = vld [vmem:[%s1 + $0x98] sm:$0xff]
  %v3364 = vld [vmem:[%s1 + $0xa0] sm:$0xff]
  %v3365 = vld [vmem:[%s1 + $0xa8] sm:$0xff]
  %v3366 = vld [vmem:[%s1 + $0xb0] sm:$0xff]
  %v3367 = vld [vmem:[%s1 + $0xb8] sm:$0xff]
  %v3368 = vld [vmem:[%s1 + $0xc0] sm:$0xff]
  %v3369 = vld [vmem:[%s1 + $0xc8] sm:$0xff]
  %v3370 = vld [vmem:[%s1 + $0xd0] sm:$0xff]
  %v3371 = vld [vmem:[%s1 + $0xd8] sm:$0xff]
  %v3372 = vld [vmem:[%s1 + $0xe0] sm:$0xff]
  %v3373 = vld [vmem:[%s1 + $0xe8] sm:$0xff]
  %v3374 = vld [vmem:[%s1 + $0xf0] sm:$0xff]
  %v3375 = vld [vmem:[%s1 + $0xf8] sm:$0xff]
  %v3408 = vunpack.c.l.b16 %v3344
  %v3409 = vunpack.c.h.b16 %v3344
  %v3410 = vunpack.c.l.b16 %v3345
  %v3411 = vunpack.c.h.b16 %v3345
  %v3412 = vunpack.c.l.b16 %v3346
  %v3413 = vunpack.c.h.b16 %v3346
  %v3414 = vunpack.c.l.b16 %v3347
  %v3415 = vunpack.c.h.b16 %v3347
  %v3416 = vunpack.c.l.b16 %v3348
  %v3417 = vunpack.c.h.b16 %v3348
  %v3418 = vunpack.c.l.b16 %v3349
  %v3419 = vunpack.c.h.b16 %v3349
  %v3420 = vunpack.c.l.b16 %v3350
  %v3421 = vunpack.c.h.b16 %v3350
  %v3422 = vunpack.c.l.b16 %v3351
  %v3423 = vunpack.c.h.b16 %v3351
  %v3424 = vunpack.c.l.b16 %v3352
  %v3425 = vunpack.c.h.b16 %v3352
  %v3426 = vunpack.c.l.b16 %v3353
  %v3427 = vunpack.c.h.b16 %v3353
  %v3428 = vunpack.c.l.b16 %v3354
  %v3429 = vunpack.c.h.b16 %v3354
  %v3430 = vunpack.c.l.b16 %v3355
  %v3431 = vunpack.c.h.b16 %v3355
  %v3432 = vunpack.c.l.b16 %v3356
  %v3433 = vunpack.c.h.b16 %v3356
  %v3434 = vunpack.c.l.b16 %v3357
  %v3435 = vunpack.c.h.b16 %v3357
  %v3436 = vunpack.c.l.b16 %v3358
  %v3437 = vunpack.c.h.b16 %v3358
  %v3438 = vunpack.c.l.b16 %v3359
  %v3439 = vunpack.c.h.b16 %v3359
  %v3440 = vunpack.c.l.b16 %v3360
  %v3441 = vunpack.c.h.b16 %v3360
  %v3442 = vunpack.c.l.b16 %v3361
  %v3443 = vunpack.c.h.b16 %v3361
  %v3444 = vunpack.c.l.b16 %v3362
  %v3445 = vunpack.c.h.b16 %v3362
  %v3446 = vunpack.c.l.b16 %v3363
  %v3447 = vunpack.c.h.b16 %v3363
  %v3448 = vunpack.c.l.b16 %v3364
  %v3449 = vunpack.c.h.b16 %v3364
  %v3450 = vunpack.c.l.b16 %v3365
  %v3451 = vunpack.c.h.b16 %v3365
  %v3452 = vunpack.c.l.b16 %v3366
  %v3453 = vunpack.c.h.b16 %v3366
  %v3454 = vunpack.c.l.b16 %v3367
  %v3455 = vunpack.c.h.b16 %v3367
  %v3456 = vunpack.c.l.b16 %v3368
  %v3457 = vunpack.c.h.b16 %v3368
  %v3458 = vunpack.c.l.b16 %v3369
  %v3459 = vunpack.c.h.b16 %v3369
  %v3460 = vunpack.c.l.b16 %v3370
  %v3461 = vunpack.c.h.b16 %v3370
  %v3462 = vunpack.c.l.b16 %v3371
  %v3463 = vunpack.c.h.b16 %v3371
  %v3464 = vunpack.c.l.b16 %v3372
  %v3465 = vunpack.c.h.b16 %v3372
  %v3466 = vunpack.c.l.b16 %v3373
  %v3467 = vunpack.c.h.b16 %v3373
  %v3468 = vunpack.c.l.b16 %v3374
  %v3469 = vunpack.c.h.b16 %v3374
  %v3470 = vunpack.c.l.b16 %v3375
  %v3471 = vunpack.c.h.b16 %v3375
  %v3472 = vpack.c.b16 %v3412, %v3408
  %v3473 = vpack.c.b16 %v3413, %v3409
  %v3474 = vpack.c.b16 %v3414, %v3410
  %v3475 = vpack.c.b16 %v3415, %v3411
  %v3476 = vpack.c.b16 %v3420, %v3416
  %v3477 = vpack.c.b16 %v3421, %v3417
  %v3478 = vpack.c.b16 %v3422, %v3418
  %v3479 = vpack.c.b16 %v3423, %v3419
  %v3480 = vpack.c.b16 %v3428, %v3424
  %v3481 = vpack.c.b16 %v3429, %v3425
  %v3482 = vpack.c.b16 %v3430, %v3426
  %v3483 = vpack.c.b16 %v3431, %v3427
  %v3484 = vpack.c.b16 %v3436, %v3432
  %v3485 = vpack.c.b16 %v3437, %v3433
  %v3486 = vpack.c.b16 %v3438, %v3434
  %v3487 = vpack.c.b16 %v3439, %v3435
  %v3488 = vpack.c.b16 %v3444, %v3440
  %v3489 = vpack.c.b16 %v3445, %v3441
  %v3490 = vpack.c.b16 %v3446, %v3442
  %v3491 = vpack.c.b16 %v3447, %v3443
  %v3492 = vpack.c.b16 %v3452, %v3448
  %v3493 = vpack.c.b16 %v3453, %v3449
  %v3494 = vpack.c.b16 %v3454, %v3450
  %v3495 = vpack.c.b16 %v3455, %v3451
  %v3496 = vpack.c.b16 %v3460, %v3456
  %v3497 = vpack.c.b16 %v3461, %v3457
  %v3498 = vpack.c.b16 %v3462, %v3458
  %v3499 = vpack.c.b16 %v3463, %v3459
  %v3500 = vpack.c.b16 %v3468, %v3464
  %v3501 = vpack.c.b16 %v3469, %v3465
  %v3502 = vpack.c.b16 %v3470, %v3466
  %v3503 = vpack.c.b16 %v3471, %v3467
  %3536 = vmatprep.subr.bf16.mxu0 %v3473
  %3537 = vmatpush1.bf16.msra.mxu0 %v3472
  %3538 = vmatprep.subr.bf16.mxu0 %v3477
  %3539 = vmatpush1.bf16.msra.mxu0 %v3476
  %3540 = vmatprep.subr.bf16.mxu0 %v3481
  %3541 = vmatpush1.bf16.msra.mxu0 %v3480
  %3542 = vmatprep.subr.bf16.mxu0 %v3485
  %3543 = vmatpush1.bf16.msra.mxu0 %v3484
  %3544 = vmatprep.subr.bf16.mxu0 %v3489
  %3545 = vmatpush1.bf16.msra.mxu0 %v3488
  %3546 = vmatprep.subr.bf16.mxu0 %v3493
  %3547 = vmatpush1.bf16.msra.mxu0 %v3492
  %3548 = vmatprep.subr.bf16.mxu0 %v3497
  %3549 = vmatpush1.bf16.msra.mxu0 %v3496
  %3550 = vmatprep.subr.bf16.mxu0 %v3501
  %3551 = vmatpush1.bf16.msra.mxu0 %v3500
  %3552 = vmatprep.subr.bf16.mxu0 0
  %3553 = vmatpush1.bf16.msra.mxu0 0
  %3554 = vmatprep.subr.bf16.mxu0 0
  %3555 = vmatpush1.bf16.msra.mxu0 0
  %3556 = vmatprep.subr.bf16.mxu0 0
  %3557 = vmatpush1.bf16.msra.mxu0 0
  %3558 = vmatprep.subr.bf16.mxu0 0
  %3559 = vmatpush1.bf16.msra.mxu0 0
  %3560 = vmatprep.subr.bf16.mxu0 0
  %3561 = vmatpush1.bf16.msra.mxu0 0
  %3562 = vmatprep.subr.bf16.mxu0 0
  %3563 = vmatpush1.bf16.msra.mxu0 0
  %3564 = vmatprep.subr.bf16.mxu0 0
  %3565 = vmatpush1.bf16.msra.mxu0 0
  %3566 = vmatprep.subr.bf16.mxu0 0
  %3567 = vmatpush1.bf16.msra.mxu0 0
  %3568 = vmatprep.mubr.bf16.mxu0 0
  %3569 = vmatmul.mubr.bf16.gmra.mrb[0].mxu0 %v3337
  %v3570 = vpop.f32.mrb[0].mxu0
  %v3571 = vadd.f32 0.0, %v3570
  %v3572 = vpop.f32.mrb[0].mxu0
  %v3573 = vadd.f32 0.0, %v3572
  %v3574 = vpop.f32.mrb[0].mxu0
  %v3575 = vpop.f32.mrb[0].mxu0
  %3576 = vdwg.mxu0
  %3577 = vmatprep.subr.bf16.mxu0 %v3475
  %3578 = vmatpush1.bf16.msra.mxu0 %v3474
  %3579 = vmatprep.subr.bf16.mxu0 %v3479
  %3580 = vmatpush1.bf16.msra.mxu0 %v3478
  %3581 = vmatprep.subr.bf16.mxu0 %v3483
  %3582 = vmatpush1.bf16.msra.mxu0 %v3482
  %3583 = vmatprep.subr.bf16.mxu0 %v3487
  %3584 = vmatpush1.bf16.msra.mxu0 %v3486
  %3585 = vmatprep.subr.bf16.mxu0 %v3491
  %3586 = vmatpush1.bf16.msra.mxu0 %v3490
  %3587 = vmatprep.subr.bf16.mxu0 %v3495
  %3588 = vmatpush1.bf16.msra.mxu0 %v3494
  %3589 = vmatprep.subr.bf16.mxu0 %v3499
  %3590 = vmatpush1.bf16.msra.mxu0 %v3498
  %3591 = vmatprep.subr.bf16.mxu0 %v3503
  %3592 = vmatpush1.bf16.msra.mxu0 %v3502
  %3593 = vmatprep.subr.bf16.mxu0 0
  %3594 = vmatpush1.bf16.msra.mxu0 0
  %3595 = vmatprep.subr.bf16.mxu0 0
  %3596 = vmatpush1.bf16.msra.mxu0 0
  %3597 = vmatprep.subr.bf16.mxu0 0
  %3598 = vmatpush1.bf16.msra.mxu0 0
  %3599 = vmatprep.subr.bf16.mxu0 0
  %3600 = vmatpush1.bf16.msra.mxu0 0
  %3601 = vmatprep.subr.bf16.mxu0 0
  %3602 = vmatpush1.bf16.msra.mxu0 0
  %3603 = vmatprep.subr.bf16.mxu0 0
  %3604 = vmatpush1.bf16.msra.mxu0 0
  %3605 = vmatprep.subr.bf16.mxu0 0
  %3606 = vmatpush1.bf16.msra.mxu0 0
  %3607 = vmatprep.subr.bf16.mxu0 0
  %3608 = vmatpush1.bf16.msra.mxu0 0
  %3609 = vmatprep.mubr.bf16.mxu0 0
  %3610 = vmatmul.mubr.bf16.gmra.mrb[0].mxu0 %v3337
  %v3611 = vpop.f32.mrb[0].mxu0
  %v3612 = vadd.f32 0.0, %v3611
  %v3613 = vpop.f32.mrb[0].mxu0
  %v3614 = vadd.f32 0.0, %v3613
  %v3615 = vpop.f32.mrb[0].mxu0
  %v3616 = vpop.f32.mrb[0].mxu0
  %3617 = vdwg.mxu0
  %v3622 = vcombine.low %v3571, %v3573
  %v3623 = vcombine.low %v3612, %v3614
  %v3625 = vunpack.c.l.s4 1983009808
  %v3626 = vunpack.c.0.s8 %v3625
  %v3627 = vlaneseq
  %v3628 = vshrl.u32 %v3627, 7
  %v3629 = vsub.s32 %v3626, %v3628
  %v3630 = vrot.slane %v3622, %v3629
  %v3632 = vunpack.c.l.s4 1983009808
  %v3633 = vunpack.c.0.s8 %v3632
  %v3634 = vlaneseq
  %v3635 = vshrl.u32 %v3634, 7
  %v3636 = vsub.s32 %v3633, %v3635
  %v3637 = vrot.slane %v3623, %v3636
  %v3638 = vcombine.low %v3630, %v3637
  %v3640 = vadd.f32 %v3343, %v3638
  %v3641 = vld [vmem:[%s1347 + $0x8] sm:$0xff]
  %v3642 = vld [vmem:[%s2] sm:$0xff]
  %v3643 = vld [vmem:[%s2 + $0x8] sm:$0xff]
  %v3644 = vld [vmem:[%s2 + $0x10] sm:$0xff]
  %v3645 = vld [vmem:[%s2 + $0x18] sm:$0xff]
  %v3646 = vld [vmem:[%s2 + $0x20] sm:$0xff]
  %v3647 = vld [vmem:[%s2 + $0x28] sm:$0xff]
  %v3648 = vld [vmem:[%s2 + $0x30] sm:$0xff]
  %v3649 = vld [vmem:[%s2 + $0x38] sm:$0xff]
  %v3650 = vld [vmem:[%s2 + $0x40] sm:$0xff]
  %v3651 = vld [vmem:[%s2 + $0x48] sm:$0xff]
  %v3652 = vld [vmem:[%s2 + $0x50] sm:$0xff]
  %v3653 = vld [vmem:[%s2 + $0x58] sm:$0xff]
  %v3654 = vld [vmem:[%s2 + $0x60] sm:$0xff]
  %v3655 = vld [vmem:[%s2 + $0x68] sm:$0xff]
  %v3656 = vld [vmem:[%s2 + $0x70] sm:$0xff]
  %v3657 = vld [vmem:[%s2 + $0x78] sm:$0xff]
  %v3658 = vld [vmem:[%s2 + $0x80] sm:$0xff]
  %v3659 = vld [vmem:[%s2 + $0x88] sm:$0xff]
  %v3660 = vld [vmem:[%s2 + $0x90] sm:$0xff]
  %v3661 = vld [vmem:[%s2 + $0x98] sm:$0xff]
  %v3662 = vld [vmem:[%s2 + $0xa0] sm:$0xff]
  %v3663 = vld [vmem:[%s2 + $0xa8] sm:$0xff]
  %v3664 = vld [vmem:[%s2 + $0xb0] sm:$0xff]
  %v3665 = vld [vmem:[%s2 + $0xb8] sm:$0xff]
  %v3666 = vld [vmem:[%s2 + $0xc0] sm:$0xff]
  %v3667 = vld [vmem:[%s2 + $0xc8] sm:$0xff]
  %v3668 = vld [vmem:[%s2 + $0xd0] sm:$0xff]
  %v3669 = vld [vmem:[%s2 + $0xd8] sm:$0xff]
  %v3670 = vld [vmem:[%s2 + $0xe0] sm:$0xff]
  %v3671 = vld [vmem:[%s2 + $0xe8] sm:$0xff]
  %v3672 = vld [vmem:[%s2 + $0xf0] sm:$0xff]
  %v3673 = vld [vmem:[%s2 + $0xf8] sm:$0xff]
  %v3706 = vunpack.c.l.b16 %v3642
  %v3707 = vunpack.c.h.b16 %v3642
  %v3708 = vunpack.c.l.b16 %v3643
  %v3709 = vunpack.c.h.b16 %v3643
  %v3710 = vunpack.c.l.b16 %v3644
  %v3711 = vunpack.c.h.b16 %v3644
  %v3712 = vunpack.c.l.b16 %v3645
  %v3713 = vunpack.c.h.b16 %v3645
  %v3714 = vunpack.c.l.b16 %v3646
  %v3715 = vunpack.c.h.b16 %v3646
  %v3716 = vunpack.c.l.b16 %v3647
  %v3717 = vunpack.c.h.b16 %v3647
  %v3718 = vunpack.c.l.b16 %v3648
  %v3719 = vunpack.c.h.b16 %v3648
  %v3720 = vunpack.c.l.b16 %v3649
  %v3721 = vunpack.c.h.b16 %v3649
  %v3722 = vunpack.c.l.b16 %v3650
  %v3723 = vunpack.c.h.b16 %v3650
  %v3724 = vunpack.c.l.b16 %v3651
  %v3725 = vunpack.c.h.b16 %v3651
  %v3726 = vunpack.c.l.b16 %v3652
  %v3727 = vunpack.c.h.b16 %v3652
  %v3728 = vunpack.c.l.b16 %v3653
  %v3729 = vunpack.c.h.b16 %v3653
  %v3730 = vunpack.c.l.b16 %v3654
  %v3731 = vunpack.c.h.b16 %v3654
  %v3732 = vunpack.c.l.b16 %v3655
  %v3733 = vunpack.c.h.b16 %v3655
  %v3734 = vunpack.c.l.b16 %v3656
  %v3735 = vunpack.c.h.b16 %v3656
  %v3736 = vunpack.c.l.b16 %v3657
  %v3737 = vunpack.c.h.b16 %v3657
  %v3738 = vunpack.c.l.b16 %v3658
  %v3739 = vunpack.c.h.b16 %v3658
  %v3740 = vunpack.c.l.b16 %v3659
  %v3741 = vunpack.c.h.b16 %v3659
  %v3742 = vunpack.c.l.b16 %v3660
  %v3743 = vunpack.c.h.b16 %v3660
  %v3744 = vunpack.c.l.b16 %v3661
  %v3745 = vunpack.c.h.b16 %v3661
  %v3746 = vunpack.c.l.b16 %v3662
  %v3747 = vunpack.c.h.b16 %v3662
  %v3748 = vunpack.c.l.b16 %v3663
  %v3749 = vunpack.c.h.b16 %v3663
  %v3750 = vunpack.c.l.b16 %v3664
  %v3751 = vunpack.c.h.b16 %v3664
  %v3752 = vunpack.c.l.b16 %v3665
  %v3753 = vunpack.c.h.b16 %v3665
  %v3754 = vunpack.c.l.b16 %v3666
  %v3755 = vunpack.c.h.b16 %v3666
  %v3756 = vunpack.c.l.b16 %v3667
  %v3757 = vunpack.c.h.b16 %v3667
  %v3758 = vunpack.c.l.b16 %v3668
  %v3759 = vunpack.c.h.b16 %v3668
  %v3760 = vunpack.c.l.b16 %v3669
  %v3761 = vunpack.c.h.b16 %v3669
  %v3762 = vunpack.c.l.b16 %v3670
  %v3763 = vunpack.c.h.b16 %v3670
  %v3764 = vunpack.c.l.b16 %v3671
  %v3765 = vunpack.c.h.b16 %v3671
  %v3766 = vunpack.c.l.b16 %v3672
  %v3767 = vunpack.c.h.b16 %v3672
  %v3768 = vunpack.c.l.b16 %v3673
  %v3769 = vunpack.c.h.b16 %v3673
  %v3770 = vpack.c.b16 %v3710, %v3706
  %v3771 = vpack.c.b16 %v3711, %v3707
  %v3772 = vpack.c.b16 %v3712, %v3708
  %v3773 = vpack.c.b16 %v3713, %v3709
  %v3774 = vpack.c.b16 %v3718, %v3714
  %v3775 = vpack.c.b16 %v3719, %v3715
  %v3776 = vpack.c.b16 %v3720, %v3716
  %v3777 = vpack.c.b16 %v3721, %v3717
  %v3778 = vpack.c.b16 %v3726, %v3722
  %v3779 = vpack.c.b16 %v3727, %v3723
  %v3780 = vpack.c.b16 %v3728, %v3724
  %v3781 = vpack.c.b16 %v3729, %v3725
  %v3782 = vpack.c.b16 %v3734, %v3730
  %v3783 = vpack.c.b16 %v3735, %v3731
  %v3784 = vpack.c.b16 %v3736, %v3732
  %v3785 = vpack.c.b16 %v3737, %v3733
  %v3786 = vpack.c.b16 %v3742, %v3738
  %v3787 = vpack.c.b16 %v3743, %v3739
  %v3788 = vpack.c.b16 %v3744, %v3740
  %v3789 = vpack.c.b16 %v3745, %v3741
  %v3790 = vpack.c.b16 %v3750, %v3746
  %v3791 = vpack.c.b16 %v3751, %v3747
  %v3792 = vpack.c.b16 %v3752, %v3748
  %v3793 = vpack.c.b16 %v3753, %v3749
  %v3794 = vpack.c.b16 %v3758, %v3754
  %v3795 = vpack.c.b16 %v3759, %v3755
  %v3796 = vpack.c.b16 %v3760, %v3756
  %v3797 = vpack.c.b16 %v3761, %v3757
  %v3798 = vpack.c.b16 %v3766, %v3762
  %v3799 = vpack.c.b16 %v3767, %v3763
  %v3800 = vpack.c.b16 %v3768, %v3764
  %v3801 = vpack.c.b16 %v3769, %v3765
  %3834 = vmatprep.subr.bf16.mxu0 %v3771
  %3835 = vmatpush1.bf16.msra.mxu0 %v3770
  %3836 = vmatprep.subr.bf16.mxu0 %v3775
  %3837 = vmatpush1.bf16.msra.mxu0 %v3774
  %3838 = vmatprep.subr.bf16.mxu0 %v3779
  %3839 = vmatpush1.bf16.msra.mxu0 %v3778
  %3840 = vmatprep.subr.bf16.mxu0 %v3783
  %3841 = vmatpush1.bf16.msra.mxu0 %v3782
  %3842 = vmatprep.subr.bf16.mxu0 %v3787
  %3843 = vmatpush1.bf16.msra.mxu0 %v3786
  %3844 = vmatprep.subr.bf16.mxu0 %v3791
  %3845 = vmatpush1.bf16.msra.mxu0 %v3790
  %3846 = vmatprep.subr.bf16.mxu0 %v3795
  %3847 = vmatpush1.bf16.msra.mxu0 %v3794
  %3848 = vmatprep.subr.bf16.mxu0 %v3799
  %3849 = vmatpush1.bf16.msra.mxu0 %v3798
  %3850 = vmatprep.subr.bf16.mxu0 0
  %3851 = vmatpush1.bf16.msra.mxu0 0
  %3852 = vmatprep.subr.bf16.mxu0 0
  %3853 = vmatpush1.bf16.msra.mxu0 0
  %3854 = vmatprep.subr.bf16.mxu0 0
  %3855 = vmatpush1.bf16.msra.mxu0 0
  %3856 = vmatprep.subr.bf16.mxu0 0
  %3857 = vmatpush1.bf16.msra.mxu0 0
  %3858 = vmatprep.subr.bf16.mxu0 0
  %3859 = vmatpush1.bf16.msra.mxu0 0
  %3860 = vmatprep.subr.bf16.mxu0 0
  %3861 = vmatpush1.bf16.msra.mxu0 0
  %3862 = vmatprep.subr.bf16.mxu0 0
  %3863 = vmatpush1.bf16.msra.mxu0 0
  %3864 = vmatprep.subr.bf16.mxu0 0
  %3865 = vmatpush1.bf16.msra.mxu0 0
  %3866 = vmatprep.mubr.bf16.mxu0 0
  %3867 = vmatmul.mubr.bf16.gmra.mrb[0].mxu0 %v3340
  %v3868 = vpop.f32.mrb[0].mxu0
  %v3869 = vadd.f32 0.0, %v3868
  %v3870 = vpop.f32.mrb[0].mxu0
  %v3871 = vadd.f32 0.0, %v3870
  %v3872 = vpop.f32.mrb[0].mxu0
  %v3873 = vpop.f32.mrb[0].mxu0
  %3874 = vdwg.mxu0
  %3875 = vmatprep.subr.bf16.mxu0 %v3773
  %3876 = vmatpush1.bf16.msra.mxu0 %v3772
  %3877 = vmatprep.subr.bf16.mxu0 %v3777
  %3878 = vmatpush1.bf16.msra.mxu0 %v3776
  %3879 = vmatprep.subr.bf16.mxu0 %v3781
  %3880 = vmatpush1.bf16.msra.mxu0 %v3780
  %3881 = vmatprep.subr.bf16.mxu0 %v3785
  %3882 = vmatpush1.bf16.msra.mxu0 %v3784
  %3883 = vmatprep.subr.bf16.mxu0 %v3789
  %3884 = vmatpush1.bf16.msra.mxu0 %v3788
  %3885 = vmatprep.subr.bf16.mxu0 %v3793
  %3886 = vmatpush1.bf16.msra.mxu0 %v3792
  %3887 = vmatprep.subr.bf16.mxu0 %v3797
  %3888 = vmatpush1.bf16.msra.mxu0 %v3796
  %3889 = vmatprep.subr.bf16.mxu0 %v3801
  %3890 = vmatpush1.bf16.msra.mxu0 %v3800
  %3891 = vmatprep.subr.bf16.mxu0 0
  %3892 = vmatpush1.bf16.msra.mxu0 0
  %3893 = vmatprep.subr.bf16.mxu0 0
  %3894 = vmatpush1.bf16.msra.mxu0 0
  %3895 = vmatprep.subr.bf16.mxu0 0
  %3896 = vmatpush1.bf16.msra.mxu0 0
  %3897 = vmatprep.subr.bf16.mxu0 0
  %3898 = vmatpush1.bf16.msra.mxu0 0
  %3899 = vmatprep.subr.bf16.mxu0 0
  %3900 = vmatpush1.bf16.msra.mxu0 0
  %3901 = vmatprep.subr.bf16.mxu0 0
  %3902 = vmatpush1.bf16.msra.mxu0 0
  %3903 = vmatprep.subr.bf16.mxu0 0
  %3904 = vmatpush1.bf16.msra.mxu0 0
  %3905 = vmatprep.subr.bf16.mxu0 0
  %3906 = vmatpush1.bf16.msra.mxu0 0
  %3907 = vmatprep.mubr.bf16.mxu0 0
  %3908 = vmatmul.mubr.bf16.gmra.mrb[0].mxu0 %v3340
  %v3909 = vpop.f32.mrb[0].mxu0
  %v3910 = vadd.f32 0.0, %v3909
  %v3911 = vpop.f32.mrb[0].mxu0
  %v3912 = vadd.f32 0.0, %v3911
  %v3913 = vpop.f32.mrb[0].mxu0
  %v3914 = vpop.f32.mrb[0].mxu0
  %3915 = vdwg.mxu0
  %v3920 = vcombine.low %v3869, %v3871
  %v3921 = vcombine.low %v3910, %v3912
  %v3923 = vunpack.c.l.s4 1983009808
  %v3924 = vunpack.c.0.s8 %v3923
  %v3925 = vlaneseq
  %v3926 = vshrl.u32 %v3925, 7
  %v3927 = vsub.s32 %v3924, %v3926
  %v3928 = vrot.slane %v3920, %v3927
  %v3930 = vunpack.c.l.s4 1983009808
  %v3931 = vunpack.c.0.s8 %v3930
  %v3932 = vlaneseq
  %v3933 = vshrl.u32 %v3932, 7
  %v3934 = vsub.s32 %v3931, %v3933
  %v3935 = vrot.slane %v3921, %v3934
  %v3936 = vcombine.low %v3928, %v3935
  %v3938 = vadd.f32 %v3641, %v3936
  %v3939 = vxor.u32 %v3640, 2147483648
  %v3940 = vmul.f32 %v3939, 1.442695
  %v3941 = vpow.pop %v3940
  %v3942 = vadd.f32 %v3941, 1.0
  %v3943 = vrcp.pop %v3942
  %v3944 = vmul.f32 1.0, %v3943
  %v3946 = vrot.slane %v3640, 2
  %v3948 = vxor.u32 %v3946, 2147483648
  %v3949 = vmul.f32 %v3948, 1.442695
  %v3950 = vpow.pop %v3949
  %v3951 = vadd.f32 %v3950, 1.0
  %v3952 = vrcp.pop %v3951
  %v3953 = vmul.f32 1.0, %v3952
  %v3954 = vrot.slane %v3640, 4
  %v3956 = vtanh.pop %v3954
  %v3957 = vrot.slane %v3640, 6
  %v3959 = vxor.u32 %v3957, 2147483648
  %v3960 = vmul.f32 %v3959, 1.442695
  %v3961 = vpow.pop %v3960
  %v3962 = vadd.f32 %v3961, 1.0
  %v3963 = vrcp.pop %v3962
  %v3964 = vmul.f32 1.0, %v3963
  %v3965 = vmul.f32 %v3953, %v3303
  %v3966 = vmul.f32 %v3944, %v3956
  %v3967 = vadd.f32 %v3965, %v3966
  %v3968 = vtanh.pop %v3967
  %v3969 = vmul.f32 %v3964, %v3968
  %v3970 = vxor.u32 %v3938, 2147483648
  %v3971 = vmul.f32 %v3970, 1.442695
  %v3972 = vpow.pop %v3971
  %v3973 = vadd.f32 %v3972, 1.0
  %v3974 = vrcp.pop %v3973
  %v3975 = vmul.f32 1.0, %v3974
  %v3977 = vrot.slane %v3938, 2
  %v3979 = vxor.u32 %v3977, 2147483648
  %v3980 = vmul.f32 %v3979, 1.442695
  %v3981 = vpow.pop %v3980
  %v3982 = vadd.f32 %v3981, 1.0
  %v3983 = vrcp.pop %v3982
  %v3984 = vmul.f32 1.0, %v3983
  %v3985 = vrot.slane %v3938, 4
  %v3987 = vtanh.pop %v3985
  %v3988 = vrot.slane %v3938, 6
  %v3990 = vxor.u32 %v3988, 2147483648
  %v3991 = vmul.f32 %v3990, 1.442695
  %v3992 = vpow.pop %v3991
  %v3993 = vadd.f32 %v3992, 1.0
  %v3994 = vrcp.pop %v3993
  %v3995 = vmul.f32 1.0, %v3994
  %v3996 = vmul.f32 %v3984, %v3334
  %v3997 = vmul.f32 %v3975, %v3987
  %v3998 = vadd.f32 %v3996, %v3997
  %v3999 = vtanh.pop %v3998
  %v4000 = vmul.f32 %v3995, %v3999
  %v4001 = vpack.c.bf16 %v3969, %v3969
  %s4002 = scalar_lea.vmem %s3, 5
  %4003 = vst [vmem:[%s4002] sm:$0x1] %v4001
  %v4004 = vpack.c.bf16 %v4000, %v4000
  %s4005 = scalar_lea.vmem %s4, 2
  %4006 = vst [vmem:[%s4005] sm:$0x1] %v4004
  %v4007 = vld [vmem:[%s980] sm:$0xff]
  %v4008 = vld [vmem:[%s1] sm:$0xff]
  %v4009 = vld [vmem:[%s1 + $0x8] sm:$0xff]
  %v4010 = vld [vmem:[%s1 + $0x10] sm:$0xff]
  %v4011 = vld [vmem:[%s1 + $0x18] sm:$0xff]
  %v4012 = vld [vmem:[%s1 + $0x20] sm:$0xff]
  %v4013 = vld [vmem:[%s1 + $0x28] sm:$0xff]
  %v4014 = vld [vmem:[%s1 + $0x30] sm:$0xff]
  %v4015 = vld [vmem:[%s1 + $0x38] sm:$0xff]
  %v4016 = vld [vmem:[%s1 + $0x40] sm:$0xff]
  %v4017 = vld [vmem:[%s1 + $0x48] sm:$0xff]
  %v4018 = vld [vmem:[%s1 + $0x50] sm:$0xff]
  %v4019 = vld [vmem:[%s1 + $0x58] sm:$0xff]
  %v4020 = vld [vmem:[%s1 + $0x60] sm:$0xff]
  %v4021 = vld [vmem:[%s1 + $0x68] sm:$0xff]
  %v4022 = vld [vmem:[%s1 + $0x70] sm:$0xff]
  %v4023 = vld [vmem:[%s1 + $0x78] sm:$0xff]
  %v4024 = vld [vmem:[%s1 + $0x80] sm:$0xff]
  %v4025 = vld [vmem:[%s1 + $0x88] sm:$0xff]
  %v4026 = vld [vmem:[%s1 + $0x90] sm:$0xff]
  %v4027 = vld [vmem:[%s1 + $0x98] sm:$0xff]
  %v4028 = vld [vmem:[%s1 + $0xa0] sm:$0xff]
  %v4029 = vld [vmem:[%s1 + $0xa8] sm:$0xff]
  %v4030 = vld [vmem:[%s1 + $0xb0] sm:$0xff]
  %v4031 = vld [vmem:[%s1 + $0xb8] sm:$0xff]
  %v4032 = vld [vmem:[%s1 + $0xc0] sm:$0xff]
  %v4033 = vld [vmem:[%s1 + $0xc8] sm:$0xff]
  %v4034 = vld [vmem:[%s1 + $0xd0] sm:$0xff]
  %v4035 = vld [vmem:[%s1 + $0xd8] sm:$0xff]
  %v4036 = vld [vmem:[%s1 + $0xe0] sm:$0xff]
  %v4037 = vld [vmem:[%s1 + $0xe8] sm:$0xff]
  %v4038 = vld [vmem:[%s1 + $0xf0] sm:$0xff]
  %v4039 = vld [vmem:[%s1 + $0xf8] sm:$0xff]
  %v4072 = vunpack.c.l.b16 %v4008
  %v4073 = vunpack.c.h.b16 %v4008
  %v4074 = vunpack.c.l.b16 %v4009
  %v4075 = vunpack.c.h.b16 %v4009
  %v4076 = vunpack.c.l.b16 %v4010
  %v4077 = vunpack.c.h.b16 %v4010
  %v4078 = vunpack.c.l.b16 %v4011
  %v4079 = vunpack.c.h.b16 %v4011
  %v4080 = vunpack.c.l.b16 %v4012
  %v4081 = vunpack.c.h.b16 %v4012
  %v4082 = vunpack.c.l.b16 %v4013
  %v4083 = vunpack.c.h.b16 %v4013
  %v4084 = vunpack.c.l.b16 %v4014
  %v4085 = vunpack.c.h.b16 %v4014
  %v4086 = vunpack.c.l.b16 %v4015
  %v4087 = vunpack.c.h.b16 %v4015
  %v4088 = vunpack.c.l.b16 %v4016
  %v4089 = vunpack.c.h.b16 %v4016
  %v4090 = vunpack.c.l.b16 %v4017
  %v4091 = vunpack.c.h.b16 %v4017
  %v4092 = vunpack.c.l.b16 %v4018
  %v4093 = vunpack.c.h.b16 %v4018
  %v4094 = vunpack.c.l.b16 %v4019
  %v4095 = vunpack.c.h.b16 %v4019
  %v4096 = vunpack.c.l.b16 %v4020
  %v4097 = vunpack.c.h.b16 %v4020
  %v4098 = vunpack.c.l.b16 %v4021
  %v4099 = vunpack.c.h.b16 %v4021
  %v4100 = vunpack.c.l.b16 %v4022
  %v4101 = vunpack.c.h.b16 %v4022
  %v4102 = vunpack.c.l.b16 %v4023
  %v4103 = vunpack.c.h.b16 %v4023
  %v4104 = vunpack.c.l.b16 %v4024
  %v4105 = vunpack.c.h.b16 %v4024
  %v4106 = vunpack.c.l.b16 %v4025
  %v4107 = vunpack.c.h.b16 %v4025
  %v4108 = vunpack.c.l.b16 %v4026
  %v4109 = vunpack.c.h.b16 %v4026
  %v4110 = vunpack.c.l.b16 %v4027
  %v4111 = vunpack.c.h.b16 %v4027
  %v4112 = vunpack.c.l.b16 %v4028
  %v4113 = vunpack.c.h.b16 %v4028
  %v4114 = vunpack.c.l.b16 %v4029
  %v4115 = vunpack.c.h.b16 %v4029
  %v4116 = vunpack.c.l.b16 %v4030
  %v4117 = vunpack.c.h.b16 %v4030
  %v4118 = vunpack.c.l.b16 %v4031
  %v4119 = vunpack.c.h.b16 %v4031
  %v4120 = vunpack.c.l.b16 %v4032
  %v4121 = vunpack.c.h.b16 %v4032
  %v4122 = vunpack.c.l.b16 %v4033
  %v4123 = vunpack.c.h.b16 %v4033
  %v4124 = vunpack.c.l.b16 %v4034
  %v4125 = vunpack.c.h.b16 %v4034
  %v4126 = vunpack.c.l.b16 %v4035
  %v4127 = vunpack.c.h.b16 %v4035
  %v4128 = vunpack.c.l.b16 %v4036
  %v4129 = vunpack.c.h.b16 %v4036
  %v4130 = vunpack.c.l.b16 %v4037
  %v4131 = vunpack.c.h.b16 %v4037
  %v4132 = vunpack.c.l.b16 %v4038
  %v4133 = vunpack.c.h.b16 %v4038
  %v4134 = vunpack.c.l.b16 %v4039
  %v4135 = vunpack.c.h.b16 %v4039
  %v4136 = vpack.c.b16 %v4076, %v4072
  %v4137 = vpack.c.b16 %v4077, %v4073
  %v4138 = vpack.c.b16 %v4078, %v4074
  %v4139 = vpack.c.b16 %v4079, %v4075
  %v4140 = vpack.c.b16 %v4084, %v4080
  %v4141 = vpack.c.b16 %v4085, %v4081
  %v4142 = vpack.c.b16 %v4086, %v4082
  %v4143 = vpack.c.b16 %v4087, %v4083
  %v4144 = vpack.c.b16 %v4092, %v4088
  %v4145 = vpack.c.b16 %v4093, %v4089
  %v4146 = vpack.c.b16 %v4094, %v4090
  %v4147 = vpack.c.b16 %v4095, %v4091
  %v4148 = vpack.c.b16 %v4100, %v4096
  %v4149 = vpack.c.b16 %v4101, %v4097
  %v4150 = vpack.c.b16 %v4102, %v4098
  %v4151 = vpack.c.b16 %v4103, %v4099
  %v4152 = vpack.c.b16 %v4108, %v4104
  %v4153 = vpack.c.b16 %v4109, %v4105
  %v4154 = vpack.c.b16 %v4110, %v4106
  %v4155 = vpack.c.b16 %v4111, %v4107
  %v4156 = vpack.c.b16 %v4116, %v4112
  %v4157 = vpack.c.b16 %v4117, %v4113
  %v4158 = vpack.c.b16 %v4118, %v4114
  %v4159 = vpack.c.b16 %v4119, %v4115
  %v4160 = vpack.c.b16 %v4124, %v4120
  %v4161 = vpack.c.b16 %v4125, %v4121
  %v4162 = vpack.c.b16 %v4126, %v4122
  %v4163 = vpack.c.b16 %v4127, %v4123
  %v4164 = vpack.c.b16 %v4132, %v4128
  %v4165 = vpack.c.b16 %v4133, %v4129
  %v4166 = vpack.c.b16 %v4134, %v4130
  %v4167 = vpack.c.b16 %v4135, %v4131
  %4200 = vmatprep.subr.bf16.mxu0 %v4137
  %4201 = vmatpush1.bf16.msra.mxu0 %v4136
  %4202 = vmatprep.subr.bf16.mxu0 %v4141
  %4203 = vmatpush1.bf16.msra.mxu0 %v4140
  %4204 = vmatprep.subr.bf16.mxu0 %v4145
  %4205 = vmatpush1.bf16.msra.mxu0 %v4144
  %4206 = vmatprep.subr.bf16.mxu0 %v4149
  %4207 = vmatpush1.bf16.msra.mxu0 %v4148
  %4208 = vmatprep.subr.bf16.mxu0 %v4153
  %4209 = vmatpush1.bf16.msra.mxu0 %v4152
  %4210 = vmatprep.subr.bf16.mxu0 %v4157
  %4211 = vmatpush1.bf16.msra.mxu0 %v4156
  %4212 = vmatprep.subr.bf16.mxu0 %v4161
  %4213 = vmatpush1.bf16.msra.mxu0 %v4160
  %4214 = vmatprep.subr.bf16.mxu0 %v4165
  %4215 = vmatpush1.bf16.msra.mxu0 %v4164
  %4216 = vmatprep.subr.bf16.mxu0 0
  %4217 = vmatpush1.bf16.msra.mxu0 0
  %4218 = vmatprep.subr.bf16.mxu0 0
  %4219 = vmatpush1.bf16.msra.mxu0 0
  %4220 = vmatprep.subr.bf16.mxu0 0
  %4221 = vmatpush1.bf16.msra.mxu0 0
  %4222 = vmatprep.subr.bf16.mxu0 0
  %4223 = vmatpush1.bf16.msra.mxu0 0
  %4224 = vmatprep.subr.bf16.mxu0 0
  %4225 = vmatpush1.bf16.msra.mxu0 0
  %4226 = vmatprep.subr.bf16.mxu0 0
  %4227 = vmatpush1.bf16.msra.mxu0 0
  %4228 = vmatprep.subr.bf16.mxu0 0
  %4229 = vmatpush1.bf16.msra.mxu0 0
  %4230 = vmatprep.subr.bf16.mxu0 0
  %4231 = vmatpush1.bf16.msra.mxu0 0
  %4232 = vmatprep.mubr.bf16.mxu0 0
  %4233 = vmatmul.mubr.bf16.gmra.mrb[0].mxu0 %v4001
  %v4234 = vpop.f32.mrb[0].mxu0
  %v4235 = vadd.f32 0.0, %v4234
  %v4236 = vpop.f32.mrb[0].mxu0
  %v4237 = vadd.f32 0.0, %v4236
  %v4238 = vpop.f32.mrb[0].mxu0
  %v4239 = vpop.f32.mrb[0].mxu0
  %4240 = vdwg.mxu0
  %4241 = vmatprep.subr.bf16.mxu0 %v4139
  %4242 = vmatpush1.bf16.msra.mxu0 %v4138
  %4243 = vmatprep.subr.bf16.mxu0 %v4143
  %4244 = vmatpush1.bf16.msra.mxu0 %v4142
  %4245 = vmatprep.subr.bf16.mxu0 %v4147
  %4246 = vmatpush1.bf16.msra.mxu0 %v4146
  %4247 = vmatprep.subr.bf16.mxu0 %v4151
  %4248 = vmatpush1.bf16.msra.mxu0 %v4150
  %4249 = vmatprep.subr.bf16.mxu0 %v4155
  %4250 = vmatpush1.bf16.msra.mxu0 %v4154
  %4251 = vmatprep.subr.bf16.mxu0 %v4159
  %4252 = vmatpush1.bf16.msra.mxu0 %v4158
  %4253 = vmatprep.subr.bf16.mxu0 %v4163
  %4254 = vmatpush1.bf16.msra.mxu0 %v4162
  %4255 = vmatprep.subr.bf16.mxu0 %v4167
  %4256 = vmatpush1.bf16.msra.mxu0 %v4166
  %4257 = vmatprep.subr.bf16.mxu0 0
  %4258 = vmatpush1.bf16.msra.mxu0 0
  %4259 = vmatprep.subr.bf16.mxu0 0
  %4260 = vmatpush1.bf16.msra.mxu0 0
  %4261 = vmatprep.subr.bf16.mxu0 0
  %4262 = vmatpush1.bf16.msra.mxu0 0
  %4263 = vmatprep.subr.bf16.mxu0 0
  %4264 = vmatpush1.bf16.msra.mxu0 0
  %4265 = vmatprep.subr.bf16.mxu0 0
  %4266 = vmatpush1.bf16.msra.mxu0 0
  %4267 = vmatprep.subr.bf16.mxu0 0
  %4268 = vmatpush1.bf16.msra.mxu0 0
  %4269 = vmatprep.subr.bf16.mxu0 0
  %4270 = vmatpush1.bf16.msra.mxu0 0
  %4271 = vmatprep.subr.bf16.mxu0 0
  %4272 = vmatpush1.bf16.msra.mxu0 0
  %4273 = vmatprep.mubr.bf16.mxu0 0
  %4274 = vmatmul.mubr.bf16.gmra.mrb[0].mxu0 %v4001
  %v4275 = vpop.f32.mrb[0].mxu0
  %v4276 = vadd.f32 0.0, %v4275
  %v4277 = vpop.f32.mrb[0].mxu0
  %v4278 = vadd.f32 0.0, %v4277
  %v4279 = vpop.f32.mrb[0].mxu0
  %v4280 = vpop.f32.mrb[0].mxu0
  %4281 = vdwg.mxu0
  %v4286 = vcombine.low %v4235, %v4237
  %v4287 = vcombine.low %v4276, %v4278
  %v4289 = vunpack.c.l.s4 1983009808
  %v4290 = vunpack.c.0.s8 %v4289
  %v4291 = vlaneseq
  %v4292 = vshrl.u32 %v4291, 7
  %v4293 = vsub.s32 %v4290, %v4292
  %v4294 = vrot.slane %v4286, %v4293
  %v4296 = vunpack.c.l.s4 1983009808
  %v4297 = vunpack.c.0.s8 %v4296
  %v4298 = vlaneseq
  %v4299 = vshrl.u32 %v4298, 7
  %v4300 = vsub.s32 %v4297, %v4299
  %v4301 = vrot.slane %v4287, %v4300
  %v4302 = vcombine.low %v4294, %v4301
  %v4304 = vadd.f32 %v4007, %v4302
  %v4305 = vld [vmem:[%s681 + $0x8] sm:$0xff]
  %v4306 = vld [vmem:[%s2] sm:$0xff]
  %v4307 = vld [vmem:[%s2 + $0x8] sm:$0xff]
  %v4308 = vld [vmem:[%s2 + $0x10] sm:$0xff]
  %v4309 = vld [vmem:[%s2 + $0x18] sm:$0xff]
  %v4310 = vld [vmem:[%s2 + $0x20] sm:$0xff]
  %v4311 = vld [vmem:[%s2 + $0x28] sm:$0xff]
  %v4312 = vld [vmem:[%s2 + $0x30] sm:$0xff]
  %v4313 = vld [vmem:[%s2 + $0x38] sm:$0xff]
  %v4314 = vld [vmem:[%s2 + $0x40] sm:$0xff]
  %v4315 = vld [vmem:[%s2 + $0x48] sm:$0xff]
  %v4316 = vld [vmem:[%s2 + $0x50] sm:$0xff]
  %v4317 = vld [vmem:[%s2 + $0x58] sm:$0xff]
  %v4318 = vld [vmem:[%s2 + $0x60] sm:$0xff]
  %v4319 = vld [vmem:[%s2 + $0x68] sm:$0xff]
  %v4320 = vld [vmem:[%s2 + $0x70] sm:$0xff]
  %v4321 = vld [vmem:[%s2 + $0x78] sm:$0xff]
  %v4322 = vld [vmem:[%s2 + $0x80] sm:$0xff]
  %v4323 = vld [vmem:[%s2 + $0x88] sm:$0xff]
  %v4324 = vld [vmem:[%s2 + $0x90] sm:$0xff]
  %v4325 = vld [vmem:[%s2 + $0x98] sm:$0xff]
  %v4326 = vld [vmem:[%s2 + $0xa0] sm:$0xff]
  %v4327 = vld [vmem:[%s2 + $0xa8] sm:$0xff]
  %v4328 = vld [vmem:[%s2 + $0xb0] sm:$0xff]
  %v4329 = vld [vmem:[%s2 + $0xb8] sm:$0xff]
  %v4330 = vld [vmem:[%s2 + $0xc0] sm:$0xff]
  %v4331 = vld [vmem:[%s2 + $0xc8] sm:$0xff]
  %v4332 = vld [vmem:[%s2 + $0xd0] sm:$0xff]
  %v4333 = vld [vmem:[%s2 + $0xd8] sm:$0xff]
  %v4334 = vld [vmem:[%s2 + $0xe0] sm:$0xff]
  %v4335 = vld [vmem:[%s2 + $0xe8] sm:$0xff]
  %v4336 = vld [vmem:[%s2 + $0xf0] sm:$0xff]
  %v4337 = vld [vmem:[%s2 + $0xf8] sm:$0xff]
  %v4370 = vunpack.c.l.b16 %v4306
  %v4371 = vunpack.c.h.b16 %v4306
  %v4372 = vunpack.c.l.b16 %v4307
  %v4373 = vunpack.c.h.b16 %v4307
  %v4374 = vunpack.c.l.b16 %v4308
  %v4375 = vunpack.c.h.b16 %v4308
  %v4376 = vunpack.c.l.b16 %v4309
  %v4377 = vunpack.c.h.b16 %v4309
  %v4378 = vunpack.c.l.b16 %v4310
  %v4379 = vunpack.c.h.b16 %v4310
  %v4380 = vunpack.c.l.b16 %v4311
  %v4381 = vunpack.c.h.b16 %v4311
  %v4382 = vunpack.c.l.b16 %v4312
  %v4383 = vunpack.c.h.b16 %v4312
  %v4384 = vunpack.c.l.b16 %v4313
  %v4385 = vunpack.c.h.b16 %v4313
  %v4386 = vunpack.c.l.b16 %v4314
  %v4387 = vunpack.c.h.b16 %v4314
  %v4388 = vunpack.c.l.b16 %v4315
  %v4389 = vunpack.c.h.b16 %v4315
  %v4390 = vunpack.c.l.b16 %v4316
  %v4391 = vunpack.c.h.b16 %v4316
  %v4392 = vunpack.c.l.b16 %v4317
  %v4393 = vunpack.c.h.b16 %v4317
  %v4394 = vunpack.c.l.b16 %v4318
  %v4395 = vunpack.c.h.b16 %v4318
  %v4396 = vunpack.c.l.b16 %v4319
  %v4397 = vunpack.c.h.b16 %v4319
  %v4398 = vunpack.c.l.b16 %v4320
  %v4399 = vunpack.c.h.b16 %v4320
  %v4400 = vunpack.c.l.b16 %v4321
  %v4401 = vunpack.c.h.b16 %v4321
  %v4402 = vunpack.c.l.b16 %v4322
  %v4403 = vunpack.c.h.b16 %v4322
  %v4404 = vunpack.c.l.b16 %v4323
  %v4405 = vunpack.c.h.b16 %v4323
  %v4406 = vunpack.c.l.b16 %v4324
  %v4407 = vunpack.c.h.b16 %v4324
  %v4408 = vunpack.c.l.b16 %v4325
  %v4409 = vunpack.c.h.b16 %v4325
  %v4410 = vunpack.c.l.b16 %v4326
  %v4411 = vunpack.c.h.b16 %v4326
  %v4412 = vunpack.c.l.b16 %v4327
  %v4413 = vunpack.c.h.b16 %v4327
  %v4414 = vunpack.c.l.b16 %v4328
  %v4415 = vunpack.c.h.b16 %v4328
  %v4416 = vunpack.c.l.b16 %v4329
  %v4417 = vunpack.c.h.b16 %v4329
  %v4418 = vunpack.c.l.b16 %v4330
  %v4419 = vunpack.c.h.b16 %v4330
  %v4420 = vunpack.c.l.b16 %v4331
  %v4421 = vunpack.c.h.b16 %v4331
  %v4422 = vunpack.c.l.b16 %v4332
  %v4423 = vunpack.c.h.b16 %v4332
  %v4424 = vunpack.c.l.b16 %v4333
  %v4425 = vunpack.c.h.b16 %v4333
  %v4426 = vunpack.c.l.b16 %v4334
  %v4427 = vunpack.c.h.b16 %v4334
  %v4428 = vunpack.c.l.b16 %v4335
  %v4429 = vunpack.c.h.b16 %v4335
  %v4430 = vunpack.c.l.b16 %v4336
  %v4431 = vunpack.c.h.b16 %v4336
  %v4432 = vunpack.c.l.b16 %v4337
  %v4433 = vunpack.c.h.b16 %v4337
  %v4434 = vpack.c.b16 %v4374, %v4370
  %v4435 = vpack.c.b16 %v4375, %v4371
  %v4436 = vpack.c.b16 %v4376, %v4372
  %v4437 = vpack.c.b16 %v4377, %v4373
  %v4438 = vpack.c.b16 %v4382, %v4378
  %v4439 = vpack.c.b16 %v4383, %v4379
  %v4440 = vpack.c.b16 %v4384, %v4380
  %v4441 = vpack.c.b16 %v4385, %v4381
  %v4442 = vpack.c.b16 %v4390, %v4386
  %v4443 = vpack.c.b16 %v4391, %v4387
  %v4444 = vpack.c.b16 %v4392, %v4388
  %v4445 = vpack.c.b16 %v4393, %v4389
  %v4446 = vpack.c.b16 %v4398, %v4394
  %v4447 = vpack.c.b16 %v4399, %v4395
  %v4448 = vpack.c.b16 %v4400, %v4396
  %v4449 = vpack.c.b16 %v4401, %v4397
  %v4450 = vpack.c.b16 %v4406, %v4402
  %v4451 = vpack.c.b16 %v4407, %v4403
  %v4452 = vpack.c.b16 %v4408, %v4404
  %v4453 = vpack.c.b16 %v4409, %v4405
  %v4454 = vpack.c.b16 %v4414, %v4410
  %v4455 = vpack.c.b16 %v4415, %v4411
  %v4456 = vpack.c.b16 %v4416, %v4412
  %v4457 = vpack.c.b16 %v4417, %v4413
  %v4458 = vpack.c.b16 %v4422, %v4418
  %v4459 = vpack.c.b16 %v4423, %v4419
  %v4460 = vpack.c.b16 %v4424, %v4420
  %v4461 = vpack.c.b16 %v4425, %v4421
  %v4462 = vpack.c.b16 %v4430, %v4426
  %v4463 = vpack.c.b16 %v4431, %v4427
  %v4464 = vpack.c.b16 %v4432, %v4428
  %v4465 = vpack.c.b16 %v4433, %v4429
  %4498 = vmatprep.subr.bf16.mxu0 %v4435
  %4499 = vmatpush1.bf16.msra.mxu0 %v4434
  %4500 = vmatprep.subr.bf16.mxu0 %v4439
  %4501 = vmatpush1.bf16.msra.mxu0 %v4438
  %4502 = vmatprep.subr.bf16.mxu0 %v4443
  %4503 = vmatpush1.bf16.msra.mxu0 %v4442
  %4504 = vmatprep.subr.bf16.mxu0 %v4447
  %4505 = vmatpush1.bf16.msra.mxu0 %v4446
  %4506 = vmatprep.subr.bf16.mxu0 %v4451
  %4507 = vmatpush1.bf16.msra.mxu0 %v4450
  %4508 = vmatprep.subr.bf16.mxu0 %v4455
  %4509 = vmatpush1.bf16.msra.mxu0 %v4454
  %4510 = vmatprep.subr.bf16.mxu0 %v4459
  %4511 = vmatpush1.bf16.msra.mxu0 %v4458
  %4512 = vmatprep.subr.bf16.mxu0 %v4463
  %4513 = vmatpush1.bf16.msra.mxu0 %v4462
  %4514 = vmatprep.subr.bf16.mxu0 0
  %4515 = vmatpush1.bf16.msra.mxu0 0
  %4516 = vmatprep.subr.bf16.mxu0 0
  %4517 = vmatpush1.bf16.msra.mxu0 0
  %4518 = vmatprep.subr.bf16.mxu0 0
  %4519 = vmatpush1.bf16.msra.mxu0 0
  %4520 = vmatprep.subr.bf16.mxu0 0
  %4521 = vmatpush1.bf16.msra.mxu0 0
  %4522 = vmatprep.subr.bf16.mxu0 0
  %4523 = vmatpush1.bf16.msra.mxu0 0
  %4524 = vmatprep.subr.bf16.mxu0 0
  %4525 = vmatpush1.bf16.msra.mxu0 0
  %4526 = vmatprep.subr.bf16.mxu0 0
  %4527 = vmatpush1.bf16.msra.mxu0 0
  %4528 = vmatprep.subr.bf16.mxu0 0
  %4529 = vmatpush1.bf16.msra.mxu0 0
  %4530 = vmatprep.mubr.bf16.mxu0 0
  %4531 = vmatmul.mubr.bf16.gmra.mrb[0].mxu0 %v4004
  %v4532 = vpop.f32.mrb[0].mxu0
  %v4533 = vadd.f32 0.0, %v4532
  %v4534 = vpop.f32.mrb[0].mxu0
  %v4535 = vadd.f32 0.0, %v4534
  %v4536 = vpop.f32.mrb[0].mxu0
  %v4537 = vpop.f32.mrb[0].mxu0
  %4538 = vdwg.mxu0
  %4539 = vmatprep.subr.bf16.mxu0 %v4437
  %4540 = vmatpush1.bf16.msra.mxu0 %v4436
  %4541 = vmatprep.subr.bf16.mxu0 %v4441
  %4542 = vmatpush1.bf16.msra.mxu0 %v4440
  %4543 = vmatprep.subr.bf16.mxu0 %v4445
  %4544 = vmatpush1.bf16.msra.mxu0 %v4444
  %4545 = vmatprep.subr.bf16.mxu0 %v4449
  %4546 = vmatpush1.bf16.msra.mxu0 %v4448
  %4547 = vmatprep.subr.bf16.mxu0 %v4453
  %4548 = vmatpush1.bf16.msra.mxu0 %v4452
  %4549 = vmatprep.subr.bf16.mxu0 %v4457
  %4550 = vmatpush1.bf16.msra.mxu0 %v4456
  %4551 = vmatprep.subr.bf16.mxu0 %v4461
  %4552 = vmatpush1.bf16.msra.mxu0 %v4460
  %4553 = vmatprep.subr.bf16.mxu0 %v4465
  %4554 = vmatpush1.bf16.msra.mxu0 %v4464
  %4555 = vmatprep.subr.bf16.mxu0 0
  %4556 = vmatpush1.bf16.msra.mxu0 0
  %4557 = vmatprep.subr.bf16.mxu0 0
  %4558 = vmatpush1.bf16.msra.mxu0 0
  %4559 = vmatprep.subr.bf16.mxu0 0
  %4560 = vmatpush1.bf16.msra.mxu0 0
  %4561 = vmatprep.subr.bf16.mxu0 0
  %4562 = vmatpush1.bf16.msra.mxu0 0
  %4563 = vmatprep.subr.bf16.mxu0 0
  %4564 = vmatpush1.bf16.msra.mxu0 0
  %4565 = vmatprep.subr.bf16.mxu0 0
  %4566 = vmatpush1.bf16.msra.mxu0 0
  %4567 = vmatprep.subr.bf16.mxu0 0
  %4568 = vmatpush1.bf16.msra.mxu0 0
  %4569 = vmatprep.subr.bf16.mxu0 0
  %4570 = vmatpush1.bf16.msra.mxu0 0
  %4571 = vmatprep.mubr.bf16.mxu0 0
  %4572 = vmatmul.mubr.bf16.gmra.mrb[0].mxu0 %v4004
  %v4573 = vpop.f32.mrb[0].mxu0
  %v4574 = vadd.f32 0.0, %v4573
  %v4575 = vpop.f32.mrb[0].mxu0
  %v4576 = vadd.f32 0.0, %v4575
  %v4577 = vpop.f32.mrb[0].mxu0
  %v4578 = vpop.f32.mrb[0].mxu0
  %4579 = vdwg.mxu0
  %v4584 = vcombine.low %v4533, %v4535
  %v4585 = vcombine.low %v4574, %v4576
  %v4587 = vunpack.c.l.s4 1983009808
  %v4588 = vunpack.c.0.s8 %v4587
  %v4589 = vlaneseq
  %v4590 = vshrl.u32 %v4589, 7
  %v4591 = vsub.s32 %v4588, %v4590
  %v4592 = vrot.slane %v4584, %v4591
  %v4594 = vunpack.c.l.s4 1983009808
  %v4595 = vunpack.c.0.s8 %v4594
  %v4596 = vlaneseq
  %v4597 = vshrl.u32 %v4596, 7
  %v4598 = vsub.s32 %v4595, %v4597
  %v4599 = vrot.slane %v4585, %v4598
  %v4600 = vcombine.low %v4592, %v4599
  %v4602 = vadd.f32 %v4305, %v4600
  %v4603 = vxor.u32 %v4304, 2147483648
  %v4604 = vmul.f32 %v4603, 1.442695
  %v4605 = vpow.pop %v4604
  %v4606 = vadd.f32 %v4605, 1.0
  %v4607 = vrcp.pop %v4606
  %v4608 = vmul.f32 1.0, %v4607
  %v4610 = vrot.slane %v4304, 2
  %v4612 = vxor.u32 %v4610, 2147483648
  %v4613 = vmul.f32 %v4612, 1.442695
  %v4614 = vpow.pop %v4613
  %v4615 = vadd.f32 %v4614, 1.0
  %v4616 = vrcp.pop %v4615
  %v4617 = vmul.f32 1.0, %v4616
  %v4618 = vrot.slane %v4304, 4
  %v4620 = vtanh.pop %v4618
  %v4621 = vrot.slane %v4304, 6
  %v4623 = vxor.u32 %v4621, 2147483648
  %v4624 = vmul.f32 %v4623, 1.442695
  %v4625 = vpow.pop %v4624
  %v4626 = vadd.f32 %v4625, 1.0
  %v4627 = vrcp.pop %v4626
  %v4628 = vmul.f32 1.0, %v4627
  %v4629 = vmul.f32 %v4617, %v3967
  %v4630 = vmul.f32 %v4608, %v4620
  %v4631 = vadd.f32 %v4629, %v4630
  %v4632 = vtanh.pop %v4631
  %v4633 = vmul.f32 %v4628, %v4632
  %v4634 = vxor.u32 %v4602, 2147483648
  %v4635 = vmul.f32 %v4634, 1.442695
  %v4636 = vpow.pop %v4635
  %v4637 = vadd.f32 %v4636, 1.0
  %v4638 = vrcp.pop %v4637
  %v4639 = vmul.f32 1.0, %v4638
  %v4641 = vrot.slane %v4602, 2
  %v4643 = vxor.u32 %v4641, 2147483648
  %v4644 = vmul.f32 %v4643, 1.442695
  %v4645 = vpow.pop %v4644
  %v4646 = vadd.f32 %v4645, 1.0
  %v4647 = vrcp.pop %v4646
  %v4648 = vmul.f32 1.0, %v4647
  %v4649 = vrot.slane %v4602, 4
  %v4651 = vtanh.pop %v4649
  %v4652 = vrot.slane %v4602, 6
  %v4654 = vxor.u32 %v4652, 2147483648
  %v4655 = vmul.f32 %v4654, 1.442695
  %v4656 = vpow.pop %v4655
  %v4657 = vadd.f32 %v4656, 1.0
  %v4658 = vrcp.pop %v4657
  %v4659 = vmul.f32 1.0, %v4658
  %v4660 = vmul.f32 %v4648, %v3998
  %v4661 = vmul.f32 %v4639, %v4651
  %v4662 = vadd.f32 %v4660, %v4661
  %v4663 = vtanh.pop %v4662
  %v4664 = vmul.f32 %v4659, %v4663
  %v4665 = vpack.c.bf16 %v4633, %v4633
  %s4666 = scalar_lea.vmem %s3, 6
  %4667 = vst [vmem:[%s4666] sm:$0x1] %v4665
  %v4668 = vpack.c.bf16 %v4664, %v4664
  %s4669 = scalar_lea.vmem %s4, 1
  %4670 = vst [vmem:[%s4669] sm:$0x1] %v4668
  %v4671 = vld [vmem:[%s315] sm:$0xff]
  %v4672 = vld [vmem:[%s1] sm:$0xff]
  %v4673 = vld [vmem:[%s1 + $0x8] sm:$0xff]
  %v4674 = vld [vmem:[%s1 + $0x10] sm:$0xff]
  %v4675 = vld [vmem:[%s1 + $0x18] sm:$0xff]
  %v4676 = vld [vmem:[%s1 + $0x20] sm:$0xff]
  %v4677 = vld [vmem:[%s1 + $0x28] sm:$0xff]
  %v4678 = vld [vmem:[%s1 + $0x30] sm:$0xff]
  %v4679 = vld [vmem:[%s1 + $0x38] sm:$0xff]
  %v4680 = vld [vmem:[%s1 + $0x40] sm:$0xff]
  %v4681 = vld [vmem:[%s1 + $0x48] sm:$0xff]
  %v4682 = vld [vmem:[%s1 + $0x50] sm:$0xff]
  %v4683 = vld [vmem:[%s1 + $0x58] sm:$0xff]
  %v4684 = vld [vmem:[%s1 + $0x60] sm:$0xff]
  %v4685 = vld [vmem:[%s1 + $0x68] sm:$0xff]
  %v4686 = vld [vmem:[%s1 + $0x70] sm:$0xff]
  %v4687 = vld [vmem:[%s1 + $0x78] sm:$0xff]
  %v4688 = vld [vmem:[%s1 + $0x80] sm:$0xff]
  %v4689 = vld [vmem:[%s1 + $0x88] sm:$0xff]
  %v4690 = vld [vmem:[%s1 + $0x90] sm:$0xff]
  %v4691 = vld [vmem:[%s1 + $0x98] sm:$0xff]
  %v4692 = vld [vmem:[%s1 + $0xa0] sm:$0xff]
  %v4693 = vld [vmem:[%s1 + $0xa8] sm:$0xff]
  %v4694 = vld [vmem:[%s1 + $0xb0] sm:$0xff]
  %v4695 = vld [vmem:[%s1 + $0xb8] sm:$0xff]
  %v4696 = vld [vmem:[%s1 + $0xc0] sm:$0xff]
  %v4697 = vld [vmem:[%s1 + $0xc8] sm:$0xff]
  %v4698 = vld [vmem:[%s1 + $0xd0] sm:$0xff]
  %v4699 = vld [vmem:[%s1 + $0xd8] sm:$0xff]
  %v4700 = vld [vmem:[%s1 + $0xe0] sm:$0xff]
  %v4701 = vld [vmem:[%s1 + $0xe8] sm:$0xff]
  %v4702 = vld [vmem:[%s1 + $0xf0] sm:$0xff]
  %v4703 = vld [vmem:[%s1 + $0xf8] sm:$0xff]
  %v4736 = vunpack.c.l.b16 %v4672
  %v4737 = vunpack.c.h.b16 %v4672
  %v4738 = vunpack.c.l.b16 %v4673
  %v4739 = vunpack.c.h.b16 %v4673
  %v4740 = vunpack.c.l.b16 %v4674
  %v4741 = vunpack.c.h.b16 %v4674
  %v4742 = vunpack.c.l.b16 %v4675
  %v4743 = vunpack.c.h.b16 %v4675
  %v4744 = vunpack.c.l.b16 %v4676
  %v4745 = vunpack.c.h.b16 %v4676
  %v4746 = vunpack.c.l.b16 %v4677
  %v4747 = vunpack.c.h.b16 %v4677
  %v4748 = vunpack.c.l.b16 %v4678
  %v4749 = vunpack.c.h.b16 %v4678
  %v4750 = vunpack.c.l.b16 %v4679
  %v4751 = vunpack.c.h.b16 %v4679
  %v4752 = vunpack.c.l.b16 %v4680
  %v4753 = vunpack.c.h.b16 %v4680
  %v4754 = vunpack.c.l.b16 %v4681
  %v4755 = vunpack.c.h.b16 %v4681
  %v4756 = vunpack.c.l.b16 %v4682
  %v4757 = vunpack.c.h.b16 %v4682
  %v4758 = vunpack.c.l.b16 %v4683
  %v4759 = vunpack.c.h.b16 %v4683
  %v4760 = vunpack.c.l.b16 %v4684
  %v4761 = vunpack.c.h.b16 %v4684
  %v4762 = vunpack.c.l.b16 %v4685
  %v4763 = vunpack.c.h.b16 %v4685
  %v4764 = vunpack.c.l.b16 %v4686
  %v4765 = vunpack.c.h.b16 %v4686
  %v4766 = vunpack.c.l.b16 %v4687
  %v4767 = vunpack.c.h.b16 %v4687
  %v4768 = vunpack.c.l.b16 %v4688
  %v4769 = vunpack.c.h.b16 %v4688
  %v4770 = vunpack.c.l.b16 %v4689
  %v4771 = vunpack.c.h.b16 %v4689
  %v4772 = vunpack.c.l.b16 %v4690
  %v4773 = vunpack.c.h.b16 %v4690
  %v4774 = vunpack.c.l.b16 %v4691
  %v4775 = vunpack.c.h.b16 %v4691
  %v4776 = vunpack.c.l.b16 %v4692
  %v4777 = vunpack.c.h.b16 %v4692
  %v4778 = vunpack.c.l.b16 %v4693
  %v4779 = vunpack.c.h.b16 %v4693
  %v4780 = vunpack.c.l.b16 %v4694
  %v4781 = vunpack.c.h.b16 %v4694
  %v4782 = vunpack.c.l.b16 %v4695
  %v4783 = vunpack.c.h.b16 %v4695
  %v4784 = vunpack.c.l.b16 %v4696
  %v4785 = vunpack.c.h.b16 %v4696
  %v4786 = vunpack.c.l.b16 %v4697
  %v4787 = vunpack.c.h.b16 %v4697
  %v4788 = vunpack.c.l.b16 %v4698
  %v4789 = vunpack.c.h.b16 %v4698
  %v4790 = vunpack.c.l.b16 %v4699
  %v4791 = vunpack.c.h.b16 %v4699
  %v4792 = vunpack.c.l.b16 %v4700
  %v4793 = vunpack.c.h.b16 %v4700
  %v4794 = vunpack.c.l.b16 %v4701
  %v4795 = vunpack.c.h.b16 %v4701
  %v4796 = vunpack.c.l.b16 %v4702
  %v4797 = vunpack.c.h.b16 %v4702
  %v4798 = vunpack.c.l.b16 %v4703
  %v4799 = vunpack.c.h.b16 %v4703
  %v4800 = vpack.c.b16 %v4740, %v4736
  %v4801 = vpack.c.b16 %v4741, %v4737
  %v4802 = vpack.c.b16 %v4742, %v4738
  %v4803 = vpack.c.b16 %v4743, %v4739
  %v4804 = vpack.c.b16 %v4748, %v4744
  %v4805 = vpack.c.b16 %v4749, %v4745
  %v4806 = vpack.c.b16 %v4750, %v4746
  %v4807 = vpack.c.b16 %v4751, %v4747
  %v4808 = vpack.c.b16 %v4756, %v4752
  %v4809 = vpack.c.b16 %v4757, %v4753
  %v4810 = vpack.c.b16 %v4758, %v4754
  %v4811 = vpack.c.b16 %v4759, %v4755
  %v4812 = vpack.c.b16 %v4764, %v4760
  %v4813 = vpack.c.b16 %v4765, %v4761
  %v4814 = vpack.c.b16 %v4766, %v4762
  %v4815 = vpack.c.b16 %v4767, %v4763
  %v4816 = vpack.c.b16 %v4772, %v4768
  %v4817 = vpack.c.b16 %v4773, %v4769
  %v4818 = vpack.c.b16 %v4774, %v4770
  %v4819 = vpack.c.b16 %v4775, %v4771
  %v4820 = vpack.c.b16 %v4780, %v4776
  %v4821 = vpack.c.b16 %v4781, %v4777
  %v4822 = vpack.c.b16 %v4782, %v4778
  %v4823 = vpack.c.b16 %v4783, %v4779
  %v4824 = vpack.c.b16 %v4788, %v4784
  %v4825 = vpack.c.b16 %v4789, %v4785
  %v4826 = vpack.c.b16 %v4790, %v4786
  %v4827 = vpack.c.b16 %v4791, %v4787
  %v4828 = vpack.c.b16 %v4796, %v4792
  %v4829 = vpack.c.b16 %v4797, %v4793
  %v4830 = vpack.c.b16 %v4798, %v4794
  %v4831 = vpack.c.b16 %v4799, %v4795
  %4864 = vmatprep.subr.bf16.mxu0 %v4801
  %4865 = vmatpush1.bf16.msra.mxu0 %v4800
  %4866 = vmatprep.subr.bf16.mxu0 %v4805
  %4867 = vmatpush1.bf16.msra.mxu0 %v4804
  %4868 = vmatprep.subr.bf16.mxu0 %v4809
  %4869 = vmatpush1.bf16.msra.mxu0 %v4808
  %4870 = vmatprep.subr.bf16.mxu0 %v4813
  %4871 = vmatpush1.bf16.msra.mxu0 %v4812
  %4872 = vmatprep.subr.bf16.mxu0 %v4817
  %4873 = vmatpush1.bf16.msra.mxu0 %v4816
  %4874 = vmatprep.subr.bf16.mxu0 %v4821
  %4875 = vmatpush1.bf16.msra.mxu0 %v4820
  %4876 = vmatprep.subr.bf16.mxu0 %v4825
  %4877 = vmatpush1.bf16.msra.mxu0 %v4824
  %4878 = vmatprep.subr.bf16.mxu0 %v4829
  %4879 = vmatpush1.bf16.msra.mxu0 %v4828
  %4880 = vmatprep.subr.bf16.mxu0 0
  %4881 = vmatpush1.bf16.msra.mxu0 0
  %4882 = vmatprep.subr.bf16.mxu0 0
  %4883 = vmatpush1.bf16.msra.mxu0 0
  %4884 = vmatprep.subr.bf16.mxu0 0
  %4885 = vmatpush1.bf16.msra.mxu0 0
  %4886 = vmatprep.subr.bf16.mxu0 0
  %4887 = vmatpush1.bf16.msra.mxu0 0
  %4888 = vmatprep.subr.bf16.mxu0 0
  %4889 = vmatpush1.bf16.msra.mxu0 0
  %4890 = vmatprep.subr.bf16.mxu0 0
  %4891 = vmatpush1.bf16.msra.mxu0 0
  %4892 = vmatprep.subr.bf16.mxu0 0
  %4893 = vmatpush1.bf16.msra.mxu0 0
  %4894 = vmatprep.subr.bf16.mxu0 0
  %4895 = vmatpush1.bf16.msra.mxu0 0
  %4896 = vmatprep.mubr.bf16.mxu0 0
  %4897 = vmatmul.mubr.bf16.gmra.mrb[0].mxu0 %v4665
  %v4898 = vpop.f32.mrb[0].mxu0
  %v4899 = vadd.f32 0.0, %v4898
  %v4900 = vpop.f32.mrb[0].mxu0
  %v4901 = vadd.f32 0.0, %v4900
  %v4902 = vpop.f32.mrb[0].mxu0
  %v4903 = vpop.f32.mrb[0].mxu0
  %4904 = vdwg.mxu0
  %4905 = vmatprep.subr.bf16.mxu0 %v4803
  %4906 = vmatpush1.bf16.msra.mxu0 %v4802
  %4907 = vmatprep.subr.bf16.mxu0 %v4807
  %4908 = vmatpush1.bf16.msra.mxu0 %v4806
  %4909 = vmatprep.subr.bf16.mxu0 %v4811
  %4910 = vmatpush1.bf16.msra.mxu0 %v4810
  %4911 = vmatprep.subr.bf16.mxu0 %v4815
  %4912 = vmatpush1.bf16.msra.mxu0 %v4814
  %4913 = vmatprep.subr.bf16.mxu0 %v4819
  %4914 = vmatpush1.bf16.msra.mxu0 %v4818
  %4915 = vmatprep.subr.bf16.mxu0 %v4823
  %4916 = vmatpush1.bf16.msra.mxu0 %v4822
  %4917 = vmatprep.subr.bf16.mxu0 %v4827
  %4918 = vmatpush1.bf16.msra.mxu0 %v4826
  %4919 = vmatprep.subr.bf16.mxu0 %v4831
  %4920 = vmatpush1.bf16.msra.mxu0 %v4830
  %4921 = vmatprep.subr.bf16.mxu0 0
  %4922 = vmatpush1.bf16.msra.mxu0 0
  %4923 = vmatprep.subr.bf16.mxu0 0
  %4924 = vmatpush1.bf16.msra.mxu0 0
  %4925 = vmatprep.subr.bf16.mxu0 0
  %4926 = vmatpush1.bf16.msra.mxu0 0
  %4927 = vmatprep.subr.bf16.mxu0 0
  %4928 = vmatpush1.bf16.msra.mxu0 0
  %4929 = vmatprep.subr.bf16.mxu0 0
  %4930 = vmatpush1.bf16.msra.mxu0 0
  %4931 = vmatprep.subr.bf16.mxu0 0
  %4932 = vmatpush1.bf16.msra.mxu0 0
  %4933 = vmatprep.subr.bf16.mxu0 0
  %4934 = vmatpush1.bf16.msra.mxu0 0
  %4935 = vmatprep.subr.bf16.mxu0 0
  %4936 = vmatpush1.bf16.msra.mxu0 0
  %4937 = vmatprep.mubr.bf16.mxu0 0
  %4938 = vmatmul.mubr.bf16.gmra.mrb[0].mxu0 %v4665
  %v4939 = vpop.f32.mrb[0].mxu0
  %v4940 = vadd.f32 0.0, %v4939
  %v4941 = vpop.f32.mrb[0].mxu0
  %v4942 = vadd.f32 0.0, %v4941
  %v4943 = vpop.f32.mrb[0].mxu0
  %v4944 = vpop.f32.mrb[0].mxu0
  %4945 = vdwg.mxu0
  %v4950 = vcombine.low %v4899, %v4901
  %v4951 = vcombine.low %v4940, %v4942
  %v4953 = vunpack.c.l.s4 1983009808
  %v4954 = vunpack.c.0.s8 %v4953
  %v4955 = vlaneseq
  %v4956 = vshrl.u32 %v4955, 7
  %v4957 = vsub.s32 %v4954, %v4956
  %v4958 = vrot.slane %v4950, %v4957
  %v4960 = vunpack.c.l.s4 1983009808
  %v4961 = vunpack.c.0.s8 %v4960
  %v4962 = vlaneseq
  %v4963 = vshrl.u32 %v4962, 7
  %v4964 = vsub.s32 %v4961, %v4963
  %v4965 = vrot.slane %v4951, %v4964
  %v4966 = vcombine.low %v4958, %v4965
  %v4968 = vadd.f32 %v4671, %v4966
  %v4969 = vld [vmem:[%s0 + $0x8] sm:$0xff]
  %v4970 = vld [vmem:[%s2] sm:$0xff]
  %v4971 = vld [vmem:[%s2 + $0x8] sm:$0xff]
  %v4972 = vld [vmem:[%s2 + $0x10] sm:$0xff]
  %v4973 = vld [vmem:[%s2 + $0x18] sm:$0xff]
  %v4974 = vld [vmem:[%s2 + $0x20] sm:$0xff]
  %v4975 = vld [vmem:[%s2 + $0x28] sm:$0xff]
  %v4976 = vld [vmem:[%s2 + $0x30] sm:$0xff]
  %v4977 = vld [vmem:[%s2 + $0x38] sm:$0xff]
  %v4978 = vld [vmem:[%s2 + $0x40] sm:$0xff]
  %v4979 = vld [vmem:[%s2 + $0x48] sm:$0xff]
  %v4980 = vld [vmem:[%s2 + $0x50] sm:$0xff]
  %v4981 = vld [vmem:[%s2 + $0x58] sm:$0xff]
  %v4982 = vld [vmem:[%s2 + $0x60] sm:$0xff]
  %v4983 = vld [vmem:[%s2 + $0x68] sm:$0xff]
  %v4984 = vld [vmem:[%s2 + $0x70] sm:$0xff]
  %v4985 = vld [vmem:[%s2 + $0x78] sm:$0xff]
  %v4986 = vld [vmem:[%s2 + $0x80] sm:$0xff]
  %v4987 = vld [vmem:[%s2 + $0x88] sm:$0xff]
  %v4988 = vld [vmem:[%s2 + $0x90] sm:$0xff]
  %v4989 = vld [vmem:[%s2 + $0x98] sm:$0xff]
  %v4990 = vld [vmem:[%s2 + $0xa0] sm:$0xff]
  %v4991 = vld [vmem:[%s2 + $0xa8] sm:$0xff]
  %v4992 = vld [vmem:[%s2 + $0xb0] sm:$0xff]
  %v4993 = vld [vmem:[%s2 + $0xb8] sm:$0xff]
  %v4994 = vld [vmem:[%s2 + $0xc0] sm:$0xff]
  %v4995 = vld [vmem:[%s2 + $0xc8] sm:$0xff]
  %v4996 = vld [vmem:[%s2 + $0xd0] sm:$0xff]
  %v4997 = vld [vmem:[%s2 + $0xd8] sm:$0xff]
  %v4998 = vld [vmem:[%s2 + $0xe0] sm:$0xff]
  %v4999 = vld [vmem:[%s2 + $0xe8] sm:$0xff]
  %v5000 = vld [vmem:[%s2 + $0xf0] sm:$0xff]
  %v5001 = vld [vmem:[%s2 + $0xf8] sm:$0xff]
  %v5034 = vunpack.c.l.b16 %v4970
  %v5035 = vunpack.c.h.b16 %v4970
  %v5036 = vunpack.c.l.b16 %v4971
  %v5037 = vunpack.c.h.b16 %v4971
  %v5038 = vunpack.c.l.b16 %v4972
  %v5039 = vunpack.c.h.b16 %v4972
  %v5040 = vunpack.c.l.b16 %v4973
  %v5041 = vunpack.c.h.b16 %v4973
  %v5042 = vunpack.c.l.b16 %v4974
  %v5043 = vunpack.c.h.b16 %v4974
  %v5044 = vunpack.c.l.b16 %v4975
  %v5045 = vunpack.c.h.b16 %v4975
  %v5046 = vunpack.c.l.b16 %v4976
  %v5047 = vunpack.c.h.b16 %v4976
  %v5048 = vunpack.c.l.b16 %v4977
  %v5049 = vunpack.c.h.b16 %v4977
  %v5050 = vunpack.c.l.b16 %v4978
  %v5051 = vunpack.c.h.b16 %v4978
  %v5052 = vunpack.c.l.b16 %v4979
  %v5053 = vunpack.c.h.b16 %v4979
  %v5054 = vunpack.c.l.b16 %v4980
  %v5055 = vunpack.c.h.b16 %v4980
  %v5056 = vunpack.c.l.b16 %v4981
  %v5057 = vunpack.c.h.b16 %v4981
  %v5058 = vunpack.c.l.b16 %v4982
  %v5059 = vunpack.c.h.b16 %v4982
  %v5060 = vunpack.c.l.b16 %v4983
  %v5061 = vunpack.c.h.b16 %v4983
  %v5062 = vunpack.c.l.b16 %v4984
  %v5063 = vunpack.c.h.b16 %v4984
  %v5064 = vunpack.c.l.b16 %v4985
  %v5065 = vunpack.c.h.b16 %v4985
  %v5066 = vunpack.c.l.b16 %v4986
  %v5067 = vunpack.c.h.b16 %v4986
  %v5068 = vunpack.c.l.b16 %v4987
  %v5069 = vunpack.c.h.b16 %v4987
  %v5070 = vunpack.c.l.b16 %v4988
  %v5071 = vunpack.c.h.b16 %v4988
  %v5072 = vunpack.c.l.b16 %v4989
  %v5073 = vunpack.c.h.b16 %v4989
  %v5074 = vunpack.c.l.b16 %v4990
  %v5075 = vunpack.c.h.b16 %v4990
  %v5076 = vunpack.c.l.b16 %v4991
  %v5077 = vunpack.c.h.b16 %v4991
  %v5078 = vunpack.c.l.b16 %v4992
  %v5079 = vunpack.c.h.b16 %v4992
  %v5080 = vunpack.c.l.b16 %v4993
  %v5081 = vunpack.c.h.b16 %v4993
  %v5082 = vunpack.c.l.b16 %v4994
  %v5083 = vunpack.c.h.b16 %v4994
  %v5084 = vunpack.c.l.b16 %v4995
  %v5085 = vunpack.c.h.b16 %v4995
  %v5086 = vunpack.c.l.b16 %v4996
  %v5087 = vunpack.c.h.b16 %v4996
  %v5088 = vunpack.c.l.b16 %v4997
  %v5089 = vunpack.c.h.b16 %v4997
  %v5090 = vunpack.c.l.b16 %v4998
  %v5091 = vunpack.c.h.b16 %v4998
  %v5092 = vunpack.c.l.b16 %v4999
  %v5093 = vunpack.c.h.b16 %v4999
  %v5094 = vunpack.c.l.b16 %v5000
  %v5095 = vunpack.c.h.b16 %v5000
  %v5096 = vunpack.c.l.b16 %v5001
  %v5097 = vunpack.c.h.b16 %v5001
  %v5098 = vpack.c.b16 %v5038, %v5034
  %v5099 = vpack.c.b16 %v5039, %v5035
  %v5100 = vpack.c.b16 %v5040, %v5036
  %v5101 = vpack.c.b16 %v5041, %v5037
  %v5102 = vpack.c.b16 %v5046, %v5042
  %v5103 = vpack.c.b16 %v5047, %v5043
  %v5104 = vpack.c.b16 %v5048, %v5044
  %v5105 = vpack.c.b16 %v5049, %v5045
  %v5106 = vpack.c.b16 %v5054, %v5050
  %v5107 = vpack.c.b16 %v5055, %v5051
  %v5108 = vpack.c.b16 %v5056, %v5052
  %v5109 = vpack.c.b16 %v5057, %v5053
  %v5110 = vpack.c.b16 %v5062, %v5058
  %v5111 = vpack.c.b16 %v5063, %v5059
  %v5112 = vpack.c.b16 %v5064, %v5060
  %v5113 = vpack.c.b16 %v5065, %v5061
  %v5114 = vpack.c.b16 %v5070, %v5066
  %v5115 = vpack.c.b16 %v5071, %v5067
  %v5116 = vpack.c.b16 %v5072, %v5068
  %v5117 = vpack.c.b16 %v5073, %v5069
  %v5118 = vpack.c.b16 %v5078, %v5074
  %v5119 = vpack.c.b16 %v5079, %v5075
  %v5120 = vpack.c.b16 %v5080, %v5076
  %v5121 = vpack.c.b16 %v5081, %v5077
  %v5122 = vpack.c.b16 %v5086, %v5082
  %v5123 = vpack.c.b16 %v5087, %v5083
  %v5124 = vpack.c.b16 %v5088, %v5084
  %v5125 = vpack.c.b16 %v5089, %v5085
  %v5126 = vpack.c.b16 %v5094, %v5090
  %v5127 = vpack.c.b16 %v5095, %v5091
  %v5128 = vpack.c.b16 %v5096, %v5092
  %v5129 = vpack.c.b16 %v5097, %v5093
  %5162 = vmatprep.subr.bf16.mxu0 %v5099
  %5163 = vmatpush1.bf16.msra.mxu0 %v5098
  %5164 = vmatprep.subr.bf16.mxu0 %v5103
  %5165 = vmatpush1.bf16.msra.mxu0 %v5102
  %5166 = vmatprep.subr.bf16.mxu0 %v5107
  %5167 = vmatpush1.bf16.msra.mxu0 %v5106
  %5168 = vmatprep.subr.bf16.mxu0 %v5111
  %5169 = vmatpush1.bf16.msra.mxu0 %v5110
  %5170 = vmatprep.subr.bf16.mxu0 %v5115
  %5171 = vmatpush1.bf16.msra.mxu0 %v5114
  %5172 = vmatprep.subr.bf16.mxu0 %v5119
  %5173 = vmatpush1.bf16.msra.mxu0 %v5118
  %5174 = vmatprep.subr.bf16.mxu0 %v5123
  %5175 = vmatpush1.bf16.msra.mxu0 %v5122
  %5176 = vmatprep.subr.bf16.mxu0 %v5127
  %5177 = vmatpush1.bf16.msra.mxu0 %v5126
  %5178 = vmatprep.subr.bf16.mxu0 0
  %5179 = vmatpush1.bf16.msra.mxu0 0
  %5180 = vmatprep.subr.bf16.mxu0 0
  %5181 = vmatpush1.bf16.msra.mxu0 0
  %5182 = vmatprep.subr.bf16.mxu0 0
  %5183 = vmatpush1.bf16.msra.mxu0 0
  %5184 = vmatprep.subr.bf16.mxu0 0
  %5185 = vmatpush1.bf16.msra.mxu0 0
  %5186 = vmatprep.subr.bf16.mxu0 0
  %5187 = vmatpush1.bf16.msra.mxu0 0
  %5188 = vmatprep.subr.bf16.mxu0 0
  %5189 = vmatpush1.bf16.msra.mxu0 0
  %5190 = vmatprep.subr.bf16.mxu0 0
  %5191 = vmatpush1.bf16.msra.mxu0 0
  %5192 = vmatprep.subr.bf16.mxu0 0
  %5193 = vmatpush1.bf16.msra.mxu0 0
  %5194 = vmatprep.mubr.bf16.mxu0 0
  %5195 = vmatmul.mubr.bf16.gmra.mrb[0].mxu0 %v4668
  %v5196 = vpop.f32.mrb[0].mxu0
  %v5197 = vadd.f32 0.0, %v5196
  %v5198 = vpop.f32.mrb[0].mxu0
  %v5199 = vadd.f32 0.0, %v5198
  %v5200 = vpop.f32.mrb[0].mxu0
  %v5201 = vpop.f32.mrb[0].mxu0
  %5202 = vdwg.mxu0
  %5203 = vmatprep.subr.bf16.mxu0 %v5101
  %5204 = vmatpush1.bf16.msra.mxu0 %v5100
  %5205 = vmatprep.subr.bf16.mxu0 %v5105
  %5206 = vmatpush1.bf16.msra.mxu0 %v5104
  %5207 = vmatprep.subr.bf16.mxu0 %v5109
  %5208 = vmatpush1.bf16.msra.mxu0 %v5108
  %5209 = vmatprep.subr.bf16.mxu0 %v5113
  %5210 = vmatpush1.bf16.msra.mxu0 %v5112
  %5211 = vmatprep.subr.bf16.mxu0 %v5117
  %5212 = vmatpush1.bf16.msra.mxu0 %v5116
  %5213 = vmatprep.subr.bf16.mxu0 %v5121
  %5214 = vmatpush1.bf16.msra.mxu0 %v5120
  %5215 = vmatprep.subr.bf16.mxu0 %v5125
  %5216 = vmatpush1.bf16.msra.mxu0 %v5124
  %5217 = vmatprep.subr.bf16.mxu0 %v5129
  %5218 = vmatpush1.bf16.msra.mxu0 %v5128
  %5219 = vmatprep.subr.bf16.mxu0 0
  %5220 = vmatpush1.bf16.msra.mxu0 0
  %5221 = vmatprep.subr.bf16.mxu0 0
  %5222 = vmatpush1.bf16.msra.mxu0 0
  %5223 = vmatprep.subr.bf16.mxu0 0
  %5224 = vmatpush1.bf16.msra.mxu0 0
  %5225 = vmatprep.subr.bf16.mxu0 0
  %5226 = vmatpush1.bf16.msra.mxu0 0
  %5227 = vmatprep.subr.bf16.mxu0 0
  %5228 = vmatpush1.bf16.msra.mxu0 0
  %5229 = vmatprep.subr.bf16.mxu0 0
  %5230 = vmatpush1.bf16.msra.mxu0 0
  %5231 = vmatprep.subr.bf16.mxu0 0
  %5232 = vmatpush1.bf16.msra.mxu0 0
  %5233 = vmatprep.subr.bf16.mxu0 0
  %5234 = vmatpush1.bf16.msra.mxu0 0
  %5235 = vmatprep.mubr.bf16.mxu0 0
  %5236 = vmatmul.mubr.bf16.gmra.mrb[0].mxu0 %v4668
  %v5237 = vpop.f32.mrb[0].mxu0
  %v5238 = vadd.f32 0.0, %v5237
  %v5239 = vpop.f32.mrb[0].mxu0
  %v5240 = vadd.f32 0.0, %v5239
  %v5241 = vpop.f32.mrb[0].mxu0
  %v5242 = vpop.f32.mrb[0].mxu0
  %5243 = vdwg.mxu0
  %v5248 = vcombine.low %v5197, %v5199
  %v5249 = vcombine.low %v5238, %v5240
  %v5251 = vunpack.c.l.s4 1983009808
  %v5252 = vunpack.c.0.s8 %v5251
  %v5253 = vlaneseq
  %v5254 = vshrl.u32 %v5253, 7
  %v5255 = vsub.s32 %v5252, %v5254
  %v5256 = vrot.slane %v5248, %v5255
  %v5258 = vunpack.c.l.s4 1983009808
  %v5259 = vunpack.c.0.s8 %v5258
  %v5260 = vlaneseq
  %v5261 = vshrl.u32 %v5260, 7
  %v5262 = vsub.s32 %v5259, %v5261
  %v5263 = vrot.slane %v5249, %v5262
  %v5264 = vcombine.low %v5256, %v5263
  %v5266 = vadd.f32 %v4969, %v5264
  %v5267 = vxor.u32 %v4968, 2147483648
  %v5268 = vmul.f32 %v5267, 1.442695
  %v5269 = vpow.pop %v5268
  %v5270 = vadd.f32 %v5269, 1.0
  %v5271 = vrcp.pop %v5270
  %v5272 = vmul.f32 1.0, %v5271
  %v5274 = vrot.slane %v4968, 2
  %v5276 = vxor.u32 %v5274, 2147483648
  %v5277 = vmul.f32 %v5276, 1.442695
  %v5278 = vpow.pop %v5277
  %v5279 = vadd.f32 %v5278, 1.0
  %v5280 = vrcp.pop %v5279
  %v5281 = vmul.f32 1.0, %v5280
  %v5282 = vrot.slane %v4968, 4
  %v5284 = vtanh.pop %v5282
  %v5285 = vrot.slane %v4968, 6
  %v5287 = vxor.u32 %v5285, 2147483648
  %v5288 = vmul.f32 %v5287, 1.442695
  %v5289 = vpow.pop %v5288
  %v5290 = vadd.f32 %v5289, 1.0
  %v5291 = vrcp.pop %v5290
  %v5292 = vmul.f32 1.0, %v5291
  %v5293 = vmul.f32 %v5281, %v4631
  %v5294 = vmul.f32 %v5272, %v5284
  %v5295 = vadd.f32 %v5293, %v5294
  %v5296 = vtanh.pop %v5295
  %v5297 = vmul.f32 %v5292, %v5296
  %v5298 = vxor.u32 %v5266, 2147483648
  %v5299 = vmul.f32 %v5298, 1.442695
  %v5300 = vpow.pop %v5299
  %v5301 = vadd.f32 %v5300, 1.0
  %v5302 = vrcp.pop %v5301
  %v5303 = vmul.f32 1.0, %v5302
  %v5305 = vrot.slane %v5266, 2
  %v5307 = vxor.u32 %v5305, 2147483648
  %v5308 = vmul.f32 %v5307, 1.442695
  %v5309 = vpow.pop %v5308
  %v5310 = vadd.f32 %v5309, 1.0
  %v5311 = vrcp.pop %v5310
  %v5312 = vmul.f32 1.0, %v5311
  %v5313 = vrot.slane %v5266, 4
  %v5315 = vtanh.pop %v5313
  %v5316 = vrot.slane %v5266, 6
  %v5318 = vxor.u32 %v5316, 2147483648
  %v5319 = vmul.f32 %v5318, 1.442695
  %v5320 = vpow.pop %v5319
  %v5321 = vadd.f32 %v5320, 1.0
  %v5322 = vrcp.pop %v5321
  %v5323 = vmul.f32 1.0, %v5322
  %v5324 = vmul.f32 %v5312, %v4662
  %v5325 = vmul.f32 %v5303, %v5315
  %v5326 = vadd.f32 %v5324, %v5325
  %v5327 = vtanh.pop %v5326
  %v5328 = vmul.f32 %v5323, %v5327
  %v5329 = vpack.c.bf16 %v5297, %v5297
  %s5330 = scalar_lea.vmem %s3, 7
  %5331 = vst [vmem:[%s5330] sm:$0x1] %v5329
  %v5332 = vpack.c.bf16 %v5328, %v5328
  %5333 = vst [vmem:[%s4] sm:$0x1] %v5332
  // Predicated region
  $region14: #{lstm_model_forward.6} parent=0 // pred_check
    _
  $region15: #{lstm_model_forward.6} parent=0 // pred_check_branch
    %5335 = sbr.rel (0) target = $region17
  $region16: #{lstm_model_forward.6} parent=0 // pred_region
    _
  $region17: #{lstm_model_forward.6} parent=0 // pred_fallthru
    _
  // Predicated region
  $region18: #{lstm_model_forward.6} parent=0 // pred_check
    _
  $region19: #{lstm_model_forward.6} parent=0 // pred_check_branch
    %5337 = sbr.rel (0) target = $region21
  $region20: #{lstm_model_forward.6} parent=0 // pred_region
    _
  $region21: #{lstm_model_forward.6} parent=0 // pred_fallthru
    _
  // Predicated region
  $region22: #{lstm_model_forward.6} parent=0 // pred_check
    _
  $region23: #{lstm_model_forward.6} parent=0 // pred_check_branch
    %5339 = sbr.rel (0) target = $region25
  $region24: #{lstm_model_forward.6} parent=0 // pred_region
    _
  $region25: #{lstm_model_forward.6} parent=0 // pred_fallthru
    _
  // Predicated region
  $region26: #{lstm_model_forward.6} parent=0 // pred_check
    _
  $region27: #{lstm_model_forward.6} parent=0 // pred_check_branch
    %5341 = sbr.rel (0) target = $region29
  $region28: #{lstm_model_forward.6} parent=0 // pred_region
    _
  $region29: #{lstm_model_forward.6} parent=0 // pred_fallthru
    _

</llo_original>
